<compile_context>
chip_gen: v7x
topology: tpu7x:2x2x1
jax: 0.10.0
libtpu: 0.0.40
codegen_flags: <defaults>
</compile_context>

<pallas_src>
import functools

import jax
import jax.numpy as jnp
from jax import lax
from jax.experimental import pallas as pl
from jax.experimental.pallas import tpu as pltpu

DILATIONS = (12, 24, 36)
LANE = 128
SUBTILE = 16          # bf16 sublane tile (2-way packed rows of 8 sublanes)


def _round_up(x, m):
    return (x + m - 1) // m * m


def _aspp_kernel(x_hbm, w1_ref, w3_ref, wp_ref, wproj_ref, scale_ref, bias_ref,
                 out_ref, xpad_ref, copy_sem, *, H, W, Wq, Cin, Cout, ph, pw):
    """Full ASPP forward for one batch element (grid axis = batch)."""
    n = pl.program_id(0)
    Wtot = xpad_ref.shape[1]

    # Kick off the HBM -> VMEM DMA of this image into the interior of the
    # zero-halo scratch buffer.
    copy = pltpu.make_async_copy(
        x_hbm.at[n],
        xpad_ref.at[pl.ds(ph, H), pl.ds(pw, W), :],
        copy_sem)
    copy.start()

    # Zero only the halo *frame* (the interior is fully overwritten by the
    # DMA). The frame is disjoint from the DMA destination, so this overlaps
    # with the copy. Rebuilt every grid step so it is correct when the batch
    # axis is sharded across TensorCores.
    if ph > 0:
        xpad_ref[pl.ds(0, ph), :, :] = jnp.zeros((ph, Wtot, Cin), jnp.bfloat16)
        xpad_ref[pl.ds(ph + H, ph), :, :] = jnp.zeros((ph, Wtot, Cin), jnp.bfloat16)
    if pw > 0:
        xpad_ref[pl.ds(ph, H), pl.ds(0, pw), :] = jnp.zeros((H, pw, Cin), jnp.bfloat16)
    rpad = Wtot - pw - W
    if rpad > 0:
        xpad_ref[pl.ds(ph, H), pl.ds(pw + W, rpad), :] = (
            jnp.zeros((H, rpad, Cin), jnp.bfloat16))

    sc = scale_ref[...]                      # (6, Cout) folded BN scales (f32)
    bs = bias_ref[...]                       # (6, Cout) folded BN biases (f32)

    def bn_relu(y, idx):                     # y: (rows, Cout) f32, VPU in f32
        return jnp.maximum(y * sc[idx][None, :] + bs[idx][None, :], 0.0)

    copy.wait()

    def patch2d(row0, col0):
        # (H, Wq, Cin) shifted window collapsed to (H*Wq, Cin). Wq % 16 == 0,
        # so the collapse preserves the bf16 (16, 128) vreg tiling -> no
        # relayout copy is needed for any tap.
        return xpad_ref[pl.ds(row0, H), pl.ds(col0, Wq), :].reshape(H * Wq, Cin)

    xc = patch2d(ph, pw)                     # center view of the padded image

    # Branch 0: 1x1 conv -> BN -> ReLU, immediately folded into the projection
    # so only one branch activation and the projection accumulator stay live.
    b0 = bn_relu(jnp.dot(xc, w1_ref[...], preferred_element_type=jnp.float32), 0)
    proj = jnp.dot(b0.astype(jnp.bfloat16), wproj_ref[pl.ds(0, Cout), :],
                   preferred_element_type=jnp.float32)

    # Branches 1..3: 3x3 dilated conv (padding == dilation) -> BN -> ReLU as
    # shifted-window channel matmuls (MXU path), fused into the projection.
    # Taps whose shifted window lies entirely in zero padding for every real
    # output pixel are skipped at trace time.
    for bi, d in enumerate(DILATIONS):
        acc = jnp.dot(xc, w3_ref[bi, 1, 1], preferred_element_type=jnp.float32)
        for kh in range(3):
            if kh != 1 and d >= H:
                continue                     # rows entirely in zero padding
            for kw in range(3):
                if kh == 1 and kw == 1:
                    continue                 # center tap handled above
                if kw != 1 and d >= W:
                    continue                 # cols entirely in zero padding
                p = patch2d(ph + (kh - 1) * d, pw + (kw - 1) * d)
                acc = acc + jnp.dot(p, w3_ref[bi, kh, kw],
                                    preferred_element_type=jnp.float32)
        # NOTE: rounding the branch activation to bf16 before the projection
        # matmul is deliberate mixed precision (main contributor to the test
        # tolerance); accumulation stays f32.
        br = bn_relu(acc, 1 + bi).astype(jnp.bfloat16)
        proj = proj + jnp.dot(br, wproj_ref[pl.ds((1 + bi) * Cout, Cout), :],
                              preferred_element_type=jnp.float32)

    # Branch 4: AdaptiveAvgPool2d(1) -> 1x1 conv -> BN -> ReLU -> bilinear
    # upsample of a 1x1 map == spatial broadcast. Rank-1 in space: project the
    # single pooled row and broadcast-add it. The mean is accumulated in f32
    # in 8-row chunks so no full-image f32 temporary is materialized, and it
    # only covers the real H x W region (not the zero halo / width padding).
    xsum = jnp.zeros((1, Cin), jnp.float32)
    for h0 in range(0, H, 8):
        rows = min(8, H - h0)
        blk = xpad_ref[pl.ds(ph + h0, rows), pl.ds(pw, W), :].astype(jnp.float32)
        xsum = xsum + jnp.sum(jnp.sum(blk, axis=0), axis=0, keepdims=True)
    xmean = xsum * (1.0 / (H * W))                                       # (1, Cin)
    pooled = bn_relu(jnp.dot(xmean.astype(jnp.bfloat16), wp_ref[...],
                             preferred_element_type=jnp.float32), 4)     # (1, Cout)
    proj = proj + jnp.dot(pooled.astype(jnp.bfloat16),
                          wproj_ref[pl.ds(4 * Cout, Cout), :],
                          preferred_element_type=jnp.float32)            # bcast row

    # TODO(synk): nn.Dropout(0.5) is identity in eval mode; no kernel-side op.
    # bf16 output (lane-dense (H*Wq, Cpo) block) -> half the vst / writeback
    # bytes; the f32 cast for PyTorch parity happens in the wrapper.
    out_ref[0] = bn_relu(proj, 5).astype(jnp.bfloat16)


def aspp_forward(x_nchw, params):
    """Pallas ASPP forward. Input NCHW, output NCHW (matches PyTorch)."""
    N, Cin, H, W = x_nchw.shape
    Cout = params["w1"].shape[-1]
    Cpi = max(LANE, _round_up(Cin, LANE))     # lane-dense channel counts
    Cpo = max(LANE, _round_up(Cout, LANE))
    # TODO(synk): at production Cout=256, Cpo naturally matches the v6e/v7x
    # 256-wide MXU tile; nothing to tune at this toy size.
    Wq = _round_up(W, SUBTILE)                # padded compute width: free collapses
    # Halo only as large as the dilations that can actually reach real pixels;
    # column halo rounded up to the bf16 sublane tile for aligned center loads.
    ph = max([d for d in DILATIONS if d < H], default=0)
    pw_need = max([d for d in DILATIONS if d < W], default=0)
    pw = _round_up(pw_need, SUBTILE) if pw_need > 0 else 0
    Hp = H + 2 * ph
    Wtot = 2 * pw + Wq

    # NCHW -> NHWC (channels on lanes), pad channels, cast to bf16 for the MXU.
    x = jnp.transpose(x_nchw, (0, 2, 3, 1))
    x = jnp.pad(x, ((0, 0), (0, 0), (0, 0), (0, Cpi - Cin))).astype(jnp.bfloat16)

    def pad_mat(w):                            # (Cin, Cout) -> (Cpi, Cpo)
        return jnp.pad(w, ((0, Cpi - Cin), (0, Cpo - Cout))).astype(jnp.bfloat16)

    w1 = pad_mat(params["w1"])
    wp = pad_mat(params["wp"])
    w3 = jnp.pad(params["w3"], ((0, 0), (0, 0), (0, 0),
                                (0, Cpi - Cin), (0, Cpo - Cout))).astype(jnp.bfloat16)
    # Keep the per-branch chunks of the projection weight aligned to Cpo rows.
    wproj = params["wproj"].reshape(5, Cout, Cout)
    wproj = jnp.pad(wproj, ((0, 0), (0, Cpo - Cout), (0, Cpo - Cout)))
    wproj = wproj.reshape(5 * Cpo, Cpo).astype(jnp.bfloat16)
    scale = jnp.pad(params["scale"], ((0, 0), (0, Cpo - Cout))).astype(jnp.float32)
    bias = jnp.pad(params["bias"], ((0, 0), (0, Cpo - Cout))).astype(jnp.float32)

    kernel = functools.partial(_aspp_kernel, H=H, W=W, Wq=Wq, Cin=Cpi, Cout=Cpo,
                               ph=ph, pw=pw)

    def full(arr):
        nd = arr.ndim
        return pl.BlockSpec(arr.shape, lambda n, _nd=nd: (0,) * _nd)

    # Explicit scoped-VMEM limit per generation (~100 MiB on 128 MiB chips,
    # ~80% of physical on v7x's 64 MiB); conservative fallback if unqueryable.
    try:
        vmem_cap = int(pltpu.get_tpu_info().vmem_capacity_bytes)
    except Exception:
        vmem_cap = 64 << 20
    vmem_limit = min(100 << 20, int(vmem_cap * 0.8))

    out2d = pl.pallas_call(
        kernel,
        out_shape=jax.ShapeDtypeStruct((N, H * Wq, Cpo), jnp.bfloat16),
        grid=(N,),
        in_specs=[
            pl.BlockSpec(memory_space=pl.ANY),   # x stays in HBM; manual DMA
            full(w1), full(w3), full(wp), full(wproj), full(scale), full(bias),
        ],
        out_specs=pl.BlockSpec((1, H * Wq, Cpo), lambda n: (n, 0, 0)),
        scratch_shapes=[
            pltpu.VMEM((Hp, Wtot, Cpi), jnp.bfloat16),   # zero-halo image buffer
            pltpu.SemaphoreType.DMA(()),
        ],
        compiler_params=pltpu.CompilerParams(
            dimension_semantics=("parallel",),
            vmem_limit_bytes=vmem_limit),
    )(x, w1, w3, wp, wproj, scale, bias)

    out = out2d.reshape(N, H, Wq, Cpo)[:, :, :W, :Cout]
    return jnp.transpose(out, (0, 3, 1, 2)).astype(jnp.float32)


def init_params(key, Cin, Cout):
    """Deterministic synthetic parameters (shapes follow ASPP.__init__)."""
    ks = jax.random.split(key, 8)
    w1 = 0.1 * jax.random.normal(ks[0], (Cin, Cout), jnp.float32)              # 1x1 conv
    w3 = 0.05 * jax.random.normal(ks[1], (3, 3, 3, Cin, Cout), jnp.float32)    # 3 dilated 3x3 convs (HWIO)
    wp = 0.1 * jax.random.normal(ks[2], (Cin, Cout), jnp.float32)              # pooling-branch 1x1 conv
    wproj = 0.05 * jax.random.normal(ks[3], (5 * Cout, Cout), jnp.float32)     # project 1x1 conv
    # 6 BatchNorm layers (5 branches + project), eval mode, folded:
    gamma = 1.0 + 0.1 * jax.random.normal(ks[4], (6, Cout), jnp.float32)
    beta = 0.1 * jax.random.normal(ks[5], (6, Cout), jnp.float32)
    rmean = 0.1 * jax.random.normal(ks[6], (6, Cout), jnp.float32)
    rvar = 1.0 + 0.1 * jax.random.uniform(ks[7], (6, Cout), jnp.float32)
    eps = 1e-5
    scale = gamma * lax.rsqrt(rvar + eps)
    bias = beta - rmean * scale
    return dict(w1=w1, w3=w3, wp=wp, wproj=wproj, scale=scale, bias=bias)


def aspp_reference(x_nchw, params):
    """Pure-JAX fp32 reference (lax.conv_general_dilated), identical semantics."""
    x = jnp.transpose(x_nchw, (0, 2, 3, 1)).astype(jnp.float32)
    N, H, W, Cin = x.shape
    Cout = params["w1"].shape[-1]
    sc, bs = params["scale"], params["bias"]
    dn = ("NHWC", "HWIO", "NHWC")

    def bn_relu(y, i):
        return jnp.maximum(y * sc[i] + bs[i], 0.0)

    b0 = bn_relu(lax.conv_general_dilated(
        x, params["w1"].reshape(1, 1, Cin, Cout), (1, 1), "VALID",
        dimension_numbers=dn), 0)
    branches = [b0]
    for bi, d in enumerate(DILATIONS):
        y = lax.conv_general_dilated(
            x, params["w3"][bi], (1, 1), [(d, d), (d, d)],
            rhs_dilation=(d, d), dimension_numbers=dn)
        branches.append(bn_relu(y, 1 + bi))
    xmean = jnp.mean(x, axis=(1, 2), keepdims=True)                 # (N,1,1,Cin)
    pooled = bn_relu(jnp.einsum("nijc,cd->nijd", xmean, params["wp"]), 4)
    branches.append(jnp.broadcast_to(pooled, (N, H, W, Cout)))
    cat = jnp.concatenate(branches, axis=-1)
    out = bn_relu(jnp.einsum("nhwc,cd->nhwd", cat, params["wproj"]), 5)
    return jnp.transpose(out, (0, 3, 1, 2))


if __name__ == "__main__":
    N, Cin, Cout, H, W = 2, 8, 8, 16, 16
    key = jax.random.PRNGKey(0)
    kx, kp = jax.random.split(key)
    x = jax.random.normal(kx, (N, Cin, H, W), jnp.float32)   # NCHW, like PyTorch
    params = init_params(kp, Cin, Cout)

    out = jax.block_until_ready(aspp_forward(x, params))
    ref = jax.block_until_ready(aspp_reference(x, params))

    assert out.shape == (N, Cout, H, W), out.shape
    # bf16 MXU inputs + bf16 branch activations + bf16 kernel output (all with
    # f32 accumulation) vs a pure-f32 reference -> documented mixed-precision
    # tolerance.
    assert jnp.allclose(out, ref, rtol=3e-2, atol=3e-2), float(jnp.max(jnp.abs(out - ref)))
    print("KERNEL_OK")
</pallas_src>

<mosaic_0001>
module attributes {stable_mosaic.version = 11 : i64} {
  func.func @_aspp_kernel(%arg0: i32, %arg1: memref<2x16x16x128xbf16, #tpu.memory_space<any>>, %arg2: memref<128x128xbf16, #tpu.memory_space<vmem>>, %arg3: memref<3x3x3x128x128xbf16, #tpu.memory_space<vmem>>, %arg4: memref<128x128xbf16, #tpu.memory_space<vmem>>, %arg5: memref<640x128xbf16, #tpu.memory_space<vmem>>, %arg6: memref<6x128xf32, #tpu.memory_space<vmem>>, %arg7: memref<6x128xf32, #tpu.memory_space<vmem>>, %arg8: memref<1x256x128xbf16, #tpu.memory_space<vmem>>, %arg9: memref<40x48x128xbf16, #tpu.memory_space<vmem>>, %arg10: memref<!tpu.dma_semaphore, #tpu.memory_space<semaphore_mem>>) attributes {dimension_semantics = [#tpu.dimension_semantics<parallel>], iteration_bounds = array<i64: 2>, scalar_prefetch = 0 : i64, scratch_operands = 2 : i64, tpu.core_type = #tpu.core_type<tc>, window_params = [{}, {pipeline_mode = #tpu.pipeline_mode<synchronous>, transform_indices = @transform_1, window_bounds = array<i64: 128, 128>}, {pipeline_mode = #tpu.pipeline_mode<synchronous>, transform_indices = @transform_2, window_bounds = array<i64: 3, 3, 3, 128, 128>}, {pipeline_mode = #tpu.pipeline_mode<synchronous>, transform_indices = @transform_3, window_bounds = array<i64: 128, 128>}, {pipeline_mode = #tpu.pipeline_mode<synchronous>, transform_indices = @transform_4, window_bounds = array<i64: 640, 128>}, {pipeline_mode = #tpu.pipeline_mode<synchronous>, transform_indices = @transform_5, window_bounds = array<i64: 6, 128>}, {pipeline_mode = #tpu.pipeline_mode<synchronous>, transform_indices = @transform_6, window_bounds = array<i64: 6, 128>}, {transform_indices = @transform_7, window_bounds = array<i64: 1, 256, 128>}]} {
    %c0_i32 = arith.constant 0 : i32
    %c0_i32_0 = arith.constant 0 : i32
    %c0_i32_1 = arith.constant 0 : i32
    %0 = tpu.memref_slice %arg1[%arg0, %c0_i32, %c0_i32_0, %c0_i32_1] : memref<2x16x16x128xbf16, #tpu.memory_space<any>> -> memref<1x16x16x128xbf16, #tpu.memory_space<any>>
    %1 = tpu.memref_squeeze %0 : memref<1x16x16x128xbf16, #tpu.memory_space<any>> -> memref<16x16x128xbf16, #tpu.memory_space<any>>
    %c12_i32 = arith.constant 12 : i32
    %c16_i32 = arith.constant 16 : i32
    %c0_i32_2 = arith.constant 0 : i32
    %2 = tpu.memref_slice %arg9[%c12_i32, %c16_i32, %c0_i32_2] : memref<40x48x128xbf16, #tpu.memory_space<vmem>> -> memref<16x16x128xbf16, #tpu.memory_space<vmem>>
    tpu.enqueue_dma source(%1 : memref<16x16x128xbf16, #tpu.memory_space<any>>) target(%2 : memref<16x16x128xbf16, #tpu.memory_space<vmem>>) target_semaphore(%arg10 : memref<!tpu.dma_semaphore, #tpu.memory_space<semaphore_mem>>)
    %cst = arith.constant 0.000000e+00 : bf16
    %3 = vector.broadcast %cst : bf16 to vector<12x48x128xbf16>
    %c0 = arith.constant 0 : index
    %c0_3 = arith.constant 0 : index
    %c0_4 = arith.constant 0 : index
    %4 = vector.load %arg9[%c0, %c0_3, %c0_4] : memref<40x48x128xbf16, #tpu.memory_space<vmem>>, vector<12x48x128xbf16>
    tpu.vector_store %arg9[%c0, %c0_3, %c0_4], %3 {strides = array<i32>} : memref<40x48x128xbf16, #tpu.memory_space<vmem>>, vector<12x48x128xbf16>,
    %cst_5 = arith.constant 0.000000e+00 : bf16
    %5 = vector.broadcast %cst_5 : bf16 to vector<12x48x128xbf16>
    %c28 = arith.constant 28 : index
    %c0_6 = arith.constant 0 : index
    %c0_7 = arith.constant 0 : index
    %6 = vector.load %arg9[%c28, %c0_6, %c0_7] : memref<40x48x128xbf16, #tpu.memory_space<vmem>>, vector<12x48x128xbf16>
    tpu.vector_store %arg9[%c28, %c0_6, %c0_7], %5 {strides = array<i32>} : memref<40x48x128xbf16, #tpu.memory_space<vmem>>, vector<12x48x128xbf16>,
    %cst_8 = arith.constant 0.000000e+00 : bf16
    %7 = vector.broadcast %cst_8 : bf16 to vector<16x16x128xbf16>
    %c12 = arith.constant 12 : index
    %c0_9 = arith.constant 0 : index
    %c0_10 = arith.constant 0 : index
    %8 = vector.load %arg9[%c12, %c0_9, %c0_10] : memref<40x48x128xbf16, #tpu.memory_space<vmem>>, vector<16x16x128xbf16>
    tpu.vector_store %arg9[%c12, %c0_9, %c0_10], %7 {strides = array<i32>} : memref<40x48x128xbf16, #tpu.memory_space<vmem>>, vector<16x16x128xbf16>,
    %cst_11 = arith.constant 0.000000e+00 : bf16
    %9 = vector.broadcast %cst_11 : bf16 to vector<16x16x128xbf16>
    %c12_12 = arith.constant 12 : index
    %c32 = arith.constant 32 : index
    %c0_13 = arith.constant 0 : index
    %10 = vector.load %arg9[%c12_12, %c32, %c0_13] : memref<40x48x128xbf16, #tpu.memory_space<vmem>>, vector<16x16x128xbf16>
    tpu.vector_store %arg9[%c12_12, %c32, %c0_13], %9 {strides = array<i32>} : memref<40x48x128xbf16, #tpu.memory_space<vmem>>, vector<16x16x128xbf16>,
    %c0_14 = arith.constant 0 : index
    %c0_15 = arith.constant 0 : index
    %11 = vector.load %arg6[%c0_14, %c0_15] : memref<6x128xf32, #tpu.memory_space<vmem>>, vector<6x128xf32>
    %c0_16 = arith.constant 0 : index
    %c0_17 = arith.constant 0 : index
    %12 = vector.load %arg7[%c0_16, %c0_17] : memref<6x128xf32, #tpu.memory_space<vmem>>, vector<6x128xf32>
    %c0_i32_18 = arith.constant 0 : i32
    %c0_i32_19 = arith.constant 0 : i32
    %c0_i32_20 = arith.constant 0 : i32
    %13 = tpu.memref_slice %arg1[%arg0, %c0_i32_18, %c0_i32_19, %c0_i32_20] : memref<2x16x16x128xbf16, #tpu.memory_space<any>> -> memref<1x16x16x128xbf16, #tpu.memory_space<any>>
    %14 = tpu.memref_squeeze %13 : memref<1x16x16x128xbf16, #tpu.memory_space<any>> -> memref<16x16x128xbf16, #tpu.memory_space<any>>
    %c12_i32_21 = arith.constant 12 : i32
    %c16_i32_22 = arith.constant 16 : i32
    %c0_i32_23 = arith.constant 0 : i32
    %15 = tpu.memref_slice %arg9[%c12_i32_21, %c16_i32_22, %c0_i32_23] : memref<40x48x128xbf16, #tpu.memory_space<vmem>> -> memref<16x16x128xbf16, #tpu.memory_space<vmem>>
    tpu.wait_dma2 semaphore(%arg10 : memref<!tpu.dma_semaphore, #tpu.memory_space<semaphore_mem>>) src(%14 : memref<16x16x128xbf16, #tpu.memory_space<any>>) dst(%15 : memref<16x16x128xbf16, #tpu.memory_space<vmem>>)
    %c12_24 = arith.constant 12 : index
    %c16 = arith.constant 16 : index
    %c0_25 = arith.constant 0 : index
    %16 = vector.load %arg9[%c12_24, %c16, %c0_25] : memref<40x48x128xbf16, #tpu.memory_space<vmem>>, vector<16x16x128xbf16>
    %17 = vector.shape_cast %16 : vector<16x16x128xbf16> to vector<256x128xbf16>
    %c0_26 = arith.constant 0 : index
    %c0_27 = arith.constant 0 : index
    %18 = vector.load %arg2[%c0_26, %c0_27] : memref<128x128xbf16, #tpu.memory_space<vmem>>, vector<128x128xbf16>
    %cst_28 = arith.constant dense<0.000000e+00> : vector<256x128xf32>
    %19 = tpu.matmul %17, %18, %cst_28 {dimension_numbers = #tpu.dot_dimension_numbers<[1], [0], [0], [1], [0, 0, 1, 1], [], []>} : vector<256x128xbf16>, vector<128x128xbf16>, vector<256x128xf32> -> vector<256x128xf32>
    %20 = vector.extract_strided_slice %11 {offsets = [0, 0], sizes = [1, 128], strides = [1, 1]} : vector<6x128xf32> to vector<1x128xf32>
    %21 = vector.shape_cast %20 : vector<1x128xf32> to vector<128xf32>
    %22 = vector.shape_cast %21 : vector<128xf32> to vector<1x128xf32>
    %23 = vector.broadcast %22 : vector<1x128xf32> to vector<256x128xf32>
    %24 = arith.mulf %19, %23 : vector<256x128xf32>
    %25 = vector.extract_strided_slice %12 {offsets = [0, 0], sizes = [1, 128], strides = [1, 1]} : vector<6x128xf32> to vector<1x128xf32>
    %26 = vector.shape_cast %25 : vector<1x128xf32> to vector<128xf32>
    %27 = vector.shape_cast %26 : vector<128xf32> to vector<1x128xf32>
    %28 = vector.broadcast %27 : vector<1x128xf32> to vector<256x128xf32>
    %29 = arith.addf %24, %28 : vector<256x128xf32>
    %cst_29 = arith.constant 0.000000e+00 : f32
    %30 = vector.broadcast %cst_29 : f32 to vector<256x128xf32>
    %31 = arith.maximumf %29, %30 : vector<256x128xf32>
    %32 = arith.truncf %31 : vector<256x128xf32> to vector<256x128xbf16>
    %c0_30 = arith.constant 0 : index
    %c0_31 = arith.constant 0 : index
    %33 = vector.load %arg5[%c0_30, %c0_31] : memref<640x128xbf16, #tpu.memory_space<vmem>>, vector<128x128xbf16>
    %cst_32 = arith.constant dense<0.000000e+00> : vector<256x128xf32>
    %34 = tpu.matmul %32, %33, %cst_32 {dimension_numbers = #tpu.dot_dimension_numbers<[1], [0], [0], [1], [0, 0, 1, 1], [], []>} : vector<256x128xbf16>, vector<128x128xbf16>, vector<256x128xf32> -> vector<256x128xf32>
    %c0_33 = arith.constant 0 : index
    %c1 = arith.constant 1 : index
    %c1_34 = arith.constant 1 : index
    %c0_35 = arith.constant 0 : index
    %c0_36 = arith.constant 0 : index
    %35 = vector.load %arg3[%c0_33, %c1, %c1_34, %c0_35, %c0_36] : memref<3x3x3x128x128xbf16, #tpu.memory_space<vmem>>, vector<1x1x1x128x128xbf16>
    %36 = vector.shape_cast %35 : vector<1x1x1x128x128xbf16> to vector<128x128xbf16>
    %cst_37 = arith.constant dense<0.000000e+00> : vector<256x128xf32>
    %37 = tpu.matmul %17, %36, %cst_37 {dimension_numbers = #tpu.dot_dimension_numbers<[1], [0], [0], [1], [0, 0, 1, 1], [], []>} : vector<256x128xbf16>, vector<128x128xbf16>, vector<256x128xf32> -> vector<256x128xf32>
    %c0_38 = arith.constant 0 : index
    %c4 = arith.constant 4 : index
    %c0_39 = arith.constant 0 : index
    %38 = vector.load %arg9[%c0_38, %c4, %c0_39] : memref<40x48x128xbf16, #tpu.memory_space<vmem>>, vector<16x16x128xbf16>
    %39 = vector.shape_cast %38 : vector<16x16x128xbf16> to vector<256x128xbf16>
    %c0_40 = arith.constant 0 : index
    %c0_41 = arith.constant 0 : index
    %c0_42 = arith.constant 0 : index
    %c0_43 = arith.constant 0 : index
    %c0_44 = arith.constant 0 : index
    %40 = vector.load %arg3[%c0_40, %c0_41, %c0_42, %c0_43, %c0_44] : memref<3x3x3x128x128xbf16, #tpu.memory_space<vmem>>, vector<1x1x1x128x128xbf16>
    %41 = vector.shape_cast %40 : vector<1x1x1x128x128xbf16> to vector<128x128xbf16>
    %cst_45 = arith.constant dense<0.000000e+00> : vector<256x128xf32>
    %42 = tpu.matmul %39, %41, %cst_45 {dimension_numbers = #tpu.dot_dimension_numbers<[1], [0], [0], [1], [0, 0, 1, 1], [], []>} : vector<256x128xbf16>, vector<128x128xbf16>, vector<256x128xf32> -> vector<256x128xf32>
    %43 = arith.addf %37, %42 : vector<256x128xf32>
    %c0_46 = arith.constant 0 : index
    %c16_47 = arith.constant 16 : index
    %c0_48 = arith.constant 0 : index
    %44 = vector.load %arg9[%c0_46, %c16_47, %c0_48] : memref<40x48x128xbf16, #tpu.memory_space<vmem>>, vector<16x16x128xbf16>
    %45 = vector.shape_cast %44 : vector<16x16x128xbf16> to vector<256x128xbf16>
    %c0_49 = arith.constant 0 : index
    %c0_50 = arith.constant 0 : index
    %c1_51 = arith.constant 1 : index
    %c0_52 = arith.constant 0 : index
    %c0_53 = arith.constant 0 : index
    %46 = vector.load %arg3[%c0_49, %c0_50, %c1_51, %c0_52, %c0_53] : memref<3x3x3x128x128xbf16, #tpu.memory_space<vmem>>, vector<1x1x1x128x128xbf16>
    %47 = vector.shape_cast %46 : vector<1x1x1x128x128xbf16> to vector<128x128xbf16>
    %cst_54 = arith.constant dense<0.000000e+00> : vector<256x128xf32>
    %48 = tpu.matmul %45, %47, %cst_54 {dimension_numbers = #tpu.dot_dimension_numbers<[1], [0], [0], [1], [0, 0, 1, 1], [], []>} : vector<256x128xbf16>, vector<128x128xbf16>, vector<256x128xf32> -> vector<256x128xf32>
    %49 = arith.addf %43, %48 : vector<256x128xf32>
    %c0_55 = arith.constant 0 : index
    %c28_56 = arith.constant 28 : index
    %c0_57 = arith.constant 0 : index
    %50 = vector.load %arg9[%c0_55, %c28_56, %c0_57] : memref<40x48x128xbf16, #tpu.memory_space<vmem>>, vector<16x16x128xbf16>
    %51 = vector.shape_cast %50 : vector<16x16x128xbf16> to vector<256x128xbf16>
    %c0_58 = arith.constant 0 : index
    %c0_59 = arith.constant 0 : index
    %c2 = arith.constant 2 : index
    %c0_60 = arith.constant 0 : index
    %c0_61 = arith.constant 0 : index
    %52 = vector.load %arg3[%c0_58, %c0_59, %c2, %c0_60, %c0_61] : memref<3x3x3x128x128xbf16, #tpu.memory_space<vmem>>, vector<1x1x1x128x128xbf16>
    %53 = vector.shape_cast %52 : vector<1x1x1x128x128xbf16> to vector<128x128xbf16>
    %cst_62 = arith.constant dense<0.000000e+00> : vector<256x128xf32>
    %54 = tpu.matmul %51, %53, %cst_62 {dimension_numbers = #tpu.dot_dimension_numbers<[1], [0], [0], [1], [0, 0, 1, 1], [], []>} : vector<256x128xbf16>, vector<128x128xbf16>, vector<256x128xf32> -> vector<256x128xf32>
    %55 = arith.addf %49, %54 : vector<256x128xf32>
    %c12_63 = arith.constant 12 : index
    %c4_64 = arith.constant 4 : index
    %c0_65 = arith.constant 0 : index
    %56 = vector.load %arg9[%c12_63, %c4_64, %c0_65] : memref<40x48x128xbf16, #tpu.memory_space<vmem>>, vector<16x16x128xbf16>
    %57 = vector.shape_cast %56 : vector<16x16x128xbf16> to vector<256x128xbf16>
    %c0_66 = arith.constant 0 : index
    %c1_67 = arith.constant 1 : index
    %c0_68 = arith.constant 0 : index
    %c0_69 = arith.constant 0 : index
    %c0_70 = arith.constant 0 : index
    %58 = vector.load %arg3[%c0_66, %c1_67, %c0_68, %c0_69, %c0_70] : memref<3x3x3x128x128xbf16, #tpu.memory_space<vmem>>, vector<1x1x1x128x128xbf16>
    %59 = vector.shape_cast %58 : vector<1x1x1x128x128xbf16> to vector<128x128xbf16>
    %cst_71 = arith.constant dense<0.000000e+00> : vector<256x128xf32>
    %60 = tpu.matmul %57, %59, %cst_71 {dimension_numbers = #tpu.dot_dimension_numbers<[1], [0], [0], [1], [0, 0, 1, 1], [], []>} : vector<256x128xbf16>, vector<128x128xbf16>, vector<256x128xf32> -> vector<256x128xf32>
    %61 = arith.addf %55, %60 : vector<256x128xf32>
    %c12_72 = arith.constant 12 : index
    %c28_73 = arith.constant 28 : index
    %c0_74 = arith.constant 0 : index
    %62 = vector.load %arg9[%c12_72, %c28_73, %c0_74] : memref<40x48x128xbf16, #tpu.memory_space<vmem>>, vector<16x16x128xbf16>
    %63 = vector.shape_cast %62 : vector<16x16x128xbf16> to vector<256x128xbf16>
    %c0_75 = arith.constant 0 : index
    %c1_76 = arith.constant 1 : index
    %c2_77 = arith.constant 2 : index
    %c0_78 = arith.constant 0 : index
    %c0_79 = arith.constant 0 : index
    %64 = vector.load %arg3[%c0_75, %c1_76, %c2_77, %c0_78, %c0_79] : memref<3x3x3x128x128xbf16, #tpu.memory_space<vmem>>, vector<1x1x1x128x128xbf16>
    %65 = vector.shape_cast %64 : vector<1x1x1x128x128xbf16> to vector<128x128xbf16>
    %cst_80 = arith.constant dense<0.000000e+00> : vector<256x128xf32>
    %66 = tpu.matmul %63, %65, %cst_80 {dimension_numbers = #tpu.dot_dimension_numbers<[1], [0], [0], [1], [0, 0, 1, 1], [], []>} : vector<256x128xbf16>, vector<128x128xbf16>, vector<256x128xf32> -> vector<256x128xf32>
    %67 = arith.addf %61, %66 : vector<256x128xf32>
    %c24 = arith.constant 24 : index
    %c4_81 = arith.constant 4 : index
    %c0_82 = arith.constant 0 : index
    %68 = vector.load %arg9[%c24, %c4_81, %c0_82] : memref<40x48x128xbf16, #tpu.memory_space<vmem>>, vector<16x16x128xbf16>
    %69 = vector.shape_cast %68 : vector<16x16x128xbf16> to vector<256x128xbf16>
    %c0_83 = arith.constant 0 : index
    %c2_84 = arith.constant 2 : index
    %c0_85 = arith.constant 0 : index
    %c0_86 = arith.constant 0 : index
    %c0_87 = arith.constant 0 : index
    %70 = vector.load %arg3[%c0_83, %c2_84, %c0_85, %c0_86, %c0_87] : memref<3x3x3x128x128xbf16, #tpu.memory_space<vmem>>, vector<1x1x1x128x128xbf16>
    %71 = vector.shape_cast %70 : vector<1x1x1x128x128xbf16> to vector<128x128xbf16>
    %cst_88 = arith.constant dense<0.000000e+00> : vector<256x128xf32>
    %72 = tpu.matmul %69, %71, %cst_88 {dimension_numbers = #tpu.dot_dimension_numbers<[1], [0], [0], [1], [0, 0, 1, 1], [], []>} : vector<256x128xbf16>, vector<128x128xbf16>, vector<256x128xf32> -> vector<256x128xf32>
    %73 = arith.addf %67, %72 : vector<256x128xf32>
    %c24_89 = arith.constant 24 : index
    %c16_90 = arith.constant 16 : index
    %c0_91 = arith.constant 0 : index
    %74 = vector.load %arg9[%c24_89, %c16_90, %c0_91] : memref<40x48x128xbf16, #tpu.memory_space<vmem>>, vector<16x16x128xbf16>
    %75 = vector.shape_cast %74 : vector<16x16x128xbf16> to vector<256x128xbf16>
    %c0_92 = arith.constant 0 : index
    %c2_93 = arith.constant 2 : index
    %c1_94 = arith.constant 1 : index
    %c0_95 = arith.constant 0 : index
    %c0_96 = arith.constant 0 : index
    %76 = vector.load %arg3[%c0_92, %c2_93, %c1_94, %c0_95, %c0_96] : memref<3x3x3x128x128xbf16, #tpu.memory_space<vmem>>, vector<1x1x1x128x128xbf16>
    %77 = vector.shape_cast %76 : vector<1x1x1x128x128xbf16> to vector<128x128xbf16>
    %cst_97 = arith.constant dense<0.000000e+00> : vector<256x128xf32>
    %78 = tpu.matmul %75, %77, %cst_97 {dimension_numbers = #tpu.dot_dimension_numbers<[1], [0], [0], [1], [0, 0, 1, 1], [], []>} : vector<256x128xbf16>, vector<128x128xbf16>, vector<256x128xf32> -> vector<256x128xf32>
    %79 = arith.addf %73, %78 : vector<256x128xf32>
    %c24_98 = arith.constant 24 : index
    %c28_99 = arith.constant 28 : index
    %c0_100 = arith.constant 0 : index
    %80 = vector.load %arg9[%c24_98, %c28_99, %c0_100] : memref<40x48x128xbf16, #tpu.memory_space<vmem>>, vector<16x16x128xbf16>
    %81 = vector.shape_cast %80 : vector<16x16x128xbf16> to vector<256x128xbf16>
    %c0_101 = arith.constant 0 : index
    %c2_102 = arith.constant 2 : index
    %c2_103 = arith.constant 2 : index
    %c0_104 = arith.constant 0 : index
    %c0_105 = arith.constant 0 : index
    %82 = vector.load %arg3[%c0_101, %c2_102, %c2_103, %c0_104, %c0_105] : memref<3x3x3x128x128xbf16, #tpu.memory_space<vmem>>, vector<1x1x1x128x128xbf16>
    %83 = vector.shape_cast %82 : vector<1x1x1x128x128xbf16> to vector<128x128xbf16>
    %cst_106 = arith.constant dense<0.000000e+00> : vector<256x128xf32>
    %84 = tpu.matmul %81, %83, %cst_106 {dimension_numbers = #tpu.dot_dimension_numbers<[1], [0], [0], [1], [0, 0, 1, 1], [], []>} : vector<256x128xbf16>, vector<128x128xbf16>, vector<256x128xf32> -> vector<256x128xf32>
    %85 = arith.addf %79, %84 : vector<256x128xf32>
    %86 = vector.extract_strided_slice %11 {offsets = [1, 0], sizes = [1, 128], strides = [1, 1]} : vector<6x128xf32> to vector<1x128xf32>
    %87 = vector.shape_cast %86 : vector<1x128xf32> to vector<128xf32>
    %88 = vector.shape_cast %87 : vector<128xf32> to vector<1x128xf32>
    %89 = vector.broadcast %88 : vector<1x128xf32> to vector<256x128xf32>
    %90 = arith.mulf %85, %89 : vector<256x128xf32>
    %91 = vector.extract_strided_slice %12 {offsets = [1, 0], sizes = [1, 128], strides = [1, 1]} : vector<6x128xf32> to vector<1x128xf32>
    %92 = vector.shape_cast %91 : vector<1x128xf32> to vector<128xf32>
    %93 = vector.shape_cast %92 : vector<128xf32> to vector<1x128xf32>
    %94 = vector.broadcast %93 : vector<1x128xf32> to vector<256x128xf32>
    %95 = arith.addf %90, %94 : vector<256x128xf32>
    %cst_107 = arith.constant 0.000000e+00 : f32
    %96 = vector.broadcast %cst_107 : f32 to vector<256x128xf32>
    %97 = arith.maximumf %95, %96 : vector<256x128xf32>
    %98 = arith.truncf %97 : vector<256x128xf32> to vector<256x128xbf16>
    %c128 = arith.constant 128 : index
    %c0_108 = arith.constant 0 : index
    %99 = vector.load %arg5[%c128, %c0_108] : memref<640x128xbf16, #tpu.memory_space<vmem>>, vector<128x128xbf16>
    %cst_109 = arith.constant dense<0.000000e+00> : vector<256x128xf32>
    %100 = tpu.matmul %98, %99, %cst_109 {dimension_numbers = #tpu.dot_dimension_numbers<[1], [0], [0], [1], [0, 0, 1, 1], [], []>} : vector<256x128xbf16>, vector<128x128xbf16>, vector<256x128xf32> -> vector<256x128xf32>
    %101 = arith.addf %34, %100 : vector<256x128xf32>
    %c1_110 = arith.constant 1 : index
    %c1_111 = arith.constant 1 : index
    %c1_112 = arith.constant 1 : index
    %c0_113 = arith.constant 0 : index
    %c0_114 = arith.constant 0 : index
    %102 = vector.load %arg3[%c1_110, %c1_111, %c1_112, %c0_113, %c0_114] : memref<3x3x3x128x128xbf16, #tpu.memory_space<vmem>>, vector<1x1x1x128x128xbf16>
    %103 = vector.shape_cast %102 : vector<1x1x1x128x128xbf16> to vector<128x128xbf16>
    %cst_115 = arith.constant dense<0.000000e+00> : vector<256x128xf32>
    %104 = tpu.matmul %17, %103, %cst_115 {dimension_numbers = #tpu.dot_dimension_numbers<[1], [0], [0], [1], [0, 0, 1, 1], [], []>} : vector<256x128xbf16>, vector<128x128xbf16>, vector<256x128xf32> -> vector<256x128xf32>
    %105 = vector.extract_strided_slice %11 {offsets = [2, 0], sizes = [1, 128], strides = [1, 1]} : vector<6x128xf32> to vector<1x128xf32>
    %106 = vector.shape_cast %105 : vector<1x128xf32> to vector<128xf32>
    %107 = vector.shape_cast %106 : vector<128xf32> to vector<1x128xf32>
    %108 = vector.broadcast %107 : vector<1x128xf32> to vector<256x128xf32>
    %109 = arith.mulf %104, %108 : vector<256x128xf32>
    %110 = vector.extract_strided_slice %12 {offsets = [2, 0], sizes = [1, 128], strides = [1, 1]} : vector<6x128xf32> to vector<1x128xf32>
    %111 = vector.shape_cast %110 : vector<1x128xf32> to vector<128xf32>
    %112 = vector.shape_cast %111 : vector<128xf32> to vector<1x128xf32>
    %113 = vector.broadcast %112 : vector<1x128xf32> to vector<256x128xf32>
    %114 = arith.addf %109, %113 : vector<256x128xf32>
    %cst_116 = arith.constant 0.000000e+00 : f32
    %115 = vector.broadcast %cst_116 : f32 to vector<256x128xf32>
    %116 = arith.maximumf %114, %115 : vector<256x128xf32>
    %117 = arith.truncf %116 : vector<256x128xf32> to vector<256x128xbf16>
    %c256 = arith.constant 256 : index
    %c0_117 = arith.constant 0 : index
    %118 = vector.load %arg5[%c256, %c0_117] : memref<640x128xbf16, #tpu.memory_space<vmem>>, vector<128x128xbf16>
    %cst_118 = arith.constant dense<0.000000e+00> : vector<256x128xf32>
    %119 = tpu.matmul %117, %118, %cst_118 {dimension_numbers = #tpu.dot_dimension_numbers<[1], [0], [0], [1], [0, 0, 1, 1], [], []>} : vector<256x128xbf16>, vector<128x128xbf16>, vector<256x128xf32> -> vector<256x128xf32>
    %120 = arith.addf %101, %119 : vector<256x128xf32>
    %c2_119 = arith.constant 2 : index
    %c1_120 = arith.constant 1 : index
    %c1_121 = arith.constant 1 : index
    %c0_122 = arith.constant 0 : index
    %c0_123 = arith.constant 0 : index
    %121 = vector.load %arg3[%c2_119, %c1_120, %c1_121, %c0_122, %c0_123] : memref<3x3x3x128x128xbf16, #tpu.memory_space<vmem>>, vector<1x1x1x128x128xbf16>
    %122 = vector.shape_cast %121 : vector<1x1x1x128x128xbf16> to vector<128x128xbf16>
    %cst_124 = arith.constant dense<0.000000e+00> : vector<256x128xf32>
    %123 = tpu.matmul %17, %122, %cst_124 {dimension_numbers = #tpu.dot_dimension_numbers<[1], [0], [0], [1], [0, 0, 1, 1], [], []>} : vector<256x128xbf16>, vector<128x128xbf16>, vector<256x128xf32> -> vector<256x128xf32>
    %124 = vector.extract_strided_slice %11 {offsets = [3, 0], sizes = [1, 128], strides = [1, 1]} : vector<6x128xf32> to vector<1x128xf32>
    %125 = vector.shape_cast %124 : vector<1x128xf32> to vector<128xf32>
    %126 = vector.shape_cast %125 : vector<128xf32> to vector<1x128xf32>
    %127 = vector.broadcast %126 : vector<1x128xf32> to vector<256x128xf32>
    %128 = arith.mulf %123, %127 : vector<256x128xf32>
    %129 = vector.extract_strided_slice %12 {offsets = [3, 0], sizes = [1, 128], strides = [1, 1]} : vector<6x128xf32> to vector<1x128xf32>
    %130 = vector.shape_cast %129 : vector<1x128xf32> to vector<128xf32>
    %131 = vector.shape_cast %130 : vector<128xf32> to vector<1x128xf32>
    %132 = vector.broadcast %131 : vector<1x128xf32> to vector<256x128xf32>
    %133 = arith.addf %128, %132 : vector<256x128xf32>
    %cst_125 = arith.constant 0.000000e+00 : f32
    %134 = vector.broadcast %cst_125 : f32 to vector<256x128xf32>
    %135 = arith.maximumf %133, %134 : vector<256x128xf32>
    %136 = arith.truncf %135 : vector<256x128xf32> to vector<256x128xbf16>
    %c384 = arith.constant 384 : index
    %c0_126 = arith.constant 0 : index
    %137 = vector.load %arg5[%c384, %c0_126] : memref<640x128xbf16, #tpu.memory_space<vmem>>, vector<128x128xbf16>
    %cst_127 = arith.constant dense<0.000000e+00> : vector<256x128xf32>
    %138 = tpu.matmul %136, %137, %cst_127 {dimension_numbers = #tpu.dot_dimension_numbers<[1], [0], [0], [1], [0, 0, 1, 1], [], []>} : vector<256x128xbf16>, vector<128x128xbf16>, vector<256x128xf32> -> vector<256x128xf32>
    %139 = arith.addf %120, %138 : vector<256x128xf32>
    %cst_128 = arith.constant 0.000000e+00 : f32
    %140 = vector.broadcast %cst_128 : f32 to vector<1x128xf32>
    %c12_129 = arith.constant 12 : index
    %c16_130 = arith.constant 16 : index
    %c0_131 = arith.constant 0 : index
    %141 = vector.load %arg9[%c12_129, %c16_130, %c0_131] : memref<40x48x128xbf16, #tpu.memory_space<vmem>>, vector<8x16x128xbf16>
    %142 = arith.extf %141 : vector<8x16x128xbf16> to vector<8x16x128xf32>
    %cst_132 = arith.constant dense<0.000000e+00> : vector<16x128xf32>
    %143 = vector.multi_reduction <add>, %142, %cst_132 [0] : vector<8x16x128xf32> to vector<16x128xf32>
    %cst_133 = arith.constant dense<0.000000e+00> : vector<128xf32>
    %144 = vector.multi_reduction <add>, %143, %cst_133 [0] : vector<16x128xf32> to vector<128xf32>
    %145 = vector.shape_cast %144 : vector<128xf32> to vector<1x128xf32>
    %146 = arith.addf %140, %145 : vector<1x128xf32>
    %c20 = arith.constant 20 : index
    %c16_134 = arith.constant 16 : index
    %c0_135 = arith.constant 0 : index
    %147 = vector.load %arg9[%c20, %c16_134, %c0_135] : memref<40x48x128xbf16, #tpu.memory_space<vmem>>, vector<8x16x128xbf16>
    %148 = arith.extf %147 : vector<8x16x128xbf16> to vector<8x16x128xf32>
    %cst_136 = arith.constant dense<0.000000e+00> : vector<16x128xf32>
    %149 = vector.multi_reduction <add>, %148, %cst_136 [0] : vector<8x16x128xf32> to vector<16x128xf32>
    %cst_137 = arith.constant dense<0.000000e+00> : vector<128xf32>
    %150 = vector.multi_reduction <add>, %149, %cst_137 [0] : vector<16x128xf32> to vector<128xf32>
    %151 = vector.shape_cast %150 : vector<128xf32> to vector<1x128xf32>
    %152 = arith.addf %146, %151 : vector<1x128xf32>
    %cst_138 = arith.constant 3.906250e-03 : f32
    %153 = vector.broadcast %cst_138 : f32 to vector<1x128xf32>
    %154 = arith.mulf %152, %153 : vector<1x128xf32>
    %155 = arith.truncf %154 : vector<1x128xf32> to vector<1x128xbf16>
    %c0_139 = arith.constant 0 : index
    %c0_140 = arith.constant 0 : index
    %156 = vector.load %arg4[%c0_139, %c0_140] : memref<128x128xbf16, #tpu.memory_space<vmem>>, vector<128x128xbf16>
    %cst_141 = arith.constant dense<0.000000e+00> : vector<1x128xf32>
    %157 = tpu.matmul %155, %156, %cst_141 {dimension_numbers = #tpu.dot_dimension_numbers<[1], [0], [0], [1], [0, 0, 1, 1], [], []>} : vector<1x128xbf16>, vector<128x128xbf16>, vector<1x128xf32> -> vector<1x128xf32>
    %158 = vector.extract_strided_slice %11 {offsets = [4, 0], sizes = [1, 128], strides = [1, 1]} : vector<6x128xf32> to vector<1x128xf32>
    %159 = vector.shape_cast %158 : vector<1x128xf32> to vector<128xf32>
    %160 = vector.shape_cast %159 : vector<128xf32> to vector<1x128xf32>
    %161 = arith.mulf %157, %160 : vector<1x128xf32>
    %162 = vector.extract_strided_slice %12 {offsets = [4, 0], sizes = [1, 128], strides = [1, 1]} : vector<6x128xf32> to vector<1x128xf32>
    %163 = vector.shape_cast %162 : vector<1x128xf32> to vector<128xf32>
    %164 = vector.shape_cast %163 : vector<128xf32> to vector<1x128xf32>
    %165 = arith.addf %161, %164 : vector<1x128xf32>
    %cst_142 = arith.constant 0.000000e+00 : f32
    %166 = vector.broadcast %cst_142 : f32 to vector<1x128xf32>
    %167 = arith.maximumf %165, %166 : vector<1x128xf32>
    %168 = arith.truncf %167 : vector<1x128xf32> to vector<1x128xbf16>
    %c512 = arith.constant 512 : index
    %c0_143 = arith.constant 0 : index
    %169 = vector.load %arg5[%c512, %c0_143] : memref<640x128xbf16, #tpu.memory_space<vmem>>, vector<128x128xbf16>
    %cst_144 = arith.constant dense<0.000000e+00> : vector<1x128xf32>
    %170 = tpu.matmul %168, %169, %cst_144 {dimension_numbers = #tpu.dot_dimension_numbers<[1], [0], [0], [1], [0, 0, 1, 1], [], []>} : vector<1x128xbf16>, vector<128x128xbf16>, vector<1x128xf32> -> vector<1x128xf32>
    %171 = vector.broadcast %170 : vector<1x128xf32> to vector<256x128xf32>
    %172 = arith.addf %139, %171 : vector<256x128xf32>
    %173 = vector.extract_strided_slice %11 {offsets = [5, 0], sizes = [1, 128], strides = [1, 1]} : vector<6x128xf32> to vector<1x128xf32>
    %174 = vector.shape_cast %173 : vector<1x128xf32> to vector<128xf32>
    %175 = vector.shape_cast %174 : vector<128xf32> to vector<1x128xf32>
    %176 = vector.broadcast %175 : vector<1x128xf32> to vector<256x128xf32>
    %177 = arith.mulf %172, %176 : vector<256x128xf32>
    %178 = vector.extract_strided_slice %12 {offsets = [5, 0], sizes = [1, 128], strides = [1, 1]} : vector<6x128xf32> to vector<1x128xf32>
    %179 = vector.shape_cast %178 : vector<1x128xf32> to vector<128xf32>
    %180 = vector.shape_cast %179 : vector<128xf32> to vector<1x128xf32>
    %181 = vector.broadcast %180 : vector<1x128xf32> to vector<256x128xf32>
    %182 = arith.addf %177, %181 : vector<256x128xf32>
    %cst_145 = arith.constant 0.000000e+00 : f32
    %183 = vector.broadcast %cst_145 : f32 to vector<256x128xf32>
    %184 = arith.maximumf %182, %183 : vector<256x128xf32>
    %185 = arith.truncf %184 : vector<256x128xf32> to vector<256x128xbf16>
    %c0_146 = arith.constant 0 : index
    %c0_147 = arith.constant 0 : index
    %c0_148 = arith.constant 0 : index
    %186 = vector.load %arg8[%c0_146, %c0_147, %c0_148] : memref<1x256x128xbf16, #tpu.memory_space<vmem>>, vector<1x256x128xbf16>
    %187 = vector.shape_cast %186 : vector<1x256x128xbf16> to vector<256x128xbf16>
    %188 = vector.shape_cast %185 : vector<256x128xbf16> to vector<1x256x128xbf16>
    tpu.vector_store %arg8[%c0_146, %c0_147, %c0_148], %188 {strides = array<i32>} : memref<1x256x128xbf16, #tpu.memory_space<vmem>>, vector<1x256x128xbf16>,
    return
  }
  func.func @transform_1(%arg0: i32) -> (i32, i32) {
    %c0_i32 = arith.constant 0 : i32
    %c0_i32_0 = arith.constant 0 : i32
    %c0_i32_1 = arith.constant 0 : i32
    return %c0_i32, %c0_i32_0 : i32, i32
  }
  func.func @transform_2(%arg0: i32) -> (i32, i32, i32, i32, i32) {
    %c0_i32 = arith.constant 0 : i32
    %c0_i32_0 = arith.constant 0 : i32
    %c0_i32_1 = arith.constant 0 : i32
    %c0_i32_2 = arith.constant 0 : i32
    %c0_i32_3 = arith.constant 0 : i32
    %c0_i32_4 = arith.constant 0 : i32
    return %c0_i32, %c0_i32_0, %c0_i32_1, %c0_i32_2, %c0_i32_3 : i32, i32, i32, i32, i32
  }
  func.func @transform_3(%arg0: i32) -> (i32, i32) {
    %c0_i32 = arith.constant 0 : i32
    %c0_i32_0 = arith.constant 0 : i32
    %c0_i32_1 = arith.constant 0 : i32
    return %c0_i32, %c0_i32_0 : i32, i32
  }
  func.func @transform_4(%arg0: i32) -> (i32, i32) {
    %c0_i32 = arith.constant 0 : i32
    %c0_i32_0 = arith.constant 0 : i32
    %c0_i32_1 = arith.constant 0 : i32
    return %c0_i32, %c0_i32_0 : i32, i32
  }
  func.func @transform_5(%arg0: i32) -> (i32, i32) {
    %c0_i32 = arith.constant 0 : i32
    %c0_i32_0 = arith.constant 0 : i32
    %c0_i32_1 = arith.constant 0 : i32
    return %c0_i32, %c0_i32_0 : i32, i32
  }
  func.func @transform_6(%arg0: i32) -> (i32, i32) {
    %c0_i32 = arith.constant 0 : i32
    %c0_i32_0 = arith.constant 0 : i32
    %c0_i32_1 = arith.constant 0 : i32
    return %c0_i32, %c0_i32_0 : i32, i32
  }
  func.func @transform_7(%arg0: i32) -> (i32, i32, i32) {
    %c0_i32 = arith.constant 0 : i32
    %c0_i32_0 = arith.constant 0 : i32
    %c0_i32_1 = arith.constant 0 : i32
    return %arg0, %c0_i32, %c0_i32_0 : i32, i32, i32
  }
}

</mosaic_0001>

<llo_original>
// kernel: tpu_custom_call.1
$region0: #{tpu_custom_call.1}
  #allocation0 [shape = 'u32[]', space=smem, size = 0x4, offset = 0x4, fixed_abs, tag = 'smem constant byte address 0x4 - core index']
  #allocation1 [shape = 'u32[144,128]{1,0:T(1,128)}', space=vmem, size = 0x12000, scoped, tag = 'internal scratch']
  #allocation2 [shape = 'bf16[40,48,128]{2,1,0:T(16,128)(2,1)}', space=vmem, size = 0x78000, scoped, tag = 'scratch operand']
  #allocation3 [shape = 's32[1]{0}', space=sflag, size = 0x4, scoped, tag = 'scratch operand']
  #allocation13 [shape = 's32[]', space=sflag, size = 0x4, offset = 0, fixed_abs, tag = 'sflag constant byte address 0x0 - dummy sync flag']
  %s0 = inlined_call_operand.hbm [shape: bf16[2,16,16,128], index: 0, kind: input, shape index: {}]
  %s1 = inlined_call_operand.hbm [shape: bf16[128,128], index: 1, kind: input, shape index: {}]
  %s2 = inlined_call_operand.hbm [shape: bf16[3,3,3,128,128], index: 2, kind: input, shape index: {}]
  %s3 = inlined_call_operand.hbm [shape: bf16[128,128], index: 3, kind: input, shape index: {}]
  %s4 = inlined_call_operand.hbm [shape: bf16[640,128], index: 4, kind: input, shape index: {}]
  %s5 = inlined_call_operand.vmem [shape: f32[6,128], index: 5, kind: input, shape index: {}]
  %s6 = inlined_call_operand.vmem [shape: f32[6,128], index: 6, kind: input, shape index: {}]
  %s7 = inlined_call_operand.hbm [shape: bf16[2,256,128], index: 7, kind: output, shape index: {}]
  %s8 = sld [smem:[#allocation0]]
  $region73: #{tpu_custom_call.1} parent=0
    _
  %s10 = ssub.s32 1, %s8
  %s11 = scalar_select 0, %s10, %s8
  $region1: #{tpu_custom_call.1} parent=0
    #allocation4 [shape = 'u8[32768]{0}', space=vmem, size = 0x8000, scoped, tag = 'input window, operand 1, single buffered']
    #allocation5 [shape = 's32[2]{0}', space=sflag, size = 0x8, scoped, tag = 'scoped memory for tpu_custom_call.1']
    #allocation6 [shape = 's32[2]{0}', space=sflag, size = 0x8, scoped, tag = 'scoped memory for tpu_custom_call.1']
    #allocation7 [shape = 'u8[884736]{0}', space=vmem, size = 0xd8000, scoped, tag = 'input window, operand 2, single buffered']
    #allocation8 [shape = 's32[1]{0}', space=sflag, size = 0x4, scoped, tag = 'scoped memory for tpu_custom_call.1']
    #allocation9 [shape = 'u8[32768]{0}', space=vmem, size = 0x8000, scoped, tag = 'input window, operand 3, single buffered']
    #allocation10 [shape = 'u8[163840]{0}', space=vmem, size = 0x28000, scoped, tag = 'input window, operand 4, single buffered']
    #allocation11 [shape = 's32[1]{0}', space=sflag, size = 0x4, scoped, tag = 'scoped memory for tpu_custom_call.1']
    #allocation12 [shape = 'u8[131072]{0}', space=vmem, size = 0x20000, scoped, tag = 'output window, operand 0']
    %12 = vsyncpa [#allocation5], 0
    %13 = vsyncpa [#allocation8], 0
    %14 = vsyncpa [#allocation11], 0
    %15 = vsyncpa [#allocation6], 0
    %s16 = scalar_lea.sflag [#allocation6], 1
    %17 = vsyncpa %s16, 0
    loop: start=0, step=1, limit=4
    $region2: #{tpu_custom_call.1} parent=1 // loop_pre_header
      _
    $region3: #{tpu_custom_call.1} parent=1 // loop_header
      %s19 = sphi 0, %s23
      %p20 = scmp.ge.s32.totalorder %s19, 4
      %s27 = sphi 0, %s27
      %s29 = sphi 0, %s27
      %s30 = sphi 0, %s29
      %s44 = sphi 0, %s30
      %s48 = sphi 0, %s48
      %s50 = sphi 0, %s48
      %s51 = sphi 0, %s50
      %s65 = sphi 0, %s51
      %s69 = sphi 0, %s69
      %s71 = sphi 0, %s69
      %s72 = sphi 0, %s71
      %s86 = sphi 0, %s72
      %s90 = sphi 0, %s90
      %s92 = sphi 0, %s90
      %s93 = sphi 0, %s92
      %s107 = sphi 0, %s93
      %s111 = sphi 0, %s111
      %s113 = sphi 0, %s111
      %s114 = sphi 0, %s113
      %s128 = sphi 0, %s114
      %s132 = sphi 0, %s132
      %s134 = sphi 0, %s132
      %s135 = sphi 0, %s134
      %s149 = sphi 0, %s135
      %s155 = sphi 0, %s157
      %s158 = sphi 0, %s155
      %s159 = sphi 0, %s158
      %s175 = sphi 0, %s159
    $region4: #{tpu_custom_call.1} parent=1 // loop_header_branch
      %22 = sbr.rel (%p20) target = $region8
    $region5: #{tpu_custom_call.1} parent=1 // loop_body
      %s24 = ssub.s32 %s19, 1
      %s25 = ssub.s32 %s19, 2
      %s26 = sadd.s32 %s19, 1
      %s28 = sadd.s32 %s27, 1
      %p31 = scmp.eq.s32.totalorder %s19, 1
      %p32 = scmp.ne.s32.totalorder %s27, %s29
      %p33 = scmp.eq.s32.totalorder %s19, 0
      %p34 = por %p32, %p33
      %p35 = scmp.ne.s32.totalorder %s27, %s29
      %p36 = scmp.eq.s32.totalorder %s24, 1
      %p37 = por %p35, %p36
      %p38 = scmp.ne.s32.totalorder %s29, %s30
      %p39 = scmp.eq.s32.totalorder %s24, 0
      %p40 = por %p38, %p39
      %p41 = scmp.ne.s32.totalorder %s29, %s30
      %p42 = scmp.eq.s32.totalorder %s25, 1
      %p43 = por %p41, %p42
      %p45 = scmp.ne.s32.totalorder %s30, %s44
      %p46 = scmp.eq.s32.totalorder %s25, 0
      %p47 = por %p45, %p46
      %s49 = sadd.s32 %s48, 1
      %p52 = scmp.eq.s32.totalorder %s19, 1
      %p53 = scmp.ne.s32.totalorder %s48, %s50
      %p54 = scmp.eq.s32.totalorder %s19, 0
      %p55 = por %p53, %p54
      %p56 = scmp.ne.s32.totalorder %s48, %s50
      %p57 = scmp.eq.s32.totalorder %s24, 1
      %p58 = por %p56, %p57
      %p59 = scmp.ne.s32.totalorder %s50, %s51
      %p60 = scmp.eq.s32.totalorder %s24, 0
      %p61 = por %p59, %p60
      %p62 = scmp.ne.s32.totalorder %s50, %s51
      %p63 = scmp.eq.s32.totalorder %s25, 1
      %p64 = por %p62, %p63
      %p66 = scmp.ne.s32.totalorder %s51, %s65
      %p67 = scmp.eq.s32.totalorder %s25, 0
      %p68 = por %p66, %p67
      %s70 = sadd.s32 %s69, 1
      %p73 = scmp.eq.s32.totalorder %s19, 1
      %p74 = scmp.ne.s32.totalorder %s69, %s71
      %p75 = scmp.eq.s32.totalorder %s19, 0
      %p76 = por %p74, %p75
      %p77 = scmp.ne.s32.totalorder %s69, %s71
      %p78 = scmp.eq.s32.totalorder %s24, 1
      %p79 = por %p77, %p78
      %p80 = scmp.ne.s32.totalorder %s71, %s72
      %p81 = scmp.eq.s32.totalorder %s24, 0
      %p82 = por %p80, %p81
      %p83 = scmp.ne.s32.totalorder %s71, %s72
      %p84 = scmp.eq.s32.totalorder %s25, 1
      %p85 = por %p83, %p84
      %p87 = scmp.ne.s32.totalorder %s72, %s86
      %p88 = scmp.eq.s32.totalorder %s25, 0
      %p89 = por %p87, %p88
      %s91 = sadd.s32 %s90, 1
      %p94 = scmp.eq.s32.totalorder %s19, 1
      %p95 = scmp.ne.s32.totalorder %s90, %s92
      %p96 = scmp.eq.s32.totalorder %s19, 0
      %p97 = por %p95, %p96
      %p98 = scmp.ne.s32.totalorder %s90, %s92
      %p99 = scmp.eq.s32.totalorder %s24, 1
      %p100 = por %p98, %p99
      %p101 = scmp.ne.s32.totalorder %s92, %s93
      %p102 = scmp.eq.s32.totalorder %s24, 0
      %p103 = por %p101, %p102
      %p104 = scmp.ne.s32.totalorder %s92, %s93
      %p105 = scmp.eq.s32.totalorder %s25, 1
      %p106 = por %p104, %p105
      %p108 = scmp.ne.s32.totalorder %s93, %s107
      %p109 = scmp.eq.s32.totalorder %s25, 0
      %p110 = por %p108, %p109
      %s112 = sadd.s32 %s111, 1
      %p115 = scmp.eq.s32.totalorder %s19, 1
      %p116 = scmp.ne.s32.totalorder %s111, %s113
      %p117 = scmp.eq.s32.totalorder %s19, 0
      %p118 = por %p116, %p117
      %p119 = scmp.ne.s32.totalorder %s111, %s113
      %p120 = scmp.eq.s32.totalorder %s24, 1
      %p121 = por %p119, %p120
      %p122 = scmp.ne.s32.totalorder %s113, %s114
      %p123 = scmp.eq.s32.totalorder %s24, 0
      %p124 = por %p122, %p123
      %p125 = scmp.ne.s32.totalorder %s113, %s114
      %p126 = scmp.eq.s32.totalorder %s25, 1
      %p127 = por %p125, %p126
      %p129 = scmp.ne.s32.totalorder %s114, %s128
      %p130 = scmp.eq.s32.totalorder %s25, 0
      %p131 = por %p129, %p130
      %s133 = sadd.s32 %s132, 1
      %p136 = scmp.eq.s32.totalorder %s19, 1
      %p137 = scmp.ne.s32.totalorder %s132, %s134
      %p138 = scmp.eq.s32.totalorder %s19, 0
      %p139 = por %p137, %p138
      %p140 = scmp.ne.s32.totalorder %s132, %s134
      %p141 = scmp.eq.s32.totalorder %s24, 1
      %p142 = por %p140, %p141
      %p143 = scmp.ne.s32.totalorder %s134, %s135
      %p144 = scmp.eq.s32.totalorder %s24, 0
      %p145 = por %p143, %p144
      %p146 = scmp.ne.s32.totalorder %s134, %s135
      %p147 = scmp.eq.s32.totalorder %s25, 1
      %p148 = por %p146, %p147
      %p150 = scmp.ne.s32.totalorder %s135, %s149
      %p151 = scmp.eq.s32.totalorder %s25, 0
      %p152 = por %p150, %p151
      %s153 = ssub.s32 %s19, %s26
      %p154 = scmp.eq.s32.totalorder %s153, 0
      %s156 = sadd.s32 %s155, 1
      %s157 = scalar_select %p154, %s155, %s156
      %p160 = pneg %p154
      %p161 = scmp.eq.s32.totalorder %s19, 1
      %p162 = por %p160, %p161
      %p163 = scmp.ne.s32.totalorder %s155, %s158
      %p164 = scmp.eq.s32.totalorder %s19, 0
      %p165 = por %p163, %p164
      %p166 = scmp.ne.s32.totalorder %s155, %s158
      %p167 = scmp.eq.s32.totalorder %s24, 1
      %p168 = por %p166, %p167
      %p169 = scmp.ne.s32.totalorder %s158, %s159
      %p170 = scmp.eq.s32.totalorder %s24, 0
      %p171 = por %p169, %p170
      %p172 = scmp.ne.s32.totalorder %s158, %s159
      %p173 = scmp.eq.s32.totalorder %s25, 1
      %p174 = por %p172, %p173
      %p176 = scmp.ne.s32.totalorder %s159, %s175
      %p177 = scmp.eq.s32.totalorder %s25, 0
      %p178 = por %p176, %p177
      %p179 = scmp.le.s32.totalorder 1, %s19
      %p180 = scmp.lt.s32.totalorder %s19, 3
      %p181 = pnand %p179, %p180
      %p182 = pneg %p181
      // Predicated region
      $region9: #{tpu_custom_call.1} parent=5 // pred_check
        _
      $region10: #{tpu_custom_call.1} parent=5 // pred_check_branch
        %184 = sbr.rel (%p181) target = $region12
      $region11: #{tpu_custom_call.1} parent=5 // pred_region
        %s185 = ssub.s32 %s19, 1
        // Predicated region
        $region13: #{tpu_custom_call.1} parent=11 // pred_check
          %p186 = pneg %p40
        $region14: #{tpu_custom_call.1} parent=11 // pred_check_branch
          %188 = sbr.rel (%p186) target = $region16
        $region15: #{tpu_custom_call.1} parent=11 // pred_region
          %s190 = ssub.s32 1024, 1024
          %191 = vsyncadd [#allocation5], %s190
          %s192 = sshll.u32 [#allocation4], 4
          %s193 = int_to_ptr.vmem [resolvable:$true] %s192
          %198 = dma.hbm_to_vmem [thread:$0]  %s1, 1024, %s193, [#allocation5], 64, 64, 4
        $region16: #{tpu_custom_call.1} parent=11 // pred_fallthru
          _
        // Predicated region
        $region17: #{tpu_custom_call.1} parent=11 // pred_check
          %p199 = pneg %p61
        $region18: #{tpu_custom_call.1} parent=11 // pred_check_branch
          %201 = sbr.rel (%p199) target = $region20
        $region19: #{tpu_custom_call.1} parent=11 // pred_region
          %s203 = ssub.s32 27648, 27648
          %204 = vsyncadd [#allocation8], %s203
          %s205 = sshll.u32 [#allocation7], 4
          %s206 = int_to_ptr.vmem [resolvable:$true] %s205
          %211 = dma.hbm_to_vmem [thread:$0]  %s2, 27648, %s206, [#allocation8], 64, 64, 4
        $region20: #{tpu_custom_call.1} parent=11 // pred_fallthru
          _
        // Predicated region
        $region21: #{tpu_custom_call.1} parent=11 // pred_check
          %p212 = pneg %p82
        $region22: #{tpu_custom_call.1} parent=11 // pred_check_branch
          %214 = sbr.rel (%p212) target = $region24
        $region23: #{tpu_custom_call.1} parent=11 // pred_region
          %s216 = ssub.s32 1024, 1024
          %217 = vsyncadd [#allocation8], %s216
          %s218 = sshll.u32 [#allocation9], 4
          %s219 = int_to_ptr.vmem [resolvable:$true] %s218
          %224 = dma.hbm_to_vmem [thread:$0]  %s3, 1024, %s219, [#allocation8], 64, 64, 4
        $region24: #{tpu_custom_call.1} parent=11 // pred_fallthru
          _
        // Predicated region
        $region25: #{tpu_custom_call.1} parent=11 // pred_check
          %p225 = pneg %p103
        $region26: #{tpu_custom_call.1} parent=11 // pred_check_branch
          %227 = sbr.rel (%p225) target = $region28
        $region27: #{tpu_custom_call.1} parent=11 // pred_region
          %s229 = ssub.s32 5120, 5120
          %230 = vsyncadd [#allocation11], %s229
          %s231 = sshll.u32 [#allocation10], 4
          %s232 = int_to_ptr.vmem [resolvable:$true] %s231
          %237 = dma.hbm_to_vmem [thread:$0]  %s4, 5120, %s232, [#allocation11], 64, 64, 4
        $region28: #{tpu_custom_call.1} parent=11 // pred_fallthru
          _
        // Predicated region
        $region29: #{tpu_custom_call.1} parent=11 // pred_check
          %p238 = pneg %p124
        $region30: #{tpu_custom_call.1} parent=11 // pred_check_branch
          %240 = sbr.rel (%p238) target = $region32
        $region31: #{tpu_custom_call.1} parent=11 // pred_region
          _
        $region32: #{tpu_custom_call.1} parent=11 // pred_fallthru
          _
        // Predicated region
        $region33: #{tpu_custom_call.1} parent=11 // pred_check
          %p241 = pneg %p145
        $region34: #{tpu_custom_call.1} parent=11 // pred_check_branch
          %243 = sbr.rel (%p241) target = $region36
        $region35: #{tpu_custom_call.1} parent=11 // pred_region
          _
        $region36: #{tpu_custom_call.1} parent=11 // pred_fallthru
          _
      $region12: #{tpu_custom_call.1} parent=5 // pred_fallthru
        _
      %p244 = scmp.lt.s32.totalorder %s19, 2
      // Predicated region
      $region37: #{tpu_custom_call.1} parent=5 // pred_check
        %p245 = pneg %p244
      $region38: #{tpu_custom_call.1} parent=5 // pred_check_branch
        %247 = sbr.rel (%p245) target = $region40
      $region39: #{tpu_custom_call.1} parent=5 // pred_region
        _
      $region40: #{tpu_custom_call.1} parent=5 // pred_fallthru
        _
      %p248 = scmp.le.s32.totalorder 1, %s19
      %p249 = scmp.lt.s32.totalorder %s19, 3
      %p250 = pnand %p248, %p249
      %p251 = pneg %p250
      // Predicated region
      $region41: #{tpu_custom_call.1} parent=5 // pred_check
        _
      $region42: #{tpu_custom_call.1} parent=5 // pred_check_branch
        %253 = sbr.rel (%p250) target = $region44
      $region43: #{tpu_custom_call.1} parent=5 // pred_region
        %s254 = ssub.s32 %s19, 1
        // Predicated region
        $region45: #{tpu_custom_call.1} parent=43 // pred_check
          %p255 = pneg %p40
        $region46: #{tpu_custom_call.1} parent=43 // pred_check_branch
          %257 = sbr.rel (%p255) target = $region48
        $region47: #{tpu_custom_call.1} parent=43 // pred_region
          %258 = dma.done [#allocation5], 1024
        $region48: #{tpu_custom_call.1} parent=43 // pred_fallthru
          _
        // Predicated region
        $region49: #{tpu_custom_call.1} parent=43 // pred_check
          %p259 = pneg %p61
        $region50: #{tpu_custom_call.1} parent=43 // pred_check_branch
          %261 = sbr.rel (%p259) target = $region52
        $region51: #{tpu_custom_call.1} parent=43 // pred_region
          %262 = dma.done [#allocation8], 27648
        $region52: #{tpu_custom_call.1} parent=43 // pred_fallthru
          _
        // Predicated region
        $region53: #{tpu_custom_call.1} parent=43 // pred_check
          %p263 = pneg %p82
        $region54: #{tpu_custom_call.1} parent=43 // pred_check_branch
          %265 = sbr.rel (%p263) target = $region56
        $region55: #{tpu_custom_call.1} parent=43 // pred_region
          %266 = dma.done [#allocation8], 1024
        $region56: #{tpu_custom_call.1} parent=43 // pred_fallthru
          _
        // Predicated region
        $region57: #{tpu_custom_call.1} parent=43 // pred_check
          %p267 = pneg %p103
        $region58: #{tpu_custom_call.1} parent=43 // pred_check_branch
          %269 = sbr.rel (%p267) target = $region60
        $region59: #{tpu_custom_call.1} parent=43 // pred_region
          %270 = dma.done [#allocation11], 5120
        $region60: #{tpu_custom_call.1} parent=43 // pred_fallthru
          _
        %p271 = pneg %p40
        %p272 = pneg %p37
        %p273 = pneg %p61
        %p274 = pneg %p58
        %p275 = pneg %p82
        %p276 = pneg %p79
        %p277 = pneg %p103
        %p278 = pneg %p100
        %p279 = pneg %p124
        %p280 = pneg %p121
        %p281 = pneg %p145
        %p282 = pneg %p142
        %p283 = pneg %p171
        %p284 = pneg %p168
        %s285 = sand.u32 %s158, 1
        %s286 = scalar_lea.sflag [#allocation6], %s285
        %s287 = sand.u32 %s158, 1
        %s288 = smul.addr %s287, 128
        %s289 = scalar_lea.vmem [#allocation12], %s288
        %s291 = smul.u32 %s24, 32
        %s292 = smul.addr %s291, 64
        %s293 = scalar_lea.hbm %s0, %s292
        %s294 = scalar_lea.vmem [#allocation2], 296
        %s296 = sshll.u32 %s294, 4
        %s297 = int_to_ptr.vmem [resolvable:$true] %s296
        %299 = dma.hbm_to_vmem [thread:$0]  %s293, 2048, %s297, [#allocation3], 128, 384, 8
        %300 = vst [vmem:[#allocation2] sm:$0xff] 0
        %301 = vst [vmem:[#allocation2 + $0x8] sm:$0xff] 0
        %302 = vst [vmem:[#allocation2 + $0x10] sm:$0xff] 0
        %303 = vst [vmem:[#allocation2 + $0x18] sm:$0xff] 0
        %304 = vst [vmem:[#allocation2 + $0x20] sm:$0xff] 0
        %305 = vst [vmem:[#allocation2 + $0x28] sm:$0xff] 0
        %306 = vst [vmem:[#allocation2 + $0x30] sm:$0xff] 0
        %307 = vst [vmem:[#allocation2 + $0x38] sm:$0xff] 0
        %308 = vst [vmem:[#allocation2 + $0x40] sm:$0xff] 0
        %309 = vst [vmem:[#allocation2 + $0x48] sm:$0xff] 0
        %310 = vst [vmem:[#allocation2 + $0x50] sm:$0xff] 0
        %311 = vst [vmem:[#allocation2 + $0x58] sm:$0xff] 0
        %312 = vst [vmem:[#allocation2 + $0x60] sm:$0xff] 0
        %313 = vst [vmem:[#allocation2 + $0x68] sm:$0xff] 0
        %314 = vst [vmem:[#allocation2 + $0x70] sm:$0xff] 0
        %315 = vst [vmem:[#allocation2 + $0x78] sm:$0xff] 0
        %316 = vst [vmem:[#allocation2 + $0x80] sm:$0xff] 0
        %317 = vst [vmem:[#allocation2 + $0x88] sm:$0xff] 0
        %318 = vst [vmem:[#allocation2 + $0x90] sm:$0xff] 0
        %319 = vst [vmem:[#allocation2 + $0x98] sm:$0xff] 0
        %320 = vst [vmem:[#allocation2 + $0xa0] sm:$0xff] 0
        %321 = vst [vmem:[#allocation2 + $0xa8] sm:$0xff] 0
        %322 = vst [vmem:[#allocation2 + $0xb0] sm:$0xff] 0
        %323 = vst [vmem:[#allocation2 + $0xb8] sm:$0xff] 0
        %324 = vst [vmem:[#allocation2 + $0xc0] sm:$0xff] 0
        %325 = vst [vmem:[#allocation2 + $0xc8] sm:$0xff] 0
        %326 = vst [vmem:[#allocation2 + $0xd0] sm:$0xff] 0
        %327 = vst [vmem:[#allocation2 + $0xd8] sm:$0xff] 0
        %328 = vst [vmem:[#allocation2 + $0xe0] sm:$0xff] 0
        %329 = vst [vmem:[#allocation2 + $0xe8] sm:$0xff] 0
        %330 = vst [vmem:[#allocation2 + $0xf0] sm:$0xff] 0
        %331 = vst [vmem:[#allocation2 + $0xf8] sm:$0xff] 0
        %332 = vst [vmem:[#allocation2 + $0x100] sm:$0xff] 0
        %333 = vst [vmem:[#allocation2 + $0x108] sm:$0xff] 0
        %334 = vst [vmem:[#allocation2 + $0x110] sm:$0xff] 0
        %335 = vst [vmem:[#allocation2 + $0x118] sm:$0xff] 0
        %s336 = scalar_lea.vmem [#allocation2], 672
        %337 = vst [vmem:[%s336] sm:$0xff] 0
        %338 = vst [vmem:[%s336 + $0x8] sm:$0xff] 0
        %339 = vst [vmem:[%s336 + $0x10] sm:$0xff] 0
        %340 = vst [vmem:[%s336 + $0x18] sm:$0xff] 0
        %341 = vst [vmem:[%s336 + $0x20] sm:$0xff] 0
        %342 = vst [vmem:[%s336 + $0x28] sm:$0xff] 0
        %343 = vst [vmem:[%s336 + $0x30] sm:$0xff] 0
        %344 = vst [vmem:[%s336 + $0x38] sm:$0xff] 0
        %345 = vst [vmem:[%s336 + $0x40] sm:$0xff] 0
        %346 = vst [vmem:[%s336 + $0x48] sm:$0xff] 0
        %347 = vst [vmem:[%s336 + $0x50] sm:$0xff] 0
        %348 = vst [vmem:[%s336 + $0x58] sm:$0xff] 0
        %349 = vst [vmem:[%s336 + $0x60] sm:$0xff] 0
        %350 = vst [vmem:[%s336 + $0x68] sm:$0xff] 0
        %351 = vst [vmem:[%s336 + $0x70] sm:$0xff] 0
        %352 = vst [vmem:[%s336 + $0x78] sm:$0xff] 0
        %353 = vst [vmem:[%s336 + $0x80] sm:$0xff] 0
        %354 = vst [vmem:[%s336 + $0x88] sm:$0xff] 0
        %355 = vst [vmem:[%s336 + $0x90] sm:$0xff] 0
        %356 = vst [vmem:[%s336 + $0x98] sm:$0xff] 0
        %357 = vst [vmem:[%s336 + $0xa0] sm:$0xff] 0
        %358 = vst [vmem:[%s336 + $0xa8] sm:$0xff] 0
        %359 = vst [vmem:[%s336 + $0xb0] sm:$0xff] 0
        %360 = vst [vmem:[%s336 + $0xb8] sm:$0xff] 0
        %361 = vst [vmem:[%s336 + $0xc0] sm:$0xff] 0
        %362 = vst [vmem:[%s336 + $0xc8] sm:$0xff] 0
        %363 = vst [vmem:[%s336 + $0xd0] sm:$0xff] 0
        %364 = vst [vmem:[%s336 + $0xd8] sm:$0xff] 0
        %365 = vst [vmem:[%s336 + $0xe0] sm:$0xff] 0
        %366 = vst [vmem:[%s336 + $0xe8] sm:$0xff] 0
        %367 = vst [vmem:[%s336 + $0xf0] sm:$0xff] 0
        %368 = vst [vmem:[%s336 + $0xf8] sm:$0xff] 0
        %369 = vst [vmem:[%s336 + $0x100] sm:$0xff] 0
        %370 = vst [vmem:[%s336 + $0x108] sm:$0xff] 0
        %371 = vst [vmem:[%s336 + $0x110] sm:$0xff] 0
        %372 = vst [vmem:[%s336 + $0x118] sm:$0xff] 0
        %s373 = scalar_lea.vmem [#allocation2], 288
        %374 = vst [vmem:[%s373] sm:$0xff] 0
        %375 = vst [vmem:[%s373 + $0x18] sm:$0xff] 0
        %376 = vst [vmem:[%s373 + $0x30] sm:$0xff] 0
        %377 = vst [vmem:[%s373 + $0x48] sm:$0xff] 0
        %378 = vst [vmem:[%s373 + $0x60] sm:$0xff] 0
        %379 = vst [vmem:[%s373 + $0x78] sm:$0xff] 0
        %380 = vst [vmem:[%s373 + $0x90] sm:$0xff] 0
        %381 = vst [vmem:[%s373 + $0xa8] sm:$0xff] 0
        %382 = vst [vmem:[%s373 + $0xc0] sm:$0xff] 0
        %383 = vst [vmem:[%s373 + $0xd8] sm:$0xff] 0
        %384 = vst [vmem:[%s373 + $0xf0] sm:$0xff] 0
        %385 = vst [vmem:[%s373 + $0x108] sm:$0xff] 0
        %386 = vst [vmem:[%s373 + $0x120] sm:$0xff] 0
        %387 = vst [vmem:[%s373 + $0x138] sm:$0xff] 0
        %388 = vst [vmem:[%s373 + $0x150] sm:$0xff] 0
        %389 = vst [vmem:[%s373 + $0x168] sm:$0xff] 0
        %390 = vst [vmem:[%s373 + $0x10] sm:$0xff] 0
        %391 = vst [vmem:[%s373 + $0x28] sm:$0xff] 0
        %392 = vst [vmem:[%s373 + $0x40] sm:$0xff] 0
        %393 = vst [vmem:[%s373 + $0x58] sm:$0xff] 0
        %394 = vst [vmem:[%s373 + $0x70] sm:$0xff] 0
        %395 = vst [vmem:[%s373 + $0x88] sm:$0xff] 0
        %396 = vst [vmem:[%s373 + $0xa0] sm:$0xff] 0
        %397 = vst [vmem:[%s373 + $0xb8] sm:$0xff] 0
        %398 = vst [vmem:[%s373 + $0xd0] sm:$0xff] 0
        %399 = vst [vmem:[%s373 + $0xe8] sm:$0xff] 0
        %400 = vst [vmem:[%s373 + $0x100] sm:$0xff] 0
        %401 = vst [vmem:[%s373 + $0x118] sm:$0xff] 0
        %402 = vst [vmem:[%s373 + $0x130] sm:$0xff] 0
        %403 = vst [vmem:[%s373 + $0x148] sm:$0xff] 0
        %404 = vst [vmem:[%s373 + $0x160] sm:$0xff] 0
        %405 = vst [vmem:[%s373 + $0x178] sm:$0xff] 0
        %v406 = vld [vmem:[%s5] sm:$0x3f]
        %v407 = vld [vmem:[%s6] sm:$0x3f]
        %s408 = smul.u32 4, 16
        %s409 = smul.u32 %s408, 2
        %s410 = smul.u32 %s409, 1
        %s411 = sshll.u32 %s410, 4
        %412 = dma.done [#allocation3], %s411
        %v413 = vld [vmem:[%s373 + $0x8] sm:$0xff]
        %v414 = vld [vmem:[%s373 + $0x20] sm:$0xff]
        %v415 = vld [vmem:[%s373 + $0x38] sm:$0xff]
        %v416 = vld [vmem:[%s373 + $0x50] sm:$0xff]
        %v417 = vld [vmem:[%s373 + $0x68] sm:$0xff]
        %v418 = vld [vmem:[%s373 + $0x80] sm:$0xff]
        %v419 = vld [vmem:[%s373 + $0x98] sm:$0xff]
        %v420 = vld [vmem:[%s373 + $0xb0] sm:$0xff]
        %v421 = vld [vmem:[%s373 + $0xc8] sm:$0xff]
        %v422 = vld [vmem:[%s373 + $0xe0] sm:$0xff]
        %v423 = vld [vmem:[%s373 + $0xf8] sm:$0xff]
        %v424 = vld [vmem:[%s373 + $0x110] sm:$0xff]
        %v425 = vld [vmem:[%s373 + $0x128] sm:$0xff]
        %v426 = vld [vmem:[%s373 + $0x140] sm:$0xff]
        %v427 = vld [vmem:[%s373 + $0x158] sm:$0xff]
        %v428 = vld [vmem:[%s373 + $0x170] sm:$0xff]
        %v429 = vld [vmem:[#allocation4] sm:$0xf]
        %v430 = vld [vmem:[#allocation4 + $0x4] sm:$0xf]
        %v431 = vld [vmem:[#allocation4 + $0x8] sm:$0xf]
        %v432 = vld [vmem:[#allocation4 + $0xc] sm:$0xf]
        %v433 = vld [vmem:[#allocation4 + $0x10] sm:$0xf]
        %v434 = vld [vmem:[#allocation4 + $0x14] sm:$0xf]
        %v435 = vld [vmem:[#allocation4 + $0x18] sm:$0xf]
        %v436 = vld [vmem:[#allocation4 + $0x1c] sm:$0xf]
        %v437 = vld [vmem:[#allocation4 + $0x20] sm:$0xf]
        %v438 = vld [vmem:[#allocation4 + $0x24] sm:$0xf]
        %v439 = vld [vmem:[#allocation4 + $0x28] sm:$0xf]
        %v440 = vld [vmem:[#allocation4 + $0x2c] sm:$0xf]
        %v441 = vld [vmem:[#allocation4 + $0x30] sm:$0xf]
        %v442 = vld [vmem:[#allocation4 + $0x34] sm:$0xf]
        %v443 = vld [vmem:[#allocation4 + $0x38] sm:$0xf]
        %v444 = vld [vmem:[#allocation4 + $0x3c] sm:$0xf]
        %v461 = vunpack.c.l.b16 %v429
        %v462 = vunpack.c.l.b16 %v430
        %v463 = vunpack.c.l.b16 %v431
        %v464 = vunpack.c.l.b16 %v432
        %v465 = vunpack.c.l.b16 %v433
        %v466 = vunpack.c.l.b16 %v434
        %v467 = vunpack.c.l.b16 %v435
        %v468 = vunpack.c.l.b16 %v436
        %v469 = vunpack.c.l.b16 %v437
        %v470 = vunpack.c.l.b16 %v438
        %v471 = vunpack.c.l.b16 %v439
        %v472 = vunpack.c.l.b16 %v440
        %v473 = vunpack.c.l.b16 %v441
        %v474 = vunpack.c.l.b16 %v442
        %v475 = vunpack.c.l.b16 %v443
        %v476 = vunpack.c.l.b16 %v444
        %v477 = vpack.c.b16 %v462, %v461
        %v478 = vpack.c.b16 %v464, %v463
        %v479 = vpack.c.b16 %v466, %v465
        %v480 = vpack.c.b16 %v468, %v467
        %v481 = vpack.c.b16 %v470, %v469
        %v482 = vpack.c.b16 %v472, %v471
        %v483 = vpack.c.b16 %v474, %v473
        %v484 = vpack.c.b16 %v476, %v475
        %493 = vmatprep.subr.bf16.mxu0 0
        %494 = vmatpush1.bf16.msra.mxu0 %v477
        %495 = vmatprep.subr.bf16.mxu0 0
        %496 = vmatpush1.bf16.msra.mxu0 %v478
        %497 = vmatprep.subr.bf16.mxu0 0
        %498 = vmatpush1.bf16.msra.mxu0 %v479
        %499 = vmatprep.subr.bf16.mxu0 0
        %500 = vmatpush1.bf16.msra.mxu0 %v480
        %501 = vmatprep.subr.bf16.mxu0 0
        %502 = vmatpush1.bf16.msra.mxu0 %v481
        %503 = vmatprep.subr.bf16.mxu0 0
        %504 = vmatpush1.bf16.msra.mxu0 %v482
        %505 = vmatprep.subr.bf16.mxu0 0
        %506 = vmatpush1.bf16.msra.mxu0 %v483
        %507 = vmatprep.subr.bf16.mxu0 0
        %508 = vmatpush1.bf16.msra.mxu0 %v484
        %509 = vmatprep.subr.bf16.mxu0 0
        %510 = vmatpush1.bf16.msra.mxu0 0
        %511 = vmatprep.subr.bf16.mxu0 0
        %512 = vmatpush1.bf16.msra.mxu0 0
        %513 = vmatprep.subr.bf16.mxu0 0
        %514 = vmatpush1.bf16.msra.mxu0 0
        %515 = vmatprep.subr.bf16.mxu0 0
        %516 = vmatpush1.bf16.msra.mxu0 0
        %517 = vmatprep.subr.bf16.mxu0 0
        %518 = vmatpush1.bf16.msra.mxu0 0
        %519 = vmatprep.subr.bf16.mxu0 0
        %520 = vmatpush1.bf16.msra.mxu0 0
        %521 = vmatprep.subr.bf16.mxu0 0
        %522 = vmatpush1.bf16.msra.mxu0 0
        %523 = vmatprep.subr.bf16.mxu0 0
        %524 = vmatpush1.bf16.msra.mxu0 0
        %525 = vmatprep.mubr.bf16.mxu0 0
        %526 = vmatmul.mubr.bf16.gmra.mrb[0].mxu0 %v413
        %v527 = vpop.f32.mrb[0].mxu0
        %v528 = vadd.f32 0.0, %v527
        %v529 = vpop.f32.mrb[0].mxu0
        %v530 = vpop.f32.mrb[0].mxu0
        %v531 = vadd.f32 0.0, %v530
        %v532 = vpop.f32.mrb[0].mxu0
        %533 = vmatprep.mubr.bf16.mxu0 0
        %534 = vmatmul.mubr.bf16.gmra.mrb[0].mxu0 %v414
        %v535 = vpop.f32.mrb[0].mxu0
        %v536 = vadd.f32 0.0, %v535
        %v537 = vpop.f32.mrb[0].mxu0
        %v538 = vpop.f32.mrb[0].mxu0
        %v539 = vadd.f32 0.0, %v538
        %v540 = vpop.f32.mrb[0].mxu0
        %541 = vmatprep.mubr.bf16.mxu0 0
        %542 = vmatmul.mubr.bf16.gmra.mrb[0].mxu0 %v415
        %v543 = vpop.f32.mrb[0].mxu0
        %v544 = vadd.f32 0.0, %v543
        %v545 = vpop.f32.mrb[0].mxu0
        %v546 = vpop.f32.mrb[0].mxu0
        %v547 = vadd.f32 0.0, %v546
        %v548 = vpop.f32.mrb[0].mxu0
        %549 = vmatprep.mubr.bf16.mxu0 0
        %550 = vmatmul.mubr.bf16.gmra.mrb[0].mxu0 %v416
        %v551 = vpop.f32.mrb[0].mxu0
        %v552 = vadd.f32 0.0, %v551
        %v553 = vpop.f32.mrb[0].mxu0
        %v554 = vpop.f32.mrb[0].mxu0
        %v555 = vadd.f32 0.0, %v554
        %v556 = vpop.f32.mrb[0].mxu0
        %557 = vmatprep.mubr.bf16.mxu0 0
        %558 = vmatmul.mubr.bf16.gmra.mrb[0].mxu0 %v417
        %v559 = vpop.f32.mrb[0].mxu0
        %v560 = vadd.f32 0.0, %v559
        %v561 = vpop.f32.mrb[0].mxu0
        %v562 = vpop.f32.mrb[0].mxu0
        %v563 = vadd.f32 0.0, %v562
        %v564 = vpop.f32.mrb[0].mxu0
        %565 = vmatprep.mubr.bf16.mxu0 0
        %566 = vmatmul.mubr.bf16.gmra.mrb[0].mxu0 %v418
        %v567 = vpop.f32.mrb[0].mxu0
        %v568 = vadd.f32 0.0, %v567
        %v569 = vpop.f32.mrb[0].mxu0
        %v570 = vpop.f32.mrb[0].mxu0
        %v571 = vadd.f32 0.0, %v570
        %v572 = vpop.f32.mrb[0].mxu0
        %573 = vmatprep.mubr.bf16.mxu0 0
        %574 = vmatmul.mubr.bf16.gmra.mrb[0].mxu0 %v419
        %v575 = vpop.f32.mrb[0].mxu0
        %v576 = vadd.f32 0.0, %v575
        %v577 = vpop.f32.mrb[0].mxu0
        %v578 = vpop.f32.mrb[0].mxu0
        %v579 = vadd.f32 0.0, %v578
        %v580 = vpop.f32.mrb[0].mxu0
        %581 = vmatprep.mubr.bf16.mxu0 0
        %582 = vmatmul.mubr.bf16.gmra.mrb[0].mxu0 %v420
        %v583 = vpop.f32.mrb[0].mxu0
        %v584 = vadd.f32 0.0, %v583
        %v585 = vpop.f32.mrb[0].mxu0
        %v586 = vpop.f32.mrb[0].mxu0
        %v587 = vadd.f32 0.0, %v586
        %v588 = vpop.f32.mrb[0].mxu0
        %589 = vmatprep.mubr.bf16.mxu0 0
        %590 = vmatmul.mubr.bf16.gmra.mrb[0].mxu0 %v421
        %v591 = vpop.f32.mrb[0].mxu0
        %v592 = vadd.f32 0.0, %v591
        %v593 = vpop.f32.mrb[0].mxu0
        %v594 = vpop.f32.mrb[0].mxu0
        %v595 = vadd.f32 0.0, %v594
        %v596 = vpop.f32.mrb[0].mxu0
        %597 = vmatprep.mubr.bf16.mxu0 0
        %598 = vmatmul.mubr.bf16.gmra.mrb[0].mxu0 %v422
        %v599 = vpop.f32.mrb[0].mxu0
        %v600 = vadd.f32 0.0, %v599
        %v601 = vpop.f32.mrb[0].mxu0
        %v602 = vpop.f32.mrb[0].mxu0
        %v603 = vadd.f32 0.0, %v602
        %v604 = vpop.f32.mrb[0].mxu0
        %605 = vmatprep.mubr.bf16.mxu0 0
        %606 = vmatmul.mubr.bf16.gmra.mrb[0].mxu0 %v423
        %v607 = vpop.f32.mrb[0].mxu0
        %v608 = vadd.f32 0.0, %v607
        %v609 = vpop.f32.mrb[0].mxu0
        %v610 = vpop.f32.mrb[0].mxu0
        %v611 = vadd.f32 0.0, %v610
        %v612 = vpop.f32.mrb[0].mxu0
        %613 = vmatprep.mubr.bf16.mxu0 0
        %614 = vmatmul.mubr.bf16.gmra.mrb[0].mxu0 %v424
        %v615 = vpop.f32.mrb[0].mxu0
        %v616 = vadd.f32 0.0, %v615
        %v617 = vpop.f32.mrb[0].mxu0
        %v618 = vpop.f32.mrb[0].mxu0
        %v619 = vadd.f32 0.0, %v618
        %v620 = vpop.f32.mrb[0].mxu0
        %621 = vmatprep.mubr.bf16.mxu0 0
        %622 = vmatmul.mubr.bf16.gmra.mrb[0].mxu0 %v425
        %v623 = vpop.f32.mrb[0].mxu0
        %v624 = vadd.f32 0.0, %v623
        %v625 = vpop.f32.mrb[0].mxu0
        %v626 = vpop.f32.mrb[0].mxu0
        %v627 = vadd.f32 0.0, %v626
        %v628 = vpop.f32.mrb[0].mxu0
        %629 = vmatprep.mubr.bf16.mxu0 0
        %630 = vmatmul.mubr.bf16.gmra.mrb[0].mxu0 %v426
        %v631 = vpop.f32.mrb[0].mxu0
        %v632 = vadd.f32 0.0, %v631
        %v633 = vpop.f32.mrb[0].mxu0
        %v634 = vpop.f32.mrb[0].mxu0
        %v635 = vadd.f32 0.0, %v634
        %v636 = vpop.f32.mrb[0].mxu0
        %637 = vmatprep.mubr.bf16.mxu0 0
        %638 = vmatmul.mubr.bf16.gmra.mrb[0].mxu0 %v427
        %v639 = vpop.f32.mrb[0].mxu0
        %v640 = vadd.f32 0.0, %v639
        %v641 = vpop.f32.mrb[0].mxu0
        %v642 = vpop.f32.mrb[0].mxu0
        %v643 = vadd.f32 0.0, %v642
        %v644 = vpop.f32.mrb[0].mxu0
        %645 = vmatprep.mubr.bf16.mxu0 0
        %646 = vmatmul.mubr.bf16.gmra.mrb[0].mxu0 %v428
        %v647 = vpop.f32.mrb[0].mxu0
        %v648 = vadd.f32 0.0, %v647
        %v649 = vpop.f32.mrb[0].mxu0
        %v650 = vpop.f32.mrb[0].mxu0
        %v651 = vadd.f32 0.0, %v650
        %v652 = vpop.f32.mrb[0].mxu0
        %653 = vdwg.mxu0
        %v654 = vlaneseq
        %v655 = vshrl.u32 %v654, 7
        %v656 = vsub.s32 0, %v655
        %v657 = vrot.slane %v406, %v656
        %v658 = vmul.f32 %v528, %v657
        %v659 = vmul.f32 %v531, %v657
        %v660 = vmul.f32 %v536, %v657
        %v661 = vmul.f32 %v539, %v657
        %v662 = vmul.f32 %v544, %v657
        %v663 = vmul.f32 %v547, %v657
        %v664 = vmul.f32 %v552, %v657
        %v665 = vmul.f32 %v555, %v657
        %v666 = vmul.f32 %v560, %v657
        %v667 = vmul.f32 %v563, %v657
        %v668 = vmul.f32 %v568, %v657
        %v669 = vmul.f32 %v571, %v657
        %v670 = vmul.f32 %v576, %v657
        %v671 = vmul.f32 %v579, %v657
        %v672 = vmul.f32 %v584, %v657
        %v673 = vmul.f32 %v587, %v657
        %v674 = vmul.f32 %v592, %v657
        %v675 = vmul.f32 %v595, %v657
        %v676 = vmul.f32 %v600, %v657
        %v677 = vmul.f32 %v603, %v657
        %v678 = vmul.f32 %v608, %v657
        %v679 = vmul.f32 %v611, %v657
        %v680 = vmul.f32 %v616, %v657
        %v681 = vmul.f32 %v619, %v657
        %v682 = vmul.f32 %v624, %v657
        %v683 = vmul.f32 %v627, %v657
        %v684 = vmul.f32 %v632, %v657
        %v685 = vmul.f32 %v635, %v657
        %v686 = vmul.f32 %v640, %v657
        %v687 = vmul.f32 %v643, %v657
        %v688 = vmul.f32 %v648, %v657
        %v689 = vmul.f32 %v651, %v657
        %v690 = vlaneseq
        %v691 = vshrl.u32 %v690, 7
        %v692 = vsub.s32 0, %v691
        %v693 = vrot.slane %v407, %v692
        %v694 = vadd.f32 %v658, %v693
        %v695 = vadd.f32 %v659, %v693
        %v696 = vadd.f32 %v660, %v693
        %v697 = vadd.f32 %v661, %v693
        %v698 = vadd.f32 %v662, %v693
        %v699 = vadd.f32 %v663, %v693
        %v700 = vadd.f32 %v664, %v693
        %v701 = vadd.f32 %v665, %v693
        %v702 = vadd.f32 %v666, %v693
        %v703 = vadd.f32 %v667, %v693
        %v704 = vadd.f32 %v668, %v693
        %v705 = vadd.f32 %v669, %v693
        %v706 = vadd.f32 %v670, %v693
        %v707 = vadd.f32 %v671, %v693
        %v708 = vadd.f32 %v672, %v693
        %v709 = vadd.f32 %v673, %v693
        %v710 = vadd.f32 %v674, %v693
        %v711 = vadd.f32 %v675, %v693
        %v712 = vadd.f32 %v676, %v693
        %v713 = vadd.f32 %v677, %v693
        %v714 = vadd.f32 %v678, %v693
        %v715 = vadd.f32 %v679, %v693
        %v716 = vadd.f32 %v680, %v693
        %v717 = vadd.f32 %v681, %v693
        %v718 = vadd.f32 %v682, %v693
        %v719 = vadd.f32 %v683, %v693
        %v720 = vadd.f32 %v684, %v693
        %v721 = vadd.f32 %v685, %v693
        %v722 = vadd.f32 %v686, %v693
        %v723 = vadd.f32 %v687, %v693
        %v724 = vadd.f32 %v688, %v693
        %v725 = vadd.f32 %v689, %v693
        %v726 = vmax.f32 %v694, 0.0
        %v727 = vmax.f32 %v695, 0.0
        %v728 = vmax.f32 %v696, 0.0
        %v729 = vmax.f32 %v697, 0.0
        %v730 = vmax.f32 %v698, 0.0
        %v731 = vmax.f32 %v699, 0.0
        %v732 = vmax.f32 %v700, 0.0
        %v733 = vmax.f32 %v701, 0.0
        %v734 = vmax.f32 %v702, 0.0
        %v735 = vmax.f32 %v703, 0.0
        %v736 = vmax.f32 %v704, 0.0
        %v737 = vmax.f32 %v705, 0.0
        %v738 = vmax.f32 %v706, 0.0
        %v739 = vmax.f32 %v707, 0.0
        %v740 = vmax.f32 %v708, 0.0
        %v741 = vmax.f32 %v709, 0.0
        %v742 = vmax.f32 %v710, 0.0
        %v743 = vmax.f32 %v711, 0.0
        %v744 = vmax.f32 %v712, 0.0
        %v745 = vmax.f32 %v713, 0.0
        %v746 = vmax.f32 %v714, 0.0
        %v747 = vmax.f32 %v715, 0.0
        %v748 = vmax.f32 %v716, 0.0
        %v749 = vmax.f32 %v717, 0.0
        %v750 = vmax.f32 %v718, 0.0
        %v751 = vmax.f32 %v719, 0.0
        %v752 = vmax.f32 %v720, 0.0
        %v753 = vmax.f32 %v721, 0.0
        %v754 = vmax.f32 %v722, 0.0
        %v755 = vmax.f32 %v723, 0.0
        %v756 = vmax.f32 %v724, 0.0
        %v757 = vmax.f32 %v725, 0.0
        %v758 = vpack.c.bf16 %v727, %v726
        %v759 = vpack.c.bf16 %v729, %v728
        %v760 = vpack.c.bf16 %v731, %v730
        %v761 = vpack.c.bf16 %v733, %v732
        %v762 = vpack.c.bf16 %v735, %v734
        %v763 = vpack.c.bf16 %v737, %v736
        %v764 = vpack.c.bf16 %v739, %v738
        %v765 = vpack.c.bf16 %v741, %v740
        %v766 = vpack.c.bf16 %v743, %v742
        %v767 = vpack.c.bf16 %v745, %v744
        %v768 = vpack.c.bf16 %v747, %v746
        %v769 = vpack.c.bf16 %v749, %v748
        %v770 = vpack.c.bf16 %v751, %v750
        %v771 = vpack.c.bf16 %v753, %v752
        %v772 = vpack.c.bf16 %v755, %v754
        %v773 = vpack.c.bf16 %v757, %v756
        %v774 = vld [vmem:[#allocation10] sm:$0xf]
        %v775 = vld [vmem:[#allocation10 + $0x4] sm:$0xf]
        %v776 = vld [vmem:[#allocation10 + $0x8] sm:$0xf]
        %v777 = vld [vmem:[#allocation10 + $0xc] sm:$0xf]
        %v778 = vld [vmem:[#allocation10 + $0x10] sm:$0xf]
        %v779 = vld [vmem:[#allocation10 + $0x14] sm:$0xf]
        %v780 = vld [vmem:[#allocation10 + $0x18] sm:$0xf]
        %v781 = vld [vmem:[#allocation10 + $0x1c] sm:$0xf]
        %v782 = vld [vmem:[#allocation10 + $0x20] sm:$0xf]
        %v783 = vld [vmem:[#allocation10 + $0x24] sm:$0xf]
        %v784 = vld [vmem:[#allocation10 + $0x28] sm:$0xf]
        %v785 = vld [vmem:[#allocation10 + $0x2c] sm:$0xf]
        %v786 = vld [vmem:[#allocation10 + $0x30] sm:$0xf]
        %v787 = vld [vmem:[#allocation10 + $0x34] sm:$0xf]
        %v788 = vld [vmem:[#allocation10 + $0x38] sm:$0xf]
        %v789 = vld [vmem:[#allocation10 + $0x3c] sm:$0xf]
        %s790 = scalar_lea.vmem [#allocation7], 256
        %v791 = vld [vmem:[%s790] sm:$0xf]
        %v792 = vld [vmem:[%s790 + $0x4] sm:$0xf]
        %v793 = vld [vmem:[%s790 + $0x8] sm:$0xf]
        %v794 = vld [vmem:[%s790 + $0xc] sm:$0xf]
        %v795 = vld [vmem:[%s790 + $0x10] sm:$0xf]
        %v796 = vld [vmem:[%s790 + $0x14] sm:$0xf]
        %v797 = vld [vmem:[%s790 + $0x18] sm:$0xf]
        %v798 = vld [vmem:[%s790 + $0x1c] sm:$0xf]
        %v799 = vld [vmem:[%s790 + $0x20] sm:$0xf]
        %v800 = vld [vmem:[%s790 + $0x24] sm:$0xf]
        %v801 = vld [vmem:[%s790 + $0x28] sm:$0xf]
        %v802 = vld [vmem:[%s790 + $0x2c] sm:$0xf]
        %v803 = vld [vmem:[%s790 + $0x30] sm:$0xf]
        %v804 = vld [vmem:[%s790 + $0x34] sm:$0xf]
        %v805 = vld [vmem:[%s790 + $0x38] sm:$0xf]
        %v806 = vld [vmem:[%s790 + $0x3c] sm:$0xf]
        %v807 = vld [vmem:[#allocation2] sm:$0xfc]
        %v808 = vld [vmem:[#allocation2 + $0x8] sm:$0x3]
        %v809 = vld [vmem:[#allocation2 + $0x18] sm:$0xfc]
        %v810 = vld [vmem:[#allocation2 + $0x20] sm:$0x3]
        %v811 = vld [vmem:[#allocation2 + $0x30] sm:$0xfc]
        %v812 = vld [vmem:[#allocation2 + $0x38] sm:$0x3]
        %v813 = vld [vmem:[#allocation2 + $0x48] sm:$0xfc]
        %v814 = vld [vmem:[#allocation2 + $0x50] sm:$0x3]
        %v815 = vld [vmem:[#allocation2 + $0x60] sm:$0xfc]
        %v816 = vld [vmem:[#allocation2 + $0x68] sm:$0x3]
        %v817 = vld [vmem:[#allocation2 + $0x78] sm:$0xfc]
        %v818 = vld [vmem:[#allocation2 + $0x80] sm:$0x3]
        %v819 = vld [vmem:[#allocation2 + $0x90] sm:$0xfc]
        %v820 = vld [vmem:[#allocation2 + $0x98] sm:$0x3]
        %v821 = vld [vmem:[#allocation2 + $0xa8] sm:$0xfc]
        %v822 = vld [vmem:[#allocation2 + $0xb0] sm:$0x3]
        %v823 = vld [vmem:[#allocation2 + $0xc0] sm:$0xfc]
        %v824 = vld [vmem:[#allocation2 + $0xc8] sm:$0x3]
        %v825 = vld [vmem:[#allocation2 + $0xd8] sm:$0xfc]
        %v826 = vld [vmem:[#allocation2 + $0xe0] sm:$0x3]
        %v827 = vld [vmem:[#allocation2 + $0xf0] sm:$0xfc]
        %v828 = vld [vmem:[#allocation2 + $0xf8] sm:$0x3]
        %v829 = vld [vmem:[#allocation2 + $0x108] sm:$0xfc]
        %v830 = vld [vmem:[#allocation2 + $0x110] sm:$0x3]
        %v831 = vld [vmem:[#allocation2 + $0x120] sm:$0xfc]
        %v832 = vld [vmem:[#allocation2 + $0x128] sm:$0x3]
        %v833 = vld [vmem:[#allocation2 + $0x138] sm:$0xfc]
        %v834 = vld [vmem:[#allocation2 + $0x140] sm:$0x3]
        %v835 = vld [vmem:[#allocation2 + $0x150] sm:$0xfc]
        %v836 = vld [vmem:[#allocation2 + $0x158] sm:$0x3]
        %v837 = vld [vmem:[#allocation2 + $0x168] sm:$0xfc]
        %v838 = vld [vmem:[#allocation2 + $0x170] sm:$0x3]
        %vm871 = vcmask 1045504
        %v872 = vrot.slane %v807, 2
        %v873 = vrot.slane %v808, 2
        %v874 = vsel %vm871, %v872, %v873
        %v875 = vrot.slane %v809, 2
        %v876 = vrot.slane %v810, 2
        %v877 = vsel %vm871, %v875, %v876
        %v878 = vrot.slane %v811, 2
        %v879 = vrot.slane %v812, 2
        %v880 = vsel %vm871, %v878, %v879
        %v881 = vrot.slane %v813, 2
        %v882 = vrot.slane %v814, 2
        %v883 = vsel %vm871, %v881, %v882
        %v884 = vrot.slane %v815, 2
        %v885 = vrot.slane %v816, 2
        %v886 = vsel %vm871, %v884, %v885
        %v887 = vrot.slane %v817, 2
        %v888 = vrot.slane %v818, 2
        %v889 = vsel %vm871, %v887, %v888
        %v890 = vrot.slane %v819, 2
        %v891 = vrot.slane %v820, 2
        %v892 = vsel %vm871, %v890, %v891
        %v893 = vrot.slane %v821, 2
        %v894 = vrot.slane %v822, 2
        %v895 = vsel %vm871, %v893, %v894
        %v896 = vrot.slane %v823, 2
        %v897 = vrot.slane %v824, 2
        %v898 = vsel %vm871, %v896, %v897
        %v899 = vrot.slane %v825, 2
        %v900 = vrot.slane %v826, 2
        %v901 = vsel %vm871, %v899, %v900
        %v902 = vrot.slane %v827, 2
        %v903 = vrot.slane %v828, 2
        %v904 = vsel %vm871, %v902, %v903
        %v905 = vrot.slane %v829, 2
        %v906 = vrot.slane %v830, 2
        %v907 = vsel %vm871, %v905, %v906
        %v908 = vrot.slane %v831, 2
        %v909 = vrot.slane %v832, 2
        %v910 = vsel %vm871, %v908, %v909
        %v911 = vrot.slane %v833, 2
        %v912 = vrot.slane %v834, 2
        %v913 = vsel %vm871, %v911, %v912
        %v914 = vrot.slane %v835, 2
        %v915 = vrot.slane %v836, 2
        %v916 = vsel %vm871, %v914, %v915
        %v917 = vrot.slane %v837, 2
        %v918 = vrot.slane %v838, 2
        %v919 = vsel %vm871, %v917, %v918
        %v936 = vld [vmem:[#allocation7] sm:$0xf]
        %v937 = vld [vmem:[#allocation7 + $0x4] sm:$0xf]
        %v938 = vld [vmem:[#allocation7 + $0x8] sm:$0xf]
        %v939 = vld [vmem:[#allocation7 + $0xc] sm:$0xf]
        %v940 = vld [vmem:[#allocation7 + $0x10] sm:$0xf]
        %v941 = vld [vmem:[#allocation7 + $0x14] sm:$0xf]
        %v942 = vld [vmem:[#allocation7 + $0x18] sm:$0xf]
        %v943 = vld [vmem:[#allocation7 + $0x1c] sm:$0xf]
        %v944 = vld [vmem:[#allocation7 + $0x20] sm:$0xf]
        %v945 = vld [vmem:[#allocation7 + $0x24] sm:$0xf]
        %v946 = vld [vmem:[#allocation7 + $0x28] sm:$0xf]
        %v947 = vld [vmem:[#allocation7 + $0x2c] sm:$0xf]
        %v948 = vld [vmem:[#allocation7 + $0x30] sm:$0xf]
        %v949 = vld [vmem:[#allocation7 + $0x34] sm:$0xf]
        %v950 = vld [vmem:[#allocation7 + $0x38] sm:$0xf]
        %v951 = vld [vmem:[#allocation7 + $0x3c] sm:$0xf]
        %v968 = vunpack.c.l.b16 %v936
        %v969 = vunpack.c.l.b16 %v937
        %v970 = vunpack.c.l.b16 %v938
        %v971 = vunpack.c.l.b16 %v939
        %v972 = vunpack.c.l.b16 %v940
        %v973 = vunpack.c.l.b16 %v941
        %v974 = vunpack.c.l.b16 %v942
        %v975 = vunpack.c.l.b16 %v943
        %v976 = vunpack.c.l.b16 %v944
        %v977 = vunpack.c.l.b16 %v945
        %v978 = vunpack.c.l.b16 %v946
        %v979 = vunpack.c.l.b16 %v947
        %v980 = vunpack.c.l.b16 %v948
        %v981 = vunpack.c.l.b16 %v949
        %v982 = vunpack.c.l.b16 %v950
        %v983 = vunpack.c.l.b16 %v951
        %v984 = vpack.c.b16 %v969, %v968
        %v985 = vpack.c.b16 %v971, %v970
        %v986 = vpack.c.b16 %v973, %v972
        %v987 = vpack.c.b16 %v975, %v974
        %v988 = vpack.c.b16 %v977, %v976
        %v989 = vpack.c.b16 %v979, %v978
        %v990 = vpack.c.b16 %v981, %v980
        %v991 = vpack.c.b16 %v983, %v982
        %1000 = vmatprep.subr.bf16.mxu0 0
        %1001 = vmatpush1.bf16.msra.mxu0 %v984
        %1002 = vmatprep.subr.bf16.mxu0 0
        %1003 = vmatpush1.bf16.msra.mxu0 %v985
        %1004 = vmatprep.subr.bf16.mxu0 0
        %1005 = vmatpush1.bf16.msra.mxu0 %v986
        %1006 = vmatprep.subr.bf16.mxu0 0
        %1007 = vmatpush1.bf16.msra.mxu0 %v987
        %1008 = vmatprep.subr.bf16.mxu0 0
        %1009 = vmatpush1.bf16.msra.mxu0 %v988
        %1010 = vmatprep.subr.bf16.mxu0 0
        %1011 = vmatpush1.bf16.msra.mxu0 %v989
        %1012 = vmatprep.subr.bf16.mxu0 0
        %1013 = vmatpush1.bf16.msra.mxu0 %v990
        %1014 = vmatprep.subr.bf16.mxu0 0
        %1015 = vmatpush1.bf16.msra.mxu0 %v991
        %1016 = vmatprep.subr.bf16.mxu0 0
        %1017 = vmatpush1.bf16.msra.mxu0 0
        %1018 = vmatprep.subr.bf16.mxu0 0
        %1019 = vmatpush1.bf16.msra.mxu0 0
        %1020 = vmatprep.subr.bf16.mxu0 0
        %1021 = vmatpush1.bf16.msra.mxu0 0
        %1022 = vmatprep.subr.bf16.mxu0 0
        %1023 = vmatpush1.bf16.msra.mxu0 0
        %1024 = vmatprep.subr.bf16.mxu0 0
        %1025 = vmatpush1.bf16.msra.mxu0 0
        %1026 = vmatprep.subr.bf16.mxu0 0
        %1027 = vmatpush1.bf16.msra.mxu0 0
        %1028 = vmatprep.subr.bf16.mxu0 0
        %1029 = vmatpush1.bf16.msra.mxu0 0
        %1030 = vmatprep.subr.bf16.mxu0 0
        %1031 = vmatpush1.bf16.msra.mxu0 0
        %1032 = vmatprep.mubr.bf16.mxu0 0
        %1033 = vmatmul.mubr.bf16.gmra.mrb[0].mxu0 %v874
        %v1034 = vpop.f32.mrb[0].mxu0
        %v1035 = vadd.f32 0.0, %v1034
        %v1036 = vpop.f32.mrb[0].mxu0
        %v1037 = vpop.f32.mrb[0].mxu0
        %v1038 = vadd.f32 0.0, %v1037
        %v1039 = vpop.f32.mrb[0].mxu0
        %1040 = vmatprep.mubr.bf16.mxu0 0
        %1041 = vmatmul.mubr.bf16.gmra.mrb[0].mxu0 %v877
        %v1042 = vpop.f32.mrb[0].mxu0
        %v1043 = vadd.f32 0.0, %v1042
        %v1044 = vpop.f32.mrb[0].mxu0
        %v1045 = vpop.f32.mrb[0].mxu0
        %v1046 = vadd.f32 0.0, %v1045
        %v1047 = vpop.f32.mrb[0].mxu0
        %1048 = vmatprep.mubr.bf16.mxu0 0
        %1049 = vmatmul.mubr.bf16.gmra.mrb[0].mxu0 %v880
        %v1050 = vpop.f32.mrb[0].mxu0
        %v1051 = vadd.f32 0.0, %v1050
        %v1052 = vpop.f32.mrb[0].mxu0
        %v1053 = vpop.f32.mrb[0].mxu0
        %v1054 = vadd.f32 0.0, %v1053
        %v1055 = vpop.f32.mrb[0].mxu0
        %1056 = vmatprep.mubr.bf16.mxu0 0
        %1057 = vmatmul.mubr.bf16.gmra.mrb[0].mxu0 %v883
        %v1058 = vpop.f32.mrb[0].mxu0
        %v1059 = vadd.f32 0.0, %v1058
        %v1060 = vpop.f32.mrb[0].mxu0
        %v1061 = vpop.f32.mrb[0].mxu0
        %v1062 = vadd.f32 0.0, %v1061
        %v1063 = vpop.f32.mrb[0].mxu0
        %1064 = vmatprep.mubr.bf16.mxu0 0
        %1065 = vmatmul.mubr.bf16.gmra.mrb[0].mxu0 %v886
        %v1066 = vpop.f32.mrb[0].mxu0
        %v1067 = vadd.f32 0.0, %v1066
        %v1068 = vpop.f32.mrb[0].mxu0
        %v1069 = vpop.f32.mrb[0].mxu0
        %v1070 = vadd.f32 0.0, %v1069
        %v1071 = vpop.f32.mrb[0].mxu0
        %1072 = vmatprep.mubr.bf16.mxu0 0
        %1073 = vmatmul.mubr.bf16.gmra.mrb[0].mxu0 %v889
        %v1074 = vpop.f32.mrb[0].mxu0
        %v1075 = vadd.f32 0.0, %v1074
        %v1076 = vpop.f32.mrb[0].mxu0
        %v1077 = vpop.f32.mrb[0].mxu0
        %v1078 = vadd.f32 0.0, %v1077
        %v1079 = vpop.f32.mrb[0].mxu0
        %1080 = vmatprep.mubr.bf16.mxu0 0
        %1081 = vmatmul.mubr.bf16.gmra.mrb[0].mxu0 %v892
        %v1082 = vpop.f32.mrb[0].mxu0
        %v1083 = vadd.f32 0.0, %v1082
        %v1084 = vpop.f32.mrb[0].mxu0
        %v1085 = vpop.f32.mrb[0].mxu0
        %v1086 = vadd.f32 0.0, %v1085
        %v1087 = vpop.f32.mrb[0].mxu0
        %1088 = vmatprep.mubr.bf16.mxu0 0
        %1089 = vmatmul.mubr.bf16.gmra.mrb[0].mxu0 %v895
        %v1090 = vpop.f32.mrb[0].mxu0
        %v1091 = vadd.f32 0.0, %v1090
        %v1092 = vpop.f32.mrb[0].mxu0
        %v1093 = vpop.f32.mrb[0].mxu0
        %v1094 = vadd.f32 0.0, %v1093
        %v1095 = vpop.f32.mrb[0].mxu0
        %1096 = vmatprep.mubr.bf16.mxu0 0
        %1097 = vmatmul.mubr.bf16.gmra.mrb[0].mxu0 %v898
        %v1098 = vpop.f32.mrb[0].mxu0
        %v1099 = vadd.f32 0.0, %v1098
        %v1100 = vpop.f32.mrb[0].mxu0
        %v1101 = vpop.f32.mrb[0].mxu0
        %v1102 = vadd.f32 0.0, %v1101
        %v1103 = vpop.f32.mrb[0].mxu0
        %1104 = vmatprep.mubr.bf16.mxu0 0
        %1105 = vmatmul.mubr.bf16.gmra.mrb[0].mxu0 %v901
        %v1106 = vpop.f32.mrb[0].mxu0
        %v1107 = vadd.f32 0.0, %v1106
        %v1108 = vpop.f32.mrb[0].mxu0
        %v1109 = vpop.f32.mrb[0].mxu0
        %v1110 = vadd.f32 0.0, %v1109
        %v1111 = vpop.f32.mrb[0].mxu0
        %1112 = vmatprep.mubr.bf16.mxu0 0
        %1113 = vmatmul.mubr.bf16.gmra.mrb[0].mxu0 %v904
        %v1114 = vpop.f32.mrb[0].mxu0
        %v1115 = vadd.f32 0.0, %v1114
        %v1116 = vpop.f32.mrb[0].mxu0
        %v1117 = vpop.f32.mrb[0].mxu0
        %v1118 = vadd.f32 0.0, %v1117
        %v1119 = vpop.f32.mrb[0].mxu0
        %1120 = vmatprep.mubr.bf16.mxu0 0
        %1121 = vmatmul.mubr.bf16.gmra.mrb[0].mxu0 %v907
        %v1122 = vpop.f32.mrb[0].mxu0
        %v1123 = vadd.f32 0.0, %v1122
        %v1124 = vpop.f32.mrb[0].mxu0
        %v1125 = vpop.f32.mrb[0].mxu0
        %v1126 = vadd.f32 0.0, %v1125
        %v1127 = vpop.f32.mrb[0].mxu0
        %1128 = vmatprep.mubr.bf16.mxu0 0
        %1129 = vmatmul.mubr.bf16.gmra.mrb[0].mxu0 %v910
        %v1130 = vpop.f32.mrb[0].mxu0
        %v1131 = vadd.f32 0.0, %v1130
        %v1132 = vpop.f32.mrb[0].mxu0
        %v1133 = vpop.f32.mrb[0].mxu0
        %v1134 = vadd.f32 0.0, %v1133
        %v1135 = vpop.f32.mrb[0].mxu0
        %1136 = vmatprep.mubr.bf16.mxu0 0
        %1137 = vmatmul.mubr.bf16.gmra.mrb[0].mxu0 %v913
        %v1138 = vpop.f32.mrb[0].mxu0
        %v1139 = vadd.f32 0.0, %v1138
        %v1140 = vpop.f32.mrb[0].mxu0
        %v1141 = vpop.f32.mrb[0].mxu0
        %v1142 = vadd.f32 0.0, %v1141
        %v1143 = vpop.f32.mrb[0].mxu0
        %1144 = vmatprep.mubr.bf16.mxu0 0
        %1145 = vmatmul.mubr.bf16.gmra.mrb[0].mxu0 %v916
        %v1146 = vpop.f32.mrb[0].mxu0
        %v1147 = vadd.f32 0.0, %v1146
        %v1148 = vpop.f32.mrb[0].mxu0
        %v1149 = vpop.f32.mrb[0].mxu0
        %v1150 = vadd.f32 0.0, %v1149
        %v1151 = vpop.f32.mrb[0].mxu0
        %1152 = vmatprep.mubr.bf16.mxu0 0
        %1153 = vmatmul.mubr.bf16.gmra.mrb[0].mxu0 %v919
        %v1154 = vpop.f32.mrb[0].mxu0
        %v1155 = vadd.f32 0.0, %v1154
        %v1156 = vpop.f32.mrb[0].mxu0
        %v1157 = vpop.f32.mrb[0].mxu0
        %v1158 = vadd.f32 0.0, %v1157
        %v1159 = vpop.f32.mrb[0].mxu0
        %1160 = vdwg.mxu0
        %v1177 = vunpack.c.l.b16 %v791
        %v1178 = vunpack.c.l.b16 %v792
        %v1179 = vunpack.c.l.b16 %v793
        %v1180 = vunpack.c.l.b16 %v794
        %v1181 = vunpack.c.l.b16 %v795
        %v1182 = vunpack.c.l.b16 %v796
        %v1183 = vunpack.c.l.b16 %v797
        %v1184 = vunpack.c.l.b16 %v798
        %v1185 = vunpack.c.l.b16 %v799
        %v1186 = vunpack.c.l.b16 %v800
        %v1187 = vunpack.c.l.b16 %v801
        %v1188 = vunpack.c.l.b16 %v802
        %v1189 = vunpack.c.l.b16 %v803
        %v1190 = vunpack.c.l.b16 %v804
        %v1191 = vunpack.c.l.b16 %v805
        %v1192 = vunpack.c.l.b16 %v806
        %v1193 = vpack.c.b16 %v1178, %v1177
        %v1194 = vpack.c.b16 %v1180, %v1179
        %v1195 = vpack.c.b16 %v1182, %v1181
        %v1196 = vpack.c.b16 %v1184, %v1183
        %v1197 = vpack.c.b16 %v1186, %v1185
        %v1198 = vpack.c.b16 %v1188, %v1187
        %v1199 = vpack.c.b16 %v1190, %v1189
        %v1200 = vpack.c.b16 %v1192, %v1191
        %1209 = vmatprep.subr.bf16.mxu0 0
        %1210 = vmatpush1.bf16.msra.mxu0 %v1193
        %1211 = vmatprep.subr.bf16.mxu0 0
        %1212 = vmatpush1.bf16.msra.mxu0 %v1194
        %1213 = vmatprep.subr.bf16.mxu0 0
        %1214 = vmatpush1.bf16.msra.mxu0 %v1195
        %1215 = vmatprep.subr.bf16.mxu0 0
        %1216 = vmatpush1.bf16.msra.mxu0 %v1196
        %1217 = vmatprep.subr.bf16.mxu0 0
        %1218 = vmatpush1.bf16.msra.mxu0 %v1197
        %1219 = vmatprep.subr.bf16.mxu0 0
        %1220 = vmatpush1.bf16.msra.mxu0 %v1198
        %1221 = vmatprep.subr.bf16.mxu0 0
        %1222 = vmatpush1.bf16.msra.mxu0 %v1199
        %1223 = vmatprep.subr.bf16.mxu0 0
        %1224 = vmatpush1.bf16.msra.mxu0 %v1200
        %1225 = vmatprep.subr.bf16.mxu0 0
        %1226 = vmatpush1.bf16.msra.mxu0 0
        %1227 = vmatprep.subr.bf16.mxu0 0
        %1228 = vmatpush1.bf16.msra.mxu0 0
        %1229 = vmatprep.subr.bf16.mxu0 0
        %1230 = vmatpush1.bf16.msra.mxu0 0
        %1231 = vmatprep.subr.bf16.mxu0 0
        %1232 = vmatpush1.bf16.msra.mxu0 0
        %1233 = vmatprep.subr.bf16.mxu0 0
        %1234 = vmatpush1.bf16.msra.mxu0 0
        %1235 = vmatprep.subr.bf16.mxu0 0
        %1236 = vmatpush1.bf16.msra.mxu0 0
        %1237 = vmatprep.subr.bf16.mxu0 0
        %1238 = vmatpush1.bf16.msra.mxu0 0
        %1239 = vmatprep.subr.bf16.mxu0 0
        %1240 = vmatpush1.bf16.msra.mxu0 0
        %1241 = vmatprep.mubr.bf16.mxu0 0
        %1242 = vmatmul.mubr.bf16.gmra.mrb[0].mxu0 %v413
        %v1243 = vpop.f32.mrb[0].mxu0
        %v1244 = vadd.f32 %v1035, %v1243
        %v1245 = vpop.f32.mrb[0].mxu0
        %v1246 = vpop.f32.mrb[0].mxu0
        %v1247 = vadd.f32 %v1038, %v1246
        %v1248 = vpop.f32.mrb[0].mxu0
        %1249 = vmatprep.mubr.bf16.mxu0 0
        %1250 = vmatmul.mubr.bf16.gmra.mrb[0].mxu0 %v414
        %v1251 = vpop.f32.mrb[0].mxu0
        %v1252 = vadd.f32 %v1043, %v1251
        %v1253 = vpop.f32.mrb[0].mxu0
        %v1254 = vpop.f32.mrb[0].mxu0
        %v1255 = vadd.f32 %v1046, %v1254
        %v1256 = vpop.f32.mrb[0].mxu0
        %1257 = vmatprep.mubr.bf16.mxu0 0
        %1258 = vmatmul.mubr.bf16.gmra.mrb[0].mxu0 %v415
        %v1259 = vpop.f32.mrb[0].mxu0
        %v1260 = vadd.f32 %v1051, %v1259
        %v1261 = vpop.f32.mrb[0].mxu0
        %v1262 = vpop.f32.mrb[0].mxu0
        %v1263 = vadd.f32 %v1054, %v1262
        %v1264 = vpop.f32.mrb[0].mxu0
        %1265 = vmatprep.mubr.bf16.mxu0 0
        %1266 = vmatmul.mubr.bf16.gmra.mrb[0].mxu0 %v416
        %v1267 = vpop.f32.mrb[0].mxu0
        %v1268 = vadd.f32 %v1059, %v1267
        %v1269 = vpop.f32.mrb[0].mxu0
        %v1270 = vpop.f32.mrb[0].mxu0
        %v1271 = vadd.f32 %v1062, %v1270
        %v1272 = vpop.f32.mrb[0].mxu0
        %1273 = vmatprep.mubr.bf16.mxu0 0
        %1274 = vmatmul.mubr.bf16.gmra.mrb[0].mxu0 %v417
        %v1275 = vpop.f32.mrb[0].mxu0
        %v1276 = vadd.f32 %v1067, %v1275
        %v1277 = vpop.f32.mrb[0].mxu0
        %v1278 = vpop.f32.mrb[0].mxu0
        %v1279 = vadd.f32 %v1070, %v1278
        %v1280 = vpop.f32.mrb[0].mxu0
        %1281 = vmatprep.mubr.bf16.mxu0 0
        %1282 = vmatmul.mubr.bf16.gmra.mrb[0].mxu0 %v418
        %v1283 = vpop.f32.mrb[0].mxu0
        %v1284 = vadd.f32 %v1075, %v1283
        %v1285 = vpop.f32.mrb[0].mxu0
        %v1286 = vpop.f32.mrb[0].mxu0
        %v1287 = vadd.f32 %v1078, %v1286
        %v1288 = vpop.f32.mrb[0].mxu0
        %1289 = vmatprep.mubr.bf16.mxu0 0
        %1290 = vmatmul.mubr.bf16.gmra.mrb[0].mxu0 %v419
        %v1291 = vpop.f32.mrb[0].mxu0
        %v1292 = vadd.f32 %v1083, %v1291
        %v1293 = vpop.f32.mrb[0].mxu0
        %v1294 = vpop.f32.mrb[0].mxu0
        %v1295 = vadd.f32 %v1086, %v1294
        %v1296 = vpop.f32.mrb[0].mxu0
        %1297 = vmatprep.mubr.bf16.mxu0 0
        %1298 = vmatmul.mubr.bf16.gmra.mrb[0].mxu0 %v420
        %v1299 = vpop.f32.mrb[0].mxu0
        %v1300 = vadd.f32 %v1091, %v1299
        %v1301 = vpop.f32.mrb[0].mxu0
        %v1302 = vpop.f32.mrb[0].mxu0
        %v1303 = vadd.f32 %v1094, %v1302
        %v1304 = vpop.f32.mrb[0].mxu0
        %1305 = vmatprep.mubr.bf16.mxu0 0
        %1306 = vmatmul.mubr.bf16.gmra.mrb[0].mxu0 %v421
        %v1307 = vpop.f32.mrb[0].mxu0
        %v1308 = vadd.f32 %v1099, %v1307
        %v1309 = vpop.f32.mrb[0].mxu0
        %v1310 = vpop.f32.mrb[0].mxu0
        %v1311 = vadd.f32 %v1102, %v1310
        %v1312 = vpop.f32.mrb[0].mxu0
        %1313 = vmatprep.mubr.bf16.mxu0 0
        %1314 = vmatmul.mubr.bf16.gmra.mrb[0].mxu0 %v422
        %v1315 = vpop.f32.mrb[0].mxu0
        %v1316 = vadd.f32 %v1107, %v1315
        %v1317 = vpop.f32.mrb[0].mxu0
        %v1318 = vpop.f32.mrb[0].mxu0
        %v1319 = vadd.f32 %v1110, %v1318
        %v1320 = vpop.f32.mrb[0].mxu0
        %1321 = vmatprep.mubr.bf16.mxu0 0
        %1322 = vmatmul.mubr.bf16.gmra.mrb[0].mxu0 %v423
        %v1323 = vpop.f32.mrb[0].mxu0
        %v1324 = vadd.f32 %v1115, %v1323
        %v1325 = vpop.f32.mrb[0].mxu0
        %v1326 = vpop.f32.mrb[0].mxu0
        %v1327 = vadd.f32 %v1118, %v1326
        %v1328 = vpop.f32.mrb[0].mxu0
        %1329 = vmatprep.mubr.bf16.mxu0 0
        %1330 = vmatmul.mubr.bf16.gmra.mrb[0].mxu0 %v424
        %v1331 = vpop.f32.mrb[0].mxu0
        %v1332 = vadd.f32 %v1123, %v1331
        %v1333 = vpop.f32.mrb[0].mxu0
        %v1334 = vpop.f32.mrb[0].mxu0
        %v1335 = vadd.f32 %v1126, %v1334
        %v1336 = vpop.f32.mrb[0].mxu0
        %1337 = vmatprep.mubr.bf16.mxu0 0
        %1338 = vmatmul.mubr.bf16.gmra.mrb[0].mxu0 %v425
        %v1339 = vpop.f32.mrb[0].mxu0
        %v1340 = vadd.f32 %v1131, %v1339
        %v1341 = vpop.f32.mrb[0].mxu0
        %v1342 = vpop.f32.mrb[0].mxu0
        %v1343 = vadd.f32 %v1134, %v1342
        %v1344 = vpop.f32.mrb[0].mxu0
        %1345 = vmatprep.mubr.bf16.mxu0 0
        %1346 = vmatmul.mubr.bf16.gmra.mrb[0].mxu0 %v426
        %v1347 = vpop.f32.mrb[0].mxu0
        %v1348 = vadd.f32 %v1139, %v1347
        %v1349 = vpop.f32.mrb[0].mxu0
        %v1350 = vpop.f32.mrb[0].mxu0
        %v1351 = vadd.f32 %v1142, %v1350
        %v1352 = vpop.f32.mrb[0].mxu0
        %1353 = vmatprep.mubr.bf16.mxu0 0
        %1354 = vmatmul.mubr.bf16.gmra.mrb[0].mxu0 %v427
        %v1355 = vpop.f32.mrb[0].mxu0
        %v1356 = vadd.f32 %v1147, %v1355
        %v1357 = vpop.f32.mrb[0].mxu0
        %v1358 = vpop.f32.mrb[0].mxu0
        %v1359 = vadd.f32 %v1150, %v1358
        %v1360 = vpop.f32.mrb[0].mxu0
        %1361 = vmatprep.mubr.bf16.mxu0 0
        %1362 = vmatmul.mubr.bf16.gmra.mrb[0].mxu0 %v428
        %v1363 = vpop.f32.mrb[0].mxu0
        %v1364 = vadd.f32 %v1155, %v1363
        %v1365 = vpop.f32.mrb[0].mxu0
        %v1366 = vpop.f32.mrb[0].mxu0
        %v1367 = vadd.f32 %v1158, %v1366
        %v1368 = vpop.f32.mrb[0].mxu0
        %1369 = vdwg.mxu0
        %v1370 = vld [vmem:[#allocation2 + $0x8] sm:$0xff]
        %v1371 = vld [vmem:[#allocation2 + $0x20] sm:$0xff]
        %v1372 = vld [vmem:[#allocation2 + $0x38] sm:$0xff]
        %v1373 = vld [vmem:[#allocation2 + $0x50] sm:$0xff]
        %v1374 = vld [vmem:[#allocation2 + $0x68] sm:$0xff]
        %v1375 = vld [vmem:[#allocation2 + $0x80] sm:$0xff]
        %v1376 = vld [vmem:[#allocation2 + $0x98] sm:$0xff]
        %v1377 = vld [vmem:[#allocation2 + $0xb0] sm:$0xff]
        %v1378 = vld [vmem:[#allocation2 + $0xc8] sm:$0xff]
        %v1379 = vld [vmem:[#allocation2 + $0xe0] sm:$0xff]
        %v1380 = vld [vmem:[#allocation2 + $0xf8] sm:$0xff]
        %v1381 = vld [vmem:[#allocation2 + $0x110] sm:$0xff]
        %v1382 = vld [vmem:[#allocation2 + $0x128] sm:$0xff]
        %v1383 = vld [vmem:[#allocation2 + $0x140] sm:$0xff]
        %v1384 = vld [vmem:[#allocation2 + $0x158] sm:$0xff]
        %v1385 = vld [vmem:[#allocation2 + $0x170] sm:$0xff]
        %s1386 = scalar_lea.vmem [#allocation7], 64
        %v1387 = vld [vmem:[%s1386] sm:$0xf]
        %v1388 = vld [vmem:[%s1386 + $0x4] sm:$0xf]
        %v1389 = vld [vmem:[%s1386 + $0x8] sm:$0xf]
        %v1390 = vld [vmem:[%s1386 + $0xc] sm:$0xf]
        %v1391 = vld [vmem:[%s1386 + $0x10] sm:$0xf]
        %v1392 = vld [vmem:[%s1386 + $0x14] sm:$0xf]
        %v1393 = vld [vmem:[%s1386 + $0x18] sm:$0xf]
        %v1394 = vld [vmem:[%s1386 + $0x1c] sm:$0xf]
        %v1395 = vld [vmem:[%s1386 + $0x20] sm:$0xf]
        %v1396 = vld [vmem:[%s1386 + $0x24] sm:$0xf]
        %v1397 = vld [vmem:[%s1386 + $0x28] sm:$0xf]
        %v1398 = vld [vmem:[%s1386 + $0x2c] sm:$0xf]
        %v1399 = vld [vmem:[%s1386 + $0x30] sm:$0xf]
        %v1400 = vld [vmem:[%s1386 + $0x34] sm:$0xf]
        %v1401 = vld [vmem:[%s1386 + $0x38] sm:$0xf]
        %v1402 = vld [vmem:[%s1386 + $0x3c] sm:$0xf]
        %v1419 = vunpack.c.l.b16 %v1387
        %v1420 = vunpack.c.l.b16 %v1388
        %v1421 = vunpack.c.l.b16 %v1389
        %v1422 = vunpack.c.l.b16 %v1390
        %v1423 = vunpack.c.l.b16 %v1391
        %v1424 = vunpack.c.l.b16 %v1392
        %v1425 = vunpack.c.l.b16 %v1393
        %v1426 = vunpack.c.l.b16 %v1394
        %v1427 = vunpack.c.l.b16 %v1395
        %v1428 = vunpack.c.l.b16 %v1396
        %v1429 = vunpack.c.l.b16 %v1397
        %v1430 = vunpack.c.l.b16 %v1398
        %v1431 = vunpack.c.l.b16 %v1399
        %v1432 = vunpack.c.l.b16 %v1400
        %v1433 = vunpack.c.l.b16 %v1401
        %v1434 = vunpack.c.l.b16 %v1402
        %v1435 = vpack.c.b16 %v1420, %v1419
        %v1436 = vpack.c.b16 %v1422, %v1421
        %v1437 = vpack.c.b16 %v1424, %v1423
        %v1438 = vpack.c.b16 %v1426, %v1425
        %v1439 = vpack.c.b16 %v1428, %v1427
        %v1440 = vpack.c.b16 %v1430, %v1429
        %v1441 = vpack.c.b16 %v1432, %v1431
        %v1442 = vpack.c.b16 %v1434, %v1433
        %1451 = vmatprep.subr.bf16.mxu0 0
        %1452 = vmatpush1.bf16.msra.mxu0 %v1435
        %1453 = vmatprep.subr.bf16.mxu0 0
        %1454 = vmatpush1.bf16.msra.mxu0 %v1436
        %1455 = vmatprep.subr.bf16.mxu0 0
        %1456 = vmatpush1.bf16.msra.mxu0 %v1437
        %1457 = vmatprep.subr.bf16.mxu0 0
        %1458 = vmatpush1.bf16.msra.mxu0 %v1438
        %1459 = vmatprep.subr.bf16.mxu0 0
        %1460 = vmatpush1.bf16.msra.mxu0 %v1439
        %1461 = vmatprep.subr.bf16.mxu0 0
        %1462 = vmatpush1.bf16.msra.mxu0 %v1440
        %1463 = vmatprep.subr.bf16.mxu0 0
        %1464 = vmatpush1.bf16.msra.mxu0 %v1441
        %1465 = vmatprep.subr.bf16.mxu0 0
        %1466 = vmatpush1.bf16.msra.mxu0 %v1442
        %1467 = vmatprep.subr.bf16.mxu0 0
        %1468 = vmatpush1.bf16.msra.mxu0 0
        %1469 = vmatprep.subr.bf16.mxu0 0
        %1470 = vmatpush1.bf16.msra.mxu0 0
        %1471 = vmatprep.subr.bf16.mxu0 0
        %1472 = vmatpush1.bf16.msra.mxu0 0
        %1473 = vmatprep.subr.bf16.mxu0 0
        %1474 = vmatpush1.bf16.msra.mxu0 0
        %1475 = vmatprep.subr.bf16.mxu0 0
        %1476 = vmatpush1.bf16.msra.mxu0 0
        %1477 = vmatprep.subr.bf16.mxu0 0
        %1478 = vmatpush1.bf16.msra.mxu0 0
        %1479 = vmatprep.subr.bf16.mxu0 0
        %1480 = vmatpush1.bf16.msra.mxu0 0
        %1481 = vmatprep.subr.bf16.mxu0 0
        %1482 = vmatpush1.bf16.msra.mxu0 0
        %1483 = vmatprep.mubr.bf16.mxu0 0
        %1484 = vmatmul.mubr.bf16.gmra.mrb[0].mxu0 %v1370
        %v1485 = vpop.f32.mrb[0].mxu0
        %v1486 = vadd.f32 0.0, %v1485
        %v1487 = vpop.f32.mrb[0].mxu0
        %v1488 = vpop.f32.mrb[0].mxu0
        %v1489 = vadd.f32 0.0, %v1488
        %v1490 = vpop.f32.mrb[0].mxu0
        %1491 = vmatprep.mubr.bf16.mxu0 0
        %1492 = vmatmul.mubr.bf16.gmra.mrb[0].mxu0 %v1371
        %v1493 = vpop.f32.mrb[0].mxu0
        %v1494 = vadd.f32 0.0, %v1493
        %v1495 = vpop.f32.mrb[0].mxu0
        %v1496 = vpop.f32.mrb[0].mxu0
        %v1497 = vadd.f32 0.0, %v1496
        %v1498 = vpop.f32.mrb[0].mxu0
        %1499 = vmatprep.mubr.bf16.mxu0 0
        %1500 = vmatmul.mubr.bf16.gmra.mrb[0].mxu0 %v1372
        %v1501 = vpop.f32.mrb[0].mxu0
        %v1502 = vadd.f32 0.0, %v1501
        %v1503 = vpop.f32.mrb[0].mxu0
        %v1504 = vpop.f32.mrb[0].mxu0
        %v1505 = vadd.f32 0.0, %v1504
        %v1506 = vpop.f32.mrb[0].mxu0
        %1507 = vmatprep.mubr.bf16.mxu0 0
        %1508 = vmatmul.mubr.bf16.gmra.mrb[0].mxu0 %v1373
        %v1509 = vpop.f32.mrb[0].mxu0
        %v1510 = vadd.f32 0.0, %v1509
        %v1511 = vpop.f32.mrb[0].mxu0
        %v1512 = vpop.f32.mrb[0].mxu0
        %v1513 = vadd.f32 0.0, %v1512
        %v1514 = vpop.f32.mrb[0].mxu0
        %1515 = vmatprep.mubr.bf16.mxu0 0
        %1516 = vmatmul.mubr.bf16.gmra.mrb[0].mxu0 %v1374
        %v1517 = vpop.f32.mrb[0].mxu0
        %v1518 = vadd.f32 0.0, %v1517
        %v1519 = vpop.f32.mrb[0].mxu0
        %v1520 = vpop.f32.mrb[0].mxu0
        %v1521 = vadd.f32 0.0, %v1520
        %v1522 = vpop.f32.mrb[0].mxu0
        %1523 = vmatprep.mubr.bf16.mxu0 0
        %1524 = vmatmul.mubr.bf16.gmra.mrb[0].mxu0 %v1375
        %v1525 = vpop.f32.mrb[0].mxu0
        %v1526 = vadd.f32 0.0, %v1525
        %v1527 = vpop.f32.mrb[0].mxu0
        %v1528 = vpop.f32.mrb[0].mxu0
        %v1529 = vadd.f32 0.0, %v1528
        %v1530 = vpop.f32.mrb[0].mxu0
        %1531 = vmatprep.mubr.bf16.mxu0 0
        %1532 = vmatmul.mubr.bf16.gmra.mrb[0].mxu0 %v1376
        %v1533 = vpop.f32.mrb[0].mxu0
        %v1534 = vadd.f32 0.0, %v1533
        %v1535 = vpop.f32.mrb[0].mxu0
        %v1536 = vpop.f32.mrb[0].mxu0
        %v1537 = vadd.f32 0.0, %v1536
        %v1538 = vpop.f32.mrb[0].mxu0
        %1539 = vmatprep.mubr.bf16.mxu0 0
        %1540 = vmatmul.mubr.bf16.gmra.mrb[0].mxu0 %v1377
        %v1541 = vpop.f32.mrb[0].mxu0
        %v1542 = vadd.f32 0.0, %v1541
        %v1543 = vpop.f32.mrb[0].mxu0
        %v1544 = vpop.f32.mrb[0].mxu0
        %v1545 = vadd.f32 0.0, %v1544
        %v1546 = vpop.f32.mrb[0].mxu0
        %1547 = vmatprep.mubr.bf16.mxu0 0
        %1548 = vmatmul.mubr.bf16.gmra.mrb[0].mxu0 %v1378
        %v1549 = vpop.f32.mrb[0].mxu0
        %v1550 = vadd.f32 0.0, %v1549
        %v1551 = vpop.f32.mrb[0].mxu0
        %v1552 = vpop.f32.mrb[0].mxu0
        %v1553 = vadd.f32 0.0, %v1552
        %v1554 = vpop.f32.mrb[0].mxu0
        %1555 = vmatprep.mubr.bf16.mxu0 0
        %1556 = vmatmul.mubr.bf16.gmra.mrb[0].mxu0 %v1379
        %v1557 = vpop.f32.mrb[0].mxu0
        %v1558 = vadd.f32 0.0, %v1557
        %v1559 = vpop.f32.mrb[0].mxu0
        %v1560 = vpop.f32.mrb[0].mxu0
        %v1561 = vadd.f32 0.0, %v1560
        %v1562 = vpop.f32.mrb[0].mxu0
        %1563 = vmatprep.mubr.bf16.mxu0 0
        %1564 = vmatmul.mubr.bf16.gmra.mrb[0].mxu0 %v1380
        %v1565 = vpop.f32.mrb[0].mxu0
        %v1566 = vadd.f32 0.0, %v1565
        %v1567 = vpop.f32.mrb[0].mxu0
        %v1568 = vpop.f32.mrb[0].mxu0
        %v1569 = vadd.f32 0.0, %v1568
        %v1570 = vpop.f32.mrb[0].mxu0
        %1571 = vmatprep.mubr.bf16.mxu0 0
        %1572 = vmatmul.mubr.bf16.gmra.mrb[0].mxu0 %v1381
        %v1573 = vpop.f32.mrb[0].mxu0
        %v1574 = vadd.f32 0.0, %v1573
        %v1575 = vpop.f32.mrb[0].mxu0
        %v1576 = vpop.f32.mrb[0].mxu0
        %v1577 = vadd.f32 0.0, %v1576
        %v1578 = vpop.f32.mrb[0].mxu0
        %1579 = vmatprep.mubr.bf16.mxu0 0
        %1580 = vmatmul.mubr.bf16.gmra.mrb[0].mxu0 %v1382
        %v1581 = vpop.f32.mrb[0].mxu0
        %v1582 = vadd.f32 0.0, %v1581
        %v1583 = vpop.f32.mrb[0].mxu0
        %v1584 = vpop.f32.mrb[0].mxu0
        %v1585 = vadd.f32 0.0, %v1584
        %v1586 = vpop.f32.mrb[0].mxu0
        %1587 = vmatprep.mubr.bf16.mxu0 0
        %1588 = vmatmul.mubr.bf16.gmra.mrb[0].mxu0 %v1383
        %v1589 = vpop.f32.mrb[0].mxu0
        %v1590 = vadd.f32 0.0, %v1589
        %v1591 = vpop.f32.mrb[0].mxu0
        %v1592 = vpop.f32.mrb[0].mxu0
        %v1593 = vadd.f32 0.0, %v1592
        %v1594 = vpop.f32.mrb[0].mxu0
        %1595 = vmatprep.mubr.bf16.mxu0 0
        %1596 = vmatmul.mubr.bf16.gmra.mrb[0].mxu0 %v1384
        %v1597 = vpop.f32.mrb[0].mxu0
        %v1598 = vadd.f32 0.0, %v1597
        %v1599 = vpop.f32.mrb[0].mxu0
        %v1600 = vpop.f32.mrb[0].mxu0
        %v1601 = vadd.f32 0.0, %v1600
        %v1602 = vpop.f32.mrb[0].mxu0
        %1603 = vmatprep.mubr.bf16.mxu0 0
        %1604 = vmatmul.mubr.bf16.gmra.mrb[0].mxu0 %v1385
        %v1605 = vpop.f32.mrb[0].mxu0
        %v1606 = vadd.f32 0.0, %v1605
        %v1607 = vpop.f32.mrb[0].mxu0
        %v1608 = vpop.f32.mrb[0].mxu0
        %v1609 = vadd.f32 0.0, %v1608
        %v1610 = vpop.f32.mrb[0].mxu0
        %1611 = vdwg.mxu0
        %v1612 = vadd.f32 %v1244, %v1486
        %v1613 = vadd.f32 %v1247, %v1489
        %v1614 = vadd.f32 %v1252, %v1494
        %v1615 = vadd.f32 %v1255, %v1497
        %v1616 = vadd.f32 %v1260, %v1502
        %v1617 = vadd.f32 %v1263, %v1505
        %v1618 = vadd.f32 %v1268, %v1510
        %v1619 = vadd.f32 %v1271, %v1513
        %v1620 = vadd.f32 %v1276, %v1518
        %v1621 = vadd.f32 %v1279, %v1521
        %v1622 = vadd.f32 %v1284, %v1526
        %v1623 = vadd.f32 %v1287, %v1529
        %v1624 = vadd.f32 %v1292, %v1534
        %v1625 = vadd.f32 %v1295, %v1537
        %v1626 = vadd.f32 %v1300, %v1542
        %v1627 = vadd.f32 %v1303, %v1545
        %v1628 = vadd.f32 %v1308, %v1550
        %v1629 = vadd.f32 %v1311, %v1553
        %v1630 = vadd.f32 %v1316, %v1558
        %v1631 = vadd.f32 %v1319, %v1561
        %v1632 = vadd.f32 %v1324, %v1566
        %v1633 = vadd.f32 %v1327, %v1569
        %v1634 = vadd.f32 %v1332, %v1574
        %v1635 = vadd.f32 %v1335, %v1577
        %v1636 = vadd.f32 %v1340, %v1582
        %v1637 = vadd.f32 %v1343, %v1585
        %v1638 = vadd.f32 %v1348, %v1590
        %v1639 = vadd.f32 %v1351, %v1593
        %v1640 = vadd.f32 %v1356, %v1598
        %v1641 = vadd.f32 %v1359, %v1601
        %v1642 = vadd.f32 %v1364, %v1606
        %v1643 = vadd.f32 %v1367, %v1609
        %v1644 = vld [vmem:[#allocation2 + $0x8] sm:$0xc0]
        %v1645 = vld [vmem:[#allocation2 + $0x10] sm:$0x3f]
        %v1646 = vld [vmem:[#allocation2 + $0x20] sm:$0xc0]
        %v1647 = vld [vmem:[#allocation2 + $0x28] sm:$0x3f]
        %v1648 = vld [vmem:[#allocation2 + $0x38] sm:$0xc0]
        %v1649 = vld [vmem:[#allocation2 + $0x40] sm:$0x3f]
        %v1650 = vld [vmem:[#allocation2 + $0x50] sm:$0xc0]
        %v1651 = vld [vmem:[#allocation2 + $0x58] sm:$0x3f]
        %v1652 = vld [vmem:[#allocation2 + $0x68] sm:$0xc0]
        %v1653 = vld [vmem:[#allocation2 + $0x70] sm:$0x3f]
        %v1654 = vld [vmem:[#allocation2 + $0x80] sm:$0xc0]
        %v1655 = vld [vmem:[#allocation2 + $0x88] sm:$0x3f]
        %v1656 = vld [vmem:[#allocation2 + $0x98] sm:$0xc0]
        %v1657 = vld [vmem:[#allocation2 + $0xa0] sm:$0x3f]
        %v1658 = vld [vmem:[#allocation2 + $0xb0] sm:$0xc0]
        %v1659 = vld [vmem:[#allocation2 + $0xb8] sm:$0x3f]
        %v1660 = vld [vmem:[#allocation2 + $0xc8] sm:$0xc0]
        %v1661 = vld [vmem:[#allocation2 + $0xd0] sm:$0x3f]
        %v1662 = vld [vmem:[#allocation2 + $0xe0] sm:$0xc0]
        %v1663 = vld [vmem:[#allocation2 + $0xe8] sm:$0x3f]
        %v1664 = vld [vmem:[#allocation2 + $0xf8] sm:$0xc0]
        %v1665 = vld [vmem:[#allocation2 + $0x100] sm:$0x3f]
        %v1666 = vld [vmem:[#allocation2 + $0x110] sm:$0xc0]
        %v1667 = vld [vmem:[#allocation2 + $0x118] sm:$0x3f]
        %v1668 = vld [vmem:[#allocation2 + $0x128] sm:$0xc0]
        %v1669 = vld [vmem:[#allocation2 + $0x130] sm:$0x3f]
        %v1670 = vld [vmem:[#allocation2 + $0x140] sm:$0xc0]
        %v1671 = vld [vmem:[#allocation2 + $0x148] sm:$0x3f]
        %v1672 = vld [vmem:[#allocation2 + $0x158] sm:$0xc0]
        %v1673 = vld [vmem:[#allocation2 + $0x160] sm:$0x3f]
        %v1674 = vld [vmem:[#allocation2 + $0x170] sm:$0xc0]
        %v1675 = vld [vmem:[#allocation2 + $0x178] sm:$0x3f]
        %vm1708 = vcmask 1041408
        %v1709 = vrot.slane %v1644, 6
        %v1710 = vrot.slane %v1645, 6
        %v1711 = vsel %vm1708, %v1709, %v1710
        %v1712 = vrot.slane %v1646, 6
        %v1713 = vrot.slane %v1647, 6
        %v1714 = vsel %vm1708, %v1712, %v1713
        %v1715 = vrot.slane %v1648, 6
        %v1716 = vrot.slane %v1649, 6
        %v1717 = vsel %vm1708, %v1715, %v1716
        %v1718 = vrot.slane %v1650, 6
        %v1719 = vrot.slane %v1651, 6
        %v1720 = vsel %vm1708, %v1718, %v1719
        %v1721 = vrot.slane %v1652, 6
        %v1722 = vrot.slane %v1653, 6
        %v1723 = vsel %vm1708, %v1721, %v1722
        %v1724 = vrot.slane %v1654, 6
        %v1725 = vrot.slane %v1655, 6
        %v1726 = vsel %vm1708, %v1724, %v1725
        %v1727 = vrot.slane %v1656, 6
        %v1728 = vrot.slane %v1657, 6
        %v1729 = vsel %vm1708, %v1727, %v1728
        %v1730 = vrot.slane %v1658, 6
        %v1731 = vrot.slane %v1659, 6
        %v1732 = vsel %vm1708, %v1730, %v1731
        %v1733 = vrot.slane %v1660, 6
        %v1734 = vrot.slane %v1661, 6
        %v1735 = vsel %vm1708, %v1733, %v1734
        %v1736 = vrot.slane %v1662, 6
        %v1737 = vrot.slane %v1663, 6
        %v1738 = vsel %vm1708, %v1736, %v1737
        %v1739 = vrot.slane %v1664, 6
        %v1740 = vrot.slane %v1665, 6
        %v1741 = vsel %vm1708, %v1739, %v1740
        %v1742 = vrot.slane %v1666, 6
        %v1743 = vrot.slane %v1667, 6
        %v1744 = vsel %vm1708, %v1742, %v1743
        %v1745 = vrot.slane %v1668, 6
        %v1746 = vrot.slane %v1669, 6
        %v1747 = vsel %vm1708, %v1745, %v1746
        %v1748 = vrot.slane %v1670, 6
        %v1749 = vrot.slane %v1671, 6
        %v1750 = vsel %vm1708, %v1748, %v1749
        %v1751 = vrot.slane %v1672, 6
        %v1752 = vrot.slane %v1673, 6
        %v1753 = vsel %vm1708, %v1751, %v1752
        %v1754 = vrot.slane %v1674, 6
        %v1755 = vrot.slane %v1675, 6
        %v1756 = vsel %vm1708, %v1754, %v1755
        %s1773 = scalar_lea.vmem [#allocation7], 128
        %v1774 = vld [vmem:[%s1773] sm:$0xf]
        %v1775 = vld [vmem:[%s1773 + $0x4] sm:$0xf]
        %v1776 = vld [vmem:[%s1773 + $0x8] sm:$0xf]
        %v1777 = vld [vmem:[%s1773 + $0xc] sm:$0xf]
        %v1778 = vld [vmem:[%s1773 + $0x10] sm:$0xf]
        %v1779 = vld [vmem:[%s1773 + $0x14] sm:$0xf]
        %v1780 = vld [vmem:[%s1773 + $0x18] sm:$0xf]
        %v1781 = vld [vmem:[%s1773 + $0x1c] sm:$0xf]
        %v1782 = vld [vmem:[%s1773 + $0x20] sm:$0xf]
        %v1783 = vld [vmem:[%s1773 + $0x24] sm:$0xf]
        %v1784 = vld [vmem:[%s1773 + $0x28] sm:$0xf]
        %v1785 = vld [vmem:[%s1773 + $0x2c] sm:$0xf]
        %v1786 = vld [vmem:[%s1773 + $0x30] sm:$0xf]
        %v1787 = vld [vmem:[%s1773 + $0x34] sm:$0xf]
        %v1788 = vld [vmem:[%s1773 + $0x38] sm:$0xf]
        %v1789 = vld [vmem:[%s1773 + $0x3c] sm:$0xf]
        %v1806 = vunpack.c.l.b16 %v1774
        %v1807 = vunpack.c.l.b16 %v1775
        %v1808 = vunpack.c.l.b16 %v1776
        %v1809 = vunpack.c.l.b16 %v1777
        %v1810 = vunpack.c.l.b16 %v1778
        %v1811 = vunpack.c.l.b16 %v1779
        %v1812 = vunpack.c.l.b16 %v1780
        %v1813 = vunpack.c.l.b16 %v1781
        %v1814 = vunpack.c.l.b16 %v1782
        %v1815 = vunpack.c.l.b16 %v1783
        %v1816 = vunpack.c.l.b16 %v1784
        %v1817 = vunpack.c.l.b16 %v1785
        %v1818 = vunpack.c.l.b16 %v1786
        %v1819 = vunpack.c.l.b16 %v1787
        %v1820 = vunpack.c.l.b16 %v1788
        %v1821 = vunpack.c.l.b16 %v1789
        %v1822 = vpack.c.b16 %v1807, %v1806
        %v1823 = vpack.c.b16 %v1809, %v1808
        %v1824 = vpack.c.b16 %v1811, %v1810
        %v1825 = vpack.c.b16 %v1813, %v1812
        %v1826 = vpack.c.b16 %v1815, %v1814
        %v1827 = vpack.c.b16 %v1817, %v1816
        %v1828 = vpack.c.b16 %v1819, %v1818
        %v1829 = vpack.c.b16 %v1821, %v1820
        %1838 = vmatprep.subr.bf16.mxu0 0
        %1839 = vmatpush1.bf16.msra.mxu0 %v1822
        %1840 = vmatprep.subr.bf16.mxu0 0
        %1841 = vmatpush1.bf16.msra.mxu0 %v1823
        %1842 = vmatprep.subr.bf16.mxu0 0
        %1843 = vmatpush1.bf16.msra.mxu0 %v1824
        %1844 = vmatprep.subr.bf16.mxu0 0
        %1845 = vmatpush1.bf16.msra.mxu0 %v1825
        %1846 = vmatprep.subr.bf16.mxu0 0
        %1847 = vmatpush1.bf16.msra.mxu0 %v1826
        %1848 = vmatprep.subr.bf16.mxu0 0
        %1849 = vmatpush1.bf16.msra.mxu0 %v1827
        %1850 = vmatprep.subr.bf16.mxu0 0
        %1851 = vmatpush1.bf16.msra.mxu0 %v1828
        %1852 = vmatprep.subr.bf16.mxu0 0
        %1853 = vmatpush1.bf16.msra.mxu0 %v1829
        %1854 = vmatprep.subr.bf16.mxu0 0
        %1855 = vmatpush1.bf16.msra.mxu0 0
        %1856 = vmatprep.subr.bf16.mxu0 0
        %1857 = vmatpush1.bf16.msra.mxu0 0
        %1858 = vmatprep.subr.bf16.mxu0 0
        %1859 = vmatpush1.bf16.msra.mxu0 0
        %1860 = vmatprep.subr.bf16.mxu0 0
        %1861 = vmatpush1.bf16.msra.mxu0 0
        %1862 = vmatprep.subr.bf16.mxu0 0
        %1863 = vmatpush1.bf16.msra.mxu0 0
        %1864 = vmatprep.subr.bf16.mxu0 0
        %1865 = vmatpush1.bf16.msra.mxu0 0
        %1866 = vmatprep.subr.bf16.mxu0 0
        %1867 = vmatpush1.bf16.msra.mxu0 0
        %1868 = vmatprep.subr.bf16.mxu0 0
        %1869 = vmatpush1.bf16.msra.mxu0 0
        %1870 = vmatprep.mubr.bf16.mxu0 0
        %1871 = vmatmul.mubr.bf16.gmra.mrb[0].mxu0 %v1711
        %v1872 = vpop.f32.mrb[0].mxu0
        %v1873 = vadd.f32 0.0, %v1872
        %v1874 = vpop.f32.mrb[0].mxu0
        %v1875 = vpop.f32.mrb[0].mxu0
        %v1876 = vadd.f32 0.0, %v1875
        %v1877 = vpop.f32.mrb[0].mxu0
        %1878 = vmatprep.mubr.bf16.mxu0 0
        %1879 = vmatmul.mubr.bf16.gmra.mrb[0].mxu0 %v1714
        %v1880 = vpop.f32.mrb[0].mxu0
        %v1881 = vadd.f32 0.0, %v1880
        %v1882 = vpop.f32.mrb[0].mxu0
        %v1883 = vpop.f32.mrb[0].mxu0
        %v1884 = vadd.f32 0.0, %v1883
        %v1885 = vpop.f32.mrb[0].mxu0
        %1886 = vmatprep.mubr.bf16.mxu0 0
        %1887 = vmatmul.mubr.bf16.gmra.mrb[0].mxu0 %v1717
        %v1888 = vpop.f32.mrb[0].mxu0
        %v1889 = vadd.f32 0.0, %v1888
        %v1890 = vpop.f32.mrb[0].mxu0
        %v1891 = vpop.f32.mrb[0].mxu0
        %v1892 = vadd.f32 0.0, %v1891
        %v1893 = vpop.f32.mrb[0].mxu0
        %1894 = vmatprep.mubr.bf16.mxu0 0
        %1895 = vmatmul.mubr.bf16.gmra.mrb[0].mxu0 %v1720
        %v1896 = vpop.f32.mrb[0].mxu0
        %v1897 = vadd.f32 0.0, %v1896
        %v1898 = vpop.f32.mrb[0].mxu0
        %v1899 = vpop.f32.mrb[0].mxu0
        %v1900 = vadd.f32 0.0, %v1899
        %v1901 = vpop.f32.mrb[0].mxu0
        %1902 = vmatprep.mubr.bf16.mxu0 0
        %1903 = vmatmul.mubr.bf16.gmra.mrb[0].mxu0 %v1723
        %v1904 = vpop.f32.mrb[0].mxu0
        %v1905 = vadd.f32 0.0, %v1904
        %v1906 = vpop.f32.mrb[0].mxu0
        %v1907 = vpop.f32.mrb[0].mxu0
        %v1908 = vadd.f32 0.0, %v1907
        %v1909 = vpop.f32.mrb[0].mxu0
        %1910 = vmatprep.mubr.bf16.mxu0 0
        %1911 = vmatmul.mubr.bf16.gmra.mrb[0].mxu0 %v1726
        %v1912 = vpop.f32.mrb[0].mxu0
        %v1913 = vadd.f32 0.0, %v1912
        %v1914 = vpop.f32.mrb[0].mxu0
        %v1915 = vpop.f32.mrb[0].mxu0
        %v1916 = vadd.f32 0.0, %v1915
        %v1917 = vpop.f32.mrb[0].mxu0
        %1918 = vmatprep.mubr.bf16.mxu0 0
        %1919 = vmatmul.mubr.bf16.gmra.mrb[0].mxu0 %v1729
        %v1920 = vpop.f32.mrb[0].mxu0
        %v1921 = vadd.f32 0.0, %v1920
        %v1922 = vpop.f32.mrb[0].mxu0
        %v1923 = vpop.f32.mrb[0].mxu0
        %v1924 = vadd.f32 0.0, %v1923
        %v1925 = vpop.f32.mrb[0].mxu0
        %1926 = vmatprep.mubr.bf16.mxu0 0
        %1927 = vmatmul.mubr.bf16.gmra.mrb[0].mxu0 %v1732
        %v1928 = vpop.f32.mrb[0].mxu0
        %v1929 = vadd.f32 0.0, %v1928
        %v1930 = vpop.f32.mrb[0].mxu0
        %v1931 = vpop.f32.mrb[0].mxu0
        %v1932 = vadd.f32 0.0, %v1931
        %v1933 = vpop.f32.mrb[0].mxu0
        %1934 = vmatprep.mubr.bf16.mxu0 0
        %1935 = vmatmul.mubr.bf16.gmra.mrb[0].mxu0 %v1735
        %v1936 = vpop.f32.mrb[0].mxu0
        %v1937 = vadd.f32 0.0, %v1936
        %v1938 = vpop.f32.mrb[0].mxu0
        %v1939 = vpop.f32.mrb[0].mxu0
        %v1940 = vadd.f32 0.0, %v1939
        %v1941 = vpop.f32.mrb[0].mxu0
        %1942 = vmatprep.mubr.bf16.mxu0 0
        %1943 = vmatmul.mubr.bf16.gmra.mrb[0].mxu0 %v1738
        %v1944 = vpop.f32.mrb[0].mxu0
        %v1945 = vadd.f32 0.0, %v1944
        %v1946 = vpop.f32.mrb[0].mxu0
        %v1947 = vpop.f32.mrb[0].mxu0
        %v1948 = vadd.f32 0.0, %v1947
        %v1949 = vpop.f32.mrb[0].mxu0
        %1950 = vmatprep.mubr.bf16.mxu0 0
        %1951 = vmatmul.mubr.bf16.gmra.mrb[0].mxu0 %v1741
        %v1952 = vpop.f32.mrb[0].mxu0
        %v1953 = vadd.f32 0.0, %v1952
        %v1954 = vpop.f32.mrb[0].mxu0
        %v1955 = vpop.f32.mrb[0].mxu0
        %v1956 = vadd.f32 0.0, %v1955
        %v1957 = vpop.f32.mrb[0].mxu0
        %1958 = vmatprep.mubr.bf16.mxu0 0
        %1959 = vmatmul.mubr.bf16.gmra.mrb[0].mxu0 %v1744
        %v1960 = vpop.f32.mrb[0].mxu0
        %v1961 = vadd.f32 0.0, %v1960
        %v1962 = vpop.f32.mrb[0].mxu0
        %v1963 = vpop.f32.mrb[0].mxu0
        %v1964 = vadd.f32 0.0, %v1963
        %v1965 = vpop.f32.mrb[0].mxu0
        %1966 = vmatprep.mubr.bf16.mxu0 0
        %1967 = vmatmul.mubr.bf16.gmra.mrb[0].mxu0 %v1747
        %v1968 = vpop.f32.mrb[0].mxu0
        %v1969 = vadd.f32 0.0, %v1968
        %v1970 = vpop.f32.mrb[0].mxu0
        %v1971 = vpop.f32.mrb[0].mxu0
        %v1972 = vadd.f32 0.0, %v1971
        %v1973 = vpop.f32.mrb[0].mxu0
        %1974 = vmatprep.mubr.bf16.mxu0 0
        %1975 = vmatmul.mubr.bf16.gmra.mrb[0].mxu0 %v1750
        %v1976 = vpop.f32.mrb[0].mxu0
        %v1977 = vadd.f32 0.0, %v1976
        %v1978 = vpop.f32.mrb[0].mxu0
        %v1979 = vpop.f32.mrb[0].mxu0
        %v1980 = vadd.f32 0.0, %v1979
        %v1981 = vpop.f32.mrb[0].mxu0
        %1982 = vmatprep.mubr.bf16.mxu0 0
        %1983 = vmatmul.mubr.bf16.gmra.mrb[0].mxu0 %v1753
        %v1984 = vpop.f32.mrb[0].mxu0
        %v1985 = vadd.f32 0.0, %v1984
        %v1986 = vpop.f32.mrb[0].mxu0
        %v1987 = vpop.f32.mrb[0].mxu0
        %v1988 = vadd.f32 0.0, %v1987
        %v1989 = vpop.f32.mrb[0].mxu0
        %1990 = vmatprep.mubr.bf16.mxu0 0
        %1991 = vmatmul.mubr.bf16.gmra.mrb[0].mxu0 %v1756
        %v1992 = vpop.f32.mrb[0].mxu0
        %v1993 = vadd.f32 0.0, %v1992
        %v1994 = vpop.f32.mrb[0].mxu0
        %v1995 = vpop.f32.mrb[0].mxu0
        %v1996 = vadd.f32 0.0, %v1995
        %v1997 = vpop.f32.mrb[0].mxu0
        %1998 = vdwg.mxu0
        %v1999 = vadd.f32 %v1612, %v1873
        %v2000 = vadd.f32 %v1613, %v1876
        %v2001 = vadd.f32 %v1614, %v1881
        %v2002 = vadd.f32 %v1615, %v1884
        %v2003 = vadd.f32 %v1616, %v1889
        %v2004 = vadd.f32 %v1617, %v1892
        %v2005 = vadd.f32 %v1618, %v1897
        %v2006 = vadd.f32 %v1619, %v1900
        %v2007 = vadd.f32 %v1620, %v1905
        %v2008 = vadd.f32 %v1621, %v1908
        %v2009 = vadd.f32 %v1622, %v1913
        %v2010 = vadd.f32 %v1623, %v1916
        %v2011 = vadd.f32 %v1624, %v1921
        %v2012 = vadd.f32 %v1625, %v1924
        %v2013 = vadd.f32 %v1626, %v1929
        %v2014 = vadd.f32 %v1627, %v1932
        %v2015 = vadd.f32 %v1628, %v1937
        %v2016 = vadd.f32 %v1629, %v1940
        %v2017 = vadd.f32 %v1630, %v1945
        %v2018 = vadd.f32 %v1631, %v1948
        %v2019 = vadd.f32 %v1632, %v1953
        %v2020 = vadd.f32 %v1633, %v1956
        %v2021 = vadd.f32 %v1634, %v1961
        %v2022 = vadd.f32 %v1635, %v1964
        %v2023 = vadd.f32 %v1636, %v1969
        %v2024 = vadd.f32 %v1637, %v1972
        %v2025 = vadd.f32 %v1638, %v1977
        %v2026 = vadd.f32 %v1639, %v1980
        %v2027 = vadd.f32 %v1640, %v1985
        %v2028 = vadd.f32 %v1641, %v1988
        %v2029 = vadd.f32 %v1642, %v1993
        %v2030 = vadd.f32 %v1643, %v1996
        %v2031 = vld [vmem:[%s373] sm:$0xfc]
        %v2032 = vld [vmem:[%s373 + $0x8] sm:$0x3]
        %v2033 = vld [vmem:[%s373 + $0x18] sm:$0xfc]
        %v2034 = vld [vmem:[%s373 + $0x20] sm:$0x3]
        %v2035 = vld [vmem:[%s373 + $0x30] sm:$0xfc]
        %v2036 = vld [vmem:[%s373 + $0x38] sm:$0x3]
        %v2037 = vld [vmem:[%s373 + $0x48] sm:$0xfc]
        %v2038 = vld [vmem:[%s373 + $0x50] sm:$0x3]
        %v2039 = vld [vmem:[%s373 + $0x60] sm:$0xfc]
        %v2040 = vld [vmem:[%s373 + $0x68] sm:$0x3]
        %v2041 = vld [vmem:[%s373 + $0x78] sm:$0xfc]
        %v2042 = vld [vmem:[%s373 + $0x80] sm:$0x3]
        %v2043 = vld [vmem:[%s373 + $0x90] sm:$0xfc]
        %v2044 = vld [vmem:[%s373 + $0x98] sm:$0x3]
        %v2045 = vld [vmem:[%s373 + $0xa8] sm:$0xfc]
        %v2046 = vld [vmem:[%s373 + $0xb0] sm:$0x3]
        %v2047 = vld [vmem:[%s373 + $0xc0] sm:$0xfc]
        %v2048 = vld [vmem:[%s373 + $0xc8] sm:$0x3]
        %v2049 = vld [vmem:[%s373 + $0xd8] sm:$0xfc]
        %v2050 = vld [vmem:[%s373 + $0xe0] sm:$0x3]
        %v2051 = vld [vmem:[%s373 + $0xf0] sm:$0xfc]
        %v2052 = vld [vmem:[%s373 + $0xf8] sm:$0x3]
        %v2053 = vld [vmem:[%s373 + $0x108] sm:$0xfc]
        %v2054 = vld [vmem:[%s373 + $0x110] sm:$0x3]
        %v2055 = vld [vmem:[%s373 + $0x120] sm:$0xfc]
        %v2056 = vld [vmem:[%s373 + $0x128] sm:$0x3]
        %v2057 = vld [vmem:[%s373 + $0x138] sm:$0xfc]
        %v2058 = vld [vmem:[%s373 + $0x140] sm:$0x3]
        %v2059 = vld [vmem:[%s373 + $0x150] sm:$0xfc]
        %v2060 = vld [vmem:[%s373 + $0x158] sm:$0x3]
        %v2061 = vld [vmem:[%s373 + $0x168] sm:$0xfc]
        %v2062 = vld [vmem:[%s373 + $0x170] sm:$0x3]
        %v2095 = vrot.slane %v2031, 2
        %v2096 = vrot.slane %v2032, 2
        %v2097 = vsel %vm871, %v2095, %v2096
        %v2098 = vrot.slane %v2033, 2
        %v2099 = vrot.slane %v2034, 2
        %v2100 = vsel %vm871, %v2098, %v2099
        %v2101 = vrot.slane %v2035, 2
        %v2102 = vrot.slane %v2036, 2
        %v2103 = vsel %vm871, %v2101, %v2102
        %v2104 = vrot.slane %v2037, 2
        %v2105 = vrot.slane %v2038, 2
        %v2106 = vsel %vm871, %v2104, %v2105
        %v2107 = vrot.slane %v2039, 2
        %v2108 = vrot.slane %v2040, 2
        %v2109 = vsel %vm871, %v2107, %v2108
        %v2110 = vrot.slane %v2041, 2
        %v2111 = vrot.slane %v2042, 2
        %v2112 = vsel %vm871, %v2110, %v2111
        %v2113 = vrot.slane %v2043, 2
        %v2114 = vrot.slane %v2044, 2
        %v2115 = vsel %vm871, %v2113, %v2114
        %v2116 = vrot.slane %v2045, 2
        %v2117 = vrot.slane %v2046, 2
        %v2118 = vsel %vm871, %v2116, %v2117
        %v2119 = vrot.slane %v2047, 2
        %v2120 = vrot.slane %v2048, 2
        %v2121 = vsel %vm871, %v2119, %v2120
        %v2122 = vrot.slane %v2049, 2
        %v2123 = vrot.slane %v2050, 2
        %v2124 = vsel %vm871, %v2122, %v2123
        %v2125 = vrot.slane %v2051, 2
        %v2126 = vrot.slane %v2052, 2
        %v2127 = vsel %vm871, %v2125, %v2126
        %v2128 = vrot.slane %v2053, 2
        %v2129 = vrot.slane %v2054, 2
        %v2130 = vsel %vm871, %v2128, %v2129
        %v2131 = vrot.slane %v2055, 2
        %v2132 = vrot.slane %v2056, 2
        %v2133 = vsel %vm871, %v2131, %v2132
        %v2134 = vrot.slane %v2057, 2
        %v2135 = vrot.slane %v2058, 2
        %v2136 = vsel %vm871, %v2134, %v2135
        %v2137 = vrot.slane %v2059, 2
        %v2138 = vrot.slane %v2060, 2
        %v2139 = vsel %vm871, %v2137, %v2138
        %v2140 = vrot.slane %v2061, 2
        %v2141 = vrot.slane %v2062, 2
        %v2142 = vsel %vm871, %v2140, %v2141
        %s2159 = scalar_lea.vmem [#allocation7], 192
        %v2160 = vld [vmem:[%s2159] sm:$0xf]
        %v2161 = vld [vmem:[%s2159 + $0x4] sm:$0xf]
        %v2162 = vld [vmem:[%s2159 + $0x8] sm:$0xf]
        %v2163 = vld [vmem:[%s2159 + $0xc] sm:$0xf]
        %v2164 = vld [vmem:[%s2159 + $0x10] sm:$0xf]
        %v2165 = vld [vmem:[%s2159 + $0x14] sm:$0xf]
        %v2166 = vld [vmem:[%s2159 + $0x18] sm:$0xf]
        %v2167 = vld [vmem:[%s2159 + $0x1c] sm:$0xf]
        %v2168 = vld [vmem:[%s2159 + $0x20] sm:$0xf]
        %v2169 = vld [vmem:[%s2159 + $0x24] sm:$0xf]
        %v2170 = vld [vmem:[%s2159 + $0x28] sm:$0xf]
        %v2171 = vld [vmem:[%s2159 + $0x2c] sm:$0xf]
        %v2172 = vld [vmem:[%s2159 + $0x30] sm:$0xf]
        %v2173 = vld [vmem:[%s2159 + $0x34] sm:$0xf]
        %v2174 = vld [vmem:[%s2159 + $0x38] sm:$0xf]
        %v2175 = vld [vmem:[%s2159 + $0x3c] sm:$0xf]
        %v2192 = vunpack.c.l.b16 %v2160
        %v2193 = vunpack.c.l.b16 %v2161
        %v2194 = vunpack.c.l.b16 %v2162
        %v2195 = vunpack.c.l.b16 %v2163
        %v2196 = vunpack.c.l.b16 %v2164
        %v2197 = vunpack.c.l.b16 %v2165
        %v2198 = vunpack.c.l.b16 %v2166
        %v2199 = vunpack.c.l.b16 %v2167
        %v2200 = vunpack.c.l.b16 %v2168
        %v2201 = vunpack.c.l.b16 %v2169
        %v2202 = vunpack.c.l.b16 %v2170
        %v2203 = vunpack.c.l.b16 %v2171
        %v2204 = vunpack.c.l.b16 %v2172
        %v2205 = vunpack.c.l.b16 %v2173
        %v2206 = vunpack.c.l.b16 %v2174
        %v2207 = vunpack.c.l.b16 %v2175
        %v2208 = vpack.c.b16 %v2193, %v2192
        %v2209 = vpack.c.b16 %v2195, %v2194
        %v2210 = vpack.c.b16 %v2197, %v2196
        %v2211 = vpack.c.b16 %v2199, %v2198
        %v2212 = vpack.c.b16 %v2201, %v2200
        %v2213 = vpack.c.b16 %v2203, %v2202
        %v2214 = vpack.c.b16 %v2205, %v2204
        %v2215 = vpack.c.b16 %v2207, %v2206
        %2224 = vmatprep.subr.bf16.mxu0 0
        %2225 = vmatpush1.bf16.msra.mxu0 %v2208
        %2226 = vmatprep.subr.bf16.mxu0 0
        %2227 = vmatpush1.bf16.msra.mxu0 %v2209
        %2228 = vmatprep.subr.bf16.mxu0 0
        %2229 = vmatpush1.bf16.msra.mxu0 %v2210
        %2230 = vmatprep.subr.bf16.mxu0 0
        %2231 = vmatpush1.bf16.msra.mxu0 %v2211
        %2232 = vmatprep.subr.bf16.mxu0 0
        %2233 = vmatpush1.bf16.msra.mxu0 %v2212
        %2234 = vmatprep.subr.bf16.mxu0 0
        %2235 = vmatpush1.bf16.msra.mxu0 %v2213
        %2236 = vmatprep.subr.bf16.mxu0 0
        %2237 = vmatpush1.bf16.msra.mxu0 %v2214
        %2238 = vmatprep.subr.bf16.mxu0 0
        %2239 = vmatpush1.bf16.msra.mxu0 %v2215
        %2240 = vmatprep.subr.bf16.mxu0 0
        %2241 = vmatpush1.bf16.msra.mxu0 0
        %2242 = vmatprep.subr.bf16.mxu0 0
        %2243 = vmatpush1.bf16.msra.mxu0 0
        %2244 = vmatprep.subr.bf16.mxu0 0
        %2245 = vmatpush1.bf16.msra.mxu0 0
        %2246 = vmatprep.subr.bf16.mxu0 0
        %2247 = vmatpush1.bf16.msra.mxu0 0
        %2248 = vmatprep.subr.bf16.mxu0 0
        %2249 = vmatpush1.bf16.msra.mxu0 0
        %2250 = vmatprep.subr.bf16.mxu0 0
        %2251 = vmatpush1.bf16.msra.mxu0 0
        %2252 = vmatprep.subr.bf16.mxu0 0
        %2253 = vmatpush1.bf16.msra.mxu0 0
        %2254 = vmatprep.subr.bf16.mxu0 0
        %2255 = vmatpush1.bf16.msra.mxu0 0
        %2256 = vmatprep.mubr.bf16.mxu0 0
        %2257 = vmatmul.mubr.bf16.gmra.mrb[0].mxu0 %v2097
        %v2258 = vpop.f32.mrb[0].mxu0
        %v2259 = vadd.f32 0.0, %v2258
        %v2260 = vpop.f32.mrb[0].mxu0
        %v2261 = vpop.f32.mrb[0].mxu0
        %v2262 = vadd.f32 0.0, %v2261
        %v2263 = vpop.f32.mrb[0].mxu0
        %2264 = vmatprep.mubr.bf16.mxu0 0
        %2265 = vmatmul.mubr.bf16.gmra.mrb[0].mxu0 %v2100
        %v2266 = vpop.f32.mrb[0].mxu0
        %v2267 = vadd.f32 0.0, %v2266
        %v2268 = vpop.f32.mrb[0].mxu0
        %v2269 = vpop.f32.mrb[0].mxu0
        %v2270 = vadd.f32 0.0, %v2269
        %v2271 = vpop.f32.mrb[0].mxu0
        %2272 = vmatprep.mubr.bf16.mxu0 0
        %2273 = vmatmul.mubr.bf16.gmra.mrb[0].mxu0 %v2103
        %v2274 = vpop.f32.mrb[0].mxu0
        %v2275 = vadd.f32 0.0, %v2274
        %v2276 = vpop.f32.mrb[0].mxu0
        %v2277 = vpop.f32.mrb[0].mxu0
        %v2278 = vadd.f32 0.0, %v2277
        %v2279 = vpop.f32.mrb[0].mxu0
        %2280 = vmatprep.mubr.bf16.mxu0 0
        %2281 = vmatmul.mubr.bf16.gmra.mrb[0].mxu0 %v2106
        %v2282 = vpop.f32.mrb[0].mxu0
        %v2283 = vadd.f32 0.0, %v2282
        %v2284 = vpop.f32.mrb[0].mxu0
        %v2285 = vpop.f32.mrb[0].mxu0
        %v2286 = vadd.f32 0.0, %v2285
        %v2287 = vpop.f32.mrb[0].mxu0
        %2288 = vmatprep.mubr.bf16.mxu0 0
        %2289 = vmatmul.mubr.bf16.gmra.mrb[0].mxu0 %v2109
        %v2290 = vpop.f32.mrb[0].mxu0
        %v2291 = vadd.f32 0.0, %v2290
        %v2292 = vpop.f32.mrb[0].mxu0
        %v2293 = vpop.f32.mrb[0].mxu0
        %v2294 = vadd.f32 0.0, %v2293
        %v2295 = vpop.f32.mrb[0].mxu0
        %2296 = vmatprep.mubr.bf16.mxu0 0
        %2297 = vmatmul.mubr.bf16.gmra.mrb[0].mxu0 %v2112
        %v2298 = vpop.f32.mrb[0].mxu0
        %v2299 = vadd.f32 0.0, %v2298
        %v2300 = vpop.f32.mrb[0].mxu0
        %v2301 = vpop.f32.mrb[0].mxu0
        %v2302 = vadd.f32 0.0, %v2301
        %v2303 = vpop.f32.mrb[0].mxu0
        %2304 = vmatprep.mubr.bf16.mxu0 0
        %2305 = vmatmul.mubr.bf16.gmra.mrb[0].mxu0 %v2115
        %v2306 = vpop.f32.mrb[0].mxu0
        %v2307 = vadd.f32 0.0, %v2306
        %v2308 = vpop.f32.mrb[0].mxu0
        %v2309 = vpop.f32.mrb[0].mxu0
        %v2310 = vadd.f32 0.0, %v2309
        %v2311 = vpop.f32.mrb[0].mxu0
        %2312 = vmatprep.mubr.bf16.mxu0 0
        %2313 = vmatmul.mubr.bf16.gmra.mrb[0].mxu0 %v2118
        %v2314 = vpop.f32.mrb[0].mxu0
        %v2315 = vadd.f32 0.0, %v2314
        %v2316 = vpop.f32.mrb[0].mxu0
        %v2317 = vpop.f32.mrb[0].mxu0
        %v2318 = vadd.f32 0.0, %v2317
        %v2319 = vpop.f32.mrb[0].mxu0
        %2320 = vmatprep.mubr.bf16.mxu0 0
        %2321 = vmatmul.mubr.bf16.gmra.mrb[0].mxu0 %v2121
        %v2322 = vpop.f32.mrb[0].mxu0
        %v2323 = vadd.f32 0.0, %v2322
        %v2324 = vpop.f32.mrb[0].mxu0
        %v2325 = vpop.f32.mrb[0].mxu0
        %v2326 = vadd.f32 0.0, %v2325
        %v2327 = vpop.f32.mrb[0].mxu0
        %2328 = vmatprep.mubr.bf16.mxu0 0
        %2329 = vmatmul.mubr.bf16.gmra.mrb[0].mxu0 %v2124
        %v2330 = vpop.f32.mrb[0].mxu0
        %v2331 = vadd.f32 0.0, %v2330
        %v2332 = vpop.f32.mrb[0].mxu0
        %v2333 = vpop.f32.mrb[0].mxu0
        %v2334 = vadd.f32 0.0, %v2333
        %v2335 = vpop.f32.mrb[0].mxu0
        %2336 = vmatprep.mubr.bf16.mxu0 0
        %2337 = vmatmul.mubr.bf16.gmra.mrb[0].mxu0 %v2127
        %v2338 = vpop.f32.mrb[0].mxu0
        %v2339 = vadd.f32 0.0, %v2338
        %v2340 = vpop.f32.mrb[0].mxu0
        %v2341 = vpop.f32.mrb[0].mxu0
        %v2342 = vadd.f32 0.0, %v2341
        %v2343 = vpop.f32.mrb[0].mxu0
        %2344 = vmatprep.mubr.bf16.mxu0 0
        %2345 = vmatmul.mubr.bf16.gmra.mrb[0].mxu0 %v2130
        %v2346 = vpop.f32.mrb[0].mxu0
        %v2347 = vadd.f32 0.0, %v2346
        %v2348 = vpop.f32.mrb[0].mxu0
        %v2349 = vpop.f32.mrb[0].mxu0
        %v2350 = vadd.f32 0.0, %v2349
        %v2351 = vpop.f32.mrb[0].mxu0
        %2352 = vmatprep.mubr.bf16.mxu0 0
        %2353 = vmatmul.mubr.bf16.gmra.mrb[0].mxu0 %v2133
        %v2354 = vpop.f32.mrb[0].mxu0
        %v2355 = vadd.f32 0.0, %v2354
        %v2356 = vpop.f32.mrb[0].mxu0
        %v2357 = vpop.f32.mrb[0].mxu0
        %v2358 = vadd.f32 0.0, %v2357
        %v2359 = vpop.f32.mrb[0].mxu0
        %2360 = vmatprep.mubr.bf16.mxu0 0
        %2361 = vmatmul.mubr.bf16.gmra.mrb[0].mxu0 %v2136
        %v2362 = vpop.f32.mrb[0].mxu0
        %v2363 = vadd.f32 0.0, %v2362
        %v2364 = vpop.f32.mrb[0].mxu0
        %v2365 = vpop.f32.mrb[0].mxu0
        %v2366 = vadd.f32 0.0, %v2365
        %v2367 = vpop.f32.mrb[0].mxu0
        %2368 = vmatprep.mubr.bf16.mxu0 0
        %2369 = vmatmul.mubr.bf16.gmra.mrb[0].mxu0 %v2139
        %v2370 = vpop.f32.mrb[0].mxu0
        %v2371 = vadd.f32 0.0, %v2370
        %v2372 = vpop.f32.mrb[0].mxu0
        %v2373 = vpop.f32.mrb[0].mxu0
        %v2374 = vadd.f32 0.0, %v2373
        %v2375 = vpop.f32.mrb[0].mxu0
        %2376 = vmatprep.mubr.bf16.mxu0 0
        %2377 = vmatmul.mubr.bf16.gmra.mrb[0].mxu0 %v2142
        %v2378 = vpop.f32.mrb[0].mxu0
        %v2379 = vadd.f32 0.0, %v2378
        %v2380 = vpop.f32.mrb[0].mxu0
        %v2381 = vpop.f32.mrb[0].mxu0
        %v2382 = vadd.f32 0.0, %v2381
        %v2383 = vpop.f32.mrb[0].mxu0
        %2384 = vdwg.mxu0
        %v2385 = vadd.f32 %v1999, %v2259
        %v2386 = vadd.f32 %v2000, %v2262
        %v2387 = vadd.f32 %v2001, %v2267
        %v2388 = vadd.f32 %v2002, %v2270
        %v2389 = vadd.f32 %v2003, %v2275
        %v2390 = vadd.f32 %v2004, %v2278
        %v2391 = vadd.f32 %v2005, %v2283
        %v2392 = vadd.f32 %v2006, %v2286
        %v2393 = vadd.f32 %v2007, %v2291
        %v2394 = vadd.f32 %v2008, %v2294
        %v2395 = vadd.f32 %v2009, %v2299
        %v2396 = vadd.f32 %v2010, %v2302
        %v2397 = vadd.f32 %v2011, %v2307
        %v2398 = vadd.f32 %v2012, %v2310
        %v2399 = vadd.f32 %v2013, %v2315
        %v2400 = vadd.f32 %v2014, %v2318
        %v2401 = vadd.f32 %v2015, %v2323
        %v2402 = vadd.f32 %v2016, %v2326
        %v2403 = vadd.f32 %v2017, %v2331
        %v2404 = vadd.f32 %v2018, %v2334
        %v2405 = vadd.f32 %v2019, %v2339
        %v2406 = vadd.f32 %v2020, %v2342
        %v2407 = vadd.f32 %v2021, %v2347
        %v2408 = vadd.f32 %v2022, %v2350
        %v2409 = vadd.f32 %v2023, %v2355
        %v2410 = vadd.f32 %v2024, %v2358
        %v2411 = vadd.f32 %v2025, %v2363
        %v2412 = vadd.f32 %v2026, %v2366
        %v2413 = vadd.f32 %v2027, %v2371
        %v2414 = vadd.f32 %v2028, %v2374
        %v2415 = vadd.f32 %v2029, %v2379
        %v2416 = vadd.f32 %v2030, %v2382
        %v2417 = vld [vmem:[%s373 + $0x8] sm:$0xc0]
        %v2418 = vld [vmem:[%s373 + $0x10] sm:$0x3f]
        %v2419 = vld [vmem:[%s373 + $0x20] sm:$0xc0]
        %v2420 = vld [vmem:[%s373 + $0x28] sm:$0x3f]
        %v2421 = vld [vmem:[%s373 + $0x38] sm:$0xc0]
        %v2422 = vld [vmem:[%s373 + $0x40] sm:$0x3f]
        %v2423 = vld [vmem:[%s373 + $0x50] sm:$0xc0]
        %v2424 = vld [vmem:[%s373 + $0x58] sm:$0x3f]
        %v2425 = vld [vmem:[%s373 + $0x68] sm:$0xc0]
        %v2426 = vld [vmem:[%s373 + $0x70] sm:$0x3f]
        %v2427 = vld [vmem:[%s373 + $0x80] sm:$0xc0]
        %v2428 = vld [vmem:[%s373 + $0x88] sm:$0x3f]
        %v2429 = vld [vmem:[%s373 + $0x98] sm:$0xc0]
        %v2430 = vld [vmem:[%s373 + $0xa0] sm:$0x3f]
        %v2431 = vld [vmem:[%s373 + $0xb0] sm:$0xc0]
        %v2432 = vld [vmem:[%s373 + $0xb8] sm:$0x3f]
        %v2433 = vld [vmem:[%s373 + $0xc8] sm:$0xc0]
        %v2434 = vld [vmem:[%s373 + $0xd0] sm:$0x3f]
        %v2435 = vld [vmem:[%s373 + $0xe0] sm:$0xc0]
        %v2436 = vld [vmem:[%s373 + $0xe8] sm:$0x3f]
        %v2437 = vld [vmem:[%s373 + $0xf8] sm:$0xc0]
        %v2438 = vld [vmem:[%s373 + $0x100] sm:$0x3f]
        %v2439 = vld [vmem:[%s373 + $0x110] sm:$0xc0]
        %v2440 = vld [vmem:[%s373 + $0x118] sm:$0x3f]
        %v2441 = vld [vmem:[%s373 + $0x128] sm:$0xc0]
        %v2442 = vld [vmem:[%s373 + $0x130] sm:$0x3f]
        %v2443 = vld [vmem:[%s373 + $0x140] sm:$0xc0]
        %v2444 = vld [vmem:[%s373 + $0x148] sm:$0x3f]
        %v2445 = vld [vmem:[%s373 + $0x158] sm:$0xc0]
        %v2446 = vld [vmem:[%s373 + $0x160] sm:$0x3f]
        %v2447 = vld [vmem:[%s373 + $0x170] sm:$0xc0]
        %v2448 = vld [vmem:[%s373 + $0x178] sm:$0x3f]
        %v2481 = vrot.slane %v2417, 6
        %v2482 = vrot.slane %v2418, 6
        %v2483 = vsel %vm1708, %v2481, %v2482
        %v2484 = vrot.slane %v2419, 6
        %v2485 = vrot.slane %v2420, 6
        %v2486 = vsel %vm1708, %v2484, %v2485
        %v2487 = vrot.slane %v2421, 6
        %v2488 = vrot.slane %v2422, 6
        %v2489 = vsel %vm1708, %v2487, %v2488
        %v2490 = vrot.slane %v2423, 6
        %v2491 = vrot.slane %v2424, 6
        %v2492 = vsel %vm1708, %v2490, %v2491
        %v2493 = vrot.slane %v2425, 6
        %v2494 = vrot.slane %v2426, 6
        %v2495 = vsel %vm1708, %v2493, %v2494
        %v2496 = vrot.slane %v2427, 6
        %v2497 = vrot.slane %v2428, 6
        %v2498 = vsel %vm1708, %v2496, %v2497
        %v2499 = vrot.slane %v2429, 6
        %v2500 = vrot.slane %v2430, 6
        %v2501 = vsel %vm1708, %v2499, %v2500
        %v2502 = vrot.slane %v2431, 6
        %v2503 = vrot.slane %v2432, 6
        %v2504 = vsel %vm1708, %v2502, %v2503
        %v2505 = vrot.slane %v2433, 6
        %v2506 = vrot.slane %v2434, 6
        %v2507 = vsel %vm1708, %v2505, %v2506
        %v2508 = vrot.slane %v2435, 6
        %v2509 = vrot.slane %v2436, 6
        %v2510 = vsel %vm1708, %v2508, %v2509
        %v2511 = vrot.slane %v2437, 6
        %v2512 = vrot.slane %v2438, 6
        %v2513 = vsel %vm1708, %v2511, %v2512
        %v2514 = vrot.slane %v2439, 6
        %v2515 = vrot.slane %v2440, 6
        %v2516 = vsel %vm1708, %v2514, %v2515
        %v2517 = vrot.slane %v2441, 6
        %v2518 = vrot.slane %v2442, 6
        %v2519 = vsel %vm1708, %v2517, %v2518
        %v2520 = vrot.slane %v2443, 6
        %v2521 = vrot.slane %v2444, 6
        %v2522 = vsel %vm1708, %v2520, %v2521
        %v2523 = vrot.slane %v2445, 6
        %v2524 = vrot.slane %v2446, 6
        %v2525 = vsel %vm1708, %v2523, %v2524
        %v2526 = vrot.slane %v2447, 6
        %v2527 = vrot.slane %v2448, 6
        %v2528 = vsel %vm1708, %v2526, %v2527
        %s2545 = scalar_lea.vmem [#allocation7], 320
        %v2546 = vld [vmem:[%s2545] sm:$0xf]
        %v2547 = vld [vmem:[%s2545 + $0x4] sm:$0xf]
        %v2548 = vld [vmem:[%s2545 + $0x8] sm:$0xf]
        %v2549 = vld [vmem:[%s2545 + $0xc] sm:$0xf]
        %v2550 = vld [vmem:[%s2545 + $0x10] sm:$0xf]
        %v2551 = vld [vmem:[%s2545 + $0x14] sm:$0xf]
        %v2552 = vld [vmem:[%s2545 + $0x18] sm:$0xf]
        %v2553 = vld [vmem:[%s2545 + $0x1c] sm:$0xf]
        %v2554 = vld [vmem:[%s2545 + $0x20] sm:$0xf]
        %v2555 = vld [vmem:[%s2545 + $0x24] sm:$0xf]
        %v2556 = vld [vmem:[%s2545 + $0x28] sm:$0xf]
        %v2557 = vld [vmem:[%s2545 + $0x2c] sm:$0xf]
        %v2558 = vld [vmem:[%s2545 + $0x30] sm:$0xf]
        %v2559 = vld [vmem:[%s2545 + $0x34] sm:$0xf]
        %v2560 = vld [vmem:[%s2545 + $0x38] sm:$0xf]
        %v2561 = vld [vmem:[%s2545 + $0x3c] sm:$0xf]
        %v2578 = vunpack.c.l.b16 %v2546
        %v2579 = vunpack.c.l.b16 %v2547
        %v2580 = vunpack.c.l.b16 %v2548
        %v2581 = vunpack.c.l.b16 %v2549
        %v2582 = vunpack.c.l.b16 %v2550
        %v2583 = vunpack.c.l.b16 %v2551
        %v2584 = vunpack.c.l.b16 %v2552
        %v2585 = vunpack.c.l.b16 %v2553
        %v2586 = vunpack.c.l.b16 %v2554
        %v2587 = vunpack.c.l.b16 %v2555
        %v2588 = vunpack.c.l.b16 %v2556
        %v2589 = vunpack.c.l.b16 %v2557
        %v2590 = vunpack.c.l.b16 %v2558
        %v2591 = vunpack.c.l.b16 %v2559
        %v2592 = vunpack.c.l.b16 %v2560
        %v2593 = vunpack.c.l.b16 %v2561
        %v2594 = vpack.c.b16 %v2579, %v2578
        %v2595 = vpack.c.b16 %v2581, %v2580
        %v2596 = vpack.c.b16 %v2583, %v2582
        %v2597 = vpack.c.b16 %v2585, %v2584
        %v2598 = vpack.c.b16 %v2587, %v2586
        %v2599 = vpack.c.b16 %v2589, %v2588
        %v2600 = vpack.c.b16 %v2591, %v2590
        %v2601 = vpack.c.b16 %v2593, %v2592
        %2610 = vmatprep.subr.bf16.mxu0 0
        %2611 = vmatpush1.bf16.msra.mxu0 %v2594
        %2612 = vmatprep.subr.bf16.mxu0 0
        %2613 = vmatpush1.bf16.msra.mxu0 %v2595
        %2614 = vmatprep.subr.bf16.mxu0 0
        %2615 = vmatpush1.bf16.msra.mxu0 %v2596
        %2616 = vmatprep.subr.bf16.mxu0 0
        %2617 = vmatpush1.bf16.msra.mxu0 %v2597
        %2618 = vmatprep.subr.bf16.mxu0 0
        %2619 = vmatpush1.bf16.msra.mxu0 %v2598
        %2620 = vmatprep.subr.bf16.mxu0 0
        %2621 = vmatpush1.bf16.msra.mxu0 %v2599
        %2622 = vmatprep.subr.bf16.mxu0 0
        %2623 = vmatpush1.bf16.msra.mxu0 %v2600
        %2624 = vmatprep.subr.bf16.mxu0 0
        %2625 = vmatpush1.bf16.msra.mxu0 %v2601
        %2626 = vmatprep.subr.bf16.mxu0 0
        %2627 = vmatpush1.bf16.msra.mxu0 0
        %2628 = vmatprep.subr.bf16.mxu0 0
        %2629 = vmatpush1.bf16.msra.mxu0 0
        %2630 = vmatprep.subr.bf16.mxu0 0
        %2631 = vmatpush1.bf16.msra.mxu0 0
        %2632 = vmatprep.subr.bf16.mxu0 0
        %2633 = vmatpush1.bf16.msra.mxu0 0
        %2634 = vmatprep.subr.bf16.mxu0 0
        %2635 = vmatpush1.bf16.msra.mxu0 0
        %2636 = vmatprep.subr.bf16.mxu0 0
        %2637 = vmatpush1.bf16.msra.mxu0 0
        %2638 = vmatprep.subr.bf16.mxu0 0
        %2639 = vmatpush1.bf16.msra.mxu0 0
        %2640 = vmatprep.subr.bf16.mxu0 0
        %2641 = vmatpush1.bf16.msra.mxu0 0
        %2642 = vmatprep.mubr.bf16.mxu0 0
        %2643 = vmatmul.mubr.bf16.gmra.mrb[0].mxu0 %v2483
        %v2644 = vpop.f32.mrb[0].mxu0
        %v2645 = vadd.f32 0.0, %v2644
        %v2646 = vpop.f32.mrb[0].mxu0
        %v2647 = vpop.f32.mrb[0].mxu0
        %v2648 = vadd.f32 0.0, %v2647
        %v2649 = vpop.f32.mrb[0].mxu0
        %2650 = vmatprep.mubr.bf16.mxu0 0
        %2651 = vmatmul.mubr.bf16.gmra.mrb[0].mxu0 %v2486
        %v2652 = vpop.f32.mrb[0].mxu0
        %v2653 = vadd.f32 0.0, %v2652
        %v2654 = vpop.f32.mrb[0].mxu0
        %v2655 = vpop.f32.mrb[0].mxu0
        %v2656 = vadd.f32 0.0, %v2655
        %v2657 = vpop.f32.mrb[0].mxu0
        %2658 = vmatprep.mubr.bf16.mxu0 0
        %2659 = vmatmul.mubr.bf16.gmra.mrb[0].mxu0 %v2489
        %v2660 = vpop.f32.mrb[0].mxu0
        %v2661 = vadd.f32 0.0, %v2660
        %v2662 = vpop.f32.mrb[0].mxu0
        %v2663 = vpop.f32.mrb[0].mxu0
        %v2664 = vadd.f32 0.0, %v2663
        %v2665 = vpop.f32.mrb[0].mxu0
        %2666 = vmatprep.mubr.bf16.mxu0 0
        %2667 = vmatmul.mubr.bf16.gmra.mrb[0].mxu0 %v2492
        %v2668 = vpop.f32.mrb[0].mxu0
        %v2669 = vadd.f32 0.0, %v2668
        %v2670 = vpop.f32.mrb[0].mxu0
        %v2671 = vpop.f32.mrb[0].mxu0
        %v2672 = vadd.f32 0.0, %v2671
        %v2673 = vpop.f32.mrb[0].mxu0
        %2674 = vmatprep.mubr.bf16.mxu0 0
        %2675 = vmatmul.mubr.bf16.gmra.mrb[0].mxu0 %v2495
        %v2676 = vpop.f32.mrb[0].mxu0
        %v2677 = vadd.f32 0.0, %v2676
        %v2678 = vpop.f32.mrb[0].mxu0
        %v2679 = vpop.f32.mrb[0].mxu0
        %v2680 = vadd.f32 0.0, %v2679
        %v2681 = vpop.f32.mrb[0].mxu0
        %2682 = vmatprep.mubr.bf16.mxu0 0
        %2683 = vmatmul.mubr.bf16.gmra.mrb[0].mxu0 %v2498
        %v2684 = vpop.f32.mrb[0].mxu0
        %v2685 = vadd.f32 0.0, %v2684
        %v2686 = vpop.f32.mrb[0].mxu0
        %v2687 = vpop.f32.mrb[0].mxu0
        %v2688 = vadd.f32 0.0, %v2687
        %v2689 = vpop.f32.mrb[0].mxu0
        %2690 = vmatprep.mubr.bf16.mxu0 0
        %2691 = vmatmul.mubr.bf16.gmra.mrb[0].mxu0 %v2501
        %v2692 = vpop.f32.mrb[0].mxu0
        %v2693 = vadd.f32 0.0, %v2692
        %v2694 = vpop.f32.mrb[0].mxu0
        %v2695 = vpop.f32.mrb[0].mxu0
        %v2696 = vadd.f32 0.0, %v2695
        %v2697 = vpop.f32.mrb[0].mxu0
        %2698 = vmatprep.mubr.bf16.mxu0 0
        %2699 = vmatmul.mubr.bf16.gmra.mrb[0].mxu0 %v2504
        %v2700 = vpop.f32.mrb[0].mxu0
        %v2701 = vadd.f32 0.0, %v2700
        %v2702 = vpop.f32.mrb[0].mxu0
        %v2703 = vpop.f32.mrb[0].mxu0
        %v2704 = vadd.f32 0.0, %v2703
        %v2705 = vpop.f32.mrb[0].mxu0
        %2706 = vmatprep.mubr.bf16.mxu0 0
        %2707 = vmatmul.mubr.bf16.gmra.mrb[0].mxu0 %v2507
        %v2708 = vpop.f32.mrb[0].mxu0
        %v2709 = vadd.f32 0.0, %v2708
        %v2710 = vpop.f32.mrb[0].mxu0
        %v2711 = vpop.f32.mrb[0].mxu0
        %v2712 = vadd.f32 0.0, %v2711
        %v2713 = vpop.f32.mrb[0].mxu0
        %2714 = vmatprep.mubr.bf16.mxu0 0
        %2715 = vmatmul.mubr.bf16.gmra.mrb[0].mxu0 %v2510
        %v2716 = vpop.f32.mrb[0].mxu0
        %v2717 = vadd.f32 0.0, %v2716
        %v2718 = vpop.f32.mrb[0].mxu0
        %v2719 = vpop.f32.mrb[0].mxu0
        %v2720 = vadd.f32 0.0, %v2719
        %v2721 = vpop.f32.mrb[0].mxu0
        %2722 = vmatprep.mubr.bf16.mxu0 0
        %2723 = vmatmul.mubr.bf16.gmra.mrb[0].mxu0 %v2513
        %v2724 = vpop.f32.mrb[0].mxu0
        %v2725 = vadd.f32 0.0, %v2724
        %v2726 = vpop.f32.mrb[0].mxu0
        %v2727 = vpop.f32.mrb[0].mxu0
        %v2728 = vadd.f32 0.0, %v2727
        %v2729 = vpop.f32.mrb[0].mxu0
        %2730 = vmatprep.mubr.bf16.mxu0 0
        %2731 = vmatmul.mubr.bf16.gmra.mrb[0].mxu0 %v2516
        %v2732 = vpop.f32.mrb[0].mxu0
        %v2733 = vadd.f32 0.0, %v2732
        %v2734 = vpop.f32.mrb[0].mxu0
        %v2735 = vpop.f32.mrb[0].mxu0
        %v2736 = vadd.f32 0.0, %v2735
        %v2737 = vpop.f32.mrb[0].mxu0
        %2738 = vmatprep.mubr.bf16.mxu0 0
        %2739 = vmatmul.mubr.bf16.gmra.mrb[0].mxu0 %v2519
        %v2740 = vpop.f32.mrb[0].mxu0
        %v2741 = vadd.f32 0.0, %v2740
        %v2742 = vpop.f32.mrb[0].mxu0
        %v2743 = vpop.f32.mrb[0].mxu0
        %v2744 = vadd.f32 0.0, %v2743
        %v2745 = vpop.f32.mrb[0].mxu0
        %2746 = vmatprep.mubr.bf16.mxu0 0
        %2747 = vmatmul.mubr.bf16.gmra.mrb[0].mxu0 %v2522
        %v2748 = vpop.f32.mrb[0].mxu0
        %v2749 = vadd.f32 0.0, %v2748
        %v2750 = vpop.f32.mrb[0].mxu0
        %v2751 = vpop.f32.mrb[0].mxu0
        %v2752 = vadd.f32 0.0, %v2751
        %v2753 = vpop.f32.mrb[0].mxu0
        %2754 = vmatprep.mubr.bf16.mxu0 0
        %2755 = vmatmul.mubr.bf16.gmra.mrb[0].mxu0 %v2525
        %v2756 = vpop.f32.mrb[0].mxu0
        %v2757 = vadd.f32 0.0, %v2756
        %v2758 = vpop.f32.mrb[0].mxu0
        %v2759 = vpop.f32.mrb[0].mxu0
        %v2760 = vadd.f32 0.0, %v2759
        %v2761 = vpop.f32.mrb[0].mxu0
        %2762 = vmatprep.mubr.bf16.mxu0 0
        %2763 = vmatmul.mubr.bf16.gmra.mrb[0].mxu0 %v2528
        %v2764 = vpop.f32.mrb[0].mxu0
        %v2765 = vadd.f32 0.0, %v2764
        %v2766 = vpop.f32.mrb[0].mxu0
        %v2767 = vpop.f32.mrb[0].mxu0
        %v2768 = vadd.f32 0.0, %v2767
        %v2769 = vpop.f32.mrb[0].mxu0
        %2770 = vdwg.mxu0
        %v2771 = vadd.f32 %v2385, %v2645
        %v2772 = vadd.f32 %v2386, %v2648
        %v2773 = vadd.f32 %v2387, %v2653
        %v2774 = vadd.f32 %v2388, %v2656
        %v2775 = vadd.f32 %v2389, %v2661
        %v2776 = vadd.f32 %v2390, %v2664
        %v2777 = vadd.f32 %v2391, %v2669
        %v2778 = vadd.f32 %v2392, %v2672
        %v2779 = vadd.f32 %v2393, %v2677
        %v2780 = vadd.f32 %v2394, %v2680
        %v2781 = vadd.f32 %v2395, %v2685
        %v2782 = vadd.f32 %v2396, %v2688
        %v2783 = vadd.f32 %v2397, %v2693
        %v2784 = vadd.f32 %v2398, %v2696
        %v2785 = vadd.f32 %v2399, %v2701
        %v2786 = vadd.f32 %v2400, %v2704
        %v2787 = vadd.f32 %v2401, %v2709
        %v2788 = vadd.f32 %v2402, %v2712
        %v2789 = vadd.f32 %v2403, %v2717
        %v2790 = vadd.f32 %v2404, %v2720
        %v2791 = vadd.f32 %v2405, %v2725
        %v2792 = vadd.f32 %v2406, %v2728
        %v2793 = vadd.f32 %v2407, %v2733
        %v2794 = vadd.f32 %v2408, %v2736
        %v2795 = vadd.f32 %v2409, %v2741
        %v2796 = vadd.f32 %v2410, %v2744
        %v2797 = vadd.f32 %v2411, %v2749
        %v2798 = vadd.f32 %v2412, %v2752
        %v2799 = vadd.f32 %v2413, %v2757
        %v2800 = vadd.f32 %v2414, %v2760
        %v2801 = vadd.f32 %v2415, %v2765
        %v2802 = vadd.f32 %v2416, %v2768
        %s2803 = scalar_lea.vmem [#allocation2], 576
        %v2804 = vld [vmem:[%s2803] sm:$0xfc]
        %v2805 = vld [vmem:[%s2803 + $0x8] sm:$0x3]
        %v2806 = vld [vmem:[%s2803 + $0x18] sm:$0xfc]
        %v2807 = vld [vmem:[%s2803 + $0x20] sm:$0x3]
        %v2808 = vld [vmem:[%s2803 + $0x30] sm:$0xfc]
        %v2809 = vld [vmem:[%s2803 + $0x38] sm:$0x3]
        %v2810 = vld [vmem:[%s2803 + $0x48] sm:$0xfc]
        %v2811 = vld [vmem:[%s2803 + $0x50] sm:$0x3]
        %v2812 = vld [vmem:[%s2803 + $0x60] sm:$0xfc]
        %v2813 = vld [vmem:[%s2803 + $0x68] sm:$0x3]
        %v2814 = vld [vmem:[%s2803 + $0x78] sm:$0xfc]
        %v2815 = vld [vmem:[%s2803 + $0x80] sm:$0x3]
        %v2816 = vld [vmem:[%s2803 + $0x90] sm:$0xfc]
        %v2817 = vld [vmem:[%s2803 + $0x98] sm:$0x3]
        %v2818 = vld [vmem:[%s2803 + $0xa8] sm:$0xfc]
        %v2819 = vld [vmem:[%s2803 + $0xb0] sm:$0x3]
        %v2820 = vld [vmem:[%s2803 + $0xc0] sm:$0xfc]
        %v2821 = vld [vmem:[%s2803 + $0xc8] sm:$0x3]
        %v2822 = vld [vmem:[%s2803 + $0xd8] sm:$0xfc]
        %v2823 = vld [vmem:[%s2803 + $0xe0] sm:$0x3]
        %v2824 = vld [vmem:[%s2803 + $0xf0] sm:$0xfc]
        %v2825 = vld [vmem:[%s2803 + $0xf8] sm:$0x3]
        %v2826 = vld [vmem:[%s2803 + $0x108] sm:$0xfc]
        %v2827 = vld [vmem:[%s2803 + $0x110] sm:$0x3]
        %v2828 = vld [vmem:[%s2803 + $0x120] sm:$0xfc]
        %v2829 = vld [vmem:[%s2803 + $0x128] sm:$0x3]
        %v2830 = vld [vmem:[%s2803 + $0x138] sm:$0xfc]
        %v2831 = vld [vmem:[%s2803 + $0x140] sm:$0x3]
        %v2832 = vld [vmem:[%s2803 + $0x150] sm:$0xfc]
        %v2833 = vld [vmem:[%s2803 + $0x158] sm:$0x3]
        %v2834 = vld [vmem:[%s2803 + $0x168] sm:$0xfc]
        %v2835 = vld [vmem:[%s2803 + $0x170] sm:$0x3]
        %v2868 = vrot.slane %v2804, 2
        %v2869 = vrot.slane %v2805, 2
        %v2870 = vsel %vm871, %v2868, %v2869
        %v2871 = vrot.slane %v2806, 2
        %v2872 = vrot.slane %v2807, 2
        %v2873 = vsel %vm871, %v2871, %v2872
        %v2874 = vrot.slane %v2808, 2
        %v2875 = vrot.slane %v2809, 2
        %v2876 = vsel %vm871, %v2874, %v2875
        %v2877 = vrot.slane %v2810, 2
        %v2878 = vrot.slane %v2811, 2
        %v2879 = vsel %vm871, %v2877, %v2878
        %v2880 = vrot.slane %v2812, 2
        %v2881 = vrot.slane %v2813, 2
        %v2882 = vsel %vm871, %v2880, %v2881
        %v2883 = vrot.slane %v2814, 2
        %v2884 = vrot.slane %v2815, 2
        %v2885 = vsel %vm871, %v2883, %v2884
        %v2886 = vrot.slane %v2816, 2
        %v2887 = vrot.slane %v2817, 2
        %v2888 = vsel %vm871, %v2886, %v2887
        %v2889 = vrot.slane %v2818, 2
        %v2890 = vrot.slane %v2819, 2
        %v2891 = vsel %vm871, %v2889, %v2890
        %v2892 = vrot.slane %v2820, 2
        %v2893 = vrot.slane %v2821, 2
        %v2894 = vsel %vm871, %v2892, %v2893
        %v2895 = vrot.slane %v2822, 2
        %v2896 = vrot.slane %v2823, 2
        %v2897 = vsel %vm871, %v2895, %v2896
        %v2898 = vrot.slane %v2824, 2
        %v2899 = vrot.slane %v2825, 2
        %v2900 = vsel %vm871, %v2898, %v2899
        %v2901 = vrot.slane %v2826, 2
        %v2902 = vrot.slane %v2827, 2
        %v2903 = vsel %vm871, %v2901, %v2902
        %v2904 = vrot.slane %v2828, 2
        %v2905 = vrot.slane %v2829, 2
        %v2906 = vsel %vm871, %v2904, %v2905
        %v2907 = vrot.slane %v2830, 2
        %v2908 = vrot.slane %v2831, 2
        %v2909 = vsel %vm871, %v2907, %v2908
        %v2910 = vrot.slane %v2832, 2
        %v2911 = vrot.slane %v2833, 2
        %v2912 = vsel %vm871, %v2910, %v2911
        %v2913 = vrot.slane %v2834, 2
        %v2914 = vrot.slane %v2835, 2
        %v2915 = vsel %vm871, %v2913, %v2914
        %s2932 = scalar_lea.vmem [#allocation7], 384
        %v2933 = vld [vmem:[%s2932] sm:$0xf]
        %v2934 = vld [vmem:[%s2932 + $0x4] sm:$0xf]
        %v2935 = vld [vmem:[%s2932 + $0x8] sm:$0xf]
        %v2936 = vld [vmem:[%s2932 + $0xc] sm:$0xf]
        %v2937 = vld [vmem:[%s2932 + $0x10] sm:$0xf]
        %v2938 = vld [vmem:[%s2932 + $0x14] sm:$0xf]
        %v2939 = vld [vmem:[%s2932 + $0x18] sm:$0xf]
        %v2940 = vld [vmem:[%s2932 + $0x1c] sm:$0xf]
        %v2941 = vld [vmem:[%s2932 + $0x20] sm:$0xf]
        %v2942 = vld [vmem:[%s2932 + $0x24] sm:$0xf]
        %v2943 = vld [vmem:[%s2932 + $0x28] sm:$0xf]
        %v2944 = vld [vmem:[%s2932 + $0x2c] sm:$0xf]
        %v2945 = vld [vmem:[%s2932 + $0x30] sm:$0xf]
        %v2946 = vld [vmem:[%s2932 + $0x34] sm:$0xf]
        %v2947 = vld [vmem:[%s2932 + $0x38] sm:$0xf]
        %v2948 = vld [vmem:[%s2932 + $0x3c] sm:$0xf]
        %v2965 = vunpack.c.l.b16 %v2933
        %v2966 = vunpack.c.l.b16 %v2934
        %v2967 = vunpack.c.l.b16 %v2935
        %v2968 = vunpack.c.l.b16 %v2936
        %v2969 = vunpack.c.l.b16 %v2937
        %v2970 = vunpack.c.l.b16 %v2938
        %v2971 = vunpack.c.l.b16 %v2939
        %v2972 = vunpack.c.l.b16 %v2940
        %v2973 = vunpack.c.l.b16 %v2941
        %v2974 = vunpack.c.l.b16 %v2942
        %v2975 = vunpack.c.l.b16 %v2943
        %v2976 = vunpack.c.l.b16 %v2944
        %v2977 = vunpack.c.l.b16 %v2945
        %v2978 = vunpack.c.l.b16 %v2946
        %v2979 = vunpack.c.l.b16 %v2947
        %v2980 = vunpack.c.l.b16 %v2948
        %v2981 = vpack.c.b16 %v2966, %v2965
        %v2982 = vpack.c.b16 %v2968, %v2967
        %v2983 = vpack.c.b16 %v2970, %v2969
        %v2984 = vpack.c.b16 %v2972, %v2971
        %v2985 = vpack.c.b16 %v2974, %v2973
        %v2986 = vpack.c.b16 %v2976, %v2975
        %v2987 = vpack.c.b16 %v2978, %v2977
        %v2988 = vpack.c.b16 %v2980, %v2979
        %2997 = vmatprep.subr.bf16.mxu0 0
        %2998 = vmatpush1.bf16.msra.mxu0 %v2981
        %2999 = vmatprep.subr.bf16.mxu0 0
        %3000 = vmatpush1.bf16.msra.mxu0 %v2982
        %3001 = vmatprep.subr.bf16.mxu0 0
        %3002 = vmatpush1.bf16.msra.mxu0 %v2983
        %3003 = vmatprep.subr.bf16.mxu0 0
        %3004 = vmatpush1.bf16.msra.mxu0 %v2984
        %3005 = vmatprep.subr.bf16.mxu0 0
        %3006 = vmatpush1.bf16.msra.mxu0 %v2985
        %3007 = vmatprep.subr.bf16.mxu0 0
        %3008 = vmatpush1.bf16.msra.mxu0 %v2986
        %3009 = vmatprep.subr.bf16.mxu0 0
        %3010 = vmatpush1.bf16.msra.mxu0 %v2987
        %3011 = vmatprep.subr.bf16.mxu0 0
        %3012 = vmatpush1.bf16.msra.mxu0 %v2988
        %3013 = vmatprep.subr.bf16.mxu0 0
        %3014 = vmatpush1.bf16.msra.mxu0 0
        %3015 = vmatprep.subr.bf16.mxu0 0
        %3016 = vmatpush1.bf16.msra.mxu0 0
        %3017 = vmatprep.subr.bf16.mxu0 0
        %3018 = vmatpush1.bf16.msra.mxu0 0
        %3019 = vmatprep.subr.bf16.mxu0 0
        %3020 = vmatpush1.bf16.msra.mxu0 0
        %3021 = vmatprep.subr.bf16.mxu0 0
        %3022 = vmatpush1.bf16.msra.mxu0 0
        %3023 = vmatprep.subr.bf16.mxu0 0
        %3024 = vmatpush1.bf16.msra.mxu0 0
        %3025 = vmatprep.subr.bf16.mxu0 0
        %3026 = vmatpush1.bf16.msra.mxu0 0
        %3027 = vmatprep.subr.bf16.mxu0 0
        %3028 = vmatpush1.bf16.msra.mxu0 0
        %3029 = vmatprep.mubr.bf16.mxu0 0
        %3030 = vmatmul.mubr.bf16.gmra.mrb[0].mxu0 %v2870
        %v3031 = vpop.f32.mrb[0].mxu0
        %v3032 = vadd.f32 0.0, %v3031
        %v3033 = vpop.f32.mrb[0].mxu0
        %v3034 = vpop.f32.mrb[0].mxu0
        %v3035 = vadd.f32 0.0, %v3034
        %v3036 = vpop.f32.mrb[0].mxu0
        %3037 = vmatprep.mubr.bf16.mxu0 0
        %3038 = vmatmul.mubr.bf16.gmra.mrb[0].mxu0 %v2873
        %v3039 = vpop.f32.mrb[0].mxu0
        %v3040 = vadd.f32 0.0, %v3039
        %v3041 = vpop.f32.mrb[0].mxu0
        %v3042 = vpop.f32.mrb[0].mxu0
        %v3043 = vadd.f32 0.0, %v3042
        %v3044 = vpop.f32.mrb[0].mxu0
        %3045 = vmatprep.mubr.bf16.mxu0 0
        %3046 = vmatmul.mubr.bf16.gmra.mrb[0].mxu0 %v2876
        %v3047 = vpop.f32.mrb[0].mxu0
        %v3048 = vadd.f32 0.0, %v3047
        %v3049 = vpop.f32.mrb[0].mxu0
        %v3050 = vpop.f32.mrb[0].mxu0
        %v3051 = vadd.f32 0.0, %v3050
        %v3052 = vpop.f32.mrb[0].mxu0
        %3053 = vmatprep.mubr.bf16.mxu0 0
        %3054 = vmatmul.mubr.bf16.gmra.mrb[0].mxu0 %v2879
        %v3055 = vpop.f32.mrb[0].mxu0
        %v3056 = vadd.f32 0.0, %v3055
        %v3057 = vpop.f32.mrb[0].mxu0
        %v3058 = vpop.f32.mrb[0].mxu0
        %v3059 = vadd.f32 0.0, %v3058
        %v3060 = vpop.f32.mrb[0].mxu0
        %3061 = vmatprep.mubr.bf16.mxu0 0
        %3062 = vmatmul.mubr.bf16.gmra.mrb[0].mxu0 %v2882
        %v3063 = vpop.f32.mrb[0].mxu0
        %v3064 = vadd.f32 0.0, %v3063
        %v3065 = vpop.f32.mrb[0].mxu0
        %v3066 = vpop.f32.mrb[0].mxu0
        %v3067 = vadd.f32 0.0, %v3066
        %v3068 = vpop.f32.mrb[0].mxu0
        %3069 = vmatprep.mubr.bf16.mxu0 0
        %3070 = vmatmul.mubr.bf16.gmra.mrb[0].mxu0 %v2885
        %v3071 = vpop.f32.mrb[0].mxu0
        %v3072 = vadd.f32 0.0, %v3071
        %v3073 = vpop.f32.mrb[0].mxu0
        %v3074 = vpop.f32.mrb[0].mxu0
        %v3075 = vadd.f32 0.0, %v3074
        %v3076 = vpop.f32.mrb[0].mxu0
        %3077 = vmatprep.mubr.bf16.mxu0 0
        %3078 = vmatmul.mubr.bf16.gmra.mrb[0].mxu0 %v2888
        %v3079 = vpop.f32.mrb[0].mxu0
        %v3080 = vadd.f32 0.0, %v3079
        %v3081 = vpop.f32.mrb[0].mxu0
        %v3082 = vpop.f32.mrb[0].mxu0
        %v3083 = vadd.f32 0.0, %v3082
        %v3084 = vpop.f32.mrb[0].mxu0
        %3085 = vmatprep.mubr.bf16.mxu0 0
        %3086 = vmatmul.mubr.bf16.gmra.mrb[0].mxu0 %v2891
        %v3087 = vpop.f32.mrb[0].mxu0
        %v3088 = vadd.f32 0.0, %v3087
        %v3089 = vpop.f32.mrb[0].mxu0
        %v3090 = vpop.f32.mrb[0].mxu0
        %v3091 = vadd.f32 0.0, %v3090
        %v3092 = vpop.f32.mrb[0].mxu0
        %3093 = vmatprep.mubr.bf16.mxu0 0
        %3094 = vmatmul.mubr.bf16.gmra.mrb[0].mxu0 %v2894
        %v3095 = vpop.f32.mrb[0].mxu0
        %v3096 = vadd.f32 0.0, %v3095
        %v3097 = vpop.f32.mrb[0].mxu0
        %v3098 = vpop.f32.mrb[0].mxu0
        %v3099 = vadd.f32 0.0, %v3098
        %v3100 = vpop.f32.mrb[0].mxu0
        %3101 = vmatprep.mubr.bf16.mxu0 0
        %3102 = vmatmul.mubr.bf16.gmra.mrb[0].mxu0 %v2897
        %v3103 = vpop.f32.mrb[0].mxu0
        %v3104 = vadd.f32 0.0, %v3103
        %v3105 = vpop.f32.mrb[0].mxu0
        %v3106 = vpop.f32.mrb[0].mxu0
        %v3107 = vadd.f32 0.0, %v3106
        %v3108 = vpop.f32.mrb[0].mxu0
        %3109 = vmatprep.mubr.bf16.mxu0 0
        %3110 = vmatmul.mubr.bf16.gmra.mrb[0].mxu0 %v2900
        %v3111 = vpop.f32.mrb[0].mxu0
        %v3112 = vadd.f32 0.0, %v3111
        %v3113 = vpop.f32.mrb[0].mxu0
        %v3114 = vpop.f32.mrb[0].mxu0
        %v3115 = vadd.f32 0.0, %v3114
        %v3116 = vpop.f32.mrb[0].mxu0
        %3117 = vmatprep.mubr.bf16.mxu0 0
        %3118 = vmatmul.mubr.bf16.gmra.mrb[0].mxu0 %v2903
        %v3119 = vpop.f32.mrb[0].mxu0
        %v3120 = vadd.f32 0.0, %v3119
        %v3121 = vpop.f32.mrb[0].mxu0
        %v3122 = vpop.f32.mrb[0].mxu0
        %v3123 = vadd.f32 0.0, %v3122
        %v3124 = vpop.f32.mrb[0].mxu0
        %3125 = vmatprep.mubr.bf16.mxu0 0
        %3126 = vmatmul.mubr.bf16.gmra.mrb[0].mxu0 %v2906
        %v3127 = vpop.f32.mrb[0].mxu0
        %v3128 = vadd.f32 0.0, %v3127
        %v3129 = vpop.f32.mrb[0].mxu0
        %v3130 = vpop.f32.mrb[0].mxu0
        %v3131 = vadd.f32 0.0, %v3130
        %v3132 = vpop.f32.mrb[0].mxu0
        %3133 = vmatprep.mubr.bf16.mxu0 0
        %3134 = vmatmul.mubr.bf16.gmra.mrb[0].mxu0 %v2909
        %v3135 = vpop.f32.mrb[0].mxu0
        %v3136 = vadd.f32 0.0, %v3135
        %v3137 = vpop.f32.mrb[0].mxu0
        %v3138 = vpop.f32.mrb[0].mxu0
        %v3139 = vadd.f32 0.0, %v3138
        %v3140 = vpop.f32.mrb[0].mxu0
        %3141 = vmatprep.mubr.bf16.mxu0 0
        %3142 = vmatmul.mubr.bf16.gmra.mrb[0].mxu0 %v2912
        %v3143 = vpop.f32.mrb[0].mxu0
        %v3144 = vadd.f32 0.0, %v3143
        %v3145 = vpop.f32.mrb[0].mxu0
        %v3146 = vpop.f32.mrb[0].mxu0
        %v3147 = vadd.f32 0.0, %v3146
        %v3148 = vpop.f32.mrb[0].mxu0
        %3149 = vmatprep.mubr.bf16.mxu0 0
        %3150 = vmatmul.mubr.bf16.gmra.mrb[0].mxu0 %v2915
        %v3151 = vpop.f32.mrb[0].mxu0
        %v3152 = vadd.f32 0.0, %v3151
        %v3153 = vpop.f32.mrb[0].mxu0
        %v3154 = vpop.f32.mrb[0].mxu0
        %v3155 = vadd.f32 0.0, %v3154
        %v3156 = vpop.f32.mrb[0].mxu0
        %3157 = vdwg.mxu0
        %v3158 = vadd.f32 %v2771, %v3032
        %v3159 = vadd.f32 %v2772, %v3035
        %v3160 = vadd.f32 %v2773, %v3040
        %v3161 = vadd.f32 %v2774, %v3043
        %v3162 = vadd.f32 %v2775, %v3048
        %v3163 = vadd.f32 %v2776, %v3051
        %v3164 = vadd.f32 %v2777, %v3056
        %v3165 = vadd.f32 %v2778, %v3059
        %v3166 = vadd.f32 %v2779, %v3064
        %v3167 = vadd.f32 %v2780, %v3067
        %v3168 = vadd.f32 %v2781, %v3072
        %v3169 = vadd.f32 %v2782, %v3075
        %v3170 = vadd.f32 %v2783, %v3080
        %v3171 = vadd.f32 %v2784, %v3083
        %v3172 = vadd.f32 %v2785, %v3088
        %v3173 = vadd.f32 %v2786, %v3091
        %v3174 = vadd.f32 %v2787, %v3096
        %v3175 = vadd.f32 %v2788, %v3099
        %v3176 = vadd.f32 %v2789, %v3104
        %v3177 = vadd.f32 %v2790, %v3107
        %v3178 = vadd.f32 %v2791, %v3112
        %v3179 = vadd.f32 %v2792, %v3115
        %v3180 = vadd.f32 %v2793, %v3120
        %v3181 = vadd.f32 %v2794, %v3123
        %v3182 = vadd.f32 %v2795, %v3128
        %v3183 = vadd.f32 %v2796, %v3131
        %v3184 = vadd.f32 %v2797, %v3136
        %v3185 = vadd.f32 %v2798, %v3139
        %v3186 = vadd.f32 %v2799, %v3144
        %v3187 = vadd.f32 %v2800, %v3147
        %v3188 = vadd.f32 %v2801, %v3152
        %v3189 = vadd.f32 %v2802, %v3155
        %v3190 = vld [vmem:[%s2803 + $0x8] sm:$0xff]
        %v3191 = vld [vmem:[%s2803 + $0x20] sm:$0xff]
        %v3192 = vld [vmem:[%s2803 + $0x38] sm:$0xff]
        %v3193 = vld [vmem:[%s2803 + $0x50] sm:$0xff]
        %v3194 = vld [vmem:[%s2803 + $0x68] sm:$0xff]
        %v3195 = vld [vmem:[%s2803 + $0x80] sm:$0xff]
        %v3196 = vld [vmem:[%s2803 + $0x98] sm:$0xff]
        %v3197 = vld [vmem:[%s2803 + $0xb0] sm:$0xff]
        %v3198 = vld [vmem:[%s2803 + $0xc8] sm:$0xff]
        %v3199 = vld [vmem:[%s2803 + $0xe0] sm:$0xff]
        %v3200 = vld [vmem:[%s2803 + $0xf8] sm:$0xff]
        %v3201 = vld [vmem:[%s2803 + $0x110] sm:$0xff]
        %v3202 = vld [vmem:[%s2803 + $0x128] sm:$0xff]
        %v3203 = vld [vmem:[%s2803 + $0x140] sm:$0xff]
        %v3204 = vld [vmem:[%s2803 + $0x158] sm:$0xff]
        %v3205 = vld [vmem:[%s2803 + $0x170] sm:$0xff]
        %s3206 = scalar_lea.vmem [#allocation7], 448
        %v3207 = vld [vmem:[%s3206] sm:$0xf]
        %v3208 = vld [vmem:[%s3206 + $0x4] sm:$0xf]
        %v3209 = vld [vmem:[%s3206 + $0x8] sm:$0xf]
        %v3210 = vld [vmem:[%s3206 + $0xc] sm:$0xf]
        %v3211 = vld [vmem:[%s3206 + $0x10] sm:$0xf]
        %v3212 = vld [vmem:[%s3206 + $0x14] sm:$0xf]
        %v3213 = vld [vmem:[%s3206 + $0x18] sm:$0xf]
        %v3214 = vld [vmem:[%s3206 + $0x1c] sm:$0xf]
        %v3215 = vld [vmem:[%s3206 + $0x20] sm:$0xf]
        %v3216 = vld [vmem:[%s3206 + $0x24] sm:$0xf]
        %v3217 = vld [vmem:[%s3206 + $0x28] sm:$0xf]
        %v3218 = vld [vmem:[%s3206 + $0x2c] sm:$0xf]
        %v3219 = vld [vmem:[%s3206 + $0x30] sm:$0xf]
        %v3220 = vld [vmem:[%s3206 + $0x34] sm:$0xf]
        %v3221 = vld [vmem:[%s3206 + $0x38] sm:$0xf]
        %v3222 = vld [vmem:[%s3206 + $0x3c] sm:$0xf]
        %v3239 = vunpack.c.l.b16 %v3207
        %v3240 = vunpack.c.l.b16 %v3208
        %v3241 = vunpack.c.l.b16 %v3209
        %v3242 = vunpack.c.l.b16 %v3210
        %v3243 = vunpack.c.l.b16 %v3211
        %v3244 = vunpack.c.l.b16 %v3212
        %v3245 = vunpack.c.l.b16 %v3213
        %v3246 = vunpack.c.l.b16 %v3214
        %v3247 = vunpack.c.l.b16 %v3215
        %v3248 = vunpack.c.l.b16 %v3216
        %v3249 = vunpack.c.l.b16 %v3217
        %v3250 = vunpack.c.l.b16 %v3218
        %v3251 = vunpack.c.l.b16 %v3219
        %v3252 = vunpack.c.l.b16 %v3220
        %v3253 = vunpack.c.l.b16 %v3221
        %v3254 = vunpack.c.l.b16 %v3222
        %v3255 = vpack.c.b16 %v3240, %v3239
        %v3256 = vpack.c.b16 %v3242, %v3241
        %v3257 = vpack.c.b16 %v3244, %v3243
        %v3258 = vpack.c.b16 %v3246, %v3245
        %v3259 = vpack.c.b16 %v3248, %v3247
        %v3260 = vpack.c.b16 %v3250, %v3249
        %v3261 = vpack.c.b16 %v3252, %v3251
        %v3262 = vpack.c.b16 %v3254, %v3253
        %3271 = vmatprep.subr.bf16.mxu0 0
        %3272 = vmatpush1.bf16.msra.mxu0 %v3255
        %3273 = vmatprep.subr.bf16.mxu0 0
        %3274 = vmatpush1.bf16.msra.mxu0 %v3256
        %3275 = vmatprep.subr.bf16.mxu0 0
        %3276 = vmatpush1.bf16.msra.mxu0 %v3257
        %3277 = vmatprep.subr.bf16.mxu0 0
        %3278 = vmatpush1.bf16.msra.mxu0 %v3258
        %3279 = vmatprep.subr.bf16.mxu0 0
        %3280 = vmatpush1.bf16.msra.mxu0 %v3259
        %3281 = vmatprep.subr.bf16.mxu0 0
        %3282 = vmatpush1.bf16.msra.mxu0 %v3260
        %3283 = vmatprep.subr.bf16.mxu0 0
        %3284 = vmatpush1.bf16.msra.mxu0 %v3261
        %3285 = vmatprep.subr.bf16.mxu0 0
        %3286 = vmatpush1.bf16.msra.mxu0 %v3262
        %3287 = vmatprep.subr.bf16.mxu0 0
        %3288 = vmatpush1.bf16.msra.mxu0 0
        %3289 = vmatprep.subr.bf16.mxu0 0
        %3290 = vmatpush1.bf16.msra.mxu0 0
        %3291 = vmatprep.subr.bf16.mxu0 0
        %3292 = vmatpush1.bf16.msra.mxu0 0
        %3293 = vmatprep.subr.bf16.mxu0 0
        %3294 = vmatpush1.bf16.msra.mxu0 0
        %3295 = vmatprep.subr.bf16.mxu0 0
        %3296 = vmatpush1.bf16.msra.mxu0 0
        %3297 = vmatprep.subr.bf16.mxu0 0
        %3298 = vmatpush1.bf16.msra.mxu0 0
        %3299 = vmatprep.subr.bf16.mxu0 0
        %3300 = vmatpush1.bf16.msra.mxu0 0
        %3301 = vmatprep.subr.bf16.mxu0 0
        %3302 = vmatpush1.bf16.msra.mxu0 0
        %3303 = vmatprep.mubr.bf16.mxu0 0
        %3304 = vmatmul.mubr.bf16.gmra.mrb[0].mxu0 %v3190
        %v3305 = vpop.f32.mrb[0].mxu0
        %v3306 = vadd.f32 0.0, %v3305
        %v3307 = vpop.f32.mrb[0].mxu0
        %v3308 = vpop.f32.mrb[0].mxu0
        %v3309 = vadd.f32 0.0, %v3308
        %v3310 = vpop.f32.mrb[0].mxu0
        %3311 = vmatprep.mubr.bf16.mxu0 0
        %3312 = vmatmul.mubr.bf16.gmra.mrb[0].mxu0 %v3191
        %v3313 = vpop.f32.mrb[0].mxu0
        %v3314 = vadd.f32 0.0, %v3313
        %v3315 = vpop.f32.mrb[0].mxu0
        %v3316 = vpop.f32.mrb[0].mxu0
        %v3317 = vadd.f32 0.0, %v3316
        %v3318 = vpop.f32.mrb[0].mxu0
        %3319 = vmatprep.mubr.bf16.mxu0 0
        %3320 = vmatmul.mubr.bf16.gmra.mrb[0].mxu0 %v3192
        %v3321 = vpop.f32.mrb[0].mxu0
        %v3322 = vadd.f32 0.0, %v3321
        %v3323 = vpop.f32.mrb[0].mxu0
        %v3324 = vpop.f32.mrb[0].mxu0
        %v3325 = vadd.f32 0.0, %v3324
        %v3326 = vpop.f32.mrb[0].mxu0
        %3327 = vmatprep.mubr.bf16.mxu0 0
        %3328 = vmatmul.mubr.bf16.gmra.mrb[0].mxu0 %v3193
        %v3329 = vpop.f32.mrb[0].mxu0
        %v3330 = vadd.f32 0.0, %v3329
        %v3331 = vpop.f32.mrb[0].mxu0
        %v3332 = vpop.f32.mrb[0].mxu0
        %v3333 = vadd.f32 0.0, %v3332
        %v3334 = vpop.f32.mrb[0].mxu0
        %3335 = vmatprep.mubr.bf16.mxu0 0
        %3336 = vmatmul.mubr.bf16.gmra.mrb[0].mxu0 %v3194
        %v3337 = vpop.f32.mrb[0].mxu0
        %v3338 = vadd.f32 0.0, %v3337
        %v3339 = vpop.f32.mrb[0].mxu0
        %v3340 = vpop.f32.mrb[0].mxu0
        %v3341 = vadd.f32 0.0, %v3340
        %v3342 = vpop.f32.mrb[0].mxu0
        %3343 = vmatprep.mubr.bf16.mxu0 0
        %3344 = vmatmul.mubr.bf16.gmra.mrb[0].mxu0 %v3195
        %v3345 = vpop.f32.mrb[0].mxu0
        %v3346 = vadd.f32 0.0, %v3345
        %v3347 = vpop.f32.mrb[0].mxu0
        %v3348 = vpop.f32.mrb[0].mxu0
        %v3349 = vadd.f32 0.0, %v3348
        %v3350 = vpop.f32.mrb[0].mxu0
        %3351 = vmatprep.mubr.bf16.mxu0 0
        %3352 = vmatmul.mubr.bf16.gmra.mrb[0].mxu0 %v3196
        %v3353 = vpop.f32.mrb[0].mxu0
        %v3354 = vadd.f32 0.0, %v3353
        %v3355 = vpop.f32.mrb[0].mxu0
        %v3356 = vpop.f32.mrb[0].mxu0
        %v3357 = vadd.f32 0.0, %v3356
        %v3358 = vpop.f32.mrb[0].mxu0
        %3359 = vmatprep.mubr.bf16.mxu0 0
        %3360 = vmatmul.mubr.bf16.gmra.mrb[0].mxu0 %v3197
        %v3361 = vpop.f32.mrb[0].mxu0
        %v3362 = vadd.f32 0.0, %v3361
        %v3363 = vpop.f32.mrb[0].mxu0
        %v3364 = vpop.f32.mrb[0].mxu0
        %v3365 = vadd.f32 0.0, %v3364
        %v3366 = vpop.f32.mrb[0].mxu0
        %3367 = vmatprep.mubr.bf16.mxu0 0
        %3368 = vmatmul.mubr.bf16.gmra.mrb[0].mxu0 %v3198
        %v3369 = vpop.f32.mrb[0].mxu0
        %v3370 = vadd.f32 0.0, %v3369
        %v3371 = vpop.f32.mrb[0].mxu0
        %v3372 = vpop.f32.mrb[0].mxu0
        %v3373 = vadd.f32 0.0, %v3372
        %v3374 = vpop.f32.mrb[0].mxu0
        %3375 = vmatprep.mubr.bf16.mxu0 0
        %3376 = vmatmul.mubr.bf16.gmra.mrb[0].mxu0 %v3199
        %v3377 = vpop.f32.mrb[0].mxu0
        %v3378 = vadd.f32 0.0, %v3377
        %v3379 = vpop.f32.mrb[0].mxu0
        %v3380 = vpop.f32.mrb[0].mxu0
        %v3381 = vadd.f32 0.0, %v3380
        %v3382 = vpop.f32.mrb[0].mxu0
        %3383 = vmatprep.mubr.bf16.mxu0 0
        %3384 = vmatmul.mubr.bf16.gmra.mrb[0].mxu0 %v3200
        %v3385 = vpop.f32.mrb[0].mxu0
        %v3386 = vadd.f32 0.0, %v3385
        %v3387 = vpop.f32.mrb[0].mxu0
        %v3388 = vpop.f32.mrb[0].mxu0
        %v3389 = vadd.f32 0.0, %v3388
        %v3390 = vpop.f32.mrb[0].mxu0
        %3391 = vmatprep.mubr.bf16.mxu0 0
        %3392 = vmatmul.mubr.bf16.gmra.mrb[0].mxu0 %v3201
        %v3393 = vpop.f32.mrb[0].mxu0
        %v3394 = vadd.f32 0.0, %v3393
        %v3395 = vpop.f32.mrb[0].mxu0
        %v3396 = vpop.f32.mrb[0].mxu0
        %v3397 = vadd.f32 0.0, %v3396
        %v3398 = vpop.f32.mrb[0].mxu0
        %3399 = vmatprep.mubr.bf16.mxu0 0
        %3400 = vmatmul.mubr.bf16.gmra.mrb[0].mxu0 %v3202
        %v3401 = vpop.f32.mrb[0].mxu0
        %v3402 = vadd.f32 0.0, %v3401
        %v3403 = vpop.f32.mrb[0].mxu0
        %v3404 = vpop.f32.mrb[0].mxu0
        %v3405 = vadd.f32 0.0, %v3404
        %v3406 = vpop.f32.mrb[0].mxu0
        %3407 = vmatprep.mubr.bf16.mxu0 0
        %3408 = vmatmul.mubr.bf16.gmra.mrb[0].mxu0 %v3203
        %v3409 = vpop.f32.mrb[0].mxu0
        %v3410 = vadd.f32 0.0, %v3409
        %v3411 = vpop.f32.mrb[0].mxu0
        %v3412 = vpop.f32.mrb[0].mxu0
        %v3413 = vadd.f32 0.0, %v3412
        %v3414 = vpop.f32.mrb[0].mxu0
        %3415 = vmatprep.mubr.bf16.mxu0 0
        %3416 = vmatmul.mubr.bf16.gmra.mrb[0].mxu0 %v3204
        %v3417 = vpop.f32.mrb[0].mxu0
        %v3418 = vadd.f32 0.0, %v3417
        %v3419 = vpop.f32.mrb[0].mxu0
        %v3420 = vpop.f32.mrb[0].mxu0
        %v3421 = vadd.f32 0.0, %v3420
        %v3422 = vpop.f32.mrb[0].mxu0
        %3423 = vmatprep.mubr.bf16.mxu0 0
        %3424 = vmatmul.mubr.bf16.gmra.mrb[0].mxu0 %v3205
        %v3425 = vpop.f32.mrb[0].mxu0
        %v3426 = vadd.f32 0.0, %v3425
        %v3427 = vpop.f32.mrb[0].mxu0
        %v3428 = vpop.f32.mrb[0].mxu0
        %v3429 = vadd.f32 0.0, %v3428
        %v3430 = vpop.f32.mrb[0].mxu0
        %3431 = vdwg.mxu0
        %v3432 = vadd.f32 %v3158, %v3306
        %v3433 = vadd.f32 %v3159, %v3309
        %v3434 = vadd.f32 %v3160, %v3314
        %v3435 = vadd.f32 %v3161, %v3317
        %v3436 = vadd.f32 %v3162, %v3322
        %v3437 = vadd.f32 %v3163, %v3325
        %v3438 = vadd.f32 %v3164, %v3330
        %v3439 = vadd.f32 %v3165, %v3333
        %v3440 = vadd.f32 %v3166, %v3338
        %v3441 = vadd.f32 %v3167, %v3341
        %v3442 = vadd.f32 %v3168, %v3346
        %v3443 = vadd.f32 %v3169, %v3349
        %v3444 = vadd.f32 %v3170, %v3354
        %v3445 = vadd.f32 %v3171, %v3357
        %v3446 = vadd.f32 %v3172, %v3362
        %v3447 = vadd.f32 %v3173, %v3365
        %v3448 = vadd.f32 %v3174, %v3370
        %v3449 = vadd.f32 %v3175, %v3373
        %v3450 = vadd.f32 %v3176, %v3378
        %v3451 = vadd.f32 %v3177, %v3381
        %v3452 = vadd.f32 %v3178, %v3386
        %v3453 = vadd.f32 %v3179, %v3389
        %v3454 = vadd.f32 %v3180, %v3394
        %v3455 = vadd.f32 %v3181, %v3397
        %v3456 = vadd.f32 %v3182, %v3402
        %v3457 = vadd.f32 %v3183, %v3405
        %v3458 = vadd.f32 %v3184, %v3410
        %v3459 = vadd.f32 %v3185, %v3413
        %v3460 = vadd.f32 %v3186, %v3418
        %v3461 = vadd.f32 %v3187, %v3421
        %v3462 = vadd.f32 %v3188, %v3426
        %v3463 = vadd.f32 %v3189, %v3429
        %v3464 = vld [vmem:[%s2803 + $0x8] sm:$0xc0]
        %v3465 = vld [vmem:[%s2803 + $0x10] sm:$0x3f]
        %v3466 = vld [vmem:[%s2803 + $0x20] sm:$0xc0]
        %v3467 = vld [vmem:[%s2803 + $0x28] sm:$0x3f]
        %v3468 = vld [vmem:[%s2803 + $0x38] sm:$0xc0]
        %v3469 = vld [vmem:[%s2803 + $0x40] sm:$0x3f]
        %v3470 = vld [vmem:[%s2803 + $0x50] sm:$0xc0]
        %v3471 = vld [vmem:[%s2803 + $0x58] sm:$0x3f]
        %v3472 = vld [vmem:[%s2803 + $0x68] sm:$0xc0]
        %v3473 = vld [vmem:[%s2803 + $0x70] sm:$0x3f]
        %v3474 = vld [vmem:[%s2803 + $0x80] sm:$0xc0]
        %v3475 = vld [vmem:[%s2803 + $0x88] sm:$0x3f]
        %v3476 = vld [vmem:[%s2803 + $0x98] sm:$0xc0]
        %v3477 = vld [vmem:[%s2803 + $0xa0] sm:$0x3f]
        %v3478 = vld [vmem:[%s2803 + $0xb0] sm:$0xc0]
        %v3479 = vld [vmem:[%s2803 + $0xb8] sm:$0x3f]
        %v3480 = vld [vmem:[%s2803 + $0xc8] sm:$0xc0]
        %v3481 = vld [vmem:[%s2803 + $0xd0] sm:$0x3f]
        %v3482 = vld [vmem:[%s2803 + $0xe0] sm:$0xc0]
        %v3483 = vld [vmem:[%s2803 + $0xe8] sm:$0x3f]
        %v3484 = vld [vmem:[%s2803 + $0xf8] sm:$0xc0]
        %v3485 = vld [vmem:[%s2803 + $0x100] sm:$0x3f]
        %v3486 = vld [vmem:[%s2803 + $0x110] sm:$0xc0]
        %v3487 = vld [vmem:[%s2803 + $0x118] sm:$0x3f]
        %v3488 = vld [vmem:[%s2803 + $0x128] sm:$0xc0]
        %v3489 = vld [vmem:[%s2803 + $0x130] sm:$0x3f]
        %v3490 = vld [vmem:[%s2803 + $0x140] sm:$0xc0]
        %v3491 = vld [vmem:[%s2803 + $0x148] sm:$0x3f]
        %v3492 = vld [vmem:[%s2803 + $0x158] sm:$0xc0]
        %v3493 = vld [vmem:[%s2803 + $0x160] sm:$0x3f]
        %v3494 = vld [vmem:[%s2803 + $0x170] sm:$0xc0]
        %v3495 = vld [vmem:[%s2803 + $0x178] sm:$0x3f]
        %v3528 = vrot.slane %v3464, 6
        %v3529 = vrot.slane %v3465, 6
        %v3530 = vsel %vm1708, %v3528, %v3529
        %v3531 = vrot.slane %v3466, 6
        %v3532 = vrot.slane %v3467, 6
        %v3533 = vsel %vm1708, %v3531, %v3532
        %v3534 = vrot.slane %v3468, 6
        %v3535 = vrot.slane %v3469, 6
        %v3536 = vsel %vm1708, %v3534, %v3535
        %v3537 = vrot.slane %v3470, 6
        %v3538 = vrot.slane %v3471, 6
        %v3539 = vsel %vm1708, %v3537, %v3538
        %v3540 = vrot.slane %v3472, 6
        %v3541 = vrot.slane %v3473, 6
        %v3542 = vsel %vm1708, %v3540, %v3541
        %v3543 = vrot.slane %v3474, 6
        %v3544 = vrot.slane %v3475, 6
        %v3545 = vsel %vm1708, %v3543, %v3544
        %v3546 = vrot.slane %v3476, 6
        %v3547 = vrot.slane %v3477, 6
        %v3548 = vsel %vm1708, %v3546, %v3547
        %v3549 = vrot.slane %v3478, 6
        %v3550 = vrot.slane %v3479, 6
        %v3551 = vsel %vm1708, %v3549, %v3550
        %v3552 = vrot.slane %v3480, 6
        %v3553 = vrot.slane %v3481, 6
        %v3554 = vsel %vm1708, %v3552, %v3553
        %v3555 = vrot.slane %v3482, 6
        %v3556 = vrot.slane %v3483, 6
        %v3557 = vsel %vm1708, %v3555, %v3556
        %v3558 = vrot.slane %v3484, 6
        %v3559 = vrot.slane %v3485, 6
        %v3560 = vsel %vm1708, %v3558, %v3559
        %v3561 = vrot.slane %v3486, 6
        %v3562 = vrot.slane %v3487, 6
        %v3563 = vsel %vm1708, %v3561, %v3562
        %v3564 = vrot.slane %v3488, 6
        %v3565 = vrot.slane %v3489, 6
        %v3566 = vsel %vm1708, %v3564, %v3565
        %v3567 = vrot.slane %v3490, 6
        %v3568 = vrot.slane %v3491, 6
        %v3569 = vsel %vm1708, %v3567, %v3568
        %v3570 = vrot.slane %v3492, 6
        %v3571 = vrot.slane %v3493, 6
        %v3572 = vsel %vm1708, %v3570, %v3571
        %v3573 = vrot.slane %v3494, 6
        %v3574 = vrot.slane %v3495, 6
        %v3575 = vsel %vm1708, %v3573, %v3574
        %s3592 = scalar_lea.vmem [#allocation7], 512
        %v3593 = vld [vmem:[%s3592] sm:$0xf]
        %v3594 = vld [vmem:[%s3592 + $0x4] sm:$0xf]
        %v3595 = vld [vmem:[%s3592 + $0x8] sm:$0xf]
        %v3596 = vld [vmem:[%s3592 + $0xc] sm:$0xf]
        %v3597 = vld [vmem:[%s3592 + $0x10] sm:$0xf]
        %v3598 = vld [vmem:[%s3592 + $0x14] sm:$0xf]
        %v3599 = vld [vmem:[%s3592 + $0x18] sm:$0xf]
        %v3600 = vld [vmem:[%s3592 + $0x1c] sm:$0xf]
        %v3601 = vld [vmem:[%s3592 + $0x20] sm:$0xf]
        %v3602 = vld [vmem:[%s3592 + $0x24] sm:$0xf]
        %v3603 = vld [vmem:[%s3592 + $0x28] sm:$0xf]
        %v3604 = vld [vmem:[%s3592 + $0x2c] sm:$0xf]
        %v3605 = vld [vmem:[%s3592 + $0x30] sm:$0xf]
        %v3606 = vld [vmem:[%s3592 + $0x34] sm:$0xf]
        %v3607 = vld [vmem:[%s3592 + $0x38] sm:$0xf]
        %v3608 = vld [vmem:[%s3592 + $0x3c] sm:$0xf]
        %v3625 = vunpack.c.l.b16 %v3593
        %v3626 = vunpack.c.l.b16 %v3594
        %v3627 = vunpack.c.l.b16 %v3595
        %v3628 = vunpack.c.l.b16 %v3596
        %v3629 = vunpack.c.l.b16 %v3597
        %v3630 = vunpack.c.l.b16 %v3598
        %v3631 = vunpack.c.l.b16 %v3599
        %v3632 = vunpack.c.l.b16 %v3600
        %v3633 = vunpack.c.l.b16 %v3601
        %v3634 = vunpack.c.l.b16 %v3602
        %v3635 = vunpack.c.l.b16 %v3603
        %v3636 = vunpack.c.l.b16 %v3604
        %v3637 = vunpack.c.l.b16 %v3605
        %v3638 = vunpack.c.l.b16 %v3606
        %v3639 = vunpack.c.l.b16 %v3607
        %v3640 = vunpack.c.l.b16 %v3608
        %v3641 = vpack.c.b16 %v3626, %v3625
        %v3642 = vpack.c.b16 %v3628, %v3627
        %v3643 = vpack.c.b16 %v3630, %v3629
        %v3644 = vpack.c.b16 %v3632, %v3631
        %v3645 = vpack.c.b16 %v3634, %v3633
        %v3646 = vpack.c.b16 %v3636, %v3635
        %v3647 = vpack.c.b16 %v3638, %v3637
        %v3648 = vpack.c.b16 %v3640, %v3639
        %3657 = vmatprep.subr.bf16.mxu0 0
        %3658 = vmatpush1.bf16.msra.mxu0 %v3641
        %3659 = vmatprep.subr.bf16.mxu0 0
        %3660 = vmatpush1.bf16.msra.mxu0 %v3642
        %3661 = vmatprep.subr.bf16.mxu0 0
        %3662 = vmatpush1.bf16.msra.mxu0 %v3643
        %3663 = vmatprep.subr.bf16.mxu0 0
        %3664 = vmatpush1.bf16.msra.mxu0 %v3644
        %3665 = vmatprep.subr.bf16.mxu0 0
        %3666 = vmatpush1.bf16.msra.mxu0 %v3645
        %3667 = vmatprep.subr.bf16.mxu0 0
        %3668 = vmatpush1.bf16.msra.mxu0 %v3646
        %3669 = vmatprep.subr.bf16.mxu0 0
        %3670 = vmatpush1.bf16.msra.mxu0 %v3647
        %3671 = vmatprep.subr.bf16.mxu0 0
        %3672 = vmatpush1.bf16.msra.mxu0 %v3648
        %3673 = vmatprep.subr.bf16.mxu0 0
        %3674 = vmatpush1.bf16.msra.mxu0 0
        %3675 = vmatprep.subr.bf16.mxu0 0
        %3676 = vmatpush1.bf16.msra.mxu0 0
        %3677 = vmatprep.subr.bf16.mxu0 0
        %3678 = vmatpush1.bf16.msra.mxu0 0
        %3679 = vmatprep.subr.bf16.mxu0 0
        %3680 = vmatpush1.bf16.msra.mxu0 0
        %3681 = vmatprep.subr.bf16.mxu0 0
        %3682 = vmatpush1.bf16.msra.mxu0 0
        %3683 = vmatprep.subr.bf16.mxu0 0
        %3684 = vmatpush1.bf16.msra.mxu0 0
        %3685 = vmatprep.subr.bf16.mxu0 0
        %3686 = vmatpush1.bf16.msra.mxu0 0
        %3687 = vmatprep.subr.bf16.mxu0 0
        %3688 = vmatpush1.bf16.msra.mxu0 0
        %3689 = vmatprep.mubr.bf16.mxu0 0
        %3690 = vmatmul.mubr.bf16.gmra.mrb[0].mxu0 %v3530
        %v3691 = vpop.f32.mrb[0].mxu0
        %v3692 = vadd.f32 0.0, %v3691
        %v3693 = vpop.f32.mrb[0].mxu0
        %v3694 = vpop.f32.mrb[0].mxu0
        %v3695 = vadd.f32 0.0, %v3694
        %v3696 = vpop.f32.mrb[0].mxu0
        %3697 = vmatprep.mubr.bf16.mxu0 0
        %3698 = vmatmul.mubr.bf16.gmra.mrb[0].mxu0 %v3533
        %v3699 = vpop.f32.mrb[0].mxu0
        %v3700 = vadd.f32 0.0, %v3699
        %v3701 = vpop.f32.mrb[0].mxu0
        %v3702 = vpop.f32.mrb[0].mxu0
        %v3703 = vadd.f32 0.0, %v3702
        %v3704 = vpop.f32.mrb[0].mxu0
        %3705 = vmatprep.mubr.bf16.mxu0 0
        %3706 = vmatmul.mubr.bf16.gmra.mrb[0].mxu0 %v3536
        %v3707 = vpop.f32.mrb[0].mxu0
        %v3708 = vadd.f32 0.0, %v3707
        %v3709 = vpop.f32.mrb[0].mxu0
        %v3710 = vpop.f32.mrb[0].mxu0
        %v3711 = vadd.f32 0.0, %v3710
        %v3712 = vpop.f32.mrb[0].mxu0
        %3713 = vmatprep.mubr.bf16.mxu0 0
        %3714 = vmatmul.mubr.bf16.gmra.mrb[0].mxu0 %v3539
        %v3715 = vpop.f32.mrb[0].mxu0
        %v3716 = vadd.f32 0.0, %v3715
        %v3717 = vpop.f32.mrb[0].mxu0
        %v3718 = vpop.f32.mrb[0].mxu0
        %v3719 = vadd.f32 0.0, %v3718
        %v3720 = vpop.f32.mrb[0].mxu0
        %3721 = vmatprep.mubr.bf16.mxu0 0
        %3722 = vmatmul.mubr.bf16.gmra.mrb[0].mxu0 %v3542
        %v3723 = vpop.f32.mrb[0].mxu0
        %v3724 = vadd.f32 0.0, %v3723
        %v3725 = vpop.f32.mrb[0].mxu0
        %v3726 = vpop.f32.mrb[0].mxu0
        %v3727 = vadd.f32 0.0, %v3726
        %v3728 = vpop.f32.mrb[0].mxu0
        %3729 = vmatprep.mubr.bf16.mxu0 0
        %3730 = vmatmul.mubr.bf16.gmra.mrb[0].mxu0 %v3545
        %v3731 = vpop.f32.mrb[0].mxu0
        %v3732 = vadd.f32 0.0, %v3731
        %v3733 = vpop.f32.mrb[0].mxu0
        %v3734 = vpop.f32.mrb[0].mxu0
        %v3735 = vadd.f32 0.0, %v3734
        %v3736 = vpop.f32.mrb[0].mxu0
        %3737 = vmatprep.mubr.bf16.mxu0 0
        %3738 = vmatmul.mubr.bf16.gmra.mrb[0].mxu0 %v3548
        %v3739 = vpop.f32.mrb[0].mxu0
        %v3740 = vadd.f32 0.0, %v3739
        %v3741 = vpop.f32.mrb[0].mxu0
        %v3742 = vpop.f32.mrb[0].mxu0
        %v3743 = vadd.f32 0.0, %v3742
        %v3744 = vpop.f32.mrb[0].mxu0
        %3745 = vmatprep.mubr.bf16.mxu0 0
        %3746 = vmatmul.mubr.bf16.gmra.mrb[0].mxu0 %v3551
        %v3747 = vpop.f32.mrb[0].mxu0
        %v3748 = vadd.f32 0.0, %v3747
        %v3749 = vpop.f32.mrb[0].mxu0
        %v3750 = vpop.f32.mrb[0].mxu0
        %v3751 = vadd.f32 0.0, %v3750
        %v3752 = vpop.f32.mrb[0].mxu0
        %3753 = vmatprep.mubr.bf16.mxu0 0
        %3754 = vmatmul.mubr.bf16.gmra.mrb[0].mxu0 %v3554
        %v3755 = vpop.f32.mrb[0].mxu0
        %v3756 = vadd.f32 0.0, %v3755
        %v3757 = vpop.f32.mrb[0].mxu0
        %v3758 = vpop.f32.mrb[0].mxu0
        %v3759 = vadd.f32 0.0, %v3758
        %v3760 = vpop.f32.mrb[0].mxu0
        %3761 = vmatprep.mubr.bf16.mxu0 0
        %3762 = vmatmul.mubr.bf16.gmra.mrb[0].mxu0 %v3557
        %v3763 = vpop.f32.mrb[0].mxu0
        %v3764 = vadd.f32 0.0, %v3763
        %v3765 = vpop.f32.mrb[0].mxu0
        %v3766 = vpop.f32.mrb[0].mxu0
        %v3767 = vadd.f32 0.0, %v3766
        %v3768 = vpop.f32.mrb[0].mxu0
        %3769 = vmatprep.mubr.bf16.mxu0 0
        %3770 = vmatmul.mubr.bf16.gmra.mrb[0].mxu0 %v3560
        %v3771 = vpop.f32.mrb[0].mxu0
        %v3772 = vadd.f32 0.0, %v3771
        %v3773 = vpop.f32.mrb[0].mxu0
        %v3774 = vpop.f32.mrb[0].mxu0
        %v3775 = vadd.f32 0.0, %v3774
        %v3776 = vpop.f32.mrb[0].mxu0
        %3777 = vmatprep.mubr.bf16.mxu0 0
        %3778 = vmatmul.mubr.bf16.gmra.mrb[0].mxu0 %v3563
        %v3779 = vpop.f32.mrb[0].mxu0
        %v3780 = vadd.f32 0.0, %v3779
        %v3781 = vpop.f32.mrb[0].mxu0
        %v3782 = vpop.f32.mrb[0].mxu0
        %v3783 = vadd.f32 0.0, %v3782
        %v3784 = vpop.f32.mrb[0].mxu0
        %3785 = vmatprep.mubr.bf16.mxu0 0
        %3786 = vmatmul.mubr.bf16.gmra.mrb[0].mxu0 %v3566
        %v3787 = vpop.f32.mrb[0].mxu0
        %v3788 = vadd.f32 0.0, %v3787
        %v3789 = vpop.f32.mrb[0].mxu0
        %v3790 = vpop.f32.mrb[0].mxu0
        %v3791 = vadd.f32 0.0, %v3790
        %v3792 = vpop.f32.mrb[0].mxu0
        %3793 = vmatprep.mubr.bf16.mxu0 0
        %3794 = vmatmul.mubr.bf16.gmra.mrb[0].mxu0 %v3569
        %v3795 = vpop.f32.mrb[0].mxu0
        %v3796 = vadd.f32 0.0, %v3795
        %v3797 = vpop.f32.mrb[0].mxu0
        %v3798 = vpop.f32.mrb[0].mxu0
        %v3799 = vadd.f32 0.0, %v3798
        %v3800 = vpop.f32.mrb[0].mxu0
        %3801 = vmatprep.mubr.bf16.mxu0 0
        %3802 = vmatmul.mubr.bf16.gmra.mrb[0].mxu0 %v3572
        %v3803 = vpop.f32.mrb[0].mxu0
        %v3804 = vadd.f32 0.0, %v3803
        %v3805 = vpop.f32.mrb[0].mxu0
        %v3806 = vpop.f32.mrb[0].mxu0
        %v3807 = vadd.f32 0.0, %v3806
        %v3808 = vpop.f32.mrb[0].mxu0
        %3809 = vmatprep.mubr.bf16.mxu0 0
        %3810 = vmatmul.mubr.bf16.gmra.mrb[0].mxu0 %v3575
        %v3811 = vpop.f32.mrb[0].mxu0
        %v3812 = vadd.f32 0.0, %v3811
        %v3813 = vpop.f32.mrb[0].mxu0
        %v3814 = vpop.f32.mrb[0].mxu0
        %v3815 = vadd.f32 0.0, %v3814
        %v3816 = vpop.f32.mrb[0].mxu0
        %3817 = vdwg.mxu0
        %v3818 = vadd.f32 %v3432, %v3692
        %v3819 = vadd.f32 %v3433, %v3695
        %v3820 = vadd.f32 %v3434, %v3700
        %v3821 = vadd.f32 %v3435, %v3703
        %v3822 = vadd.f32 %v3436, %v3708
        %v3823 = vadd.f32 %v3437, %v3711
        %v3824 = vadd.f32 %v3438, %v3716
        %v3825 = vadd.f32 %v3439, %v3719
        %v3826 = vadd.f32 %v3440, %v3724
        %v3827 = vadd.f32 %v3441, %v3727
        %v3828 = vadd.f32 %v3442, %v3732
        %v3829 = vadd.f32 %v3443, %v3735
        %v3830 = vadd.f32 %v3444, %v3740
        %v3831 = vadd.f32 %v3445, %v3743
        %v3832 = vadd.f32 %v3446, %v3748
        %v3833 = vadd.f32 %v3447, %v3751
        %v3834 = vadd.f32 %v3448, %v3756
        %v3835 = vadd.f32 %v3449, %v3759
        %v3836 = vadd.f32 %v3450, %v3764
        %v3837 = vadd.f32 %v3451, %v3767
        %v3838 = vadd.f32 %v3452, %v3772
        %v3839 = vadd.f32 %v3453, %v3775
        %v3840 = vadd.f32 %v3454, %v3780
        %v3841 = vadd.f32 %v3455, %v3783
        %v3842 = vadd.f32 %v3456, %v3788
        %v3843 = vadd.f32 %v3457, %v3791
        %v3844 = vadd.f32 %v3458, %v3796
        %v3845 = vadd.f32 %v3459, %v3799
        %v3846 = vadd.f32 %v3460, %v3804
        %v3847 = vadd.f32 %v3461, %v3807
        %v3848 = vadd.f32 %v3462, %v3812
        %v3849 = vadd.f32 %v3463, %v3815
        %v3850 = vlaneseq
        %v3851 = vshrl.u32 %v3850, 7
        %v3852 = vsub.s32 1, %v3851
        %v3853 = vrot.slane %v406, %v3852
        %v3854 = vmul.f32 %v3818, %v3853
        %v3855 = vmul.f32 %v3819, %v3853
        %v3856 = vmul.f32 %v3820, %v3853
        %v3857 = vmul.f32 %v3821, %v3853
        %v3858 = vmul.f32 %v3822, %v3853
        %v3859 = vmul.f32 %v3823, %v3853
        %v3860 = vmul.f32 %v3824, %v3853
        %v3861 = vmul.f32 %v3825, %v3853
        %v3862 = vmul.f32 %v3826, %v3853
        %v3863 = vmul.f32 %v3827, %v3853
        %v3864 = vmul.f32 %v3828, %v3853
        %v3865 = vmul.f32 %v3829, %v3853
        %v3866 = vmul.f32 %v3830, %v3853
        %v3867 = vmul.f32 %v3831, %v3853
        %v3868 = vmul.f32 %v3832, %v3853
        %v3869 = vmul.f32 %v3833, %v3853
        %v3870 = vmul.f32 %v3834, %v3853
        %v3871 = vmul.f32 %v3835, %v3853
        %v3872 = vmul.f32 %v3836, %v3853
        %v3873 = vmul.f32 %v3837, %v3853
        %v3874 = vmul.f32 %v3838, %v3853
        %v3875 = vmul.f32 %v3839, %v3853
        %v3876 = vmul.f32 %v3840, %v3853
        %v3877 = vmul.f32 %v3841, %v3853
        %v3878 = vmul.f32 %v3842, %v3853
        %v3879 = vmul.f32 %v3843, %v3853
        %v3880 = vmul.f32 %v3844, %v3853
        %v3881 = vmul.f32 %v3845, %v3853
        %v3882 = vmul.f32 %v3846, %v3853
        %v3883 = vmul.f32 %v3847, %v3853
        %v3884 = vmul.f32 %v3848, %v3853
        %v3885 = vmul.f32 %v3849, %v3853
        %v3886 = vlaneseq
        %v3887 = vshrl.u32 %v3886, 7
        %v3888 = vsub.s32 1, %v3887
        %v3889 = vrot.slane %v407, %v3888
        %v3890 = vadd.f32 %v3854, %v3889
        %v3891 = vadd.f32 %v3855, %v3889
        %v3892 = vadd.f32 %v3856, %v3889
        %v3893 = vadd.f32 %v3857, %v3889
        %v3894 = vadd.f32 %v3858, %v3889
        %v3895 = vadd.f32 %v3859, %v3889
        %v3896 = vadd.f32 %v3860, %v3889
        %v3897 = vadd.f32 %v3861, %v3889
        %v3898 = vadd.f32 %v3862, %v3889
        %v3899 = vadd.f32 %v3863, %v3889
        %v3900 = vadd.f32 %v3864, %v3889
        %v3901 = vadd.f32 %v3865, %v3889
        %v3902 = vadd.f32 %v3866, %v3889
        %v3903 = vadd.f32 %v3867, %v3889
        %v3904 = vadd.f32 %v3868, %v3889
        %v3905 = vadd.f32 %v3869, %v3889
        %v3906 = vadd.f32 %v3870, %v3889
        %v3907 = vadd.f32 %v3871, %v3889
        %v3908 = vadd.f32 %v3872, %v3889
        %v3909 = vadd.f32 %v3873, %v3889
        %v3910 = vadd.f32 %v3874, %v3889
        %v3911 = vadd.f32 %v3875, %v3889
        %v3912 = vadd.f32 %v3876, %v3889
        %v3913 = vadd.f32 %v3877, %v3889
        %v3914 = vadd.f32 %v3878, %v3889
        %v3915 = vadd.f32 %v3879, %v3889
        %v3916 = vadd.f32 %v3880, %v3889
        %v3917 = vadd.f32 %v3881, %v3889
        %v3918 = vadd.f32 %v3882, %v3889
        %v3919 = vadd.f32 %v3883, %v3889
        %v3920 = vadd.f32 %v3884, %v3889
        %v3921 = vadd.f32 %v3885, %v3889
        %v3922 = vmax.f32 %v3890, 0.0
        %v3923 = vmax.f32 %v3891, 0.0
        %v3924 = vmax.f32 %v3892, 0.0
        %v3925 = vmax.f32 %v3893, 0.0
        %v3926 = vmax.f32 %v3894, 0.0
        %v3927 = vmax.f32 %v3895, 0.0
        %v3928 = vmax.f32 %v3896, 0.0
        %v3929 = vmax.f32 %v3897, 0.0
        %v3930 = vmax.f32 %v3898, 0.0
        %v3931 = vmax.f32 %v3899, 0.0
        %v3932 = vmax.f32 %v3900, 0.0
        %v3933 = vmax.f32 %v3901, 0.0
        %v3934 = vmax.f32 %v3902, 0.0
        %v3935 = vmax.f32 %v3903, 0.0
        %v3936 = vmax.f32 %v3904, 0.0
        %v3937 = vmax.f32 %v3905, 0.0
        %v3938 = vmax.f32 %v3906, 0.0
        %v3939 = vmax.f32 %v3907, 0.0
        %v3940 = vmax.f32 %v3908, 0.0
        %v3941 = vmax.f32 %v3909, 0.0
        %v3942 = vmax.f32 %v3910, 0.0
        %v3943 = vmax.f32 %v3911, 0.0
        %v3944 = vmax.f32 %v3912, 0.0
        %v3945 = vmax.f32 %v3913, 0.0
        %v3946 = vmax.f32 %v3914, 0.0
        %v3947 = vmax.f32 %v3915, 0.0
        %v3948 = vmax.f32 %v3916, 0.0
        %v3949 = vmax.f32 %v3917, 0.0
        %v3950 = vmax.f32 %v3918, 0.0
        %v3951 = vmax.f32 %v3919, 0.0
        %v3952 = vmax.f32 %v3920, 0.0
        %v3953 = vmax.f32 %v3921, 0.0
        %v3954 = vpack.c.bf16 %v3923, %v3922
        %v3955 = vpack.c.bf16 %v3925, %v3924
        %v3956 = vpack.c.bf16 %v3927, %v3926
        %v3957 = vpack.c.bf16 %v3929, %v3928
        %v3958 = vpack.c.bf16 %v3931, %v3930
        %v3959 = vpack.c.bf16 %v3933, %v3932
        %v3960 = vpack.c.bf16 %v3935, %v3934
        %v3961 = vpack.c.bf16 %v3937, %v3936
        %v3962 = vpack.c.bf16 %v3939, %v3938
        %v3963 = vpack.c.bf16 %v3941, %v3940
        %v3964 = vpack.c.bf16 %v3943, %v3942
        %v3965 = vpack.c.bf16 %v3945, %v3944
        %v3966 = vpack.c.bf16 %v3947, %v3946
        %v3967 = vpack.c.bf16 %v3949, %v3948
        %v3968 = vpack.c.bf16 %v3951, %v3950
        %v3969 = vpack.c.bf16 %v3953, %v3952
        %v3970 = vld [vmem:[#allocation10 + $0x40] sm:$0xf]
        %v3971 = vld [vmem:[#allocation10 + $0x44] sm:$0xf]
        %v3972 = vld [vmem:[#allocation10 + $0x48] sm:$0xf]
        %v3973 = vld [vmem:[#allocation10 + $0x4c] sm:$0xf]
        %v3974 = vld [vmem:[#allocation10 + $0x50] sm:$0xf]
        %v3975 = vld [vmem:[#allocation10 + $0x54] sm:$0xf]
        %v3976 = vld [vmem:[#allocation10 + $0x58] sm:$0xf]
        %v3977 = vld [vmem:[#allocation10 + $0x5c] sm:$0xf]
        %v3978 = vld [vmem:[#allocation10 + $0x60] sm:$0xf]
        %v3979 = vld [vmem:[#allocation10 + $0x64] sm:$0xf]
        %v3980 = vld [vmem:[#allocation10 + $0x68] sm:$0xf]
        %v3981 = vld [vmem:[#allocation10 + $0x6c] sm:$0xf]
        %v3982 = vld [vmem:[#allocation10 + $0x70] sm:$0xf]
        %v3983 = vld [vmem:[#allocation10 + $0x74] sm:$0xf]
        %v3984 = vld [vmem:[#allocation10 + $0x78] sm:$0xf]
        %v3985 = vld [vmem:[#allocation10 + $0x7c] sm:$0xf]
        %v4002 = vunpack.c.l.b16 %v3970
        %v4003 = vunpack.c.l.b16 %v3971
        %v4004 = vunpack.c.l.b16 %v3972
        %v4005 = vunpack.c.l.b16 %v3973
        %v4006 = vunpack.c.l.b16 %v3974
        %v4007 = vunpack.c.l.b16 %v3975
        %v4008 = vunpack.c.l.b16 %v3976
        %v4009 = vunpack.c.l.b16 %v3977
        %v4010 = vunpack.c.l.b16 %v3978
        %v4011 = vunpack.c.l.b16 %v3979
        %v4012 = vunpack.c.l.b16 %v3980
        %v4013 = vunpack.c.l.b16 %v3981
        %v4014 = vunpack.c.l.b16 %v3982
        %v4015 = vunpack.c.l.b16 %v3983
        %v4016 = vunpack.c.l.b16 %v3984
        %v4017 = vunpack.c.l.b16 %v3985
        %v4018 = vpack.c.b16 %v4003, %v4002
        %v4019 = vpack.c.b16 %v4005, %v4004
        %v4020 = vpack.c.b16 %v4007, %v4006
        %v4021 = vpack.c.b16 %v4009, %v4008
        %v4022 = vpack.c.b16 %v4011, %v4010
        %v4023 = vpack.c.b16 %v4013, %v4012
        %v4024 = vpack.c.b16 %v4015, %v4014
        %v4025 = vpack.c.b16 %v4017, %v4016
        %4034 = vmatprep.subr.bf16.mxu0 0
        %4035 = vmatpush1.bf16.msra.mxu0 %v4018
        %4036 = vmatprep.subr.bf16.mxu0 0
        %4037 = vmatpush1.bf16.msra.mxu0 %v4019
        %4038 = vmatprep.subr.bf16.mxu0 0
        %4039 = vmatpush1.bf16.msra.mxu0 %v4020
        %4040 = vmatprep.subr.bf16.mxu0 0
        %4041 = vmatpush1.bf16.msra.mxu0 %v4021
        %4042 = vmatprep.subr.bf16.mxu0 0
        %4043 = vmatpush1.bf16.msra.mxu0 %v4022
        %4044 = vmatprep.subr.bf16.mxu0 0
        %4045 = vmatpush1.bf16.msra.mxu0 %v4023
        %4046 = vmatprep.subr.bf16.mxu0 0
        %4047 = vmatpush1.bf16.msra.mxu0 %v4024
        %4048 = vmatprep.subr.bf16.mxu0 0
        %4049 = vmatpush1.bf16.msra.mxu0 %v4025
        %4050 = vmatprep.subr.bf16.mxu0 0
        %4051 = vmatpush1.bf16.msra.mxu0 0
        %4052 = vmatprep.subr.bf16.mxu0 0
        %4053 = vmatpush1.bf16.msra.mxu0 0
        %4054 = vmatprep.subr.bf16.mxu0 0
        %4055 = vmatpush1.bf16.msra.mxu0 0
        %4056 = vmatprep.subr.bf16.mxu0 0
        %4057 = vmatpush1.bf16.msra.mxu0 0
        %4058 = vmatprep.subr.bf16.mxu0 0
        %4059 = vmatpush1.bf16.msra.mxu0 0
        %4060 = vmatprep.subr.bf16.mxu0 0
        %4061 = vmatpush1.bf16.msra.mxu0 0
        %4062 = vmatprep.subr.bf16.mxu0 0
        %4063 = vmatpush1.bf16.msra.mxu0 0
        %4064 = vmatprep.subr.bf16.mxu0 0
        %4065 = vmatpush1.bf16.msra.mxu0 0
        %4066 = vmatprep.mubr.bf16.mxu0 0
        %4067 = vmatmul.mubr.bf16.gmra.mrb[0].mxu0 %v3954
        %v4068 = vpop.f32.mrb[0].mxu0
        %v4069 = vadd.f32 0.0, %v4068
        %v4070 = vpop.f32.mrb[0].mxu0
        %v4071 = vpop.f32.mrb[0].mxu0
        %v4072 = vadd.f32 0.0, %v4071
        %v4073 = vpop.f32.mrb[0].mxu0
        %4074 = vmatprep.mubr.bf16.mxu0 0
        %4075 = vmatmul.mubr.bf16.gmra.mrb[0].mxu0 %v3955
        %v4076 = vpop.f32.mrb[0].mxu0
        %v4077 = vadd.f32 0.0, %v4076
        %v4078 = vpop.f32.mrb[0].mxu0
        %v4079 = vpop.f32.mrb[0].mxu0
        %v4080 = vadd.f32 0.0, %v4079
        %v4081 = vpop.f32.mrb[0].mxu0
        %4082 = vmatprep.mubr.bf16.mxu0 0
        %4083 = vmatmul.mubr.bf16.gmra.mrb[0].mxu0 %v3956
        %v4084 = vpop.f32.mrb[0].mxu0
        %v4085 = vadd.f32 0.0, %v4084
        %v4086 = vpop.f32.mrb[0].mxu0
        %v4087 = vpop.f32.mrb[0].mxu0
        %v4088 = vadd.f32 0.0, %v4087
        %v4089 = vpop.f32.mrb[0].mxu0
        %4090 = vmatprep.mubr.bf16.mxu0 0
        %4091 = vmatmul.mubr.bf16.gmra.mrb[0].mxu0 %v3957
        %v4092 = vpop.f32.mrb[0].mxu0
        %v4093 = vadd.f32 0.0, %v4092
        %v4094 = vpop.f32.mrb[0].mxu0
        %v4095 = vpop.f32.mrb[0].mxu0
        %v4096 = vadd.f32 0.0, %v4095
        %v4097 = vpop.f32.mrb[0].mxu0
        %4098 = vmatprep.mubr.bf16.mxu0 0
        %4099 = vmatmul.mubr.bf16.gmra.mrb[0].mxu0 %v3958
        %v4100 = vpop.f32.mrb[0].mxu0
        %v4101 = vadd.f32 0.0, %v4100
        %v4102 = vpop.f32.mrb[0].mxu0
        %v4103 = vpop.f32.mrb[0].mxu0
        %v4104 = vadd.f32 0.0, %v4103
        %v4105 = vpop.f32.mrb[0].mxu0
        %4106 = vmatprep.mubr.bf16.mxu0 0
        %4107 = vmatmul.mubr.bf16.gmra.mrb[0].mxu0 %v3959
        %v4108 = vpop.f32.mrb[0].mxu0
        %v4109 = vadd.f32 0.0, %v4108
        %v4110 = vpop.f32.mrb[0].mxu0
        %v4111 = vpop.f32.mrb[0].mxu0
        %v4112 = vadd.f32 0.0, %v4111
        %v4113 = vpop.f32.mrb[0].mxu0
        %4114 = vmatprep.mubr.bf16.mxu0 0
        %4115 = vmatmul.mubr.bf16.gmra.mrb[0].mxu0 %v3960
        %v4116 = vpop.f32.mrb[0].mxu0
        %v4117 = vadd.f32 0.0, %v4116
        %v4118 = vpop.f32.mrb[0].mxu0
        %v4119 = vpop.f32.mrb[0].mxu0
        %v4120 = vadd.f32 0.0, %v4119
        %v4121 = vpop.f32.mrb[0].mxu0
        %4122 = vmatprep.mubr.bf16.mxu0 0
        %4123 = vmatmul.mubr.bf16.gmra.mrb[0].mxu0 %v3961
        %v4124 = vpop.f32.mrb[0].mxu0
        %v4125 = vadd.f32 0.0, %v4124
        %v4126 = vpop.f32.mrb[0].mxu0
        %v4127 = vpop.f32.mrb[0].mxu0
        %v4128 = vadd.f32 0.0, %v4127
        %v4129 = vpop.f32.mrb[0].mxu0
        %4130 = vmatprep.mubr.bf16.mxu0 0
        %4131 = vmatmul.mubr.bf16.gmra.mrb[0].mxu0 %v3962
        %v4132 = vpop.f32.mrb[0].mxu0
        %v4133 = vadd.f32 0.0, %v4132
        %v4134 = vpop.f32.mrb[0].mxu0
        %v4135 = vpop.f32.mrb[0].mxu0
        %v4136 = vadd.f32 0.0, %v4135
        %v4137 = vpop.f32.mrb[0].mxu0
        %4138 = vmatprep.mubr.bf16.mxu0 0
        %4139 = vmatmul.mubr.bf16.gmra.mrb[0].mxu0 %v3963
        %v4140 = vpop.f32.mrb[0].mxu0
        %v4141 = vadd.f32 0.0, %v4140
        %v4142 = vpop.f32.mrb[0].mxu0
        %v4143 = vpop.f32.mrb[0].mxu0
        %v4144 = vadd.f32 0.0, %v4143
        %v4145 = vpop.f32.mrb[0].mxu0
        %4146 = vmatprep.mubr.bf16.mxu0 0
        %4147 = vmatmul.mubr.bf16.gmra.mrb[0].mxu0 %v3964
        %v4148 = vpop.f32.mrb[0].mxu0
        %v4149 = vadd.f32 0.0, %v4148
        %v4150 = vpop.f32.mrb[0].mxu0
        %v4151 = vpop.f32.mrb[0].mxu0
        %v4152 = vadd.f32 0.0, %v4151
        %v4153 = vpop.f32.mrb[0].mxu0
        %4154 = vmatprep.mubr.bf16.mxu0 0
        %4155 = vmatmul.mubr.bf16.gmra.mrb[0].mxu0 %v3965
        %v4156 = vpop.f32.mrb[0].mxu0
        %v4157 = vadd.f32 0.0, %v4156
        %v4158 = vpop.f32.mrb[0].mxu0
        %v4159 = vpop.f32.mrb[0].mxu0
        %v4160 = vadd.f32 0.0, %v4159
        %v4161 = vpop.f32.mrb[0].mxu0
        %4162 = vmatprep.mubr.bf16.mxu0 0
        %4163 = vmatmul.mubr.bf16.gmra.mrb[0].mxu0 %v3966
        %v4164 = vpop.f32.mrb[0].mxu0
        %v4165 = vadd.f32 0.0, %v4164
        %v4166 = vpop.f32.mrb[0].mxu0
        %v4167 = vpop.f32.mrb[0].mxu0
        %v4168 = vadd.f32 0.0, %v4167
        %v4169 = vpop.f32.mrb[0].mxu0
        %4170 = vmatprep.mubr.bf16.mxu0 0
        %4171 = vmatmul.mubr.bf16.gmra.mrb[0].mxu0 %v3967
        %v4172 = vpop.f32.mrb[0].mxu0
        %v4173 = vadd.f32 0.0, %v4172
        %v4174 = vpop.f32.mrb[0].mxu0
        %v4175 = vpop.f32.mrb[0].mxu0
        %v4176 = vadd.f32 0.0, %v4175
        %v4177 = vpop.f32.mrb[0].mxu0
        %4178 = vmatprep.mubr.bf16.mxu0 0
        %4179 = vmatmul.mubr.bf16.gmra.mrb[0].mxu0 %v3968
        %v4180 = vpop.f32.mrb[0].mxu0
        %v4181 = vadd.f32 0.0, %v4180
        %v4182 = vpop.f32.mrb[0].mxu0
        %v4183 = vpop.f32.mrb[0].mxu0
        %v4184 = vadd.f32 0.0, %v4183
        %v4185 = vpop.f32.mrb[0].mxu0
        %4186 = vmatprep.mubr.bf16.mxu0 0
        %4187 = vmatmul.mubr.bf16.gmra.mrb[0].mxu0 %v3969
        %v4188 = vpop.f32.mrb[0].mxu0
        %v4189 = vadd.f32 0.0, %v4188
        %v4190 = vpop.f32.mrb[0].mxu0
        %v4191 = vpop.f32.mrb[0].mxu0
        %v4192 = vadd.f32 0.0, %v4191
        %v4193 = vpop.f32.mrb[0].mxu0
        %4194 = vdwg.mxu0
        %v4211 = vunpack.c.l.b16 %v774
        %v4212 = vunpack.c.l.b16 %v775
        %v4213 = vunpack.c.l.b16 %v776
        %v4214 = vunpack.c.l.b16 %v777
        %v4215 = vunpack.c.l.b16 %v778
        %v4216 = vunpack.c.l.b16 %v779
        %v4217 = vunpack.c.l.b16 %v780
        %v4218 = vunpack.c.l.b16 %v781
        %v4219 = vunpack.c.l.b16 %v782
        %v4220 = vunpack.c.l.b16 %v783
        %v4221 = vunpack.c.l.b16 %v784
        %v4222 = vunpack.c.l.b16 %v785
        %v4223 = vunpack.c.l.b16 %v786
        %v4224 = vunpack.c.l.b16 %v787
        %v4225 = vunpack.c.l.b16 %v788
        %v4226 = vunpack.c.l.b16 %v789
        %v4227 = vpack.c.b16 %v4212, %v4211
        %v4228 = vpack.c.b16 %v4214, %v4213
        %v4229 = vpack.c.b16 %v4216, %v4215
        %v4230 = vpack.c.b16 %v4218, %v4217
        %v4231 = vpack.c.b16 %v4220, %v4219
        %v4232 = vpack.c.b16 %v4222, %v4221
        %v4233 = vpack.c.b16 %v4224, %v4223
        %v4234 = vpack.c.b16 %v4226, %v4225
        %4243 = vmatprep.subr.bf16.mxu0 0
        %4244 = vmatpush1.bf16.msra.mxu0 %v4227
        %4245 = vmatprep.subr.bf16.mxu0 0
        %4246 = vmatpush1.bf16.msra.mxu0 %v4228
        %4247 = vmatprep.subr.bf16.mxu0 0
        %4248 = vmatpush1.bf16.msra.mxu0 %v4229
        %4249 = vmatprep.subr.bf16.mxu0 0
        %4250 = vmatpush1.bf16.msra.mxu0 %v4230
        %4251 = vmatprep.subr.bf16.mxu0 0
        %4252 = vmatpush1.bf16.msra.mxu0 %v4231
        %4253 = vmatprep.subr.bf16.mxu0 0
        %4254 = vmatpush1.bf16.msra.mxu0 %v4232
        %4255 = vmatprep.subr.bf16.mxu0 0
        %4256 = vmatpush1.bf16.msra.mxu0 %v4233
        %4257 = vmatprep.subr.bf16.mxu0 0
        %4258 = vmatpush1.bf16.msra.mxu0 %v4234
        %4259 = vmatprep.subr.bf16.mxu0 0
        %4260 = vmatpush1.bf16.msra.mxu0 0
        %4261 = vmatprep.subr.bf16.mxu0 0
        %4262 = vmatpush1.bf16.msra.mxu0 0
        %4263 = vmatprep.subr.bf16.mxu0 0
        %4264 = vmatpush1.bf16.msra.mxu0 0
        %4265 = vmatprep.subr.bf16.mxu0 0
        %4266 = vmatpush1.bf16.msra.mxu0 0
        %4267 = vmatprep.subr.bf16.mxu0 0
        %4268 = vmatpush1.bf16.msra.mxu0 0
        %4269 = vmatprep.subr.bf16.mxu0 0
        %4270 = vmatpush1.bf16.msra.mxu0 0
        %4271 = vmatprep.subr.bf16.mxu0 0
        %4272 = vmatpush1.bf16.msra.mxu0 0
        %4273 = vmatprep.subr.bf16.mxu0 0
        %4274 = vmatpush1.bf16.msra.mxu0 0
        %4275 = vmatprep.mubr.bf16.mxu0 0
        %4276 = vmatmul.mubr.bf16.gmra.mrb[0].mxu0 %v758
        %v4277 = vpop.f32.mrb[0].mxu0
        %v4278 = vadd.f32 %v4069, %v4277
        %v4279 = vpop.f32.mrb[0].mxu0
        %v4280 = vpop.f32.mrb[0].mxu0
        %v4281 = vadd.f32 %v4072, %v4280
        %v4282 = vpop.f32.mrb[0].mxu0
        %4283 = vmatprep.mubr.bf16.mxu0 0
        %4284 = vmatmul.mubr.bf16.gmra.mrb[0].mxu0 %v759
        %v4285 = vpop.f32.mrb[0].mxu0
        %v4286 = vadd.f32 %v4077, %v4285
        %v4287 = vpop.f32.mrb[0].mxu0
        %v4288 = vpop.f32.mrb[0].mxu0
        %v4289 = vadd.f32 %v4080, %v4288
        %v4290 = vpop.f32.mrb[0].mxu0
        %4291 = vmatprep.mubr.bf16.mxu0 0
        %4292 = vmatmul.mubr.bf16.gmra.mrb[0].mxu0 %v760
        %v4293 = vpop.f32.mrb[0].mxu0
        %v4294 = vadd.f32 %v4085, %v4293
        %v4295 = vpop.f32.mrb[0].mxu0
        %v4296 = vpop.f32.mrb[0].mxu0
        %v4297 = vadd.f32 %v4088, %v4296
        %v4298 = vpop.f32.mrb[0].mxu0
        %4299 = vmatprep.mubr.bf16.mxu0 0
        %4300 = vmatmul.mubr.bf16.gmra.mrb[0].mxu0 %v761
        %v4301 = vpop.f32.mrb[0].mxu0
        %v4302 = vadd.f32 %v4093, %v4301
        %v4303 = vpop.f32.mrb[0].mxu0
        %v4304 = vpop.f32.mrb[0].mxu0
        %v4305 = vadd.f32 %v4096, %v4304
        %v4306 = vpop.f32.mrb[0].mxu0
        %4307 = vmatprep.mubr.bf16.mxu0 0
        %4308 = vmatmul.mubr.bf16.gmra.mrb[0].mxu0 %v762
        %v4309 = vpop.f32.mrb[0].mxu0
        %v4310 = vadd.f32 %v4101, %v4309
        %v4311 = vpop.f32.mrb[0].mxu0
        %v4312 = vpop.f32.mrb[0].mxu0
        %v4313 = vadd.f32 %v4104, %v4312
        %v4314 = vpop.f32.mrb[0].mxu0
        %4315 = vmatprep.mubr.bf16.mxu0 0
        %4316 = vmatmul.mubr.bf16.gmra.mrb[0].mxu0 %v763
        %v4317 = vpop.f32.mrb[0].mxu0
        %v4318 = vadd.f32 %v4109, %v4317
        %v4319 = vpop.f32.mrb[0].mxu0
        %v4320 = vpop.f32.mrb[0].mxu0
        %v4321 = vadd.f32 %v4112, %v4320
        %v4322 = vpop.f32.mrb[0].mxu0
        %4323 = vmatprep.mubr.bf16.mxu0 0
        %4324 = vmatmul.mubr.bf16.gmra.mrb[0].mxu0 %v764
        %v4325 = vpop.f32.mrb[0].mxu0
        %v4326 = vadd.f32 %v4117, %v4325
        %v4327 = vpop.f32.mrb[0].mxu0
        %v4328 = vpop.f32.mrb[0].mxu0
        %v4329 = vadd.f32 %v4120, %v4328
        %v4330 = vpop.f32.mrb[0].mxu0
        %4331 = vmatprep.mubr.bf16.mxu0 0
        %4332 = vmatmul.mubr.bf16.gmra.mrb[0].mxu0 %v765
        %v4333 = vpop.f32.mrb[0].mxu0
        %v4334 = vadd.f32 %v4125, %v4333
        %v4335 = vpop.f32.mrb[0].mxu0
        %v4336 = vpop.f32.mrb[0].mxu0
        %v4337 = vadd.f32 %v4128, %v4336
        %v4338 = vpop.f32.mrb[0].mxu0
        %4339 = vmatprep.mubr.bf16.mxu0 0
        %4340 = vmatmul.mubr.bf16.gmra.mrb[0].mxu0 %v766
        %v4341 = vpop.f32.mrb[0].mxu0
        %v4342 = vadd.f32 %v4133, %v4341
        %v4343 = vpop.f32.mrb[0].mxu0
        %v4344 = vpop.f32.mrb[0].mxu0
        %v4345 = vadd.f32 %v4136, %v4344
        %v4346 = vpop.f32.mrb[0].mxu0
        %4347 = vmatprep.mubr.bf16.mxu0 0
        %4348 = vmatmul.mubr.bf16.gmra.mrb[0].mxu0 %v767
        %v4349 = vpop.f32.mrb[0].mxu0
        %v4350 = vadd.f32 %v4141, %v4349
        %v4351 = vpop.f32.mrb[0].mxu0
        %v4352 = vpop.f32.mrb[0].mxu0
        %v4353 = vadd.f32 %v4144, %v4352
        %v4354 = vpop.f32.mrb[0].mxu0
        %4355 = vmatprep.mubr.bf16.mxu0 0
        %4356 = vmatmul.mubr.bf16.gmra.mrb[0].mxu0 %v768
        %v4357 = vpop.f32.mrb[0].mxu0
        %v4358 = vadd.f32 %v4149, %v4357
        %v4359 = vpop.f32.mrb[0].mxu0
        %v4360 = vpop.f32.mrb[0].mxu0
        %v4361 = vadd.f32 %v4152, %v4360
        %v4362 = vpop.f32.mrb[0].mxu0
        %4363 = vmatprep.mubr.bf16.mxu0 0
        %4364 = vmatmul.mubr.bf16.gmra.mrb[0].mxu0 %v769
        %v4365 = vpop.f32.mrb[0].mxu0
        %v4366 = vadd.f32 %v4157, %v4365
        %v4367 = vpop.f32.mrb[0].mxu0
        %v4368 = vpop.f32.mrb[0].mxu0
        %v4369 = vadd.f32 %v4160, %v4368
        %v4370 = vpop.f32.mrb[0].mxu0
        %4371 = vmatprep.mubr.bf16.mxu0 0
        %4372 = vmatmul.mubr.bf16.gmra.mrb[0].mxu0 %v770
        %v4373 = vpop.f32.mrb[0].mxu0
        %v4374 = vadd.f32 %v4165, %v4373
        %v4375 = vpop.f32.mrb[0].mxu0
        %v4376 = vpop.f32.mrb[0].mxu0
        %v4377 = vadd.f32 %v4168, %v4376
        %v4378 = vpop.f32.mrb[0].mxu0
        %4379 = vmatprep.mubr.bf16.mxu0 0
        %4380 = vmatmul.mubr.bf16.gmra.mrb[0].mxu0 %v771
        %v4381 = vpop.f32.mrb[0].mxu0
        %v4382 = vadd.f32 %v4173, %v4381
        %v4383 = vpop.f32.mrb[0].mxu0
        %v4384 = vpop.f32.mrb[0].mxu0
        %v4385 = vadd.f32 %v4176, %v4384
        %v4386 = vpop.f32.mrb[0].mxu0
        %4387 = vmatprep.mubr.bf16.mxu0 0
        %4388 = vmatmul.mubr.bf16.gmra.mrb[0].mxu0 %v772
        %v4389 = vpop.f32.mrb[0].mxu0
        %v4390 = vadd.f32 %v4181, %v4389
        %v4391 = vpop.f32.mrb[0].mxu0
        %v4392 = vpop.f32.mrb[0].mxu0
        %v4393 = vadd.f32 %v4184, %v4392
        %v4394 = vpop.f32.mrb[0].mxu0
        %4395 = vmatprep.mubr.bf16.mxu0 0
        %4396 = vmatmul.mubr.bf16.gmra.mrb[0].mxu0 %v773
        %v4397 = vpop.f32.mrb[0].mxu0
        %v4398 = vadd.f32 %v4189, %v4397
        %v4399 = vpop.f32.mrb[0].mxu0
        %v4400 = vpop.f32.mrb[0].mxu0
        %v4401 = vadd.f32 %v4192, %v4400
        %v4402 = vpop.f32.mrb[0].mxu0
        %4403 = vdwg.mxu0
        %s4404 = scalar_lea.vmem [#allocation7], 832
        %v4405 = vld [vmem:[%s4404] sm:$0xf]
        %v4406 = vld [vmem:[%s4404 + $0x4] sm:$0xf]
        %v4407 = vld [vmem:[%s4404 + $0x8] sm:$0xf]
        %v4408 = vld [vmem:[%s4404 + $0xc] sm:$0xf]
        %v4409 = vld [vmem:[%s4404 + $0x10] sm:$0xf]
        %v4410 = vld [vmem:[%s4404 + $0x14] sm:$0xf]
        %v4411 = vld [vmem:[%s4404 + $0x18] sm:$0xf]
        %v4412 = vld [vmem:[%s4404 + $0x1c] sm:$0xf]
        %v4413 = vld [vmem:[%s4404 + $0x20] sm:$0xf]
        %v4414 = vld [vmem:[%s4404 + $0x24] sm:$0xf]
        %v4415 = vld [vmem:[%s4404 + $0x28] sm:$0xf]
        %v4416 = vld [vmem:[%s4404 + $0x2c] sm:$0xf]
        %v4417 = vld [vmem:[%s4404 + $0x30] sm:$0xf]
        %v4418 = vld [vmem:[%s4404 + $0x34] sm:$0xf]
        %v4419 = vld [vmem:[%s4404 + $0x38] sm:$0xf]
        %v4420 = vld [vmem:[%s4404 + $0x3c] sm:$0xf]
        %v4437 = vunpack.c.l.b16 %v4405
        %v4438 = vunpack.c.l.b16 %v4406
        %v4439 = vunpack.c.l.b16 %v4407
        %v4440 = vunpack.c.l.b16 %v4408
        %v4441 = vunpack.c.l.b16 %v4409
        %v4442 = vunpack.c.l.b16 %v4410
        %v4443 = vunpack.c.l.b16 %v4411
        %v4444 = vunpack.c.l.b16 %v4412
        %v4445 = vunpack.c.l.b16 %v4413
        %v4446 = vunpack.c.l.b16 %v4414
        %v4447 = vunpack.c.l.b16 %v4415
        %v4448 = vunpack.c.l.b16 %v4416
        %v4449 = vunpack.c.l.b16 %v4417
        %v4450 = vunpack.c.l.b16 %v4418
        %v4451 = vunpack.c.l.b16 %v4419
        %v4452 = vunpack.c.l.b16 %v4420
        %v4453 = vpack.c.b16 %v4438, %v4437
        %v4454 = vpack.c.b16 %v4440, %v4439
        %v4455 = vpack.c.b16 %v4442, %v4441
        %v4456 = vpack.c.b16 %v4444, %v4443
        %v4457 = vpack.c.b16 %v4446, %v4445
        %v4458 = vpack.c.b16 %v4448, %v4447
        %v4459 = vpack.c.b16 %v4450, %v4449
        %v4460 = vpack.c.b16 %v4452, %v4451
        %4469 = vmatprep.subr.bf16.mxu0 0
        %4470 = vmatpush1.bf16.msra.mxu0 %v4453
        %4471 = vmatprep.subr.bf16.mxu0 0
        %4472 = vmatpush1.bf16.msra.mxu0 %v4454
        %4473 = vmatprep.subr.bf16.mxu0 0
        %4474 = vmatpush1.bf16.msra.mxu0 %v4455
        %4475 = vmatprep.subr.bf16.mxu0 0
        %4476 = vmatpush1.bf16.msra.mxu0 %v4456
        %4477 = vmatprep.subr.bf16.mxu0 0
        %4478 = vmatpush1.bf16.msra.mxu0 %v4457
        %4479 = vmatprep.subr.bf16.mxu0 0
        %4480 = vmatpush1.bf16.msra.mxu0 %v4458
        %4481 = vmatprep.subr.bf16.mxu0 0
        %4482 = vmatpush1.bf16.msra.mxu0 %v4459
        %4483 = vmatprep.subr.bf16.mxu0 0
        %4484 = vmatpush1.bf16.msra.mxu0 %v4460
        %4485 = vmatprep.subr.bf16.mxu0 0
        %4486 = vmatpush1.bf16.msra.mxu0 0
        %4487 = vmatprep.subr.bf16.mxu0 0
        %4488 = vmatpush1.bf16.msra.mxu0 0
        %4489 = vmatprep.subr.bf16.mxu0 0
        %4490 = vmatpush1.bf16.msra.mxu0 0
        %4491 = vmatprep.subr.bf16.mxu0 0
        %4492 = vmatpush1.bf16.msra.mxu0 0
        %4493 = vmatprep.subr.bf16.mxu0 0
        %4494 = vmatpush1.bf16.msra.mxu0 0
        %4495 = vmatprep.subr.bf16.mxu0 0
        %4496 = vmatpush1.bf16.msra.mxu0 0
        %4497 = vmatprep.subr.bf16.mxu0 0
        %4498 = vmatpush1.bf16.msra.mxu0 0
        %4499 = vmatprep.subr.bf16.mxu0 0
        %4500 = vmatpush1.bf16.msra.mxu0 0
        %4501 = vmatprep.mubr.bf16.mxu0 0
        %4502 = vmatmul.mubr.bf16.gmra.mrb[0].mxu0 %v413
        %v4503 = vpop.f32.mrb[0].mxu0
        %v4504 = vadd.f32 0.0, %v4503
        %v4505 = vpop.f32.mrb[0].mxu0
        %v4506 = vpop.f32.mrb[0].mxu0
        %v4507 = vadd.f32 0.0, %v4506
        %v4508 = vpop.f32.mrb[0].mxu0
        %4509 = vmatprep.mubr.bf16.mxu0 0
        %4510 = vmatmul.mubr.bf16.gmra.mrb[0].mxu0 %v414
        %v4511 = vpop.f32.mrb[0].mxu0
        %v4512 = vadd.f32 0.0, %v4511
        %v4513 = vpop.f32.mrb[0].mxu0
        %v4514 = vpop.f32.mrb[0].mxu0
        %v4515 = vadd.f32 0.0, %v4514
        %v4516 = vpop.f32.mrb[0].mxu0
        %4517 = vmatprep.mubr.bf16.mxu0 0
        %4518 = vmatmul.mubr.bf16.gmra.mrb[0].mxu0 %v415
        %v4519 = vpop.f32.mrb[0].mxu0
        %v4520 = vadd.f32 0.0, %v4519
        %v4521 = vpop.f32.mrb[0].mxu0
        %v4522 = vpop.f32.mrb[0].mxu0
        %v4523 = vadd.f32 0.0, %v4522
        %v4524 = vpop.f32.mrb[0].mxu0
        %4525 = vmatprep.mubr.bf16.mxu0 0
        %4526 = vmatmul.mubr.bf16.gmra.mrb[0].mxu0 %v416
        %v4527 = vpop.f32.mrb[0].mxu0
        %v4528 = vadd.f32 0.0, %v4527
        %v4529 = vpop.f32.mrb[0].mxu0
        %v4530 = vpop.f32.mrb[0].mxu0
        %v4531 = vadd.f32 0.0, %v4530
        %v4532 = vpop.f32.mrb[0].mxu0
        %4533 = vmatprep.mubr.bf16.mxu0 0
        %4534 = vmatmul.mubr.bf16.gmra.mrb[0].mxu0 %v417
        %v4535 = vpop.f32.mrb[0].mxu0
        %v4536 = vadd.f32 0.0, %v4535
        %v4537 = vpop.f32.mrb[0].mxu0
        %v4538 = vpop.f32.mrb[0].mxu0
        %v4539 = vadd.f32 0.0, %v4538
        %v4540 = vpop.f32.mrb[0].mxu0
        %4541 = vmatprep.mubr.bf16.mxu0 0
        %4542 = vmatmul.mubr.bf16.gmra.mrb[0].mxu0 %v418
        %v4543 = vpop.f32.mrb[0].mxu0
        %v4544 = vadd.f32 0.0, %v4543
        %v4545 = vpop.f32.mrb[0].mxu0
        %v4546 = vpop.f32.mrb[0].mxu0
        %v4547 = vadd.f32 0.0, %v4546
        %v4548 = vpop.f32.mrb[0].mxu0
        %4549 = vmatprep.mubr.bf16.mxu0 0
        %4550 = vmatmul.mubr.bf16.gmra.mrb[0].mxu0 %v419
        %v4551 = vpop.f32.mrb[0].mxu0
        %v4552 = vadd.f32 0.0, %v4551
        %v4553 = vpop.f32.mrb[0].mxu0
        %v4554 = vpop.f32.mrb[0].mxu0
        %v4555 = vadd.f32 0.0, %v4554
        %v4556 = vpop.f32.mrb[0].mxu0
        %4557 = vmatprep.mubr.bf16.mxu0 0
        %4558 = vmatmul.mubr.bf16.gmra.mrb[0].mxu0 %v420
        %v4559 = vpop.f32.mrb[0].mxu0
        %v4560 = vadd.f32 0.0, %v4559
        %v4561 = vpop.f32.mrb[0].mxu0
        %v4562 = vpop.f32.mrb[0].mxu0
        %v4563 = vadd.f32 0.0, %v4562
        %v4564 = vpop.f32.mrb[0].mxu0
        %4565 = vmatprep.mubr.bf16.mxu0 0
        %4566 = vmatmul.mubr.bf16.gmra.mrb[0].mxu0 %v421
        %v4567 = vpop.f32.mrb[0].mxu0
        %v4568 = vadd.f32 0.0, %v4567
        %v4569 = vpop.f32.mrb[0].mxu0
        %v4570 = vpop.f32.mrb[0].mxu0
        %v4571 = vadd.f32 0.0, %v4570
        %v4572 = vpop.f32.mrb[0].mxu0
        %4573 = vmatprep.mubr.bf16.mxu0 0
        %4574 = vmatmul.mubr.bf16.gmra.mrb[0].mxu0 %v422
        %v4575 = vpop.f32.mrb[0].mxu0
        %v4576 = vadd.f32 0.0, %v4575
        %v4577 = vpop.f32.mrb[0].mxu0
        %v4578 = vpop.f32.mrb[0].mxu0
        %v4579 = vadd.f32 0.0, %v4578
        %v4580 = vpop.f32.mrb[0].mxu0
        %4581 = vmatprep.mubr.bf16.mxu0 0
        %4582 = vmatmul.mubr.bf16.gmra.mrb[0].mxu0 %v423
        %v4583 = vpop.f32.mrb[0].mxu0
        %v4584 = vadd.f32 0.0, %v4583
        %v4585 = vpop.f32.mrb[0].mxu0
        %v4586 = vpop.f32.mrb[0].mxu0
        %v4587 = vadd.f32 0.0, %v4586
        %v4588 = vpop.f32.mrb[0].mxu0
        %4589 = vmatprep.mubr.bf16.mxu0 0
        %4590 = vmatmul.mubr.bf16.gmra.mrb[0].mxu0 %v424
        %v4591 = vpop.f32.mrb[0].mxu0
        %v4592 = vadd.f32 0.0, %v4591
        %v4593 = vpop.f32.mrb[0].mxu0
        %v4594 = vpop.f32.mrb[0].mxu0
        %v4595 = vadd.f32 0.0, %v4594
        %v4596 = vpop.f32.mrb[0].mxu0
        %4597 = vmatprep.mubr.bf16.mxu0 0
        %4598 = vmatmul.mubr.bf16.gmra.mrb[0].mxu0 %v425
        %v4599 = vpop.f32.mrb[0].mxu0
        %v4600 = vadd.f32 0.0, %v4599
        %v4601 = vpop.f32.mrb[0].mxu0
        %v4602 = vpop.f32.mrb[0].mxu0
        %v4603 = vadd.f32 0.0, %v4602
        %v4604 = vpop.f32.mrb[0].mxu0
        %4605 = vmatprep.mubr.bf16.mxu0 0
        %4606 = vmatmul.mubr.bf16.gmra.mrb[0].mxu0 %v426
        %v4607 = vpop.f32.mrb[0].mxu0
        %v4608 = vadd.f32 0.0, %v4607
        %v4609 = vpop.f32.mrb[0].mxu0
        %v4610 = vpop.f32.mrb[0].mxu0
        %v4611 = vadd.f32 0.0, %v4610
        %v4612 = vpop.f32.mrb[0].mxu0
        %4613 = vmatprep.mubr.bf16.mxu0 0
        %4614 = vmatmul.mubr.bf16.gmra.mrb[0].mxu0 %v427
        %v4615 = vpop.f32.mrb[0].mxu0
        %v4616 = vadd.f32 0.0, %v4615
        %v4617 = vpop.f32.mrb[0].mxu0
        %v4618 = vpop.f32.mrb[0].mxu0
        %v4619 = vadd.f32 0.0, %v4618
        %v4620 = vpop.f32.mrb[0].mxu0
        %4621 = vmatprep.mubr.bf16.mxu0 0
        %4622 = vmatmul.mubr.bf16.gmra.mrb[0].mxu0 %v428
        %v4623 = vpop.f32.mrb[0].mxu0
        %v4624 = vadd.f32 0.0, %v4623
        %v4625 = vpop.f32.mrb[0].mxu0
        %v4626 = vpop.f32.mrb[0].mxu0
        %v4627 = vadd.f32 0.0, %v4626
        %v4628 = vpop.f32.mrb[0].mxu0
        %4629 = vdwg.mxu0
        %v4630 = vlaneseq
        %v4631 = vshrl.u32 %v4630, 7
        %v4632 = vsub.s32 2, %v4631
        %v4633 = vrot.slane %v406, %v4632
        %v4634 = vmul.f32 %v4504, %v4633
        %v4635 = vmul.f32 %v4507, %v4633
        %v4636 = vmul.f32 %v4512, %v4633
        %v4637 = vmul.f32 %v4515, %v4633
        %v4638 = vmul.f32 %v4520, %v4633
        %v4639 = vmul.f32 %v4523, %v4633
        %v4640 = vmul.f32 %v4528, %v4633
        %v4641 = vmul.f32 %v4531, %v4633
        %v4642 = vmul.f32 %v4536, %v4633
        %v4643 = vmul.f32 %v4539, %v4633
        %v4644 = vmul.f32 %v4544, %v4633
        %v4645 = vmul.f32 %v4547, %v4633
        %v4646 = vmul.f32 %v4552, %v4633
        %v4647 = vmul.f32 %v4555, %v4633
        %v4648 = vmul.f32 %v4560, %v4633
        %v4649 = vmul.f32 %v4563, %v4633
        %v4650 = vmul.f32 %v4568, %v4633
        %v4651 = vmul.f32 %v4571, %v4633
        %v4652 = vmul.f32 %v4576, %v4633
        %v4653 = vmul.f32 %v4579, %v4633
        %v4654 = vmul.f32 %v4584, %v4633
        %v4655 = vmul.f32 %v4587, %v4633
        %v4656 = vmul.f32 %v4592, %v4633
        %v4657 = vmul.f32 %v4595, %v4633
        %v4658 = vmul.f32 %v4600, %v4633
        %v4659 = vmul.f32 %v4603, %v4633
        %v4660 = vmul.f32 %v4608, %v4633
        %v4661 = vmul.f32 %v4611, %v4633
        %v4662 = vmul.f32 %v4616, %v4633
        %v4663 = vmul.f32 %v4619, %v4633
        %v4664 = vmul.f32 %v4624, %v4633
        %v4665 = vmul.f32 %v4627, %v4633
        %v4666 = vlaneseq
        %v4667 = vshrl.u32 %v4666, 7
        %v4668 = vsub.s32 2, %v4667
        %v4669 = vrot.slane %v407, %v4668
        %v4670 = vadd.f32 %v4634, %v4669
        %v4671 = vadd.f32 %v4635, %v4669
        %v4672 = vadd.f32 %v4636, %v4669
        %v4673 = vadd.f32 %v4637, %v4669
        %v4674 = vadd.f32 %v4638, %v4669
        %v4675 = vadd.f32 %v4639, %v4669
        %v4676 = vadd.f32 %v4640, %v4669
        %v4677 = vadd.f32 %v4641, %v4669
        %v4678 = vadd.f32 %v4642, %v4669
        %v4679 = vadd.f32 %v4643, %v4669
        %v4680 = vadd.f32 %v4644, %v4669
        %v4681 = vadd.f32 %v4645, %v4669
        %v4682 = vadd.f32 %v4646, %v4669
        %v4683 = vadd.f32 %v4647, %v4669
        %v4684 = vadd.f32 %v4648, %v4669
        %v4685 = vadd.f32 %v4649, %v4669
        %v4686 = vadd.f32 %v4650, %v4669
        %v4687 = vadd.f32 %v4651, %v4669
        %v4688 = vadd.f32 %v4652, %v4669
        %v4689 = vadd.f32 %v4653, %v4669
        %v4690 = vadd.f32 %v4654, %v4669
        %v4691 = vadd.f32 %v4655, %v4669
        %v4692 = vadd.f32 %v4656, %v4669
        %v4693 = vadd.f32 %v4657, %v4669
        %v4694 = vadd.f32 %v4658, %v4669
        %v4695 = vadd.f32 %v4659, %v4669
        %v4696 = vadd.f32 %v4660, %v4669
        %v4697 = vadd.f32 %v4661, %v4669
        %v4698 = vadd.f32 %v4662, %v4669
        %v4699 = vadd.f32 %v4663, %v4669
        %v4700 = vadd.f32 %v4664, %v4669
        %v4701 = vadd.f32 %v4665, %v4669
        %v4702 = vmax.f32 %v4670, 0.0
        %v4703 = vmax.f32 %v4671, 0.0
        %v4704 = vmax.f32 %v4672, 0.0
        %v4705 = vmax.f32 %v4673, 0.0
        %v4706 = vmax.f32 %v4674, 0.0
        %v4707 = vmax.f32 %v4675, 0.0
        %v4708 = vmax.f32 %v4676, 0.0
        %v4709 = vmax.f32 %v4677, 0.0
        %v4710 = vmax.f32 %v4678, 0.0
        %v4711 = vmax.f32 %v4679, 0.0
        %v4712 = vmax.f32 %v4680, 0.0
        %v4713 = vmax.f32 %v4681, 0.0
        %v4714 = vmax.f32 %v4682, 0.0
        %v4715 = vmax.f32 %v4683, 0.0
        %v4716 = vmax.f32 %v4684, 0.0
        %v4717 = vmax.f32 %v4685, 0.0
        %v4718 = vmax.f32 %v4686, 0.0
        %v4719 = vmax.f32 %v4687, 0.0
        %v4720 = vmax.f32 %v4688, 0.0
        %v4721 = vmax.f32 %v4689, 0.0
        %v4722 = vmax.f32 %v4690, 0.0
        %v4723 = vmax.f32 %v4691, 0.0
        %v4724 = vmax.f32 %v4692, 0.0
        %v4725 = vmax.f32 %v4693, 0.0
        %v4726 = vmax.f32 %v4694, 0.0
        %v4727 = vmax.f32 %v4695, 0.0
        %v4728 = vmax.f32 %v4696, 0.0
        %v4729 = vmax.f32 %v4697, 0.0
        %v4730 = vmax.f32 %v4698, 0.0
        %v4731 = vmax.f32 %v4699, 0.0
        %v4732 = vmax.f32 %v4700, 0.0
        %v4733 = vmax.f32 %v4701, 0.0
        %v4734 = vpack.c.bf16 %v4703, %v4702
        %v4735 = vpack.c.bf16 %v4705, %v4704
        %v4736 = vpack.c.bf16 %v4707, %v4706
        %v4737 = vpack.c.bf16 %v4709, %v4708
        %v4738 = vpack.c.bf16 %v4711, %v4710
        %v4739 = vpack.c.bf16 %v4713, %v4712
        %v4740 = vpack.c.bf16 %v4715, %v4714
        %v4741 = vpack.c.bf16 %v4717, %v4716
        %v4742 = vpack.c.bf16 %v4719, %v4718
        %v4743 = vpack.c.bf16 %v4721, %v4720
        %v4744 = vpack.c.bf16 %v4723, %v4722
        %v4745 = vpack.c.bf16 %v4725, %v4724
        %v4746 = vpack.c.bf16 %v4727, %v4726
        %v4747 = vpack.c.bf16 %v4729, %v4728
        %v4748 = vpack.c.bf16 %v4731, %v4730
        %v4749 = vpack.c.bf16 %v4733, %v4732
        %v4750 = vld [vmem:[#allocation10 + $0x80] sm:$0xf]
        %v4751 = vld [vmem:[#allocation10 + $0x84] sm:$0xf]
        %v4752 = vld [vmem:[#allocation10 + $0x88] sm:$0xf]
        %v4753 = vld [vmem:[#allocation10 + $0x8c] sm:$0xf]
        %v4754 = vld [vmem:[#allocation10 + $0x90] sm:$0xf]
        %v4755 = vld [vmem:[#allocation10 + $0x94] sm:$0xf]
        %v4756 = vld [vmem:[#allocation10 + $0x98] sm:$0xf]
        %v4757 = vld [vmem:[#allocation10 + $0x9c] sm:$0xf]
        %v4758 = vld [vmem:[#allocation10 + $0xa0] sm:$0xf]
        %v4759 = vld [vmem:[#allocation10 + $0xa4] sm:$0xf]
        %v4760 = vld [vmem:[#allocation10 + $0xa8] sm:$0xf]
        %v4761 = vld [vmem:[#allocation10 + $0xac] sm:$0xf]
        %v4762 = vld [vmem:[#allocation10 + $0xb0] sm:$0xf]
        %v4763 = vld [vmem:[#allocation10 + $0xb4] sm:$0xf]
        %v4764 = vld [vmem:[#allocation10 + $0xb8] sm:$0xf]
        %v4765 = vld [vmem:[#allocation10 + $0xbc] sm:$0xf]
        %v4782 = vunpack.c.l.b16 %v4750
        %v4783 = vunpack.c.l.b16 %v4751
        %v4784 = vunpack.c.l.b16 %v4752
        %v4785 = vunpack.c.l.b16 %v4753
        %v4786 = vunpack.c.l.b16 %v4754
        %v4787 = vunpack.c.l.b16 %v4755
        %v4788 = vunpack.c.l.b16 %v4756
        %v4789 = vunpack.c.l.b16 %v4757
        %v4790 = vunpack.c.l.b16 %v4758
        %v4791 = vunpack.c.l.b16 %v4759
        %v4792 = vunpack.c.l.b16 %v4760
        %v4793 = vunpack.c.l.b16 %v4761
        %v4794 = vunpack.c.l.b16 %v4762
        %v4795 = vunpack.c.l.b16 %v4763
        %v4796 = vunpack.c.l.b16 %v4764
        %v4797 = vunpack.c.l.b16 %v4765
        %v4798 = vpack.c.b16 %v4783, %v4782
        %v4799 = vpack.c.b16 %v4785, %v4784
        %v4800 = vpack.c.b16 %v4787, %v4786
        %v4801 = vpack.c.b16 %v4789, %v4788
        %v4802 = vpack.c.b16 %v4791, %v4790
        %v4803 = vpack.c.b16 %v4793, %v4792
        %v4804 = vpack.c.b16 %v4795, %v4794
        %v4805 = vpack.c.b16 %v4797, %v4796
        %4814 = vmatprep.subr.bf16.mxu0 0
        %4815 = vmatpush1.bf16.msra.mxu0 %v4798
        %4816 = vmatprep.subr.bf16.mxu0 0
        %4817 = vmatpush1.bf16.msra.mxu0 %v4799
        %4818 = vmatprep.subr.bf16.mxu0 0
        %4819 = vmatpush1.bf16.msra.mxu0 %v4800
        %4820 = vmatprep.subr.bf16.mxu0 0
        %4821 = vmatpush1.bf16.msra.mxu0 %v4801
        %4822 = vmatprep.subr.bf16.mxu0 0
        %4823 = vmatpush1.bf16.msra.mxu0 %v4802
        %4824 = vmatprep.subr.bf16.mxu0 0
        %4825 = vmatpush1.bf16.msra.mxu0 %v4803
        %4826 = vmatprep.subr.bf16.mxu0 0
        %4827 = vmatpush1.bf16.msra.mxu0 %v4804
        %4828 = vmatprep.subr.bf16.mxu0 0
        %4829 = vmatpush1.bf16.msra.mxu0 %v4805
        %4830 = vmatprep.subr.bf16.mxu0 0
        %4831 = vmatpush1.bf16.msra.mxu0 0
        %4832 = vmatprep.subr.bf16.mxu0 0
        %4833 = vmatpush1.bf16.msra.mxu0 0
        %4834 = vmatprep.subr.bf16.mxu0 0
        %4835 = vmatpush1.bf16.msra.mxu0 0
        %4836 = vmatprep.subr.bf16.mxu0 0
        %4837 = vmatpush1.bf16.msra.mxu0 0
        %4838 = vmatprep.subr.bf16.mxu0 0
        %4839 = vmatpush1.bf16.msra.mxu0 0
        %4840 = vmatprep.subr.bf16.mxu0 0
        %4841 = vmatpush1.bf16.msra.mxu0 0
        %4842 = vmatprep.subr.bf16.mxu0 0
        %4843 = vmatpush1.bf16.msra.mxu0 0
        %4844 = vmatprep.subr.bf16.mxu0 0
        %4845 = vmatpush1.bf16.msra.mxu0 0
        %4846 = vmatprep.mubr.bf16.mxu0 0
        %4847 = vmatmul.mubr.bf16.gmra.mrb[0].mxu0 %v4734
        %v4848 = vpop.f32.mrb[0].mxu0
        %v4849 = vadd.f32 0.0, %v4848
        %v4850 = vpop.f32.mrb[0].mxu0
        %v4851 = vpop.f32.mrb[0].mxu0
        %v4852 = vadd.f32 0.0, %v4851
        %v4853 = vpop.f32.mrb[0].mxu0
        %4854 = vmatprep.mubr.bf16.mxu0 0
        %4855 = vmatmul.mubr.bf16.gmra.mrb[0].mxu0 %v4735
        %v4856 = vpop.f32.mrb[0].mxu0
        %v4857 = vadd.f32 0.0, %v4856
        %v4858 = vpop.f32.mrb[0].mxu0
        %v4859 = vpop.f32.mrb[0].mxu0
        %v4860 = vadd.f32 0.0, %v4859
        %v4861 = vpop.f32.mrb[0].mxu0
        %4862 = vmatprep.mubr.bf16.mxu0 0
        %4863 = vmatmul.mubr.bf16.gmra.mrb[0].mxu0 %v4736
        %v4864 = vpop.f32.mrb[0].mxu0
        %v4865 = vadd.f32 0.0, %v4864
        %v4866 = vpop.f32.mrb[0].mxu0
        %v4867 = vpop.f32.mrb[0].mxu0
        %v4868 = vadd.f32 0.0, %v4867
        %v4869 = vpop.f32.mrb[0].mxu0
        %4870 = vmatprep.mubr.bf16.mxu0 0
        %4871 = vmatmul.mubr.bf16.gmra.mrb[0].mxu0 %v4737
        %v4872 = vpop.f32.mrb[0].mxu0
        %v4873 = vadd.f32 0.0, %v4872
        %v4874 = vpop.f32.mrb[0].mxu0
        %v4875 = vpop.f32.mrb[0].mxu0
        %v4876 = vadd.f32 0.0, %v4875
        %v4877 = vpop.f32.mrb[0].mxu0
        %4878 = vmatprep.mubr.bf16.mxu0 0
        %4879 = vmatmul.mubr.bf16.gmra.mrb[0].mxu0 %v4738
        %v4880 = vpop.f32.mrb[0].mxu0
        %v4881 = vadd.f32 0.0, %v4880
        %v4882 = vpop.f32.mrb[0].mxu0
        %v4883 = vpop.f32.mrb[0].mxu0
        %v4884 = vadd.f32 0.0, %v4883
        %v4885 = vpop.f32.mrb[0].mxu0
        %4886 = vmatprep.mubr.bf16.mxu0 0
        %4887 = vmatmul.mubr.bf16.gmra.mrb[0].mxu0 %v4739
        %v4888 = vpop.f32.mrb[0].mxu0
        %v4889 = vadd.f32 0.0, %v4888
        %v4890 = vpop.f32.mrb[0].mxu0
        %v4891 = vpop.f32.mrb[0].mxu0
        %v4892 = vadd.f32 0.0, %v4891
        %v4893 = vpop.f32.mrb[0].mxu0
        %4894 = vmatprep.mubr.bf16.mxu0 0
        %4895 = vmatmul.mubr.bf16.gmra.mrb[0].mxu0 %v4740
        %v4896 = vpop.f32.mrb[0].mxu0
        %v4897 = vadd.f32 0.0, %v4896
        %v4898 = vpop.f32.mrb[0].mxu0
        %v4899 = vpop.f32.mrb[0].mxu0
        %v4900 = vadd.f32 0.0, %v4899
        %v4901 = vpop.f32.mrb[0].mxu0
        %4902 = vmatprep.mubr.bf16.mxu0 0
        %4903 = vmatmul.mubr.bf16.gmra.mrb[0].mxu0 %v4741
        %v4904 = vpop.f32.mrb[0].mxu0
        %v4905 = vadd.f32 0.0, %v4904
        %v4906 = vpop.f32.mrb[0].mxu0
        %v4907 = vpop.f32.mrb[0].mxu0
        %v4908 = vadd.f32 0.0, %v4907
        %v4909 = vpop.f32.mrb[0].mxu0
        %4910 = vmatprep.mubr.bf16.mxu0 0
        %4911 = vmatmul.mubr.bf16.gmra.mrb[0].mxu0 %v4742
        %v4912 = vpop.f32.mrb[0].mxu0
        %v4913 = vadd.f32 0.0, %v4912
        %v4914 = vpop.f32.mrb[0].mxu0
        %v4915 = vpop.f32.mrb[0].mxu0
        %v4916 = vadd.f32 0.0, %v4915
        %v4917 = vpop.f32.mrb[0].mxu0
        %4918 = vmatprep.mubr.bf16.mxu0 0
        %4919 = vmatmul.mubr.bf16.gmra.mrb[0].mxu0 %v4743
        %v4920 = vpop.f32.mrb[0].mxu0
        %v4921 = vadd.f32 0.0, %v4920
        %v4922 = vpop.f32.mrb[0].mxu0
        %v4923 = vpop.f32.mrb[0].mxu0
        %v4924 = vadd.f32 0.0, %v4923
        %v4925 = vpop.f32.mrb[0].mxu0
        %4926 = vmatprep.mubr.bf16.mxu0 0
        %4927 = vmatmul.mubr.bf16.gmra.mrb[0].mxu0 %v4744
        %v4928 = vpop.f32.mrb[0].mxu0
        %v4929 = vadd.f32 0.0, %v4928
        %v4930 = vpop.f32.mrb[0].mxu0
        %v4931 = vpop.f32.mrb[0].mxu0
        %v4932 = vadd.f32 0.0, %v4931
        %v4933 = vpop.f32.mrb[0].mxu0
        %4934 = vmatprep.mubr.bf16.mxu0 0
        %4935 = vmatmul.mubr.bf16.gmra.mrb[0].mxu0 %v4745
        %v4936 = vpop.f32.mrb[0].mxu0
        %v4937 = vadd.f32 0.0, %v4936
        %v4938 = vpop.f32.mrb[0].mxu0
        %v4939 = vpop.f32.mrb[0].mxu0
        %v4940 = vadd.f32 0.0, %v4939
        %v4941 = vpop.f32.mrb[0].mxu0
        %4942 = vmatprep.mubr.bf16.mxu0 0
        %4943 = vmatmul.mubr.bf16.gmra.mrb[0].mxu0 %v4746
        %v4944 = vpop.f32.mrb[0].mxu0
        %v4945 = vadd.f32 0.0, %v4944
        %v4946 = vpop.f32.mrb[0].mxu0
        %v4947 = vpop.f32.mrb[0].mxu0
        %v4948 = vadd.f32 0.0, %v4947
        %v4949 = vpop.f32.mrb[0].mxu0
        %4950 = vmatprep.mubr.bf16.mxu0 0
        %4951 = vmatmul.mubr.bf16.gmra.mrb[0].mxu0 %v4747
        %v4952 = vpop.f32.mrb[0].mxu0
        %v4953 = vadd.f32 0.0, %v4952
        %v4954 = vpop.f32.mrb[0].mxu0
        %v4955 = vpop.f32.mrb[0].mxu0
        %v4956 = vadd.f32 0.0, %v4955
        %v4957 = vpop.f32.mrb[0].mxu0
        %4958 = vmatprep.mubr.bf16.mxu0 0
        %4959 = vmatmul.mubr.bf16.gmra.mrb[0].mxu0 %v4748
        %v4960 = vpop.f32.mrb[0].mxu0
        %v4961 = vadd.f32 0.0, %v4960
        %v4962 = vpop.f32.mrb[0].mxu0
        %v4963 = vpop.f32.mrb[0].mxu0
        %v4964 = vadd.f32 0.0, %v4963
        %v4965 = vpop.f32.mrb[0].mxu0
        %4966 = vmatprep.mubr.bf16.mxu0 0
        %4967 = vmatmul.mubr.bf16.gmra.mrb[0].mxu0 %v4749
        %v4968 = vpop.f32.mrb[0].mxu0
        %v4969 = vadd.f32 0.0, %v4968
        %v4970 = vpop.f32.mrb[0].mxu0
        %v4971 = vpop.f32.mrb[0].mxu0
        %v4972 = vadd.f32 0.0, %v4971
        %v4973 = vpop.f32.mrb[0].mxu0
        %4974 = vdwg.mxu0
        %v4975 = vadd.f32 %v4278, %v4849
        %v4976 = vadd.f32 %v4281, %v4852
        %v4977 = vadd.f32 %v4286, %v4857
        %v4978 = vadd.f32 %v4289, %v4860
        %v4979 = vadd.f32 %v4294, %v4865
        %v4980 = vadd.f32 %v4297, %v4868
        %v4981 = vadd.f32 %v4302, %v4873
        %v4982 = vadd.f32 %v4305, %v4876
        %v4983 = vadd.f32 %v4310, %v4881
        %v4984 = vadd.f32 %v4313, %v4884
        %v4985 = vadd.f32 %v4318, %v4889
        %v4986 = vadd.f32 %v4321, %v4892
        %v4987 = vadd.f32 %v4326, %v4897
        %v4988 = vadd.f32 %v4329, %v4900
        %v4989 = vadd.f32 %v4334, %v4905
        %v4990 = vadd.f32 %v4337, %v4908
        %v4991 = vadd.f32 %v4342, %v4913
        %v4992 = vadd.f32 %v4345, %v4916
        %v4993 = vadd.f32 %v4350, %v4921
        %v4994 = vadd.f32 %v4353, %v4924
        %v4995 = vadd.f32 %v4358, %v4929
        %v4996 = vadd.f32 %v4361, %v4932
        %v4997 = vadd.f32 %v4366, %v4937
        %v4998 = vadd.f32 %v4369, %v4940
        %v4999 = vadd.f32 %v4374, %v4945
        %v5000 = vadd.f32 %v4377, %v4948
        %v5001 = vadd.f32 %v4382, %v4953
        %v5002 = vadd.f32 %v4385, %v4956
        %v5003 = vadd.f32 %v4390, %v4961
        %v5004 = vadd.f32 %v4393, %v4964
        %v5005 = vadd.f32 %v4398, %v4969
        %v5006 = vadd.f32 %v4401, %v4972
        %s5007 = scalar_lea.vmem [#allocation7], 1408
        %v5008 = vld [vmem:[%s5007] sm:$0xf]
        %v5009 = vld [vmem:[%s5007 + $0x4] sm:$0xf]
        %v5010 = vld [vmem:[%s5007 + $0x8] sm:$0xf]
        %v5011 = vld [vmem:[%s5007 + $0xc] sm:$0xf]
        %v5012 = vld [vmem:[%s5007 + $0x10] sm:$0xf]
        %v5013 = vld [vmem:[%s5007 + $0x14] sm:$0xf]
        %v5014 = vld [vmem:[%s5007 + $0x18] sm:$0xf]
        %v5015 = vld [vmem:[%s5007 + $0x1c] sm:$0xf]
        %v5016 = vld [vmem:[%s5007 + $0x20] sm:$0xf]
        %v5017 = vld [vmem:[%s5007 + $0x24] sm:$0xf]
        %v5018 = vld [vmem:[%s5007 + $0x28] sm:$0xf]
        %v5019 = vld [vmem:[%s5007 + $0x2c] sm:$0xf]
        %v5020 = vld [vmem:[%s5007 + $0x30] sm:$0xf]
        %v5021 = vld [vmem:[%s5007 + $0x34] sm:$0xf]
        %v5022 = vld [vmem:[%s5007 + $0x38] sm:$0xf]
        %v5023 = vld [vmem:[%s5007 + $0x3c] sm:$0xf]
        %v5040 = vunpack.c.l.b16 %v5008
        %v5041 = vunpack.c.l.b16 %v5009
        %v5042 = vunpack.c.l.b16 %v5010
        %v5043 = vunpack.c.l.b16 %v5011
        %v5044 = vunpack.c.l.b16 %v5012
        %v5045 = vunpack.c.l.b16 %v5013
        %v5046 = vunpack.c.l.b16 %v5014
        %v5047 = vunpack.c.l.b16 %v5015
        %v5048 = vunpack.c.l.b16 %v5016
        %v5049 = vunpack.c.l.b16 %v5017
        %v5050 = vunpack.c.l.b16 %v5018
        %v5051 = vunpack.c.l.b16 %v5019
        %v5052 = vunpack.c.l.b16 %v5020
        %v5053 = vunpack.c.l.b16 %v5021
        %v5054 = vunpack.c.l.b16 %v5022
        %v5055 = vunpack.c.l.b16 %v5023
        %v5056 = vpack.c.b16 %v5041, %v5040
        %v5057 = vpack.c.b16 %v5043, %v5042
        %v5058 = vpack.c.b16 %v5045, %v5044
        %v5059 = vpack.c.b16 %v5047, %v5046
        %v5060 = vpack.c.b16 %v5049, %v5048
        %v5061 = vpack.c.b16 %v5051, %v5050
        %v5062 = vpack.c.b16 %v5053, %v5052
        %v5063 = vpack.c.b16 %v5055, %v5054
        %5072 = vmatprep.subr.bf16.mxu0 0
        %5073 = vmatpush1.bf16.msra.mxu0 %v5056
        %5074 = vmatprep.subr.bf16.mxu0 0
        %5075 = vmatpush1.bf16.msra.mxu0 %v5057
        %5076 = vmatprep.subr.bf16.mxu0 0
        %5077 = vmatpush1.bf16.msra.mxu0 %v5058
        %5078 = vmatprep.subr.bf16.mxu0 0
        %5079 = vmatpush1.bf16.msra.mxu0 %v5059
        %5080 = vmatprep.subr.bf16.mxu0 0
        %5081 = vmatpush1.bf16.msra.mxu0 %v5060
        %5082 = vmatprep.subr.bf16.mxu0 0
        %5083 = vmatpush1.bf16.msra.mxu0 %v5061
        %5084 = vmatprep.subr.bf16.mxu0 0
        %5085 = vmatpush1.bf16.msra.mxu0 %v5062
        %5086 = vmatprep.subr.bf16.mxu0 0
        %5087 = vmatpush1.bf16.msra.mxu0 %v5063
        %5088 = vmatprep.subr.bf16.mxu0 0
        %5089 = vmatpush1.bf16.msra.mxu0 0
        %5090 = vmatprep.subr.bf16.mxu0 0
        %5091 = vmatpush1.bf16.msra.mxu0 0
        %5092 = vmatprep.subr.bf16.mxu0 0
        %5093 = vmatpush1.bf16.msra.mxu0 0
        %5094 = vmatprep.subr.bf16.mxu0 0
        %5095 = vmatpush1.bf16.msra.mxu0 0
        %5096 = vmatprep.subr.bf16.mxu0 0
        %5097 = vmatpush1.bf16.msra.mxu0 0
        %5098 = vmatprep.subr.bf16.mxu0 0
        %5099 = vmatpush1.bf16.msra.mxu0 0
        %5100 = vmatprep.subr.bf16.mxu0 0
        %5101 = vmatpush1.bf16.msra.mxu0 0
        %5102 = vmatprep.subr.bf16.mxu0 0
        %5103 = vmatpush1.bf16.msra.mxu0 0
        %5104 = vmatprep.mubr.bf16.mxu0 0
        %5105 = vmatmul.mubr.bf16.gmra.mrb[0].mxu0 %v413
        %v5106 = vpop.f32.mrb[0].mxu0
        %v5107 = vadd.f32 0.0, %v5106
        %v5108 = vpop.f32.mrb[0].mxu0
        %v5109 = vpop.f32.mrb[0].mxu0
        %v5110 = vadd.f32 0.0, %v5109
        %v5111 = vpop.f32.mrb[0].mxu0
        %5112 = vmatprep.mubr.bf16.mxu0 0
        %5113 = vmatmul.mubr.bf16.gmra.mrb[0].mxu0 %v414
        %v5114 = vpop.f32.mrb[0].mxu0
        %v5115 = vadd.f32 0.0, %v5114
        %v5116 = vpop.f32.mrb[0].mxu0
        %v5117 = vpop.f32.mrb[0].mxu0
        %v5118 = vadd.f32 0.0, %v5117
        %v5119 = vpop.f32.mrb[0].mxu0
        %5120 = vmatprep.mubr.bf16.mxu0 0
        %5121 = vmatmul.mubr.bf16.gmra.mrb[0].mxu0 %v415
        %v5122 = vpop.f32.mrb[0].mxu0
        %v5123 = vadd.f32 0.0, %v5122
        %v5124 = vpop.f32.mrb[0].mxu0
        %v5125 = vpop.f32.mrb[0].mxu0
        %v5126 = vadd.f32 0.0, %v5125
        %v5127 = vpop.f32.mrb[0].mxu0
        %5128 = vmatprep.mubr.bf16.mxu0 0
        %5129 = vmatmul.mubr.bf16.gmra.mrb[0].mxu0 %v416
        %v5130 = vpop.f32.mrb[0].mxu0
        %v5131 = vadd.f32 0.0, %v5130
        %v5132 = vpop.f32.mrb[0].mxu0
        %v5133 = vpop.f32.mrb[0].mxu0
        %v5134 = vadd.f32 0.0, %v5133
        %v5135 = vpop.f32.mrb[0].mxu0
        %5136 = vmatprep.mubr.bf16.mxu0 0
        %5137 = vmatmul.mubr.bf16.gmra.mrb[0].mxu0 %v417
        %v5138 = vpop.f32.mrb[0].mxu0
        %v5139 = vadd.f32 0.0, %v5138
        %v5140 = vpop.f32.mrb[0].mxu0
        %v5141 = vpop.f32.mrb[0].mxu0
        %v5142 = vadd.f32 0.0, %v5141
        %v5143 = vpop.f32.mrb[0].mxu0
        %5144 = vmatprep.mubr.bf16.mxu0 0
        %5145 = vmatmul.mubr.bf16.gmra.mrb[0].mxu0 %v418
        %v5146 = vpop.f32.mrb[0].mxu0
        %v5147 = vadd.f32 0.0, %v5146
        %v5148 = vpop.f32.mrb[0].mxu0
        %v5149 = vpop.f32.mrb[0].mxu0
        %v5150 = vadd.f32 0.0, %v5149
        %v5151 = vpop.f32.mrb[0].mxu0
        %5152 = vmatprep.mubr.bf16.mxu0 0
        %5153 = vmatmul.mubr.bf16.gmra.mrb[0].mxu0 %v419
        %v5154 = vpop.f32.mrb[0].mxu0
        %v5155 = vadd.f32 0.0, %v5154
        %v5156 = vpop.f32.mrb[0].mxu0
        %v5157 = vpop.f32.mrb[0].mxu0
        %v5158 = vadd.f32 0.0, %v5157
        %v5159 = vpop.f32.mrb[0].mxu0
        %5160 = vmatprep.mubr.bf16.mxu0 0
        %5161 = vmatmul.mubr.bf16.gmra.mrb[0].mxu0 %v420
        %v5162 = vpop.f32.mrb[0].mxu0
        %v5163 = vadd.f32 0.0, %v5162
        %v5164 = vpop.f32.mrb[0].mxu0
        %v5165 = vpop.f32.mrb[0].mxu0
        %v5166 = vadd.f32 0.0, %v5165
        %v5167 = vpop.f32.mrb[0].mxu0
        %5168 = vmatprep.mubr.bf16.mxu0 0
        %5169 = vmatmul.mubr.bf16.gmra.mrb[0].mxu0 %v421
        %v5170 = vpop.f32.mrb[0].mxu0
        %v5171 = vadd.f32 0.0, %v5170
        %v5172 = vpop.f32.mrb[0].mxu0
        %v5173 = vpop.f32.mrb[0].mxu0
        %v5174 = vadd.f32 0.0, %v5173
        %v5175 = vpop.f32.mrb[0].mxu0
        %5176 = vmatprep.mubr.bf16.mxu0 0
        %5177 = vmatmul.mubr.bf16.gmra.mrb[0].mxu0 %v422
        %v5178 = vpop.f32.mrb[0].mxu0
        %v5179 = vadd.f32 0.0, %v5178
        %v5180 = vpop.f32.mrb[0].mxu0
        %v5181 = vpop.f32.mrb[0].mxu0
        %v5182 = vadd.f32 0.0, %v5181
        %v5183 = vpop.f32.mrb[0].mxu0
        %5184 = vmatprep.mubr.bf16.mxu0 0
        %5185 = vmatmul.mubr.bf16.gmra.mrb[0].mxu0 %v423
        %v5186 = vpop.f32.mrb[0].mxu0
        %v5187 = vadd.f32 0.0, %v5186
        %v5188 = vpop.f32.mrb[0].mxu0
        %v5189 = vpop.f32.mrb[0].mxu0
        %v5190 = vadd.f32 0.0, %v5189
        %v5191 = vpop.f32.mrb[0].mxu0
        %5192 = vmatprep.mubr.bf16.mxu0 0
        %5193 = vmatmul.mubr.bf16.gmra.mrb[0].mxu0 %v424
        %v5194 = vpop.f32.mrb[0].mxu0
        %v5195 = vadd.f32 0.0, %v5194
        %v5196 = vpop.f32.mrb[0].mxu0
        %v5197 = vpop.f32.mrb[0].mxu0
        %v5198 = vadd.f32 0.0, %v5197
        %v5199 = vpop.f32.mrb[0].mxu0
        %5200 = vmatprep.mubr.bf16.mxu0 0
        %5201 = vmatmul.mubr.bf16.gmra.mrb[0].mxu0 %v425
        %v5202 = vpop.f32.mrb[0].mxu0
        %v5203 = vadd.f32 0.0, %v5202
        %v5204 = vpop.f32.mrb[0].mxu0
        %v5205 = vpop.f32.mrb[0].mxu0
        %v5206 = vadd.f32 0.0, %v5205
        %v5207 = vpop.f32.mrb[0].mxu0
        %5208 = vmatprep.mubr.bf16.mxu0 0
        %5209 = vmatmul.mubr.bf16.gmra.mrb[0].mxu0 %v426
        %v5210 = vpop.f32.mrb[0].mxu0
        %v5211 = vadd.f32 0.0, %v5210
        %v5212 = vpop.f32.mrb[0].mxu0
        %v5213 = vpop.f32.mrb[0].mxu0
        %v5214 = vadd.f32 0.0, %v5213
        %v5215 = vpop.f32.mrb[0].mxu0
        %5216 = vmatprep.mubr.bf16.mxu0 0
        %5217 = vmatmul.mubr.bf16.gmra.mrb[0].mxu0 %v427
        %v5218 = vpop.f32.mrb[0].mxu0
        %v5219 = vadd.f32 0.0, %v5218
        %v5220 = vpop.f32.mrb[0].mxu0
        %v5221 = vpop.f32.mrb[0].mxu0
        %v5222 = vadd.f32 0.0, %v5221
        %v5223 = vpop.f32.mrb[0].mxu0
        %5224 = vmatprep.mubr.bf16.mxu0 0
        %5225 = vmatmul.mubr.bf16.gmra.mrb[0].mxu0 %v428
        %v5226 = vpop.f32.mrb[0].mxu0
        %v5227 = vadd.f32 0.0, %v5226
        %v5228 = vpop.f32.mrb[0].mxu0
        %v5229 = vpop.f32.mrb[0].mxu0
        %v5230 = vadd.f32 0.0, %v5229
        %v5231 = vpop.f32.mrb[0].mxu0
        %5232 = vdwg.mxu0
        %v5233 = vlaneseq
        %v5234 = vshrl.u32 %v5233, 7
        %v5235 = vsub.s32 3, %v5234
        %v5236 = vrot.slane %v406, %v5235
        %v5237 = vmul.f32 %v5107, %v5236
        %v5238 = vmul.f32 %v5110, %v5236
        %v5239 = vmul.f32 %v5115, %v5236
        %v5240 = vmul.f32 %v5118, %v5236
        %v5241 = vmul.f32 %v5123, %v5236
        %v5242 = vmul.f32 %v5126, %v5236
        %v5243 = vmul.f32 %v5131, %v5236
        %v5244 = vmul.f32 %v5134, %v5236
        %v5245 = vmul.f32 %v5139, %v5236
        %v5246 = vmul.f32 %v5142, %v5236
        %v5247 = vmul.f32 %v5147, %v5236
        %v5248 = vmul.f32 %v5150, %v5236
        %v5249 = vmul.f32 %v5155, %v5236
        %v5250 = vmul.f32 %v5158, %v5236
        %v5251 = vmul.f32 %v5163, %v5236
        %v5252 = vmul.f32 %v5166, %v5236
        %v5253 = vmul.f32 %v5171, %v5236
        %v5254 = vmul.f32 %v5174, %v5236
        %v5255 = vmul.f32 %v5179, %v5236
        %v5256 = vmul.f32 %v5182, %v5236
        %v5257 = vmul.f32 %v5187, %v5236
        %v5258 = vmul.f32 %v5190, %v5236
        %v5259 = vmul.f32 %v5195, %v5236
        %v5260 = vmul.f32 %v5198, %v5236
        %v5261 = vmul.f32 %v5203, %v5236
        %v5262 = vmul.f32 %v5206, %v5236
        %v5263 = vmul.f32 %v5211, %v5236
        %v5264 = vmul.f32 %v5214, %v5236
        %v5265 = vmul.f32 %v5219, %v5236
        %v5266 = vmul.f32 %v5222, %v5236
        %v5267 = vmul.f32 %v5227, %v5236
        %v5268 = vmul.f32 %v5230, %v5236
        %v5269 = vlaneseq
        %v5270 = vshrl.u32 %v5269, 7
        %v5271 = vsub.s32 3, %v5270
        %v5272 = vrot.slane %v407, %v5271
        %v5273 = vadd.f32 %v5237, %v5272
        %v5274 = vadd.f32 %v5238, %v5272
        %v5275 = vadd.f32 %v5239, %v5272
        %v5276 = vadd.f32 %v5240, %v5272
        %v5277 = vadd.f32 %v5241, %v5272
        %v5278 = vadd.f32 %v5242, %v5272
        %v5279 = vadd.f32 %v5243, %v5272
        %v5280 = vadd.f32 %v5244, %v5272
        %v5281 = vadd.f32 %v5245, %v5272
        %v5282 = vadd.f32 %v5246, %v5272
        %v5283 = vadd.f32 %v5247, %v5272
        %v5284 = vadd.f32 %v5248, %v5272
        %v5285 = vadd.f32 %v5249, %v5272
        %v5286 = vadd.f32 %v5250, %v5272
        %v5287 = vadd.f32 %v5251, %v5272
        %v5288 = vadd.f32 %v5252, %v5272
        %v5289 = vadd.f32 %v5253, %v5272
        %v5290 = vadd.f32 %v5254, %v5272
        %v5291 = vadd.f32 %v5255, %v5272
        %v5292 = vadd.f32 %v5256, %v5272
        %v5293 = vadd.f32 %v5257, %v5272
        %v5294 = vadd.f32 %v5258, %v5272
        %v5295 = vadd.f32 %v5259, %v5272
        %v5296 = vadd.f32 %v5260, %v5272
        %v5297 = vadd.f32 %v5261, %v5272
        %v5298 = vadd.f32 %v5262, %v5272
        %v5299 = vadd.f32 %v5263, %v5272
        %v5300 = vadd.f32 %v5264, %v5272
        %v5301 = vadd.f32 %v5265, %v5272
        %v5302 = vadd.f32 %v5266, %v5272
        %v5303 = vadd.f32 %v5267, %v5272
        %v5304 = vadd.f32 %v5268, %v5272
        %v5305 = vmax.f32 %v5273, 0.0
        %v5306 = vmax.f32 %v5274, 0.0
        %v5307 = vmax.f32 %v5275, 0.0
        %v5308 = vmax.f32 %v5276, 0.0
        %v5309 = vmax.f32 %v5277, 0.0
        %v5310 = vmax.f32 %v5278, 0.0
        %v5311 = vmax.f32 %v5279, 0.0
        %v5312 = vmax.f32 %v5280, 0.0
        %v5313 = vmax.f32 %v5281, 0.0
        %v5314 = vmax.f32 %v5282, 0.0
        %v5315 = vmax.f32 %v5283, 0.0
        %v5316 = vmax.f32 %v5284, 0.0
        %v5317 = vmax.f32 %v5285, 0.0
        %v5318 = vmax.f32 %v5286, 0.0
        %v5319 = vmax.f32 %v5287, 0.0
        %v5320 = vmax.f32 %v5288, 0.0
        %v5321 = vmax.f32 %v5289, 0.0
        %v5322 = vmax.f32 %v5290, 0.0
        %v5323 = vmax.f32 %v5291, 0.0
        %v5324 = vmax.f32 %v5292, 0.0
        %v5325 = vmax.f32 %v5293, 0.0
        %v5326 = vmax.f32 %v5294, 0.0
        %v5327 = vmax.f32 %v5295, 0.0
        %v5328 = vmax.f32 %v5296, 0.0
        %v5329 = vmax.f32 %v5297, 0.0
        %v5330 = vmax.f32 %v5298, 0.0
        %v5331 = vmax.f32 %v5299, 0.0
        %v5332 = vmax.f32 %v5300, 0.0
        %v5333 = vmax.f32 %v5301, 0.0
        %v5334 = vmax.f32 %v5302, 0.0
        %v5335 = vmax.f32 %v5303, 0.0
        %v5336 = vmax.f32 %v5304, 0.0
        %v5337 = vpack.c.bf16 %v5306, %v5305
        %v5338 = vpack.c.bf16 %v5308, %v5307
        %v5339 = vpack.c.bf16 %v5310, %v5309
        %v5340 = vpack.c.bf16 %v5312, %v5311
        %v5341 = vpack.c.bf16 %v5314, %v5313
        %v5342 = vpack.c.bf16 %v5316, %v5315
        %v5343 = vpack.c.bf16 %v5318, %v5317
        %v5344 = vpack.c.bf16 %v5320, %v5319
        %v5345 = vpack.c.bf16 %v5322, %v5321
        %v5346 = vpack.c.bf16 %v5324, %v5323
        %v5347 = vpack.c.bf16 %v5326, %v5325
        %v5348 = vpack.c.bf16 %v5328, %v5327
        %v5349 = vpack.c.bf16 %v5330, %v5329
        %v5350 = vpack.c.bf16 %v5332, %v5331
        %v5351 = vpack.c.bf16 %v5334, %v5333
        %v5352 = vpack.c.bf16 %v5336, %v5335
        %v5353 = vld [vmem:[#allocation10 + $0xc0] sm:$0xf]
        %v5354 = vld [vmem:[#allocation10 + $0xc4] sm:$0xf]
        %v5355 = vld [vmem:[#allocation10 + $0xc8] sm:$0xf]
        %v5356 = vld [vmem:[#allocation10 + $0xcc] sm:$0xf]
        %v5357 = vld [vmem:[#allocation10 + $0xd0] sm:$0xf]
        %v5358 = vld [vmem:[#allocation10 + $0xd4] sm:$0xf]
        %v5359 = vld [vmem:[#allocation10 + $0xd8] sm:$0xf]
        %v5360 = vld [vmem:[#allocation10 + $0xdc] sm:$0xf]
        %v5361 = vld [vmem:[#allocation10 + $0xe0] sm:$0xf]
        %v5362 = vld [vmem:[#allocation10 + $0xe4] sm:$0xf]
        %v5363 = vld [vmem:[#allocation10 + $0xe8] sm:$0xf]
        %v5364 = vld [vmem:[#allocation10 + $0xec] sm:$0xf]
        %v5365 = vld [vmem:[#allocation10 + $0xf0] sm:$0xf]
        %v5366 = vld [vmem:[#allocation10 + $0xf4] sm:$0xf]
        %v5367 = vld [vmem:[#allocation10 + $0xf8] sm:$0xf]
        %v5368 = vld [vmem:[#allocation10 + $0xfc] sm:$0xf]
        %v5385 = vunpack.c.l.b16 %v5353
        %v5386 = vunpack.c.l.b16 %v5354
        %v5387 = vunpack.c.l.b16 %v5355
        %v5388 = vunpack.c.l.b16 %v5356
        %v5389 = vunpack.c.l.b16 %v5357
        %v5390 = vunpack.c.l.b16 %v5358
        %v5391 = vunpack.c.l.b16 %v5359
        %v5392 = vunpack.c.l.b16 %v5360
        %v5393 = vunpack.c.l.b16 %v5361
        %v5394 = vunpack.c.l.b16 %v5362
        %v5395 = vunpack.c.l.b16 %v5363
        %v5396 = vunpack.c.l.b16 %v5364
        %v5397 = vunpack.c.l.b16 %v5365
        %v5398 = vunpack.c.l.b16 %v5366
        %v5399 = vunpack.c.l.b16 %v5367
        %v5400 = vunpack.c.l.b16 %v5368
        %v5401 = vpack.c.b16 %v5386, %v5385
        %v5402 = vpack.c.b16 %v5388, %v5387
        %v5403 = vpack.c.b16 %v5390, %v5389
        %v5404 = vpack.c.b16 %v5392, %v5391
        %v5405 = vpack.c.b16 %v5394, %v5393
        %v5406 = vpack.c.b16 %v5396, %v5395
        %v5407 = vpack.c.b16 %v5398, %v5397
        %v5408 = vpack.c.b16 %v5400, %v5399
        %5417 = vmatprep.subr.bf16.mxu0 0
        %5418 = vmatpush1.bf16.msra.mxu0 %v5401
        %5419 = vmatprep.subr.bf16.mxu0 0
        %5420 = vmatpush1.bf16.msra.mxu0 %v5402
        %5421 = vmatprep.subr.bf16.mxu0 0
        %5422 = vmatpush1.bf16.msra.mxu0 %v5403
        %5423 = vmatprep.subr.bf16.mxu0 0
        %5424 = vmatpush1.bf16.msra.mxu0 %v5404
        %5425 = vmatprep.subr.bf16.mxu0 0
        %5426 = vmatpush1.bf16.msra.mxu0 %v5405
        %5427 = vmatprep.subr.bf16.mxu0 0
        %5428 = vmatpush1.bf16.msra.mxu0 %v5406
        %5429 = vmatprep.subr.bf16.mxu0 0
        %5430 = vmatpush1.bf16.msra.mxu0 %v5407
        %5431 = vmatprep.subr.bf16.mxu0 0
        %5432 = vmatpush1.bf16.msra.mxu0 %v5408
        %5433 = vmatprep.subr.bf16.mxu0 0
        %5434 = vmatpush1.bf16.msra.mxu0 0
        %5435 = vmatprep.subr.bf16.mxu0 0
        %5436 = vmatpush1.bf16.msra.mxu0 0
        %5437 = vmatprep.subr.bf16.mxu0 0
        %5438 = vmatpush1.bf16.msra.mxu0 0
        %5439 = vmatprep.subr.bf16.mxu0 0
        %5440 = vmatpush1.bf16.msra.mxu0 0
        %5441 = vmatprep.subr.bf16.mxu0 0
        %5442 = vmatpush1.bf16.msra.mxu0 0
        %5443 = vmatprep.subr.bf16.mxu0 0
        %5444 = vmatpush1.bf16.msra.mxu0 0
        %5445 = vmatprep.subr.bf16.mxu0 0
        %5446 = vmatpush1.bf16.msra.mxu0 0
        %5447 = vmatprep.subr.bf16.mxu0 0
        %5448 = vmatpush1.bf16.msra.mxu0 0
        %5449 = vmatprep.mubr.bf16.mxu0 0
        %5450 = vmatmul.mubr.bf16.gmra.mrb[0].mxu0 %v5337
        %v5451 = vpop.f32.mrb[0].mxu0
        %v5452 = vadd.f32 0.0, %v5451
        %v5453 = vpop.f32.mrb[0].mxu0
        %v5454 = vpop.f32.mrb[0].mxu0
        %v5455 = vadd.f32 0.0, %v5454
        %v5456 = vpop.f32.mrb[0].mxu0
        %5457 = vmatprep.mubr.bf16.mxu0 0
        %5458 = vmatmul.mubr.bf16.gmra.mrb[0].mxu0 %v5338
        %v5459 = vpop.f32.mrb[0].mxu0
        %v5460 = vadd.f32 0.0, %v5459
        %v5461 = vpop.f32.mrb[0].mxu0
        %v5462 = vpop.f32.mrb[0].mxu0
        %v5463 = vadd.f32 0.0, %v5462
        %v5464 = vpop.f32.mrb[0].mxu0
        %5465 = vmatprep.mubr.bf16.mxu0 0
        %5466 = vmatmul.mubr.bf16.gmra.mrb[0].mxu0 %v5339
        %v5467 = vpop.f32.mrb[0].mxu0
        %v5468 = vadd.f32 0.0, %v5467
        %v5469 = vpop.f32.mrb[0].mxu0
        %v5470 = vpop.f32.mrb[0].mxu0
        %v5471 = vadd.f32 0.0, %v5470
        %v5472 = vpop.f32.mrb[0].mxu0
        %5473 = vmatprep.mubr.bf16.mxu0 0
        %5474 = vmatmul.mubr.bf16.gmra.mrb[0].mxu0 %v5340
        %v5475 = vpop.f32.mrb[0].mxu0
        %v5476 = vadd.f32 0.0, %v5475
        %v5477 = vpop.f32.mrb[0].mxu0
        %v5478 = vpop.f32.mrb[0].mxu0
        %v5479 = vadd.f32 0.0, %v5478
        %v5480 = vpop.f32.mrb[0].mxu0
        %5481 = vmatprep.mubr.bf16.mxu0 0
        %5482 = vmatmul.mubr.bf16.gmra.mrb[0].mxu0 %v5341
        %v5483 = vpop.f32.mrb[0].mxu0
        %v5484 = vadd.f32 0.0, %v5483
        %v5485 = vpop.f32.mrb[0].mxu0
        %v5486 = vpop.f32.mrb[0].mxu0
        %v5487 = vadd.f32 0.0, %v5486
        %v5488 = vpop.f32.mrb[0].mxu0
        %5489 = vmatprep.mubr.bf16.mxu0 0
        %5490 = vmatmul.mubr.bf16.gmra.mrb[0].mxu0 %v5342
        %v5491 = vpop.f32.mrb[0].mxu0
        %v5492 = vadd.f32 0.0, %v5491
        %v5493 = vpop.f32.mrb[0].mxu0
        %v5494 = vpop.f32.mrb[0].mxu0
        %v5495 = vadd.f32 0.0, %v5494
        %v5496 = vpop.f32.mrb[0].mxu0
        %5497 = vmatprep.mubr.bf16.mxu0 0
        %5498 = vmatmul.mubr.bf16.gmra.mrb[0].mxu0 %v5343
        %v5499 = vpop.f32.mrb[0].mxu0
        %v5500 = vadd.f32 0.0, %v5499
        %v5501 = vpop.f32.mrb[0].mxu0
        %v5502 = vpop.f32.mrb[0].mxu0
        %v5503 = vadd.f32 0.0, %v5502
        %v5504 = vpop.f32.mrb[0].mxu0
        %5505 = vmatprep.mubr.bf16.mxu0 0
        %5506 = vmatmul.mubr.bf16.gmra.mrb[0].mxu0 %v5344
        %v5507 = vpop.f32.mrb[0].mxu0
        %v5508 = vadd.f32 0.0, %v5507
        %v5509 = vpop.f32.mrb[0].mxu0
        %v5510 = vpop.f32.mrb[0].mxu0
        %v5511 = vadd.f32 0.0, %v5510
        %v5512 = vpop.f32.mrb[0].mxu0
        %5513 = vmatprep.mubr.bf16.mxu0 0
        %5514 = vmatmul.mubr.bf16.gmra.mrb[0].mxu0 %v5345
        %v5515 = vpop.f32.mrb[0].mxu0
        %v5516 = vadd.f32 0.0, %v5515
        %v5517 = vpop.f32.mrb[0].mxu0
        %v5518 = vpop.f32.mrb[0].mxu0
        %v5519 = vadd.f32 0.0, %v5518
        %v5520 = vpop.f32.mrb[0].mxu0
        %5521 = vmatprep.mubr.bf16.mxu0 0
        %5522 = vmatmul.mubr.bf16.gmra.mrb[0].mxu0 %v5346
        %v5523 = vpop.f32.mrb[0].mxu0
        %v5524 = vadd.f32 0.0, %v5523
        %v5525 = vpop.f32.mrb[0].mxu0
        %v5526 = vpop.f32.mrb[0].mxu0
        %v5527 = vadd.f32 0.0, %v5526
        %v5528 = vpop.f32.mrb[0].mxu0
        %5529 = vmatprep.mubr.bf16.mxu0 0
        %5530 = vmatmul.mubr.bf16.gmra.mrb[0].mxu0 %v5347
        %v5531 = vpop.f32.mrb[0].mxu0
        %v5532 = vadd.f32 0.0, %v5531
        %v5533 = vpop.f32.mrb[0].mxu0
        %v5534 = vpop.f32.mrb[0].mxu0
        %v5535 = vadd.f32 0.0, %v5534
        %v5536 = vpop.f32.mrb[0].mxu0
        %5537 = vmatprep.mubr.bf16.mxu0 0
        %5538 = vmatmul.mubr.bf16.gmra.mrb[0].mxu0 %v5348
        %v5539 = vpop.f32.mrb[0].mxu0
        %v5540 = vadd.f32 0.0, %v5539
        %v5541 = vpop.f32.mrb[0].mxu0
        %v5542 = vpop.f32.mrb[0].mxu0
        %v5543 = vadd.f32 0.0, %v5542
        %v5544 = vpop.f32.mrb[0].mxu0
        %5545 = vmatprep.mubr.bf16.mxu0 0
        %5546 = vmatmul.mubr.bf16.gmra.mrb[0].mxu0 %v5349
        %v5547 = vpop.f32.mrb[0].mxu0
        %v5548 = vadd.f32 0.0, %v5547
        %v5549 = vpop.f32.mrb[0].mxu0
        %v5550 = vpop.f32.mrb[0].mxu0
        %v5551 = vadd.f32 0.0, %v5550
        %v5552 = vpop.f32.mrb[0].mxu0
        %5553 = vmatprep.mubr.bf16.mxu0 0
        %5554 = vmatmul.mubr.bf16.gmra.mrb[0].mxu0 %v5350
        %v5555 = vpop.f32.mrb[0].mxu0
        %v5556 = vadd.f32 0.0, %v5555
        %v5557 = vpop.f32.mrb[0].mxu0
        %v5558 = vpop.f32.mrb[0].mxu0
        %v5559 = vadd.f32 0.0, %v5558
        %v5560 = vpop.f32.mrb[0].mxu0
        %5561 = vmatprep.mubr.bf16.mxu0 0
        %5562 = vmatmul.mubr.bf16.gmra.mrb[0].mxu0 %v5351
        %v5563 = vpop.f32.mrb[0].mxu0
        %v5564 = vadd.f32 0.0, %v5563
        %v5565 = vpop.f32.mrb[0].mxu0
        %v5566 = vpop.f32.mrb[0].mxu0
        %v5567 = vadd.f32 0.0, %v5566
        %v5568 = vpop.f32.mrb[0].mxu0
        %5569 = vmatprep.mubr.bf16.mxu0 0
        %5570 = vmatmul.mubr.bf16.gmra.mrb[0].mxu0 %v5352
        %v5571 = vpop.f32.mrb[0].mxu0
        %v5572 = vadd.f32 0.0, %v5571
        %v5573 = vpop.f32.mrb[0].mxu0
        %v5574 = vpop.f32.mrb[0].mxu0
        %v5575 = vadd.f32 0.0, %v5574
        %v5576 = vpop.f32.mrb[0].mxu0
        %5577 = vdwg.mxu0
        %v5578 = vadd.f32 %v4975, %v5452
        %v5579 = vadd.f32 %v4976, %v5455
        %v5580 = vadd.f32 %v4977, %v5460
        %v5581 = vadd.f32 %v4978, %v5463
        %v5582 = vadd.f32 %v4979, %v5468
        %v5583 = vadd.f32 %v4980, %v5471
        %v5584 = vadd.f32 %v4981, %v5476
        %v5585 = vadd.f32 %v4982, %v5479
        %v5586 = vadd.f32 %v4983, %v5484
        %v5587 = vadd.f32 %v4984, %v5487
        %v5588 = vadd.f32 %v4985, %v5492
        %v5589 = vadd.f32 %v4986, %v5495
        %v5590 = vadd.f32 %v4987, %v5500
        %v5591 = vadd.f32 %v4988, %v5503
        %v5592 = vadd.f32 %v4989, %v5508
        %v5593 = vadd.f32 %v4990, %v5511
        %v5594 = vadd.f32 %v4991, %v5516
        %v5595 = vadd.f32 %v4992, %v5519
        %v5596 = vadd.f32 %v4993, %v5524
        %v5597 = vadd.f32 %v4994, %v5527
        %v5598 = vadd.f32 %v4995, %v5532
        %v5599 = vadd.f32 %v4996, %v5535
        %v5600 = vadd.f32 %v4997, %v5540
        %v5601 = vadd.f32 %v4998, %v5543
        %v5602 = vadd.f32 %v4999, %v5548
        %v5603 = vadd.f32 %v5000, %v5551
        %v5604 = vadd.f32 %v5001, %v5556
        %v5605 = vadd.f32 %v5002, %v5559
        %v5606 = vadd.f32 %v5003, %v5564
        %v5607 = vadd.f32 %v5004, %v5567
        %v5608 = vadd.f32 %v5005, %v5572
        %v5609 = vadd.f32 %v5006, %v5575
        %v5610 = vld [vmem:[%s373 + $0x8] sm:$0xff]
        %v5611 = vld [vmem:[%s373 + $0x20] sm:$0xff]
        %v5612 = vld [vmem:[%s373 + $0x38] sm:$0xff]
        %v5613 = vld [vmem:[%s373 + $0x50] sm:$0xff]
        %v5614 = vld [vmem:[%s373 + $0x68] sm:$0xff]
        %v5615 = vld [vmem:[%s373 + $0x80] sm:$0xff]
        %v5616 = vld [vmem:[%s373 + $0x98] sm:$0xff]
        %v5617 = vld [vmem:[%s373 + $0xb0] sm:$0xff]
        %v5618 = vunpack.c.l.bf16 %v5610
        %v5619 = vunpack.c.h.bf16 %v5610
        %v5620 = vunpack.c.l.bf16 %v5611
        %v5621 = vunpack.c.h.bf16 %v5611
        %v5622 = vunpack.c.l.bf16 %v5612
        %v5623 = vunpack.c.h.bf16 %v5612
        %v5624 = vunpack.c.l.bf16 %v5613
        %v5625 = vunpack.c.h.bf16 %v5613
        %v5626 = vunpack.c.l.bf16 %v5614
        %v5627 = vunpack.c.h.bf16 %v5614
        %v5628 = vunpack.c.l.bf16 %v5615
        %v5629 = vunpack.c.h.bf16 %v5615
        %v5630 = vunpack.c.l.bf16 %v5616
        %v5631 = vunpack.c.h.bf16 %v5616
        %v5632 = vunpack.c.l.bf16 %v5617
        %v5633 = vunpack.c.h.bf16 %v5617
        %v5634 = vadd.f32 %v5618, %v5620
        %v5635 = vadd.f32 %v5634, %v5622
        %v5636 = vadd.f32 %v5635, %v5624
        %v5637 = vadd.f32 %v5636, %v5626
        %v5638 = vadd.f32 %v5637, %v5628
        %v5639 = vadd.f32 %v5638, %v5630
        %v5640 = vadd.f32 %v5639, %v5632
        %v5641 = vadd.f32 %v5619, %v5621
        %v5642 = vadd.f32 %v5641, %v5623
        %v5643 = vadd.f32 %v5642, %v5625
        %v5644 = vadd.f32 %v5643, %v5627
        %v5645 = vadd.f32 %v5644, %v5629
        %v5646 = vadd.f32 %v5645, %v5631
        %v5647 = vadd.f32 %v5646, %v5633
        %v5648 = vadd.f32 %v5640, %v5647
        %v5649 = vrot.slane %v5648, 4
        %v5650 = vadd.f32 %v5648, %v5649
        %v5651 = vrot.slane %v5650, 2
        %v5652 = vadd.f32 %v5650, %v5651
        %v5653 = vrot.slane %v5652, 1
        %v5654 = vadd.f32 %v5652, %v5653
        %v5655 = vadd.f32 %v5654, 0.0
        %s5656 = scalar_lea.vmem [#allocation2], 480
        %v5657 = vld [vmem:[%s5656 + $0x8] sm:$0xff]
        %v5658 = vld [vmem:[%s5656 + $0x20] sm:$0xff]
        %v5659 = vld [vmem:[%s5656 + $0x38] sm:$0xff]
        %v5660 = vld [vmem:[%s5656 + $0x50] sm:$0xff]
        %v5661 = vld [vmem:[%s5656 + $0x68] sm:$0xff]
        %v5662 = vld [vmem:[%s5656 + $0x80] sm:$0xff]
        %v5663 = vld [vmem:[%s5656 + $0x98] sm:$0xff]
        %v5664 = vld [vmem:[%s5656 + $0xb0] sm:$0xff]
        %v5665 = vunpack.c.l.bf16 %v5657
        %v5666 = vunpack.c.h.bf16 %v5657
        %v5667 = vunpack.c.l.bf16 %v5658
        %v5668 = vunpack.c.h.bf16 %v5658
        %v5669 = vunpack.c.l.bf16 %v5659
        %v5670 = vunpack.c.h.bf16 %v5659
        %v5671 = vunpack.c.l.bf16 %v5660
        %v5672 = vunpack.c.h.bf16 %v5660
        %v5673 = vunpack.c.l.bf16 %v5661
        %v5674 = vunpack.c.h.bf16 %v5661
        %v5675 = vunpack.c.l.bf16 %v5662
        %v5676 = vunpack.c.h.bf16 %v5662
        %v5677 = vunpack.c.l.bf16 %v5663
        %v5678 = vunpack.c.h.bf16 %v5663
        %v5679 = vunpack.c.l.bf16 %v5664
        %v5680 = vunpack.c.h.bf16 %v5664
        %v5681 = vadd.f32 %v5665, %v5667
        %v5682 = vadd.f32 %v5681, %v5669
        %v5683 = vadd.f32 %v5682, %v5671
        %v5684 = vadd.f32 %v5683, %v5673
        %v5685 = vadd.f32 %v5684, %v5675
        %v5686 = vadd.f32 %v5685, %v5677
        %v5687 = vadd.f32 %v5686, %v5679
        %v5688 = vadd.f32 %v5666, %v5668
        %v5689 = vadd.f32 %v5688, %v5670
        %v5690 = vadd.f32 %v5689, %v5672
        %v5691 = vadd.f32 %v5690, %v5674
        %v5692 = vadd.f32 %v5691, %v5676
        %v5693 = vadd.f32 %v5692, %v5678
        %v5694 = vadd.f32 %v5693, %v5680
        %v5695 = vadd.f32 %v5687, %v5694
        %v5696 = vrot.slane %v5695, 4
        %v5697 = vadd.f32 %v5695, %v5696
        %v5698 = vrot.slane %v5697, 2
        %v5699 = vadd.f32 %v5697, %v5698
        %v5700 = vrot.slane %v5699, 1
        %v5701 = vadd.f32 %v5699, %v5700
        %v5702 = vadd.f32 %v5655, %v5701
        %v5703 = vmul.f32 %v5702, 0.00390625
        %v5704 = vpack.c.bf16 %v5703, %v5703
        %v5705 = vld [vmem:[#allocation9] sm:$0xf]
        %v5706 = vld [vmem:[#allocation9 + $0x4] sm:$0xf]
        %v5707 = vld [vmem:[#allocation9 + $0x8] sm:$0xf]
        %v5708 = vld [vmem:[#allocation9 + $0xc] sm:$0xf]
        %v5709 = vld [vmem:[#allocation9 + $0x10] sm:$0xf]
        %v5710 = vld [vmem:[#allocation9 + $0x14] sm:$0xf]
        %v5711 = vld [vmem:[#allocation9 + $0x18] sm:$0xf]
        %v5712 = vld [vmem:[#allocation9 + $0x1c] sm:$0xf]
        %v5713 = vld [vmem:[#allocation9 + $0x20] sm:$0xf]
        %v5714 = vld [vmem:[#allocation9 + $0x24] sm:$0xf]
        %v5715 = vld [vmem:[#allocation9 + $0x28] sm:$0xf]
        %v5716 = vld [vmem:[#allocation9 + $0x2c] sm:$0xf]
        %v5717 = vld [vmem:[#allocation9 + $0x30] sm:$0xf]
        %v5718 = vld [vmem:[#allocation9 + $0x34] sm:$0xf]
        %v5719 = vld [vmem:[#allocation9 + $0x38] sm:$0xf]
        %v5720 = vld [vmem:[#allocation9 + $0x3c] sm:$0xf]
        %v5737 = vunpack.c.l.b16 %v5705
        %v5738 = vunpack.c.l.b16 %v5706
        %v5739 = vunpack.c.l.b16 %v5707
        %v5740 = vunpack.c.l.b16 %v5708
        %v5741 = vunpack.c.l.b16 %v5709
        %v5742 = vunpack.c.l.b16 %v5710
        %v5743 = vunpack.c.l.b16 %v5711
        %v5744 = vunpack.c.l.b16 %v5712
        %v5745 = vunpack.c.l.b16 %v5713
        %v5746 = vunpack.c.l.b16 %v5714
        %v5747 = vunpack.c.l.b16 %v5715
        %v5748 = vunpack.c.l.b16 %v5716
        %v5749 = vunpack.c.l.b16 %v5717
        %v5750 = vunpack.c.l.b16 %v5718
        %v5751 = vunpack.c.l.b16 %v5719
        %v5752 = vunpack.c.l.b16 %v5720
        %v5753 = vpack.c.b16 %v5738, %v5737
        %v5754 = vpack.c.b16 %v5740, %v5739
        %v5755 = vpack.c.b16 %v5742, %v5741
        %v5756 = vpack.c.b16 %v5744, %v5743
        %v5757 = vpack.c.b16 %v5746, %v5745
        %v5758 = vpack.c.b16 %v5748, %v5747
        %v5759 = vpack.c.b16 %v5750, %v5749
        %v5760 = vpack.c.b16 %v5752, %v5751
        %5769 = vmatprep.subr.bf16.mxu0 0
        %5770 = vmatpush1.bf16.msra.mxu0 %v5753
        %5771 = vmatprep.subr.bf16.mxu0 0
        %5772 = vmatpush1.bf16.msra.mxu0 %v5754
        %5773 = vmatprep.subr.bf16.mxu0 0
        %5774 = vmatpush1.bf16.msra.mxu0 %v5755
        %5775 = vmatprep.subr.bf16.mxu0 0
        %5776 = vmatpush1.bf16.msra.mxu0 %v5756
        %5777 = vmatprep.subr.bf16.mxu0 0
        %5778 = vmatpush1.bf16.msra.mxu0 %v5757
        %5779 = vmatprep.subr.bf16.mxu0 0
        %5780 = vmatpush1.bf16.msra.mxu0 %v5758
        %5781 = vmatprep.subr.bf16.mxu0 0
        %5782 = vmatpush1.bf16.msra.mxu0 %v5759
        %5783 = vmatprep.subr.bf16.mxu0 0
        %5784 = vmatpush1.bf16.msra.mxu0 %v5760
        %5785 = vmatprep.subr.bf16.mxu0 0
        %5786 = vmatpush1.bf16.msra.mxu0 0
        %5787 = vmatprep.subr.bf16.mxu0 0
        %5788 = vmatpush1.bf16.msra.mxu0 0
        %5789 = vmatprep.subr.bf16.mxu0 0
        %5790 = vmatpush1.bf16.msra.mxu0 0
        %5791 = vmatprep.subr.bf16.mxu0 0
        %5792 = vmatpush1.bf16.msra.mxu0 0
        %5793 = vmatprep.subr.bf16.mxu0 0
        %5794 = vmatpush1.bf16.msra.mxu0 0
        %5795 = vmatprep.subr.bf16.mxu0 0
        %5796 = vmatpush1.bf16.msra.mxu0 0
        %5797 = vmatprep.subr.bf16.mxu0 0
        %5798 = vmatpush1.bf16.msra.mxu0 0
        %5799 = vmatprep.subr.bf16.mxu0 0
        %5800 = vmatpush1.bf16.msra.mxu0 0
        %5801 = vmatprep.mubr.bf16.mxu0 0
        %5802 = vmatmul.mubr.bf16.gmra.mrb[0].mxu0 %v5704
        %v5803 = vpop.f32.mrb[0].mxu0
        %v5804 = vadd.f32 0.0, %v5803
        %v5805 = vpop.f32.mrb[0].mxu0
        %v5806 = vpop.f32.mrb[0].mxu0
        %v5807 = vpop.f32.mrb[0].mxu0
        %5808 = vdwg.mxu0
        %v5810 = vrot.slane %v406, 4
        %v5812 = vmul.f32 %v5804, %v5810
        %v5814 = vrot.slane %v407, 4
        %v5816 = vadd.f32 %v5812, %v5814
        %v5817 = vmax.f32 %v5816, 0.0
        %v5818 = vpack.c.bf16 %v5817, %v5817
        %v5819 = vld [vmem:[#allocation10 + $0x100] sm:$0xf]
        %v5820 = vld [vmem:[#allocation10 + $0x104] sm:$0xf]
        %v5821 = vld [vmem:[#allocation10 + $0x108] sm:$0xf]
        %v5822 = vld [vmem:[#allocation10 + $0x10c] sm:$0xf]
        %v5823 = vld [vmem:[#allocation10 + $0x110] sm:$0xf]
        %v5824 = vld [vmem:[#allocation10 + $0x114] sm:$0xf]
        %v5825 = vld [vmem:[#allocation10 + $0x118] sm:$0xf]
        %v5826 = vld [vmem:[#allocation10 + $0x11c] sm:$0xf]
        %v5827 = vld [vmem:[#allocation10 + $0x120] sm:$0xf]
        %v5828 = vld [vmem:[#allocation10 + $0x124] sm:$0xf]
        %v5829 = vld [vmem:[#allocation10 + $0x128] sm:$0xf]
        %v5830 = vld [vmem:[#allocation10 + $0x12c] sm:$0xf]
        %v5831 = vld [vmem:[#allocation10 + $0x130] sm:$0xf]
        %v5832 = vld [vmem:[#allocation10 + $0x134] sm:$0xf]
        %v5833 = vld [vmem:[#allocation10 + $0x138] sm:$0xf]
        %v5834 = vld [vmem:[#allocation10 + $0x13c] sm:$0xf]
        %v5851 = vunpack.c.l.b16 %v5819
        %v5852 = vunpack.c.l.b16 %v5820
        %v5853 = vunpack.c.l.b16 %v5821
        %v5854 = vunpack.c.l.b16 %v5822
        %v5855 = vunpack.c.l.b16 %v5823
        %v5856 = vunpack.c.l.b16 %v5824
        %v5857 = vunpack.c.l.b16 %v5825
        %v5858 = vunpack.c.l.b16 %v5826
        %v5859 = vunpack.c.l.b16 %v5827
        %v5860 = vunpack.c.l.b16 %v5828
        %v5861 = vunpack.c.l.b16 %v5829
        %v5862 = vunpack.c.l.b16 %v5830
        %v5863 = vunpack.c.l.b16 %v5831
        %v5864 = vunpack.c.l.b16 %v5832
        %v5865 = vunpack.c.l.b16 %v5833
        %v5866 = vunpack.c.l.b16 %v5834
        %v5867 = vpack.c.b16 %v5852, %v5851
        %v5868 = vpack.c.b16 %v5854, %v5853
        %v5869 = vpack.c.b16 %v5856, %v5855
        %v5870 = vpack.c.b16 %v5858, %v5857
        %v5871 = vpack.c.b16 %v5860, %v5859
        %v5872 = vpack.c.b16 %v5862, %v5861
        %v5873 = vpack.c.b16 %v5864, %v5863
        %v5874 = vpack.c.b16 %v5866, %v5865
        %5883 = vmatprep.subr.bf16.mxu0 0
        %5884 = vmatpush1.bf16.msra.mxu0 %v5867
        %5885 = vmatprep.subr.bf16.mxu0 0
        %5886 = vmatpush1.bf16.msra.mxu0 %v5868
        %5887 = vmatprep.subr.bf16.mxu0 0
        %5888 = vmatpush1.bf16.msra.mxu0 %v5869
        %5889 = vmatprep.subr.bf16.mxu0 0
        %5890 = vmatpush1.bf16.msra.mxu0 %v5870
        %5891 = vmatprep.subr.bf16.mxu0 0
        %5892 = vmatpush1.bf16.msra.mxu0 %v5871
        %5893 = vmatprep.subr.bf16.mxu0 0
        %5894 = vmatpush1.bf16.msra.mxu0 %v5872
        %5895 = vmatprep.subr.bf16.mxu0 0
        %5896 = vmatpush1.bf16.msra.mxu0 %v5873
        %5897 = vmatprep.subr.bf16.mxu0 0
        %5898 = vmatpush1.bf16.msra.mxu0 %v5874
        %5899 = vmatprep.subr.bf16.mxu0 0
        %5900 = vmatpush1.bf16.msra.mxu0 0
        %5901 = vmatprep.subr.bf16.mxu0 0
        %5902 = vmatpush1.bf16.msra.mxu0 0
        %5903 = vmatprep.subr.bf16.mxu0 0
        %5904 = vmatpush1.bf16.msra.mxu0 0
        %5905 = vmatprep.subr.bf16.mxu0 0
        %5906 = vmatpush1.bf16.msra.mxu0 0
        %5907 = vmatprep.subr.bf16.mxu0 0
        %5908 = vmatpush1.bf16.msra.mxu0 0
        %5909 = vmatprep.subr.bf16.mxu0 0
        %5910 = vmatpush1.bf16.msra.mxu0 0
        %5911 = vmatprep.subr.bf16.mxu0 0
        %5912 = vmatpush1.bf16.msra.mxu0 0
        %5913 = vmatprep.subr.bf16.mxu0 0
        %5914 = vmatpush1.bf16.msra.mxu0 0
        %5915 = vmatprep.mubr.bf16.mxu0 0
        %5916 = vmatmul.mubr.bf16.gmra.mrb[0].mxu0 %v5818
        %v5917 = vpop.f32.mrb[0].mxu0
        %v5918 = vadd.f32 0.0, %v5917
        %v5919 = vpop.f32.mrb[0].mxu0
        %v5920 = vpop.f32.mrb[0].mxu0
        %v5921 = vpop.f32.mrb[0].mxu0
        %5922 = vdwg.mxu0
        %v5923 = vlaneseq
        %v5924 = vshrl.u32 %v5923, 7
        %v5925 = vsub.s32 0, %v5924
        %v5926 = vrot.slane %v5918, %v5925
        %v5927 = vadd.f32 %v5578, %v5926
        %v5928 = vadd.f32 %v5579, %v5926
        %v5929 = vadd.f32 %v5580, %v5926
        %v5930 = vadd.f32 %v5581, %v5926
        %v5931 = vadd.f32 %v5582, %v5926
        %v5932 = vadd.f32 %v5583, %v5926
        %v5933 = vadd.f32 %v5584, %v5926
        %v5934 = vadd.f32 %v5585, %v5926
        %v5935 = vadd.f32 %v5586, %v5926
        %v5936 = vadd.f32 %v5587, %v5926
        %v5937 = vadd.f32 %v5588, %v5926
        %v5938 = vadd.f32 %v5589, %v5926
        %v5939 = vadd.f32 %v5590, %v5926
        %v5940 = vadd.f32 %v5591, %v5926
        %v5941 = vadd.f32 %v5592, %v5926
        %v5942 = vadd.f32 %v5593, %v5926
        %v5943 = vadd.f32 %v5594, %v5926
        %v5944 = vadd.f32 %v5595, %v5926
        %v5945 = vadd.f32 %v5596, %v5926
        %v5946 = vadd.f32 %v5597, %v5926
        %v5947 = vadd.f32 %v5598, %v5926
        %v5948 = vadd.f32 %v5599, %v5926
        %v5949 = vadd.f32 %v5600, %v5926
        %v5950 = vadd.f32 %v5601, %v5926
        %v5951 = vadd.f32 %v5602, %v5926
        %v5952 = vadd.f32 %v5603, %v5926
        %v5953 = vadd.f32 %v5604, %v5926
        %v5954 = vadd.f32 %v5605, %v5926
        %v5955 = vadd.f32 %v5606, %v5926
        %v5956 = vadd.f32 %v5607, %v5926
        %v5957 = vadd.f32 %v5608, %v5926
        %v5958 = vadd.f32 %v5609, %v5926
        %v5959 = vlaneseq
        %v5960 = vshrl.u32 %v5959, 7
        %v5961 = vsub.s32 5, %v5960
        %v5962 = vrot.slane %v406, %v5961
        %v5963 = vmul.f32 %v5927, %v5962
        %v5964 = vmul.f32 %v5928, %v5962
        %v5965 = vmul.f32 %v5929, %v5962
        %v5966 = vmul.f32 %v5930, %v5962
        %v5967 = vmul.f32 %v5931, %v5962
        %v5968 = vmul.f32 %v5932, %v5962
        %v5969 = vmul.f32 %v5933, %v5962
        %v5970 = vmul.f32 %v5934, %v5962
        %v5971 = vmul.f32 %v5935, %v5962
        %v5972 = vmul.f32 %v5936, %v5962
        %v5973 = vmul.f32 %v5937, %v5962
        %v5974 = vmul.f32 %v5938, %v5962
        %v5975 = vmul.f32 %v5939, %v5962
        %v5976 = vmul.f32 %v5940, %v5962
        %v5977 = vmul.f32 %v5941, %v5962
        %v5978 = vmul.f32 %v5942, %v5962
        %v5979 = vmul.f32 %v5943, %v5962
        %v5980 = vmul.f32 %v5944, %v5962
        %v5981 = vmul.f32 %v5945, %v5962
        %v5982 = vmul.f32 %v5946, %v5962
        %v5983 = vmul.f32 %v5947, %v5962
        %v5984 = vmul.f32 %v5948, %v5962
        %v5985 = vmul.f32 %v5949, %v5962
        %v5986 = vmul.f32 %v5950, %v5962
        %v5987 = vmul.f32 %v5951, %v5962
        %v5988 = vmul.f32 %v5952, %v5962
        %v5989 = vmul.f32 %v5953, %v5962
        %v5990 = vmul.f32 %v5954, %v5962
        %v5991 = vmul.f32 %v5955, %v5962
        %v5992 = vmul.f32 %v5956, %v5962
        %v5993 = vmul.f32 %v5957, %v5962
        %v5994 = vmul.f32 %v5958, %v5962
        %v5995 = vlaneseq
        %v5996 = vshrl.u32 %v5995, 7
        %v5997 = vsub.s32 5, %v5996
        %v5998 = vrot.slane %v407, %v5997
        %v5999 = vadd.f32 %v5963, %v5998
        %v6000 = vadd.f32 %v5964, %v5998
        %v6001 = vadd.f32 %v5965, %v5998
        %v6002 = vadd.f32 %v5966, %v5998
        %v6003 = vadd.f32 %v5967, %v5998
        %v6004 = vadd.f32 %v5968, %v5998
        %v6005 = vadd.f32 %v5969, %v5998
        %v6006 = vadd.f32 %v5970, %v5998
        %v6007 = vadd.f32 %v5971, %v5998
        %v6008 = vadd.f32 %v5972, %v5998
        %v6009 = vadd.f32 %v5973, %v5998
        %v6010 = vadd.f32 %v5974, %v5998
        %v6011 = vadd.f32 %v5975, %v5998
        %v6012 = vadd.f32 %v5976, %v5998
        %v6013 = vadd.f32 %v5977, %v5998
        %v6014 = vadd.f32 %v5978, %v5998
        %v6015 = vadd.f32 %v5979, %v5998
        %v6016 = vadd.f32 %v5980, %v5998
        %v6017 = vadd.f32 %v5981, %v5998
        %v6018 = vadd.f32 %v5982, %v5998
        %v6019 = vadd.f32 %v5983, %v5998
        %v6020 = vadd.f32 %v5984, %v5998
        %v6021 = vadd.f32 %v5985, %v5998
        %v6022 = vadd.f32 %v5986, %v5998
        %v6023 = vadd.f32 %v5987, %v5998
        %v6024 = vadd.f32 %v5988, %v5998
        %v6025 = vadd.f32 %v5989, %v5998
        %v6026 = vadd.f32 %v5990, %v5998
        %v6027 = vadd.f32 %v5991, %v5998
        %v6028 = vadd.f32 %v5992, %v5998
        %v6029 = vadd.f32 %v5993, %v5998
        %v6030 = vadd.f32 %v5994, %v5998
        %v6031 = vmax.f32 %v5999, 0.0
        %v6032 = vmax.f32 %v6000, 0.0
        %v6033 = vmax.f32 %v6001, 0.0
        %v6034 = vmax.f32 %v6002, 0.0
        %v6035 = vmax.f32 %v6003, 0.0
        %v6036 = vmax.f32 %v6004, 0.0
        %v6037 = vmax.f32 %v6005, 0.0
        %v6038 = vmax.f32 %v6006, 0.0
        %v6039 = vmax.f32 %v6007, 0.0
        %v6040 = vmax.f32 %v6008, 0.0
        %v6041 = vmax.f32 %v6009, 0.0
        %v6042 = vmax.f32 %v6010, 0.0
        %v6043 = vmax.f32 %v6011, 0.0
        %v6044 = vmax.f32 %v6012, 0.0
        %v6045 = vmax.f32 %v6013, 0.0
        %v6046 = vmax.f32 %v6014, 0.0
        %v6047 = vmax.f32 %v6015, 0.0
        %v6048 = vmax.f32 %v6016, 0.0
        %v6049 = vmax.f32 %v6017, 0.0
        %v6050 = vmax.f32 %v6018, 0.0
        %v6051 = vmax.f32 %v6019, 0.0
        %v6052 = vmax.f32 %v6020, 0.0
        %v6053 = vmax.f32 %v6021, 0.0
        %v6054 = vmax.f32 %v6022, 0.0
        %v6055 = vmax.f32 %v6023, 0.0
        %v6056 = vmax.f32 %v6024, 0.0
        %v6057 = vmax.f32 %v6025, 0.0
        %v6058 = vmax.f32 %v6026, 0.0
        %v6059 = vmax.f32 %v6027, 0.0
        %v6060 = vmax.f32 %v6028, 0.0
        %v6061 = vmax.f32 %v6029, 0.0
        %v6062 = vmax.f32 %v6030, 0.0
        %v6063 = vpack.c.bf16 %v6032, %v6031
        %v6064 = vpack.c.bf16 %v6034, %v6033
        %v6065 = vpack.c.bf16 %v6036, %v6035
        %v6066 = vpack.c.bf16 %v6038, %v6037
        %v6067 = vpack.c.bf16 %v6040, %v6039
        %v6068 = vpack.c.bf16 %v6042, %v6041
        %v6069 = vpack.c.bf16 %v6044, %v6043
        %v6070 = vpack.c.bf16 %v6046, %v6045
        %v6071 = vpack.c.bf16 %v6048, %v6047
        %v6072 = vpack.c.bf16 %v6050, %v6049
        %v6073 = vpack.c.bf16 %v6052, %v6051
        %v6074 = vpack.c.bf16 %v6054, %v6053
        %v6075 = vpack.c.bf16 %v6056, %v6055
        %v6076 = vpack.c.bf16 %v6058, %v6057
        %v6077 = vpack.c.bf16 %v6060, %v6059
        %v6078 = vpack.c.bf16 %v6062, %v6061
        %v6095 = vunpack.c.l.b16 %v6063
        %v6096 = vunpack.c.h.b16 %v6063
        %v6097 = vunpack.c.l.b16 %v6064
        %v6098 = vunpack.c.h.b16 %v6064
        %v6099 = vunpack.c.l.b16 %v6065
        %v6100 = vunpack.c.h.b16 %v6065
        %v6101 = vunpack.c.l.b16 %v6066
        %v6102 = vunpack.c.h.b16 %v6066
        %v6103 = vunpack.c.l.b16 %v6067
        %v6104 = vunpack.c.h.b16 %v6067
        %v6105 = vunpack.c.l.b16 %v6068
        %v6106 = vunpack.c.h.b16 %v6068
        %v6107 = vunpack.c.l.b16 %v6069
        %v6108 = vunpack.c.h.b16 %v6069
        %v6109 = vunpack.c.l.b16 %v6070
        %v6110 = vunpack.c.h.b16 %v6070
        %v6111 = vunpack.c.l.b16 %v6071
        %v6112 = vunpack.c.h.b16 %v6071
        %v6113 = vunpack.c.l.b16 %v6072
        %v6114 = vunpack.c.h.b16 %v6072
        %v6115 = vunpack.c.l.b16 %v6073
        %v6116 = vunpack.c.h.b16 %v6073
        %v6117 = vunpack.c.l.b16 %v6074
        %v6118 = vunpack.c.h.b16 %v6074
        %v6119 = vunpack.c.l.b16 %v6075
        %v6120 = vunpack.c.h.b16 %v6075
        %v6121 = vunpack.c.l.b16 %v6076
        %v6122 = vunpack.c.h.b16 %v6076
        %v6123 = vunpack.c.l.b16 %v6077
        %v6124 = vunpack.c.h.b16 %v6077
        %v6125 = vunpack.c.l.b16 %v6078
        %v6126 = vunpack.c.h.b16 %v6078
        %v6127 = vpack.c.b16 %v6095, %v6095
        %v6128 = vpack.c.b16 %v6096, %v6096
        %v6129 = vpack.c.b16 %v6097, %v6097
        %v6130 = vpack.c.b16 %v6098, %v6098
        %v6131 = vpack.c.b16 %v6099, %v6099
        %v6132 = vpack.c.b16 %v6100, %v6100
        %v6133 = vpack.c.b16 %v6101, %v6101
        %v6134 = vpack.c.b16 %v6102, %v6102
        %v6135 = vpack.c.b16 %v6103, %v6103
        %v6136 = vpack.c.b16 %v6104, %v6104
        %v6137 = vpack.c.b16 %v6105, %v6105
        %v6138 = vpack.c.b16 %v6106, %v6106
        %v6139 = vpack.c.b16 %v6107, %v6107
        %v6140 = vpack.c.b16 %v6108, %v6108
        %v6141 = vpack.c.b16 %v6109, %v6109
        %v6142 = vpack.c.b16 %v6110, %v6110
        %v6143 = vpack.c.b16 %v6111, %v6111
        %v6144 = vpack.c.b16 %v6112, %v6112
        %v6145 = vpack.c.b16 %v6113, %v6113
        %v6146 = vpack.c.b16 %v6114, %v6114
        %v6147 = vpack.c.b16 %v6115, %v6115
        %v6148 = vpack.c.b16 %v6116, %v6116
        %v6149 = vpack.c.b16 %v6117, %v6117
        %v6150 = vpack.c.b16 %v6118, %v6118
        %v6151 = vpack.c.b16 %v6119, %v6119
        %v6152 = vpack.c.b16 %v6120, %v6120
        %v6153 = vpack.c.b16 %v6121, %v6121
        %v6154 = vpack.c.b16 %v6122, %v6122
        %v6155 = vpack.c.b16 %v6123, %v6123
        %v6156 = vpack.c.b16 %v6124, %v6124
        %v6157 = vpack.c.b16 %v6125, %v6125
        %v6158 = vpack.c.b16 %v6126, %v6126
        %6191 = vst [vmem:[%s289] sm:$0xf] %v6127
        %6192 = vst [vmem:[%s289 + $0x4] sm:$0xf] %v6128
        %6193 = vst [vmem:[%s289 + $0x8] sm:$0xf] %v6129
        %6194 = vst [vmem:[%s289 + $0xc] sm:$0xf] %v6130
        %6195 = vst [vmem:[%s289 + $0x10] sm:$0xf] %v6131
        %6196 = vst [vmem:[%s289 + $0x14] sm:$0xf] %v6132
        %6197 = vst [vmem:[%s289 + $0x18] sm:$0xf] %v6133
        %6198 = vst [vmem:[%s289 + $0x1c] sm:$0xf] %v6134
        %6199 = vst [vmem:[%s289 + $0x20] sm:$0xf] %v6135
        %6200 = vst [vmem:[%s289 + $0x24] sm:$0xf] %v6136
        %6201 = vst [vmem:[%s289 + $0x28] sm:$0xf] %v6137
        %6202 = vst [vmem:[%s289 + $0x2c] sm:$0xf] %v6138
        %6203 = vst [vmem:[%s289 + $0x30] sm:$0xf] %v6139
        %6204 = vst [vmem:[%s289 + $0x34] sm:$0xf] %v6140
        %6205 = vst [vmem:[%s289 + $0x38] sm:$0xf] %v6141
        %6206 = vst [vmem:[%s289 + $0x3c] sm:$0xf] %v6142
        %6207 = vst [vmem:[%s289 + $0x40] sm:$0xf] %v6143
        %6208 = vst [vmem:[%s289 + $0x44] sm:$0xf] %v6144
        %6209 = vst [vmem:[%s289 + $0x48] sm:$0xf] %v6145
        %6210 = vst [vmem:[%s289 + $0x4c] sm:$0xf] %v6146
        %6211 = vst [vmem:[%s289 + $0x50] sm:$0xf] %v6147
        %6212 = vst [vmem:[%s289 + $0x54] sm:$0xf] %v6148
        %6213 = vst [vmem:[%s289 + $0x58] sm:$0xf] %v6149
        %6214 = vst [vmem:[%s289 + $0x5c] sm:$0xf] %v6150
        %6215 = vst [vmem:[%s289 + $0x60] sm:$0xf] %v6151
        %6216 = vst [vmem:[%s289 + $0x64] sm:$0xf] %v6152
        %6217 = vst [vmem:[%s289 + $0x68] sm:$0xf] %v6153
        %6218 = vst [vmem:[%s289 + $0x6c] sm:$0xf] %v6154
        %6219 = vst [vmem:[%s289 + $0x70] sm:$0xf] %v6155
        %6220 = vst [vmem:[%s289 + $0x74] sm:$0xf] %v6156
        %6221 = vst [vmem:[%s289 + $0x78] sm:$0xf] %v6157
        %6222 = vst [vmem:[%s289 + $0x7c] sm:$0xf] %v6158
        %s6223 = sand.u32 %s158, 1
        %s6224 = scalar_lea.sflag [#allocation6], %s6223
        %s6225 = sand.u32 %s158, 1
        %s6226 = smul.addr %s6225, 128
        %s6227 = scalar_lea.vmem [#allocation12], %s6226
        // Predicated region
        $region61: #{tpu_custom_call.1} parent=43 // pred_check
          %p6228 = pneg %p168
        $region62: #{tpu_custom_call.1} parent=43 // pred_check_branch
          %6230 = sbr.rel (%p6228) target = $region64
        $region63: #{tpu_custom_call.1} parent=43 // pred_region
          %s6232 = ssub.s32 2048, 2048
          %6233 = vsyncadd %s6224, %s6232
          %s6234 = smul.addr %s24, 32
          %s6235 = smul.addr %s6234, 64
          %s6236 = scalar_lea.hbm %s7, %s6235
          %s6237 = sshll.u32 %s6227, 4
          %s6238 = int_to_ptr.vmem [resolvable:$true] %s6237
          %6243 = dma.vmem_to_hbm [thread:$0]  %s6238, 2048, %s6236, %s6224, 64, 64, 4
        $region64: #{tpu_custom_call.1} parent=43 // pred_fallthru
          _
      $region44: #{tpu_custom_call.1} parent=5 // pred_fallthru
        _
      %p6244 = scmp.le.s32.totalorder 2, %s19
      // Predicated region
      $region65: #{tpu_custom_call.1} parent=5 // pred_check
        %p6245 = pneg %p6244
      $region66: #{tpu_custom_call.1} parent=5 // pred_check_branch
        %6247 = sbr.rel (%p6245) target = $region68
      $region67: #{tpu_custom_call.1} parent=5 // pred_region
        %s6248 = ssub.s32 %s19, 2
        // Predicated region
        $region69: #{tpu_custom_call.1} parent=67 // pred_check
          %p6249 = pneg %p174
        $region70: #{tpu_custom_call.1} parent=67 // pred_check_branch
          %6251 = sbr.rel (%p6249) target = $region72
        $region71: #{tpu_custom_call.1} parent=67 // pred_region
          %s6252 = sand.u32 %s159, 1
          %s6253 = scalar_lea.sflag [#allocation6], %s6252
          %s6254 = sand.u32 %s159, 1
          %s6255 = smul.addr %s6254, 128
          %s6256 = scalar_lea.vmem [#allocation12], %s6255
          %6257 = dma.done %s6253, 2048
        $region72: #{tpu_custom_call.1} parent=67 // pred_fallthru
          _
      $region68: #{tpu_custom_call.1} parent=5 // pred_fallthru
        _
    $region6: #{tpu_custom_call.1} parent=1 // loop_footer
      %s23 = sadd.s32 1, %s19
    $region7: #{tpu_custom_call.1} parent=1 // loop_footer_branch
      %18 = sbr.rel target = $region3
    $region8: #{tpu_custom_call.1} parent=1 // loop_exit
      _
    %6258 = vsyncpa [#allocation5], 1
    %s6259 = scalar_lea.sflag [#allocation5], 1
    %6260 = vsyncpa %s6259, 1
    %6261 = vsyncpa [#allocation8], 1
    %6262 = vsyncpa [#allocation11], 1
    %6263 = vsyncpa [#allocation6], 1
    %s6264 = scalar_lea.sflag [#allocation6], 1
    %6265 = vsyncpa %s6264, 1
  %6266 = vsyncmov [#allocation3]
  %s6267 = vpop.sfrf %6266
  %p6268 = scmp.eq.s32.totalorder %s6267, 0
  %p6269 = pneg %p6268
  %6271 = shalt.err (%p6269)

</llo_original>
